<compile_context>
chip_gen: v6e
topology: v6e:2x2x1
jax: 0.10.0
libtpu: 0.0.40
codegen_flags: <defaults>
</compile_context>

<pallas_src>
import jax
import jax.numpy as jnp
import numpy as np
from jax import lax
from jax.experimental import pallas as pl
from jax.experimental.pallas import tpu as pltpu

EPS = 1e-5


def decoder_block_pallas(x_nchw, p):
    N, Cin, H, W = x_nchw.shape
    C1 = p["w1"].shape[1]
    Cout = p["w3"].shape[1]
    R = N * H
    f32 = jnp.float32

    # ---------------- wrapper-side layout plumbing (no compute hoisting) ----------------
    x_pk = jnp.transpose(x_nchw, (0, 2, 3, 1)).astype(f32).reshape(R, W * Cin)

    eye_w = jnp.eye(W, dtype=f32)
    sub_w = jnp.eye(W, k=-1, dtype=f32)            # [w_in, w_out] = 1  iff  w_in == w_out + 1

    w1_big = jnp.kron(eye_w, p["w1"].astype(f32))                      # (W*Cin, W*C1)

    wd_k = jnp.transpose(p["wd"], (2, 3, 0, 1)).astype(f32)            # (kh, kw, ci, co)
    zc = jnp.zeros((C1, C1), f32)
    # per-tap contribution to the 4 parity planes, columns = [ee | eo | oe | oo]
    t_a = jnp.concatenate([wd_k[1, 1], wd_k[1, 2], wd_k[2, 1], wd_k[2, 2]], axis=1)
    t_b = jnp.concatenate([zc,         wd_k[1, 0], zc,         wd_k[2, 0]], axis=1)
    t_c = jnp.concatenate([zc,         zc,         wd_k[0, 1], wd_k[0, 2]], axis=1)
    t_d = jnp.concatenate([zc,         zc,         zc,         wd_k[0, 0]], axis=1)
    wd_big = jnp.concatenate(
        [jnp.kron(eye_w, t_a) + jnp.kron(sub_w, t_b),    # taps on y[h, w]   and y[h,   w+1]
         jnp.kron(eye_w, t_c) + jnp.kron(sub_w, t_d)],   # taps on y[h+1, w] and y[h+1, w+1]
        axis=0)                                                        # (2*W*C1, W*4*C1)

    w3_big = jnp.kron(jnp.eye(4 * W, dtype=f32), p["w3"].astype(f32))  # (4W*C1, 4W*Cout)

    # channel-selector matrices kb[c, g*C + c'] = (c == c'): used for the per-channel
    # statistic fold (rhs-transposed dot) and the scale/shift lane broadcast.
    kb1 = jnp.tile(jnp.eye(C1, dtype=f32), (1, W))                     # (C1,  W*C1)
    kb2 = jnp.tile(jnp.eye(C1, dtype=f32), (1, 4 * W))                 # (C1,  4W*C1)
    kb3 = jnp.tile(jnp.eye(Cout, dtype=f32), (1, 4 * W))               # (Cout, 4W*Cout)

    row = lambda v: v.reshape(1, -1).astype(f32)
    args = (x_pk, w1_big, row(p["g1"]), row(p["be1"]), kb1,
            wd_big, row(p["g2"]), row(p["be2"]), kb2,
            w3_big, row(p["g3"]), row(p["be3"]), kb3)

    count1 = float(N * H * W)          # BN1 pools over N x H x W
    count2 = float(N * 4 * H * W)      # BN2 / BN3 pool over N x 2H x 2W

    nt_dims = (((1,), (1,)), ((), ()))  # contract lhs dim 1 with rhs dim 1 (rhs transposed)

    def bn_relu(y, gamma, beta, kb, count):
        """Single-pass folded training-mode BatchNorm fused with ReLU.

        y: (R, G*C) packed rows; gamma/beta: (1, C); kb: (C, G*C) channel selector.
        """
        row_s = lax.dot_general(y, kb, nt_dims, preferred_element_type=f32)       # (R, C)
        row_sq = lax.dot_general(y * y, kb, nt_dims, preferred_element_type=f32)  # (R, C)
        inv_n = 1.0 / count
        mean = jnp.sum(row_s, axis=0, keepdims=True) * inv_n                       # (1, C)
        var = jnp.maximum(jnp.sum(row_sq, axis=0, keepdims=True) * inv_n - mean * mean, 0.0)
        scale = gamma * lax.rsqrt(var + EPS)
        shift = beta - mean * scale
        scale_t = jnp.dot(scale, kb, preferred_element_type=f32)                   # (1, G*C)
        shift_t = jnp.dot(shift, kb, preferred_element_type=f32)
        return jnp.maximum(y * scale_t + shift_t, 0.0)

    def kernel(x_ref, w1_ref, g1_ref, be1_ref, kb1_ref,
               wd_ref, g2_ref, be2_ref, kb2_ref,
               w3_ref, g3_ref, be3_ref, kb3_ref, o_ref):
        # conv1 (1x1) + BN1 + ReLU.  (Conv bias omitted: cancelled by the BN batch mean.)
        y = jnp.dot(x_ref[...], w1_ref[...], preferred_element_type=f32)       # (R, W*C1)
        y = bn_relu(y, g1_ref[...], be1_ref[...], kb1_ref[...], count1)

        # h+1 shifted copy of y (rows move up by one image row; bottom edge -> 0).
        lanes = y.shape[1]
        y_dn = jnp.concatenate([y[1:, :], jnp.zeros((1, lanes), f32)], axis=0)
        r_idx = lax.broadcasted_iota(jnp.int32, (R, 1), 0)
        y_dn = jnp.where((r_idx % H) != (H - 1), y_dn, 0.0)

        # ConvTranspose2d(3, stride=2, pad=1, out_pad=1): all 8 parity-tap matmuls fused
        # into one block matmul; the w+1 taps live on the weight's sub-diagonal blocks.
        x2 = jnp.concatenate([y, y_dn], axis=1)                                 # (R, 2*W*C1)
        z = jnp.dot(x2, wd_ref[...], preferred_element_type=f32)                # (R, W*4*C1)
        z = bn_relu(z, g2_ref[...], be2_ref[...], kb2_ref[...], count2)

        # conv3 (1x1) + BN3 + ReLU; fully lane-dense (R, W*4*Cout) store.
        y3 = jnp.dot(z, w3_ref[...], preferred_element_type=f32)                # (R, W*4*Cout)
        o_ref[...] = bn_relu(y3, g3_ref[...], be3_ref[...], kb3_ref[...], count2)

    out_shape = jax.ShapeDtypeStruct((R, 4 * W * Cout), f32)

    mm_flops = 2 * R * ((W * Cin) * (W * C1)
                        + (2 * W * C1) * (4 * W * C1)
                        + (4 * W * C1) * (4 * W * Cout))
    bn_flops = 4 * R * ((W * C1) * C1 + (4 * W * C1) * C1 + (4 * W * Cout) * Cout)
    bytes_accessed = sum(int(a.size) * 4 for a in args) + int(np.prod(out_shape.shape)) * 4

    out2d = pl.pallas_call(
        kernel,
        grid=(1,),
        in_specs=[pl.BlockSpec(a.shape, lambda i: (0, 0)) for a in args],
        out_specs=pl.BlockSpec(out_shape.shape, lambda i: (0, 0)),
        out_shape=out_shape,
        compiler_params=pltpu.CompilerParams(
            dimension_semantics=("arbitrary",),
            vmem_limit_bytes=32 * 1024 * 1024),
        cost_estimate=pl.CostEstimate(flops=mm_flops + bn_flops,
                                      transcendentals=2 * C1 + Cout,
                                      bytes_accessed=bytes_accessed),
    )(*args)
    # TODO(synk): for v7x / larger production shapes, split R across the 2 TensorCores
    # (core-parallel grid axis + cross-core BN stat reduction) and tile R with an
    # accumulating stats pass instead of the whole-batch grid=(1,) design used here.

    # glue: unpack lanes (w, row-parity, col-parity, cout) and interleave the 2x2 parities
    o = out2d.reshape(N, H, W, 2, 2, Cout)
    o = jnp.transpose(o, (0, 1, 3, 2, 4, 5)).reshape(N, 2 * H, 2 * W, Cout)
    return jnp.transpose(o, (0, 3, 1, 2))                                      # NHWC -> NCHW


def decoder_block_ref(x_nchw, p):
    """Pure-JAX reference with identical semantics (biases included) for self-check."""
    x = jnp.transpose(x_nchw, (0, 2, 3, 1)).astype(jnp.float32)

    def bn(y, g, b):
        m = jnp.mean(y, axis=(0, 1, 2), keepdims=True)
        v = jnp.mean((y - m) ** 2, axis=(0, 1, 2), keepdims=True)
        return (y - m) * lax.rsqrt(v + EPS) * g + b

    y = jnp.einsum("nhwc,cd->nhwd", x, p["w1"]) + p["b1"]
    y = jax.nn.relu(bn(y, p["g1"], p["be1"]))

    # ConvTranspose2d == conv of lhs-dilated input with spatially-flipped kernel
    w_flip = p["wd"][:, :, ::-1, ::-1]
    w_hwio = jnp.transpose(w_flip, (2, 3, 0, 1))
    y = lax.conv_general_dilated(y, w_hwio, window_strides=(1, 1),
                                 padding=[(1, 2), (1, 2)], lhs_dilation=(2, 2),
                                 dimension_numbers=("NHWC", "HWIO", "NHWC")) + p["bd"]
    y = jax.nn.relu(bn(y, p["g2"], p["be2"]))

    y = jnp.einsum("nhwc,cd->nhwd", y, p["w3"]) + p["b3"]
    y = jax.nn.relu(bn(y, p["g3"], p["be3"]))
    return jnp.transpose(y, (0, 3, 1, 2))


if __name__ == "__main__":
    N, Cin, H, W = 2, 32, 16, 16
    Cout = 16
    C1 = Cin // 4

    key = jax.random.PRNGKey(0)
    ks = jax.random.split(key, 14)
    nrm = jax.random.normal

    params = {
        "w1": 0.2 * nrm(ks[0], (Cin, C1), jnp.float32),
        "b1": 0.1 * nrm(ks[1], (C1,), jnp.float32),           # biases: reference only
        "g1": 1.0 + 0.2 * nrm(ks[2], (C1,), jnp.float32),
        "be1": 0.1 * nrm(ks[3], (C1,), jnp.float32),
        "wd": 0.2 * nrm(ks[4], (C1, C1, 3, 3), jnp.float32),  # PyTorch ConvTranspose2d layout
        "bd": 0.1 * nrm(ks[5], (C1,), jnp.float32),
        "g2": 1.0 + 0.2 * nrm(ks[6], (C1,), jnp.float32),
        "be2": 0.1 * nrm(ks[7], (C1,), jnp.float32),
        "w3": 0.2 * nrm(ks[8], (C1, Cout), jnp.float32),
        "b3": 0.1 * nrm(ks[9], (Cout,), jnp.float32),
        "g3": 1.0 + 0.2 * nrm(ks[10], (Cout,), jnp.float32),
        "be3": 0.1 * nrm(ks[11], (Cout,), jnp.float32),
    }
    x = nrm(ks[13], (N, Cin, H, W), jnp.float32)

    out = jax.jit(decoder_block_pallas)(x, params)
    out = jax.block_until_ready(out)

    ref = decoder_block_ref(x, params)
    assert out.shape == (N, Cout, 2 * H, 2 * W), out.shape
    np.testing.assert_allclose(np.asarray(out), np.asarray(ref), rtol=2e-3, atol=2e-3)

    # TODO(synk): running_mean / running_var buffer updates (training-time side effect
    # of BatchNorm2d) are not modeled; they do not affect the forward output.
    print("KERNEL_OK")
</pallas_src>

<mosaic_0001>
module attributes {stable_mosaic.version = 11 : i64} {
  func.func @kernel(%arg0: i32, %arg1: memref<32x512xf32, #tpu.memory_space<vmem>>, %arg2: memref<512x128xf32, #tpu.memory_space<vmem>>, %arg3: memref<1x8xf32, #tpu.memory_space<vmem>>, %arg4: memref<1x8xf32, #tpu.memory_space<vmem>>, %arg5: memref<8x128xf32, #tpu.memory_space<vmem>>, %arg6: memref<256x512xf32, #tpu.memory_space<vmem>>, %arg7: memref<1x8xf32, #tpu.memory_space<vmem>>, %arg8: memref<1x8xf32, #tpu.memory_space<vmem>>, %arg9: memref<8x512xf32, #tpu.memory_space<vmem>>, %arg10: memref<512x1024xf32, #tpu.memory_space<vmem>>, %arg11: memref<1x16xf32, #tpu.memory_space<vmem>>, %arg12: memref<1x16xf32, #tpu.memory_space<vmem>>, %arg13: memref<16x1024xf32, #tpu.memory_space<vmem>>, %arg14: memref<32x1024xf32, #tpu.memory_space<vmem>>) attributes {dimension_semantics = [#tpu.dimension_semantics<arbitrary>], iteration_bounds = array<i64: 1>, scalar_prefetch = 0 : i64, scratch_operands = 0 : i64, tpu.core_type = #tpu.core_type<tc>, window_params = [{pipeline_mode = #tpu.pipeline_mode<synchronous>, transform_indices = @transform_0, window_bounds = array<i64: 32, 512>}, {pipeline_mode = #tpu.pipeline_mode<synchronous>, transform_indices = @transform_1, window_bounds = array<i64: 512, 128>}, {pipeline_mode = #tpu.pipeline_mode<synchronous>, transform_indices = @transform_2, window_bounds = array<i64: 1, 8>}, {pipeline_mode = #tpu.pipeline_mode<synchronous>, transform_indices = @transform_3, window_bounds = array<i64: 1, 8>}, {pipeline_mode = #tpu.pipeline_mode<synchronous>, transform_indices = @transform_4, window_bounds = array<i64: 8, 128>}, {pipeline_mode = #tpu.pipeline_mode<synchronous>, transform_indices = @transform_5, window_bounds = array<i64: 256, 512>}, {pipeline_mode = #tpu.pipeline_mode<synchronous>, transform_indices = @transform_6, window_bounds = array<i64: 1, 8>}, {pipeline_mode = #tpu.pipeline_mode<synchronous>, transform_indices = @transform_7, window_bounds = array<i64: 1, 8>}, {pipeline_mode = #tpu.pipeline_mode<synchronous>, transform_indices = @transform_8, window_bounds = array<i64: 8, 512>}, {pipeline_mode = #tpu.pipeline_mode<synchronous>, transform_indices = @transform_9, window_bounds = array<i64: 512, 1024>}, {pipeline_mode = #tpu.pipeline_mode<synchronous>, transform_indices = @transform_10, window_bounds = array<i64: 1, 16>}, {pipeline_mode = #tpu.pipeline_mode<synchronous>, transform_indices = @transform_11, window_bounds = array<i64: 1, 16>}, {pipeline_mode = #tpu.pipeline_mode<synchronous>, transform_indices = @transform_12, window_bounds = array<i64: 16, 1024>}, {pipeline_mode = #tpu.pipeline_mode<synchronous>, transform_indices = @transform_13, window_bounds = array<i64: 32, 1024>}]} {
    %c0 = arith.constant 0 : index
    %c0_0 = arith.constant 0 : index
    %0 = vector.load %arg1[%c0, %c0_0] : memref<32x512xf32, #tpu.memory_space<vmem>>, vector<32x512xf32>
    %c0_1 = arith.constant 0 : index
    %c0_2 = arith.constant 0 : index
    %1 = vector.load %arg2[%c0_1, %c0_2] : memref<512x128xf32, #tpu.memory_space<vmem>>, vector<512x128xf32>
    %cst = arith.constant dense<0.000000e+00> : vector<32x128xf32>
    %2 = tpu.matmul %0, %1, %cst {dimension_numbers = #tpu.dot_dimension_numbers<[1], [0], [0], [1], [0, 0, 1, 1], [], []>} : vector<32x512xf32>, vector<512x128xf32>, vector<32x128xf32> -> vector<32x128xf32>
    %c0_3 = arith.constant 0 : index
    %c0_4 = arith.constant 0 : index
    %3 = vector.load %arg3[%c0_3, %c0_4] : memref<1x8xf32, #tpu.memory_space<vmem>>, vector<1x8xf32>
    %c0_5 = arith.constant 0 : index
    %c0_6 = arith.constant 0 : index
    %4 = vector.load %arg4[%c0_5, %c0_6] : memref<1x8xf32, #tpu.memory_space<vmem>>, vector<1x8xf32>
    %c0_7 = arith.constant 0 : index
    %c0_8 = arith.constant 0 : index
    %5 = vector.load %arg5[%c0_7, %c0_8] : memref<8x128xf32, #tpu.memory_space<vmem>>, vector<8x128xf32>
    %cst_9 = arith.constant dense<0.000000e+00> : vector<32x8xf32>
    %6 = tpu.matmul %2, %5, %cst_9 {dimension_numbers = #tpu.dot_dimension_numbers<[1], [1], [0], [0], [0, 0, 1, 0], [], []>} : vector<32x128xf32>, vector<8x128xf32>, vector<32x8xf32> -> vector<32x8xf32>
    %7 = arith.mulf %2, %2 : vector<32x128xf32>
    %cst_10 = arith.constant dense<0.000000e+00> : vector<32x8xf32>
    %8 = tpu.matmul %7, %5, %cst_10 {dimension_numbers = #tpu.dot_dimension_numbers<[1], [1], [0], [0], [0, 0, 1, 0], [], []>} : vector<32x128xf32>, vector<8x128xf32>, vector<32x8xf32> -> vector<32x8xf32>
    %cst_11 = arith.constant dense<0.000000e+00> : vector<8xf32>
    %9 = vector.multi_reduction <add>, %6, %cst_11 [0] : vector<32x8xf32> to vector<8xf32>
    %10 = vector.shape_cast %9 : vector<8xf32> to vector<1x8xf32>
    %cst_12 = arith.constant 0.001953125 : f32
    %11 = vector.broadcast %cst_12 : f32 to vector<1x8xf32>
    %12 = arith.mulf %10, %11 : vector<1x8xf32>
    %cst_13 = arith.constant dense<0.000000e+00> : vector<8xf32>
    %13 = vector.multi_reduction <add>, %8, %cst_13 [0] : vector<32x8xf32> to vector<8xf32>
    %14 = vector.shape_cast %13 : vector<8xf32> to vector<1x8xf32>
    %cst_14 = arith.constant 0.001953125 : f32
    %15 = vector.broadcast %cst_14 : f32 to vector<1x8xf32>
    %16 = arith.mulf %14, %15 : vector<1x8xf32>
    %17 = arith.mulf %12, %12 : vector<1x8xf32>
    %18 = arith.subf %16, %17 : vector<1x8xf32>
    %cst_15 = arith.constant 0.000000e+00 : f32
    %19 = vector.broadcast %cst_15 : f32 to vector<1x8xf32>
    %20 = arith.maximumf %18, %19 : vector<1x8xf32>
    %cst_16 = arith.constant 9.99999974E-6 : f32
    %21 = vector.broadcast %cst_16 : f32 to vector<1x8xf32>
    %22 = arith.addf %20, %21 : vector<1x8xf32>
    %23 = math.rsqrt %22 : vector<1x8xf32>
    %24 = arith.mulf %3, %23 : vector<1x8xf32>
    %25 = arith.mulf %12, %24 : vector<1x8xf32>
    %26 = arith.subf %4, %25 : vector<1x8xf32>
    %cst_17 = arith.constant dense<0.000000e+00> : vector<1x128xf32>
    %27 = tpu.matmul %24, %5, %cst_17 {dimension_numbers = #tpu.dot_dimension_numbers<[1], [0], [0], [1], [0, 0, 1, 1], [], []>} : vector<1x8xf32>, vector<8x128xf32>, vector<1x128xf32> -> vector<1x128xf32>
    %cst_18 = arith.constant dense<0.000000e+00> : vector<1x128xf32>
    %28 = tpu.matmul %26, %5, %cst_18 {dimension_numbers = #tpu.dot_dimension_numbers<[1], [0], [0], [1], [0, 0, 1, 1], [], []>} : vector<1x8xf32>, vector<8x128xf32>, vector<1x128xf32> -> vector<1x128xf32>
    %29 = vector.broadcast %27 : vector<1x128xf32> to vector<32x128xf32>
    %30 = arith.mulf %2, %29 : vector<32x128xf32>
    %31 = vector.broadcast %28 : vector<1x128xf32> to vector<32x128xf32>
    %32 = arith.addf %30, %31 : vector<32x128xf32>
    %cst_19 = arith.constant 0.000000e+00 : f32
    %33 = vector.broadcast %cst_19 : f32 to vector<32x128xf32>
    %34 = arith.maximumf %32, %33 : vector<32x128xf32>
    %35 = vector.extract_strided_slice %34 {offsets = [1, 0], sizes = [31, 128], strides = [1, 1]} : vector<32x128xf32> to vector<31x128xf32>
    %cst_20 = arith.constant 0.000000e+00 : f32
    %36 = vector.broadcast %cst_20 : f32 to vector<1x128xf32>
    %37 = tpu.concatenate %35, %36 in 0 : vector<31x128xf32>, vector<1x128xf32> -> vector<32x128xf32>
    %38 = tpu.iota {dimensions = array<i32: 0>} : vector<32x1xi32>
    %c16_i32 = arith.constant 16 : i32
    %c0_i32 = arith.constant 0 : i32
    %39 = arith.cmpi eq, %c16_i32, %c0_i32 : i32
    %c1_i32 = arith.constant 1 : i32
    %40 = arith.select %39, %c1_i32, %c16_i32 : i32
    %41 = vector.broadcast %40 : i32 to vector<32x1xi32>
    %42 = arith.remsi %38, %41 : vector<32x1xi32>
    %c0_i32_21 = arith.constant 0 : i32
    %43 = vector.broadcast %c0_i32_21 : i32 to vector<32x1xi32>
    %44 = arith.cmpi ne, %42, %43 : vector<32x1xi32>
    %c0_i32_22 = arith.constant 0 : i32
    %45 = vector.broadcast %c0_i32_22 : i32 to vector<32x1xi32>
    %46 = arith.cmpi slt, %42, %45 : vector<32x1xi32>
    %c0_i32_23 = arith.constant 0 : i32
    %47 = arith.cmpi slt, %40, %c0_i32_23 : i32
    %48 = vector.broadcast %47 : i1 to vector<32x1xi1>
    %49 = vector.broadcast %48 : vector<32x1xi1> to vector<32x1xi1>
    %50 = arith.xori %46, %49 : vector<32x1xi1>
    %51 = arith.andi %50, %44 : vector<32x1xi1>
    %52 = vector.broadcast %40 : i32 to vector<32x1xi32>
    %53 = arith.addi %42, %52 : vector<32x1xi32>
    %54 = arith.select %51, %53, %42 : vector<32x1xi1>, vector<32x1xi32>
    %c15_i32 = arith.constant 15 : i32
    %55 = vector.broadcast %c15_i32 : i32 to vector<32x1xi32>
    %56 = arith.cmpi ne, %54, %55 : vector<32x1xi32>
    %cst_24 = arith.constant 0.000000e+00 : f32
    %57 = vector.shape_cast %56 : vector<32x1xi1> to vector<32x1xi1>
    %58 = vector.broadcast %57 : vector<32x1xi1> to vector<32x128xi1>
    %59 = vector.broadcast %cst_24 : f32 to vector<32x128xf32>
    %60 = arith.select %58, %37, %59 : vector<32x128xi1>, vector<32x128xf32>
    %61 = tpu.concatenate %34, %60 in 1 : vector<32x128xf32>, vector<32x128xf32> -> vector<32x256xf32>
    %c0_25 = arith.constant 0 : index
    %c0_26 = arith.constant 0 : index
    %62 = vector.load %arg6[%c0_25, %c0_26] : memref<256x512xf32, #tpu.memory_space<vmem>>, vector<256x512xf32>
    %cst_27 = arith.constant dense<0.000000e+00> : vector<32x512xf32>
    %63 = tpu.matmul %61, %62, %cst_27 {dimension_numbers = #tpu.dot_dimension_numbers<[1], [0], [0], [1], [0, 0, 1, 1], [], []>} : vector<32x256xf32>, vector<256x512xf32>, vector<32x512xf32> -> vector<32x512xf32>
    %c0_28 = arith.constant 0 : index
    %c0_29 = arith.constant 0 : index
    %64 = vector.load %arg7[%c0_28, %c0_29] : memref<1x8xf32, #tpu.memory_space<vmem>>, vector<1x8xf32>
    %c0_30 = arith.constant 0 : index
    %c0_31 = arith.constant 0 : index
    %65 = vector.load %arg8[%c0_30, %c0_31] : memref<1x8xf32, #tpu.memory_space<vmem>>, vector<1x8xf32>
    %c0_32 = arith.constant 0 : index
    %c0_33 = arith.constant 0 : index
    %66 = vector.load %arg9[%c0_32, %c0_33] : memref<8x512xf32, #tpu.memory_space<vmem>>, vector<8x512xf32>
    %cst_34 = arith.constant dense<0.000000e+00> : vector<32x8xf32>
    %67 = tpu.matmul %63, %66, %cst_34 {dimension_numbers = #tpu.dot_dimension_numbers<[1], [1], [0], [0], [0, 0, 1, 0], [], []>} : vector<32x512xf32>, vector<8x512xf32>, vector<32x8xf32> -> vector<32x8xf32>
    %68 = arith.mulf %63, %63 : vector<32x512xf32>
    %cst_35 = arith.constant dense<0.000000e+00> : vector<32x8xf32>
    %69 = tpu.matmul %68, %66, %cst_35 {dimension_numbers = #tpu.dot_dimension_numbers<[1], [1], [0], [0], [0, 0, 1, 0], [], []>} : vector<32x512xf32>, vector<8x512xf32>, vector<32x8xf32> -> vector<32x8xf32>
    %cst_36 = arith.constant dense<0.000000e+00> : vector<8xf32>
    %70 = vector.multi_reduction <add>, %67, %cst_36 [0] : vector<32x8xf32> to vector<8xf32>
    %71 = vector.shape_cast %70 : vector<8xf32> to vector<1x8xf32>
    %cst_37 = arith.constant 4.8828125E-4 : f32
    %72 = vector.broadcast %cst_37 : f32 to vector<1x8xf32>
    %73 = arith.mulf %71, %72 : vector<1x8xf32>
    %cst_38 = arith.constant dense<0.000000e+00> : vector<8xf32>
    %74 = vector.multi_reduction <add>, %69, %cst_38 [0] : vector<32x8xf32> to vector<8xf32>
    %75 = vector.shape_cast %74 : vector<8xf32> to vector<1x8xf32>
    %cst_39 = arith.constant 4.8828125E-4 : f32
    %76 = vector.broadcast %cst_39 : f32 to vector<1x8xf32>
    %77 = arith.mulf %75, %76 : vector<1x8xf32>
    %78 = arith.mulf %73, %73 : vector<1x8xf32>
    %79 = arith.subf %77, %78 : vector<1x8xf32>
    %cst_40 = arith.constant 0.000000e+00 : f32
    %80 = vector.broadcast %cst_40 : f32 to vector<1x8xf32>
    %81 = arith.maximumf %79, %80 : vector<1x8xf32>
    %cst_41 = arith.constant 9.99999974E-6 : f32
    %82 = vector.broadcast %cst_41 : f32 to vector<1x8xf32>
    %83 = arith.addf %81, %82 : vector<1x8xf32>
    %84 = math.rsqrt %83 : vector<1x8xf32>
    %85 = arith.mulf %64, %84 : vector<1x8xf32>
    %86 = arith.mulf %73, %85 : vector<1x8xf32>
    %87 = arith.subf %65, %86 : vector<1x8xf32>
    %cst_42 = arith.constant dense<0.000000e+00> : vector<1x512xf32>
    %88 = tpu.matmul %85, %66, %cst_42 {dimension_numbers = #tpu.dot_dimension_numbers<[1], [0], [0], [1], [0, 0, 1, 1], [], []>} : vector<1x8xf32>, vector<8x512xf32>, vector<1x512xf32> -> vector<1x512xf32>
    %cst_43 = arith.constant dense<0.000000e+00> : vector<1x512xf32>
    %89 = tpu.matmul %87, %66, %cst_43 {dimension_numbers = #tpu.dot_dimension_numbers<[1], [0], [0], [1], [0, 0, 1, 1], [], []>} : vector<1x8xf32>, vector<8x512xf32>, vector<1x512xf32> -> vector<1x512xf32>
    %90 = vector.broadcast %88 : vector<1x512xf32> to vector<32x512xf32>
    %91 = arith.mulf %63, %90 : vector<32x512xf32>
    %92 = vector.broadcast %89 : vector<1x512xf32> to vector<32x512xf32>
    %93 = arith.addf %91, %92 : vector<32x512xf32>
    %cst_44 = arith.constant 0.000000e+00 : f32
    %94 = vector.broadcast %cst_44 : f32 to vector<32x512xf32>
    %95 = arith.maximumf %93, %94 : vector<32x512xf32>
    %c0_45 = arith.constant 0 : index
    %c0_46 = arith.constant 0 : index
    %96 = vector.load %arg10[%c0_45, %c0_46] : memref<512x1024xf32, #tpu.memory_space<vmem>>, vector<512x1024xf32>
    %cst_47 = arith.constant dense<0.000000e+00> : vector<32x1024xf32>
    %97 = tpu.matmul %95, %96, %cst_47 {dimension_numbers = #tpu.dot_dimension_numbers<[1], [0], [0], [1], [0, 0, 1, 1], [], []>} : vector<32x512xf32>, vector<512x1024xf32>, vector<32x1024xf32> -> vector<32x1024xf32>
    %c0_48 = arith.constant 0 : index
    %c0_49 = arith.constant 0 : index
    %98 = vector.load %arg11[%c0_48, %c0_49] : memref<1x16xf32, #tpu.memory_space<vmem>>, vector<1x16xf32>
    %c0_50 = arith.constant 0 : index
    %c0_51 = arith.constant 0 : index
    %99 = vector.load %arg12[%c0_50, %c0_51] : memref<1x16xf32, #tpu.memory_space<vmem>>, vector<1x16xf32>
    %c0_52 = arith.constant 0 : index
    %c0_53 = arith.constant 0 : index
    %100 = vector.load %arg13[%c0_52, %c0_53] : memref<16x1024xf32, #tpu.memory_space<vmem>>, vector<16x1024xf32>
    %cst_54 = arith.constant dense<0.000000e+00> : vector<32x16xf32>
    %101 = tpu.matmul %97, %100, %cst_54 {dimension_numbers = #tpu.dot_dimension_numbers<[1], [1], [0], [0], [0, 0, 1, 0], [], []>} : vector<32x1024xf32>, vector<16x1024xf32>, vector<32x16xf32> -> vector<32x16xf32>
    %102 = arith.mulf %97, %97 : vector<32x1024xf32>
    %cst_55 = arith.constant dense<0.000000e+00> : vector<32x16xf32>
    %103 = tpu.matmul %102, %100, %cst_55 {dimension_numbers = #tpu.dot_dimension_numbers<[1], [1], [0], [0], [0, 0, 1, 0], [], []>} : vector<32x1024xf32>, vector<16x1024xf32>, vector<32x16xf32> -> vector<32x16xf32>
    %cst_56 = arith.constant dense<0.000000e+00> : vector<16xf32>
    %104 = vector.multi_reduction <add>, %101, %cst_56 [0] : vector<32x16xf32> to vector<16xf32>
    %105 = vector.shape_cast %104 : vector<16xf32> to vector<1x16xf32>
    %cst_57 = arith.constant 4.8828125E-4 : f32
    %106 = vector.broadcast %cst_57 : f32 to vector<1x16xf32>
    %107 = arith.mulf %105, %106 : vector<1x16xf32>
    %cst_58 = arith.constant dense<0.000000e+00> : vector<16xf32>
    %108 = vector.multi_reduction <add>, %103, %cst_58 [0] : vector<32x16xf32> to vector<16xf32>
    %109 = vector.shape_cast %108 : vector<16xf32> to vector<1x16xf32>
    %cst_59 = arith.constant 4.8828125E-4 : f32
    %110 = vector.broadcast %cst_59 : f32 to vector<1x16xf32>
    %111 = arith.mulf %109, %110 : vector<1x16xf32>
    %112 = arith.mulf %107, %107 : vector<1x16xf32>
    %113 = arith.subf %111, %112 : vector<1x16xf32>
    %cst_60 = arith.constant 0.000000e+00 : f32
    %114 = vector.broadcast %cst_60 : f32 to vector<1x16xf32>
    %115 = arith.maximumf %113, %114 : vector<1x16xf32>
    %cst_61 = arith.constant 9.99999974E-6 : f32
    %116 = vector.broadcast %cst_61 : f32 to vector<1x16xf32>
    %117 = arith.addf %115, %116 : vector<1x16xf32>
    %118 = math.rsqrt %117 : vector<1x16xf32>
    %119 = arith.mulf %98, %118 : vector<1x16xf32>
    %120 = arith.mulf %107, %119 : vector<1x16xf32>
    %121 = arith.subf %99, %120 : vector<1x16xf32>
    %cst_62 = arith.constant dense<0.000000e+00> : vector<1x1024xf32>
    %122 = tpu.matmul %119, %100, %cst_62 {dimension_numbers = #tpu.dot_dimension_numbers<[1], [0], [0], [1], [0, 0, 1, 1], [], []>} : vector<1x16xf32>, vector<16x1024xf32>, vector<1x1024xf32> -> vector<1x1024xf32>
    %cst_63 = arith.constant dense<0.000000e+00> : vector<1x1024xf32>
    %123 = tpu.matmul %121, %100, %cst_63 {dimension_numbers = #tpu.dot_dimension_numbers<[1], [0], [0], [1], [0, 0, 1, 1], [], []>} : vector<1x16xf32>, vector<16x1024xf32>, vector<1x1024xf32> -> vector<1x1024xf32>
    %124 = vector.broadcast %122 : vector<1x1024xf32> to vector<32x1024xf32>
    %125 = arith.mulf %97, %124 : vector<32x1024xf32>
    %126 = vector.broadcast %123 : vector<1x1024xf32> to vector<32x1024xf32>
    %127 = arith.addf %125, %126 : vector<32x1024xf32>
    %cst_64 = arith.constant 0.000000e+00 : f32
    %128 = vector.broadcast %cst_64 : f32 to vector<32x1024xf32>
    %129 = arith.maximumf %127, %128 : vector<32x1024xf32>
    %c0_65 = arith.constant 0 : index
    %c0_66 = arith.constant 0 : index
    %130 = vector.load %arg14[%c0_65, %c0_66] : memref<32x1024xf32, #tpu.memory_space<vmem>>, vector<32x1024xf32>
    tpu.vector_store %arg14[%c0_65, %c0_66], %129 {strides = array<i32>} : memref<32x1024xf32, #tpu.memory_space<vmem>>, vector<32x1024xf32>,
    return
  }
  func.func @transform_0(%arg0: i32) -> (i32, i32) {
    %c0_i32 = arith.constant 0 : i32
    %c0_i32_0 = arith.constant 0 : i32
    %c0_i32_1 = arith.constant 0 : i32
    return %c0_i32, %c0_i32_0 : i32, i32
  }
  func.func @transform_1(%arg0: i32) -> (i32, i32) {
    %c0_i32 = arith.constant 0 : i32
    %c0_i32_0 = arith.constant 0 : i32
    %c0_i32_1 = arith.constant 0 : i32
    return %c0_i32, %c0_i32_0 : i32, i32
  }
  func.func @transform_2(%arg0: i32) -> (i32, i32) {
    %c0_i32 = arith.constant 0 : i32
    %c0_i32_0 = arith.constant 0 : i32
    %c0_i32_1 = arith.constant 0 : i32
    return %c0_i32, %c0_i32_0 : i32, i32
  }
  func.func @transform_3(%arg0: i32) -> (i32, i32) {
    %c0_i32 = arith.constant 0 : i32
    %c0_i32_0 = arith.constant 0 : i32
    %c0_i32_1 = arith.constant 0 : i32
    return %c0_i32, %c0_i32_0 : i32, i32
  }
  func.func @transform_4(%arg0: i32) -> (i32, i32) {
    %c0_i32 = arith.constant 0 : i32
    %c0_i32_0 = arith.constant 0 : i32
    %c0_i32_1 = arith.constant 0 : i32
    return %c0_i32, %c0_i32_0 : i32, i32
  }
  func.func @transform_5(%arg0: i32) -> (i32, i32) {
    %c0_i32 = arith.constant 0 : i32
    %c0_i32_0 = arith.constant 0 : i32
    %c0_i32_1 = arith.constant 0 : i32
    return %c0_i32, %c0_i32_0 : i32, i32
  }
  func.func @transform_6(%arg0: i32) -> (i32, i32) {
    %c0_i32 = arith.constant 0 : i32
    %c0_i32_0 = arith.constant 0 : i32
    %c0_i32_1 = arith.constant 0 : i32
    return %c0_i32, %c0_i32_0 : i32, i32
  }
  func.func @transform_7(%arg0: i32) -> (i32, i32) {
    %c0_i32 = arith.constant 0 : i32
    %c0_i32_0 = arith.constant 0 : i32
    %c0_i32_1 = arith.constant 0 : i32
    return %c0_i32, %c0_i32_0 : i32, i32
  }
  func.func @transform_8(%arg0: i32) -> (i32, i32) {
    %c0_i32 = arith.constant 0 : i32
    %c0_i32_0 = arith.constant 0 : i32
    %c0_i32_1 = arith.constant 0 : i32
    return %c0_i32, %c0_i32_0 : i32, i32
  }
  func.func @transform_9(%arg0: i32) -> (i32, i32) {
    %c0_i32 = arith.constant 0 : i32
    %c0_i32_0 = arith.constant 0 : i32
    %c0_i32_1 = arith.constant 0 : i32
    return %c0_i32, %c0_i32_0 : i32, i32
  }
  func.func @transform_10(%arg0: i32) -> (i32, i32) {
    %c0_i32 = arith.constant 0 : i32
    %c0_i32_0 = arith.constant 0 : i32
    %c0_i32_1 = arith.constant 0 : i32
    return %c0_i32, %c0_i32_0 : i32, i32
  }
  func.func @transform_11(%arg0: i32) -> (i32, i32) {
    %c0_i32 = arith.constant 0 : i32
    %c0_i32_0 = arith.constant 0 : i32
    %c0_i32_1 = arith.constant 0 : i32
    return %c0_i32, %c0_i32_0 : i32, i32
  }
  func.func @transform_12(%arg0: i32) -> (i32, i32) {
    %c0_i32 = arith.constant 0 : i32
    %c0_i32_0 = arith.constant 0 : i32
    %c0_i32_1 = arith.constant 0 : i32
    return %c0_i32, %c0_i32_0 : i32, i32
  }
  func.func @transform_13(%arg0: i32) -> (i32, i32) {
    %c0_i32 = arith.constant 0 : i32
    %c0_i32_0 = arith.constant 0 : i32
    %c0_i32_1 = arith.constant 0 : i32
    return %c0_i32, %c0_i32_0 : i32, i32
  }
}

</mosaic_0001>

<llo_original>
// kernel: tile.29
$region0: #{tile.29}
  %s0 = inlined_call_operand.vmem [shape: f32[16,64,16], index: 0, kind: input, shape index: {}]
  %s1 = inlined_call_operand.vmem [shape: f32[16,1024], index: 1, kind: output, shape index: {}]
  %v2 = vld [vmem:[%s0] ss:$8 sm:$0xf]
  %v3 = vld [vmem:[%s0] ss:$8 sm:$0xf0]
  %vm4 = vcmask 1047556
  %v5 = vsel %vm4, %v3, %v2
  %vm6 = vcmask 130048
  %7 = vst.msk [vmem:[%s1] ss:$8 sm:$0xf] %vm6, %v5
  %8 = vst.msk [vmem:[%s1] ss:$8 sm:$0xf0] %vm6, %v5
  %s9 = scalar_lea.vmem %s0, 64
  %v10 = vld [vmem:[%s9] ss:$8 sm:$0xf]
  %s11 = scalar_lea.vmem %s0, 64
  %v12 = vld [vmem:[%s11] ss:$8 sm:$0xf0]
  %vm13 = vcmask 1047556
  %v14 = vsel %vm13, %v12, %v10
  %vm15 = vcmask 130048
  %s16 = scalar_lea.vmem %s1, 1
  %17 = vst.msk [vmem:[%s16] ss:$8 sm:$0xf] %vm15, %v14
  %s18 = scalar_lea.vmem %s1, 1
  %19 = vst.msk [vmem:[%s18] ss:$8 sm:$0xf0] %vm15, %v14
  %s20 = scalar_lea.vmem %s0, 128
  %v21 = vld [vmem:[%s20] ss:$8 sm:$0xf]
  %s22 = scalar_lea.vmem %s0, 128
  %v23 = vld [vmem:[%s22] ss:$8 sm:$0xf0]
  %vm24 = vcmask 1047556
  %v25 = vsel %vm24, %v23, %v21
  %vm26 = vcmask 130048
  %s27 = scalar_lea.vmem %s1, 2
  %28 = vst.msk [vmem:[%s27] ss:$8 sm:$0xf] %vm26, %v25
  %s29 = scalar_lea.vmem %s1, 2
  %30 = vst.msk [vmem:[%s29] ss:$8 sm:$0xf0] %vm26, %v25
  %s31 = scalar_lea.vmem %s0, 192
  %v32 = vld [vmem:[%s31] ss:$8 sm:$0xf]
  %s33 = scalar_lea.vmem %s0, 192
  %v34 = vld [vmem:[%s33] ss:$8 sm:$0xf0]
  %vm35 = vcmask 1047556
  %v36 = vsel %vm35, %v34, %v32
  %vm37 = vcmask 130048
  %s38 = scalar_lea.vmem %s1, 3
  %39 = vst.msk [vmem:[%s38] ss:$8 sm:$0xf] %vm37, %v36
  %s40 = scalar_lea.vmem %s1, 3
  %41 = vst.msk [vmem:[%s40] ss:$8 sm:$0xf0] %vm37, %v36
  %s42 = scalar_lea.vmem %s0, 256
  %v43 = vld [vmem:[%s42] ss:$8 sm:$0xf]
  %s44 = scalar_lea.vmem %s0, 256
  %v45 = vld [vmem:[%s44] ss:$8 sm:$0xf0]
  %vm46 = vcmask 1047556
  %v47 = vsel %vm46, %v45, %v43
  %vm48 = vcmask 130048
  %s49 = scalar_lea.vmem %s1, 4
  %50 = vst.msk [vmem:[%s49] ss:$8 sm:$0xf] %vm48, %v47
  %s51 = scalar_lea.vmem %s1, 4
  %52 = vst.msk [vmem:[%s51] ss:$8 sm:$0xf0] %vm48, %v47
  %s53 = scalar_lea.vmem %s0, 320
  %v54 = vld [vmem:[%s53] ss:$8 sm:$0xf]
  %s55 = scalar_lea.vmem %s0, 320
  %v56 = vld [vmem:[%s55] ss:$8 sm:$0xf0]
  %vm57 = vcmask 1047556
  %v58 = vsel %vm57, %v56, %v54
  %vm59 = vcmask 130048
  %s60 = scalar_lea.vmem %s1, 5
  %61 = vst.msk [vmem:[%s60] ss:$8 sm:$0xf] %vm59, %v58
  %s62 = scalar_lea.vmem %s1, 5
  %63 = vst.msk [vmem:[%s62] ss:$8 sm:$0xf0] %vm59, %v58
  %s64 = scalar_lea.vmem %s0, 384
  %v65 = vld [vmem:[%s64] ss:$8 sm:$0xf]
  %s66 = scalar_lea.vmem %s0, 384
  %v67 = vld [vmem:[%s66] ss:$8 sm:$0xf0]
  %vm68 = vcmask 1047556
  %v69 = vsel %vm68, %v67, %v65
  %vm70 = vcmask 130048
  %s71 = scalar_lea.vmem %s1, 6
  %72 = vst.msk [vmem:[%s71] ss:$8 sm:$0xf] %vm70, %v69
  %s73 = scalar_lea.vmem %s1, 6
  %74 = vst.msk [vmem:[%s73] ss:$8 sm:$0xf0] %vm70, %v69
  %s75 = scalar_lea.vmem %s0, 448
  %v76 = vld [vmem:[%s75] ss:$8 sm:$0xf]
  %s77 = scalar_lea.vmem %s0, 448
  %v78 = vld [vmem:[%s77] ss:$8 sm:$0xf0]
  %vm79 = vcmask 1047556
  %v80 = vsel %vm79, %v78, %v76
  %vm81 = vcmask 130048
  %s82 = scalar_lea.vmem %s1, 7
  %83 = vst.msk [vmem:[%s82] ss:$8 sm:$0xf] %vm81, %v80
  %s84 = scalar_lea.vmem %s1, 7
  %85 = vst.msk [vmem:[%s84] ss:$8 sm:$0xf0] %vm81, %v80
  %s86 = scalar_lea.vmem %s0, 512
  %v87 = vld [vmem:[%s86] ss:$8 sm:$0xf]
  %s88 = scalar_lea.vmem %s0, 512
  %v89 = vld [vmem:[%s88] ss:$8 sm:$0xf0]
  %vm90 = vcmask 1047556
  %v91 = vsel %vm90, %v89, %v87
  %vm92 = vcmask 130048
  %s93 = scalar_lea.vmem %s1, 64
  %94 = vst.msk [vmem:[%s93] ss:$8 sm:$0xf] %vm92, %v91
  %s95 = scalar_lea.vmem %s1, 64
  %96 = vst.msk [vmem:[%s95] ss:$8 sm:$0xf0] %vm92, %v91
  %s97 = scalar_lea.vmem %s0, 576
  %v98 = vld [vmem:[%s97] ss:$8 sm:$0xf]
  %s99 = scalar_lea.vmem %s0, 576
  %v100 = vld [vmem:[%s99] ss:$8 sm:$0xf0]
  %vm101 = vcmask 1047556
  %v102 = vsel %vm101, %v100, %v98
  %vm103 = vcmask 130048
  %s104 = scalar_lea.vmem %s1, 65
  %105 = vst.msk [vmem:[%s104] ss:$8 sm:$0xf] %vm103, %v102
  %s106 = scalar_lea.vmem %s1, 65
  %107 = vst.msk [vmem:[%s106] ss:$8 sm:$0xf0] %vm103, %v102
  %s108 = scalar_lea.vmem %s0, 640
  %v109 = vld [vmem:[%s108] ss:$8 sm:$0xf]
  %s110 = scalar_lea.vmem %s0, 640
  %v111 = vld [vmem:[%s110] ss:$8 sm:$0xf0]
  %vm112 = vcmask 1047556
  %v113 = vsel %vm112, %v111, %v109
  %vm114 = vcmask 130048
  %s115 = scalar_lea.vmem %s1, 66
  %116 = vst.msk [vmem:[%s115] ss:$8 sm:$0xf] %vm114, %v113
  %s117 = scalar_lea.vmem %s1, 66
  %118 = vst.msk [vmem:[%s117] ss:$8 sm:$0xf0] %vm114, %v113
  %s119 = scalar_lea.vmem %s0, 704
  %v120 = vld [vmem:[%s119] ss:$8 sm:$0xf]
  %s121 = scalar_lea.vmem %s0, 704
  %v122 = vld [vmem:[%s121] ss:$8 sm:$0xf0]
  %vm123 = vcmask 1047556
  %v124 = vsel %vm123, %v122, %v120
  %vm125 = vcmask 130048
  %s126 = scalar_lea.vmem %s1, 67
  %127 = vst.msk [vmem:[%s126] ss:$8 sm:$0xf] %vm125, %v124
  %s128 = scalar_lea.vmem %s1, 67
  %129 = vst.msk [vmem:[%s128] ss:$8 sm:$0xf0] %vm125, %v124
  %s130 = scalar_lea.vmem %s0, 768
  %v131 = vld [vmem:[%s130] ss:$8 sm:$0xf]
  %s132 = scalar_lea.vmem %s0, 768
  %v133 = vld [vmem:[%s132] ss:$8 sm:$0xf0]
  %vm134 = vcmask 1047556
  %v135 = vsel %vm134, %v133, %v131
  %vm136 = vcmask 130048
  %s137 = scalar_lea.vmem %s1, 68
  %138 = vst.msk [vmem:[%s137] ss:$8 sm:$0xf] %vm136, %v135
  %s139 = scalar_lea.vmem %s1, 68
  %140 = vst.msk [vmem:[%s139] ss:$8 sm:$0xf0] %vm136, %v135
  %s141 = scalar_lea.vmem %s0, 832
  %v142 = vld [vmem:[%s141] ss:$8 sm:$0xf]
  %s143 = scalar_lea.vmem %s0, 832
  %v144 = vld [vmem:[%s143] ss:$8 sm:$0xf0]
  %vm145 = vcmask 1047556
  %v146 = vsel %vm145, %v144, %v142
  %vm147 = vcmask 130048
  %s148 = scalar_lea.vmem %s1, 69
  %149 = vst.msk [vmem:[%s148] ss:$8 sm:$0xf] %vm147, %v146
  %s150 = scalar_lea.vmem %s1, 69
  %151 = vst.msk [vmem:[%s150] ss:$8 sm:$0xf0] %vm147, %v146
  %s152 = scalar_lea.vmem %s0, 896
  %v153 = vld [vmem:[%s152] ss:$8 sm:$0xf]
  %s154 = scalar_lea.vmem %s0, 896
  %v155 = vld [vmem:[%s154] ss:$8 sm:$0xf0]
  %vm156 = vcmask 1047556
  %v157 = vsel %vm156, %v155, %v153
  %vm158 = vcmask 130048
  %s159 = scalar_lea.vmem %s1, 70
  %160 = vst.msk [vmem:[%s159] ss:$8 sm:$0xf] %vm158, %v157
  %s161 = scalar_lea.vmem %s1, 70
  %162 = vst.msk [vmem:[%s161] ss:$8 sm:$0xf0] %vm158, %v157
  %s163 = scalar_lea.vmem %s0, 960
  %v164 = vld [vmem:[%s163] ss:$8 sm:$0xf]
  %s165 = scalar_lea.vmem %s0, 960
  %v166 = vld [vmem:[%s165] ss:$8 sm:$0xf0]
  %vm167 = vcmask 1047556
  %v168 = vsel %vm167, %v166, %v164
  %vm169 = vcmask 130048
  %s170 = scalar_lea.vmem %s1, 71
  %171 = vst.msk [vmem:[%s170] ss:$8 sm:$0xf] %vm169, %v168
  %s172 = scalar_lea.vmem %s1, 71
  %173 = vst.msk [vmem:[%s172] ss:$8 sm:$0xf0] %vm169, %v168
  %s174 = scalar_lea.vmem %s0, 7
  %v175 = vld [vmem:[%s174] sm:$0x1]
  %s176 = scalar_lea.vmem %s0, 70
  %v177 = vld [vmem:[%s176] sm:$0x2]
  %vm178 = vcmask 1041409
  %v179 = vsel %vm178, %v177, %v175
  %s180 = scalar_lea.vmem %s0, 133
  %v181 = vld [vmem:[%s180] sm:$0x4]
  %vm182 = vcmask 1042434
  %v183 = vsel %vm182, %v181, %v179
  %s184 = scalar_lea.vmem %s0, 196
  %v185 = vld [vmem:[%s184] sm:$0x8]
  %vm186 = vcmask 1043459
  %v187 = vsel %vm186, %v185, %v183
  %s188 = scalar_lea.vmem %s0, 259
  %v189 = vld [vmem:[%s188] sm:$0x10]
  %vm190 = vcmask 1044484
  %v191 = vsel %vm190, %v189, %v187
  %s192 = scalar_lea.vmem %s0, 322
  %v193 = vld [vmem:[%s192] sm:$0x20]
  %vm194 = vcmask 1045509
  %v195 = vsel %vm194, %v193, %v191
  %s196 = scalar_lea.vmem %s0, 385
  %v197 = vld [vmem:[%s196] sm:$0x40]
  %vm198 = vcmask 1046534
  %v199 = vsel %vm198, %v197, %v195
  %s200 = scalar_lea.vmem %s0, 448
  %v201 = vld [vmem:[%s200] sm:$0x80]
  %vm202 = vcmask 1047559
  %v203 = vsel %vm202, %v201, %v199
  %204 = vrot.lane.b32.xlu0 %v203, 112
  %v205 = vpop.permute.xlu0 %204
  %vm206 = vcmask 1048448
  %207 = vst.msk [vmem:[%s1] sm:$0xff] %vm206, %v205
  %s208 = scalar_lea.vmem %s0, 39
  %v209 = vld [vmem:[%s208] sm:$0x1]
  %s210 = scalar_lea.vmem %s0, 102
  %v211 = vld [vmem:[%s210] sm:$0x2]
  %vm212 = vcmask 1041409
  %v213 = vsel %vm212, %v211, %v209
  %s214 = scalar_lea.vmem %s0, 165
  %v215 = vld [vmem:[%s214] sm:$0x4]
  %vm216 = vcmask 1042434
  %v217 = vsel %vm216, %v215, %v213
  %s218 = scalar_lea.vmem %s0, 228
  %v219 = vld [vmem:[%s218] sm:$0x8]
  %vm220 = vcmask 1043459
  %v221 = vsel %vm220, %v219, %v217
  %s222 = scalar_lea.vmem %s0, 291
  %v223 = vld [vmem:[%s222] sm:$0x10]
  %vm224 = vcmask 1044484
  %v225 = vsel %vm224, %v223, %v221
  %s226 = scalar_lea.vmem %s0, 354
  %v227 = vld [vmem:[%s226] sm:$0x20]
  %vm228 = vcmask 1045509
  %v229 = vsel %vm228, %v227, %v225
  %s230 = scalar_lea.vmem %s0, 417
  %v231 = vld [vmem:[%s230] sm:$0x40]
  %vm232 = vcmask 1046534
  %v233 = vsel %vm232, %v231, %v229
  %s234 = scalar_lea.vmem %s0, 480
  %v235 = vld [vmem:[%s234] sm:$0x80]
  %vm236 = vcmask 1047559
  %v237 = vsel %vm236, %v235, %v233
  %238 = vrot.lane.b32.xlu0 %v237, 112
  %v239 = vpop.permute.xlu0 %238
  %vm240 = vcmask 1048448
  %s241 = scalar_lea.vmem %s1, 32
  %242 = vst.msk [vmem:[%s241] sm:$0xff] %vm240, %v239
  %s243 = scalar_lea.vmem %s0, 519
  %v244 = vld [vmem:[%s243] sm:$0x1]
  %s245 = scalar_lea.vmem %s0, 582
  %v246 = vld [vmem:[%s245] sm:$0x2]
  %vm247 = vcmask 1041409
  %v248 = vsel %vm247, %v246, %v244
  %s249 = scalar_lea.vmem %s0, 645
  %v250 = vld [vmem:[%s249] sm:$0x4]
  %vm251 = vcmask 1042434
  %v252 = vsel %vm251, %v250, %v248
  %s253 = scalar_lea.vmem %s0, 708
  %v254 = vld [vmem:[%s253] sm:$0x8]
  %vm255 = vcmask 1043459
  %v256 = vsel %vm255, %v254, %v252
  %s257 = scalar_lea.vmem %s0, 771
  %v258 = vld [vmem:[%s257] sm:$0x10]
  %vm259 = vcmask 1044484
  %v260 = vsel %vm259, %v258, %v256
  %s261 = scalar_lea.vmem %s0, 834
  %v262 = vld [vmem:[%s261] sm:$0x20]
  %vm263 = vcmask 1045509
  %v264 = vsel %vm263, %v262, %v260
  %s265 = scalar_lea.vmem %s0, 897
  %v266 = vld [vmem:[%s265] sm:$0x40]
  %vm267 = vcmask 1046534
  %v268 = vsel %vm267, %v266, %v264
  %s269 = scalar_lea.vmem %s0, 960
  %v270 = vld [vmem:[%s269] sm:$0x80]
  %vm271 = vcmask 1047559
  %v272 = vsel %vm271, %v270, %v268
  %273 = vrot.lane.b32.xlu0 %v272, 112
  %v274 = vpop.permute.xlu0 %273
  %vm275 = vcmask 1048448
  %s276 = scalar_lea.vmem %s1, 64
  %277 = vst.msk [vmem:[%s276] sm:$0xff] %vm275, %v274
  %s278 = scalar_lea.vmem %s0, 551
  %v279 = vld [vmem:[%s278] sm:$0x1]
  %s280 = scalar_lea.vmem %s0, 614
  %v281 = vld [vmem:[%s280] sm:$0x2]
  %vm282 = vcmask 1041409
  %v283 = vsel %vm282, %v281, %v279
  %s284 = scalar_lea.vmem %s0, 677
  %v285 = vld [vmem:[%s284] sm:$0x4]
  %vm286 = vcmask 1042434
  %v287 = vsel %vm286, %v285, %v283
  %s288 = scalar_lea.vmem %s0, 740
  %v289 = vld [vmem:[%s288] sm:$0x8]
  %vm290 = vcmask 1043459
  %v291 = vsel %vm290, %v289, %v287
  %s292 = scalar_lea.vmem %s0, 803
  %v293 = vld [vmem:[%s292] sm:$0x10]
  %vm294 = vcmask 1044484
  %v295 = vsel %vm294, %v293, %v291
  %s296 = scalar_lea.vmem %s0, 866
  %v297 = vld [vmem:[%s296] sm:$0x20]
  %vm298 = vcmask 1045509
  %v299 = vsel %vm298, %v297, %v295
  %s300 = scalar_lea.vmem %s0, 929
  %v301 = vld [vmem:[%s300] sm:$0x40]
  %vm302 = vcmask 1046534
  %v303 = vsel %vm302, %v301, %v299
  %s304 = scalar_lea.vmem %s0, 992
  %v305 = vld [vmem:[%s304] sm:$0x80]
  %vm306 = vcmask 1047559
  %v307 = vsel %vm306, %v305, %v303
  %308 = vrot.lane.b32.xlu0 %v307, 112
  %v309 = vpop.permute.xlu0 %308
  %vm310 = vcmask 1048448
  %s311 = scalar_lea.vmem %s1, 96
  %312 = vst.msk [vmem:[%s311] sm:$0xff] %vm310, %v309
  %s313 = scalar_lea.vmem %s0, 15
  %v314 = vld [vmem:[%s313] sm:$0x1]
  %s315 = scalar_lea.vmem %s0, 78
  %v316 = vld [vmem:[%s315] sm:$0x2]
  %vm317 = vcmask 1041409
  %v318 = vsel %vm317, %v316, %v314
  %s319 = scalar_lea.vmem %s0, 141
  %v320 = vld [vmem:[%s319] sm:$0x4]
  %vm321 = vcmask 1042434
  %v322 = vsel %vm321, %v320, %v318
  %s323 = scalar_lea.vmem %s0, 204
  %v324 = vld [vmem:[%s323] sm:$0x8]
  %vm325 = vcmask 1043459
  %v326 = vsel %vm325, %v324, %v322
  %s327 = scalar_lea.vmem %s0, 267
  %v328 = vld [vmem:[%s327] sm:$0x10]
  %vm329 = vcmask 1044484
  %v330 = vsel %vm329, %v328, %v326
  %s331 = scalar_lea.vmem %s0, 330
  %v332 = vld [vmem:[%s331] sm:$0x20]
  %vm333 = vcmask 1045509
  %v334 = vsel %vm333, %v332, %v330
  %s335 = scalar_lea.vmem %s0, 393
  %v336 = vld [vmem:[%s335] sm:$0x40]
  %vm337 = vcmask 1046534
  %v338 = vsel %vm337, %v336, %v334
  %s339 = scalar_lea.vmem %s0, 456
  %v340 = vld [vmem:[%s339] sm:$0x80]
  %vm341 = vcmask 1047559
  %v342 = vsel %vm341, %v340, %v338
  %343 = vrot.lane.b32.xlu0 %v342, 112
  %v344 = vpop.permute.xlu0 %343
  %vm345 = vcmask 1048448
  %s346 = scalar_lea.vmem %s1, 8
  %347 = vst.msk [vmem:[%s346] sm:$0xff] %vm345, %v344
  %s348 = scalar_lea.vmem %s0, 47
  %v349 = vld [vmem:[%s348] sm:$0x1]
  %s350 = scalar_lea.vmem %s0, 110
  %v351 = vld [vmem:[%s350] sm:$0x2]
  %vm352 = vcmask 1041409
  %v353 = vsel %vm352, %v351, %v349
  %s354 = scalar_lea.vmem %s0, 173
  %v355 = vld [vmem:[%s354] sm:$0x4]
  %vm356 = vcmask 1042434
  %v357 = vsel %vm356, %v355, %v353
  %s358 = scalar_lea.vmem %s0, 236
  %v359 = vld [vmem:[%s358] sm:$0x8]
  %vm360 = vcmask 1043459
  %v361 = vsel %vm360, %v359, %v357
  %s362 = scalar_lea.vmem %s0, 299
  %v363 = vld [vmem:[%s362] sm:$0x10]
  %vm364 = vcmask 1044484
  %v365 = vsel %vm364, %v363, %v361
  %s366 = scalar_lea.vmem %s0, 362
  %v367 = vld [vmem:[%s366] sm:$0x20]
  %vm368 = vcmask 1045509
  %v369 = vsel %vm368, %v367, %v365
  %s370 = scalar_lea.vmem %s0, 425
  %v371 = vld [vmem:[%s370] sm:$0x40]
  %vm372 = vcmask 1046534
  %v373 = vsel %vm372, %v371, %v369
  %s374 = scalar_lea.vmem %s0, 488
  %v375 = vld [vmem:[%s374] sm:$0x80]
  %vm376 = vcmask 1047559
  %v377 = vsel %vm376, %v375, %v373
  %378 = vrot.lane.b32.xlu0 %v377, 112
  %v379 = vpop.permute.xlu0 %378
  %vm380 = vcmask 1048448
  %s381 = scalar_lea.vmem %s1, 40
  %382 = vst.msk [vmem:[%s381] sm:$0xff] %vm380, %v379
  %s383 = scalar_lea.vmem %s0, 527
  %v384 = vld [vmem:[%s383] sm:$0x1]
  %s385 = scalar_lea.vmem %s0, 590
  %v386 = vld [vmem:[%s385] sm:$0x2]
  %vm387 = vcmask 1041409
  %v388 = vsel %vm387, %v386, %v384
  %s389 = scalar_lea.vmem %s0, 653
  %v390 = vld [vmem:[%s389] sm:$0x4]
  %vm391 = vcmask 1042434
  %v392 = vsel %vm391, %v390, %v388
  %s393 = scalar_lea.vmem %s0, 716
  %v394 = vld [vmem:[%s393] sm:$0x8]
  %vm395 = vcmask 1043459
  %v396 = vsel %vm395, %v394, %v392
  %s397 = scalar_lea.vmem %s0, 779
  %v398 = vld [vmem:[%s397] sm:$0x10]
  %vm399 = vcmask 1044484
  %v400 = vsel %vm399, %v398, %v396
  %s401 = scalar_lea.vmem %s0, 842
  %v402 = vld [vmem:[%s401] sm:$0x20]
  %vm403 = vcmask 1045509
  %v404 = vsel %vm403, %v402, %v400
  %s405 = scalar_lea.vmem %s0, 905
  %v406 = vld [vmem:[%s405] sm:$0x40]
  %vm407 = vcmask 1046534
  %v408 = vsel %vm407, %v406, %v404
  %s409 = scalar_lea.vmem %s0, 968
  %v410 = vld [vmem:[%s409] sm:$0x80]
  %vm411 = vcmask 1047559
  %v412 = vsel %vm411, %v410, %v408
  %413 = vrot.lane.b32.xlu0 %v412, 112
  %v414 = vpop.permute.xlu0 %413
  %vm415 = vcmask 1048448
  %s416 = scalar_lea.vmem %s1, 72
  %417 = vst.msk [vmem:[%s416] sm:$0xff] %vm415, %v414
  %s418 = scalar_lea.vmem %s0, 559
  %v419 = vld [vmem:[%s418] sm:$0x1]
  %s420 = scalar_lea.vmem %s0, 622
  %v421 = vld [vmem:[%s420] sm:$0x2]
  %vm422 = vcmask 1041409
  %v423 = vsel %vm422, %v421, %v419
  %s424 = scalar_lea.vmem %s0, 685
  %v425 = vld [vmem:[%s424] sm:$0x4]
  %vm426 = vcmask 1042434
  %v427 = vsel %vm426, %v425, %v423
  %s428 = scalar_lea.vmem %s0, 748
  %v429 = vld [vmem:[%s428] sm:$0x8]
  %vm430 = vcmask 1043459
  %v431 = vsel %vm430, %v429, %v427
  %s432 = scalar_lea.vmem %s0, 811
  %v433 = vld [vmem:[%s432] sm:$0x10]
  %vm434 = vcmask 1044484
  %v435 = vsel %vm434, %v433, %v431
  %s436 = scalar_lea.vmem %s0, 874
  %v437 = vld [vmem:[%s436] sm:$0x20]
  %vm438 = vcmask 1045509
  %v439 = vsel %vm438, %v437, %v435
  %s440 = scalar_lea.vmem %s0, 937
  %v441 = vld [vmem:[%s440] sm:$0x40]
  %vm442 = vcmask 1046534
  %v443 = vsel %vm442, %v441, %v439
  %s444 = scalar_lea.vmem %s0, 1000
  %v445 = vld [vmem:[%s444] sm:$0x80]
  %vm446 = vcmask 1047559
  %v447 = vsel %vm446, %v445, %v443
  %448 = vrot.lane.b32.xlu0 %v447, 112
  %v449 = vpop.permute.xlu0 %448
  %vm450 = vcmask 1048448
  %s451 = scalar_lea.vmem %s1, 104
  %452 = vst.msk [vmem:[%s451] sm:$0xff] %vm450, %v449
  %s453 = scalar_lea.vmem %s0, 23
  %v454 = vld [vmem:[%s453] sm:$0x1]
  %s455 = scalar_lea.vmem %s0, 86
  %v456 = vld [vmem:[%s455] sm:$0x2]
  %vm457 = vcmask 1041409
  %v458 = vsel %vm457, %v456, %v454
  %s459 = scalar_lea.vmem %s0, 149
  %v460 = vld [vmem:[%s459] sm:$0x4]
  %vm461 = vcmask 1042434
  %v462 = vsel %vm461, %v460, %v458
  %s463 = scalar_lea.vmem %s0, 212
  %v464 = vld [vmem:[%s463] sm:$0x8]
  %vm465 = vcmask 1043459
  %v466 = vsel %vm465, %v464, %v462
  %s467 = scalar_lea.vmem %s0, 275
  %v468 = vld [vmem:[%s467] sm:$0x10]
  %vm469 = vcmask 1044484
  %v470 = vsel %vm469, %v468, %v466
  %s471 = scalar_lea.vmem %s0, 338
  %v472 = vld [vmem:[%s471] sm:$0x20]
  %vm473 = vcmask 1045509
  %v474 = vsel %vm473, %v472, %v470
  %s475 = scalar_lea.vmem %s0, 401
  %v476 = vld [vmem:[%s475] sm:$0x40]
  %vm477 = vcmask 1046534
  %v478 = vsel %vm477, %v476, %v474
  %s479 = scalar_lea.vmem %s0, 464
  %v480 = vld [vmem:[%s479] sm:$0x80]
  %vm481 = vcmask 1047559
  %v482 = vsel %vm481, %v480, %v478
  %483 = vrot.lane.b32.xlu0 %v482, 112
  %v484 = vpop.permute.xlu0 %483
  %vm485 = vcmask 1048448
  %s486 = scalar_lea.vmem %s1, 16
  %487 = vst.msk [vmem:[%s486] sm:$0xff] %vm485, %v484
  %s488 = scalar_lea.vmem %s0, 55
  %v489 = vld [vmem:[%s488] sm:$0x1]
  %s490 = scalar_lea.vmem %s0, 118
  %v491 = vld [vmem:[%s490] sm:$0x2]
  %vm492 = vcmask 1041409
  %v493 = vsel %vm492, %v491, %v489
  %s494 = scalar_lea.vmem %s0, 181
  %v495 = vld [vmem:[%s494] sm:$0x4]
  %vm496 = vcmask 1042434
  %v497 = vsel %vm496, %v495, %v493
  %s498 = scalar_lea.vmem %s0, 244
  %v499 = vld [vmem:[%s498] sm:$0x8]
  %vm500 = vcmask 1043459
  %v501 = vsel %vm500, %v499, %v497
  %s502 = scalar_lea.vmem %s0, 307
  %v503 = vld [vmem:[%s502] sm:$0x10]
  %vm504 = vcmask 1044484
  %v505 = vsel %vm504, %v503, %v501
  %s506 = scalar_lea.vmem %s0, 370
  %v507 = vld [vmem:[%s506] sm:$0x20]
  %vm508 = vcmask 1045509
  %v509 = vsel %vm508, %v507, %v505
  %s510 = scalar_lea.vmem %s0, 433
  %v511 = vld [vmem:[%s510] sm:$0x40]
  %vm512 = vcmask 1046534
  %v513 = vsel %vm512, %v511, %v509
  %s514 = scalar_lea.vmem %s0, 496
  %v515 = vld [vmem:[%s514] sm:$0x80]
  %vm516 = vcmask 1047559
  %v517 = vsel %vm516, %v515, %v513
  %518 = vrot.lane.b32.xlu0 %v517, 112
  %v519 = vpop.permute.xlu0 %518
  %vm520 = vcmask 1048448
  %s521 = scalar_lea.vmem %s1, 48
  %522 = vst.msk [vmem:[%s521] sm:$0xff] %vm520, %v519
  %s523 = scalar_lea.vmem %s0, 535
  %v524 = vld [vmem:[%s523] sm:$0x1]
  %s525 = scalar_lea.vmem %s0, 598
  %v526 = vld [vmem:[%s525] sm:$0x2]
  %vm527 = vcmask 1041409
  %v528 = vsel %vm527, %v526, %v524
  %s529 = scalar_lea.vmem %s0, 661
  %v530 = vld [vmem:[%s529] sm:$0x4]
  %vm531 = vcmask 1042434
  %v532 = vsel %vm531, %v530, %v528
  %s533 = scalar_lea.vmem %s0, 724
  %v534 = vld [vmem:[%s533] sm:$0x8]
  %vm535 = vcmask 1043459
  %v536 = vsel %vm535, %v534, %v532
  %s537 = scalar_lea.vmem %s0, 787
  %v538 = vld [vmem:[%s537] sm:$0x10]
  %vm539 = vcmask 1044484
  %v540 = vsel %vm539, %v538, %v536
  %s541 = scalar_lea.vmem %s0, 850
  %v542 = vld [vmem:[%s541] sm:$0x20]
  %vm543 = vcmask 1045509
  %v544 = vsel %vm543, %v542, %v540
  %s545 = scalar_lea.vmem %s0, 913
  %v546 = vld [vmem:[%s545] sm:$0x40]
  %vm547 = vcmask 1046534
  %v548 = vsel %vm547, %v546, %v544
  %s549 = scalar_lea.vmem %s0, 976
  %v550 = vld [vmem:[%s549] sm:$0x80]
  %vm551 = vcmask 1047559
  %v552 = vsel %vm551, %v550, %v548
  %553 = vrot.lane.b32.xlu0 %v552, 112
  %v554 = vpop.permute.xlu0 %553
  %vm555 = vcmask 1048448
  %s556 = scalar_lea.vmem %s1, 80
  %557 = vst.msk [vmem:[%s556] sm:$0xff] %vm555, %v554
  %s558 = scalar_lea.vmem %s0, 567
  %v559 = vld [vmem:[%s558] sm:$0x1]
  %s560 = scalar_lea.vmem %s0, 630
  %v561 = vld [vmem:[%s560] sm:$0x2]
  %vm562 = vcmask 1041409
  %v563 = vsel %vm562, %v561, %v559
  %s564 = scalar_lea.vmem %s0, 693
  %v565 = vld [vmem:[%s564] sm:$0x4]
  %vm566 = vcmask 1042434
  %v567 = vsel %vm566, %v565, %v563
  %s568 = scalar_lea.vmem %s0, 756
  %v569 = vld [vmem:[%s568] sm:$0x8]
  %vm570 = vcmask 1043459
  %v571 = vsel %vm570, %v569, %v567
  %s572 = scalar_lea.vmem %s0, 819
  %v573 = vld [vmem:[%s572] sm:$0x10]
  %vm574 = vcmask 1044484
  %v575 = vsel %vm574, %v573, %v571
  %s576 = scalar_lea.vmem %s0, 882
  %v577 = vld [vmem:[%s576] sm:$0x20]
  %vm578 = vcmask 1045509
  %v579 = vsel %vm578, %v577, %v575
  %s580 = scalar_lea.vmem %s0, 945
  %v581 = vld [vmem:[%s580] sm:$0x40]
  %vm582 = vcmask 1046534
  %v583 = vsel %vm582, %v581, %v579
  %s584 = scalar_lea.vmem %s0, 1008
  %v585 = vld [vmem:[%s584] sm:$0x80]
  %vm586 = vcmask 1047559
  %v587 = vsel %vm586, %v585, %v583
  %588 = vrot.lane.b32.xlu0 %v587, 112
  %v589 = vpop.permute.xlu0 %588
  %vm590 = vcmask 1048448
  %s591 = scalar_lea.vmem %s1, 112
  %592 = vst.msk [vmem:[%s591] sm:$0xff] %vm590, %v589
  %s593 = scalar_lea.vmem %s0, 31
  %v594 = vld [vmem:[%s593] sm:$0x1]
  %s595 = scalar_lea.vmem %s0, 94
  %v596 = vld [vmem:[%s595] sm:$0x2]
  %vm597 = vcmask 1041409
  %v598 = vsel %vm597, %v596, %v594
  %s599 = scalar_lea.vmem %s0, 157
  %v600 = vld [vmem:[%s599] sm:$0x4]
  %vm601 = vcmask 1042434
  %v602 = vsel %vm601, %v600, %v598
  %s603 = scalar_lea.vmem %s0, 220
  %v604 = vld [vmem:[%s603] sm:$0x8]
  %vm605 = vcmask 1043459
  %v606 = vsel %vm605, %v604, %v602
  %s607 = scalar_lea.vmem %s0, 283
  %v608 = vld [vmem:[%s607] sm:$0x10]
  %vm609 = vcmask 1044484
  %v610 = vsel %vm609, %v608, %v606
  %s611 = scalar_lea.vmem %s0, 346
  %v612 = vld [vmem:[%s611] sm:$0x20]
  %vm613 = vcmask 1045509
  %v614 = vsel %vm613, %v612, %v610
  %s615 = scalar_lea.vmem %s0, 409
  %v616 = vld [vmem:[%s615] sm:$0x40]
  %vm617 = vcmask 1046534
  %v618 = vsel %vm617, %v616, %v614
  %s619 = scalar_lea.vmem %s0, 472
  %v620 = vld [vmem:[%s619] sm:$0x80]
  %vm621 = vcmask 1047559
  %v622 = vsel %vm621, %v620, %v618
  %623 = vrot.lane.b32.xlu0 %v622, 112
  %v624 = vpop.permute.xlu0 %623
  %vm625 = vcmask 1048448
  %s626 = scalar_lea.vmem %s1, 24
  %627 = vst.msk [vmem:[%s626] sm:$0xff] %vm625, %v624
  %s628 = scalar_lea.vmem %s0, 63
  %v629 = vld [vmem:[%s628] sm:$0x1]
  %s630 = scalar_lea.vmem %s0, 126
  %v631 = vld [vmem:[%s630] sm:$0x2]
  %vm632 = vcmask 1041409
  %v633 = vsel %vm632, %v631, %v629
  %s634 = scalar_lea.vmem %s0, 189
  %v635 = vld [vmem:[%s634] sm:$0x4]
  %vm636 = vcmask 1042434
  %v637 = vsel %vm636, %v635, %v633
  %s638 = scalar_lea.vmem %s0, 252
  %v639 = vld [vmem:[%s638] sm:$0x8]
  %vm640 = vcmask 1043459
  %v641 = vsel %vm640, %v639, %v637
  %s642 = scalar_lea.vmem %s0, 315
  %v643 = vld [vmem:[%s642] sm:$0x10]
  %vm644 = vcmask 1044484
  %v645 = vsel %vm644, %v643, %v641
  %s646 = scalar_lea.vmem %s0, 378
  %v647 = vld [vmem:[%s646] sm:$0x20]
  %vm648 = vcmask 1045509
  %v649 = vsel %vm648, %v647, %v645
  %s650 = scalar_lea.vmem %s0, 441
  %v651 = vld [vmem:[%s650] sm:$0x40]
  %vm652 = vcmask 1046534
  %v653 = vsel %vm652, %v651, %v649
  %s654 = scalar_lea.vmem %s0, 504
  %v655 = vld [vmem:[%s654] sm:$0x80]
  %vm656 = vcmask 1047559
  %v657 = vsel %vm656, %v655, %v653
  %658 = vrot.lane.b32.xlu0 %v657, 112
  %v659 = vpop.permute.xlu0 %658
  %vm660 = vcmask 1048448
  %s661 = scalar_lea.vmem %s1, 56
  %662 = vst.msk [vmem:[%s661] sm:$0xff] %vm660, %v659
  %s663 = scalar_lea.vmem %s0, 543
  %v664 = vld [vmem:[%s663] sm:$0x1]
  %s665 = scalar_lea.vmem %s0, 606
  %v666 = vld [vmem:[%s665] sm:$0x2]
  %vm667 = vcmask 1041409
  %v668 = vsel %vm667, %v666, %v664
  %s669 = scalar_lea.vmem %s0, 669
  %v670 = vld [vmem:[%s669] sm:$0x4]
  %vm671 = vcmask 1042434
  %v672 = vsel %vm671, %v670, %v668
  %s673 = scalar_lea.vmem %s0, 732
  %v674 = vld [vmem:[%s673] sm:$0x8]
  %vm675 = vcmask 1043459
  %v676 = vsel %vm675, %v674, %v672
  %s677 = scalar_lea.vmem %s0, 795
  %v678 = vld [vmem:[%s677] sm:$0x10]
  %vm679 = vcmask 1044484
  %v680 = vsel %vm679, %v678, %v676
  %s681 = scalar_lea.vmem %s0, 858
  %v682 = vld [vmem:[%s681] sm:$0x20]
  %vm683 = vcmask 1045509
  %v684 = vsel %vm683, %v682, %v680
  %s685 = scalar_lea.vmem %s0, 921
  %v686 = vld [vmem:[%s685] sm:$0x40]
  %vm687 = vcmask 1046534
  %v688 = vsel %vm687, %v686, %v684
  %s689 = scalar_lea.vmem %s0, 984
  %v690 = vld [vmem:[%s689] sm:$0x80]
  %vm691 = vcmask 1047559
  %v692 = vsel %vm691, %v690, %v688
  %693 = vrot.lane.b32.xlu0 %v692, 112
  %v694 = vpop.permute.xlu0 %693
  %vm695 = vcmask 1048448
  %s696 = scalar_lea.vmem %s1, 88
  %697 = vst.msk [vmem:[%s696] sm:$0xff] %vm695, %v694
  %s698 = scalar_lea.vmem %s0, 575
  %v699 = vld [vmem:[%s698] sm:$0x1]
  %s700 = scalar_lea.vmem %s0, 638
  %v701 = vld [vmem:[%s700] sm:$0x2]
  %vm702 = vcmask 1041409
  %v703 = vsel %vm702, %v701, %v699
  %s704 = scalar_lea.vmem %s0, 701
  %v705 = vld [vmem:[%s704] sm:$0x4]
  %vm706 = vcmask 1042434
  %v707 = vsel %vm706, %v705, %v703
  %s708 = scalar_lea.vmem %s0, 764
  %v709 = vld [vmem:[%s708] sm:$0x8]
  %vm710 = vcmask 1043459
  %v711 = vsel %vm710, %v709, %v707
  %s712 = scalar_lea.vmem %s0, 827
  %v713 = vld [vmem:[%s712] sm:$0x10]
  %vm714 = vcmask 1044484
  %v715 = vsel %vm714, %v713, %v711
  %s716 = scalar_lea.vmem %s0, 890
  %v717 = vld [vmem:[%s716] sm:$0x20]
  %vm718 = vcmask 1045509
  %v719 = vsel %vm718, %v717, %v715
  %s720 = scalar_lea.vmem %s0, 953
  %v721 = vld [vmem:[%s720] sm:$0x40]
  %vm722 = vcmask 1046534
  %v723 = vsel %vm722, %v721, %v719
  %s724 = scalar_lea.vmem %s0, 1016
  %v725 = vld [vmem:[%s724] sm:$0x80]
  %vm726 = vcmask 1047559
  %v727 = vsel %vm726, %v725, %v723
  %728 = vrot.lane.b32.xlu0 %v727, 112
  %v729 = vpop.permute.xlu0 %728
  %vm730 = vcmask 1048448
  %s731 = scalar_lea.vmem %s1, 120
  %732 = vst.msk [vmem:[%s731] sm:$0xff] %vm730, %v729
  %s733 = scalar_lea.vmem %s0, 6
  %v734 = vld [vmem:[%s733] sm:$0x1]
  %s735 = scalar_lea.vmem %s0, 69
  %v736 = vld [vmem:[%s735] sm:$0x2]
  %vm737 = vcmask 1041409
  %v738 = vsel %vm737, %v736, %v734
  %s739 = scalar_lea.vmem %s0, 132
  %v740 = vld [vmem:[%s739] sm:$0x4]
  %vm741 = vcmask 1042434
  %v742 = vsel %vm741, %v740, %v738
  %s743 = scalar_lea.vmem %s0, 195
  %v744 = vld [vmem:[%s743] sm:$0x8]
  %vm745 = vcmask 1043459
  %v746 = vsel %vm745, %v744, %v742
  %s747 = scalar_lea.vmem %s0, 258
  %v748 = vld [vmem:[%s747] sm:$0x10]
  %vm749 = vcmask 1044484
  %v750 = vsel %vm749, %v748, %v746
  %s751 = scalar_lea.vmem %s0, 321
  %v752 = vld [vmem:[%s751] sm:$0x20]
  %vm753 = vcmask 1045509
  %v754 = vsel %vm753, %v752, %v750
  %s755 = scalar_lea.vmem %s0, 384
  %v756 = vld [vmem:[%s755] sm:$0x40]
  %vm757 = vcmask 1046534
  %v758 = vsel %vm757, %v756, %v754
  %s759 = scalar_lea.vmem %s0, 447
  %v760 = vld [vmem:[%s759] sm:$0x80]
  %vm761 = vcmask 1047559
  %v762 = vsel %vm761, %v760, %v758
  %763 = vrot.lane.b32.xlu0 %v762, 96
  %v764 = vpop.permute.xlu0 %763
  %vm765 = vcmask 917248
  %766 = vst.msk [vmem:[%s1] sm:$0xff] %vm765, %v764
  %s767 = scalar_lea.vmem %s0, 38
  %v768 = vld [vmem:[%s767] sm:$0x1]
  %s769 = scalar_lea.vmem %s0, 101
  %v770 = vld [vmem:[%s769] sm:$0x2]
  %vm771 = vcmask 1041409
  %v772 = vsel %vm771, %v770, %v768
  %s773 = scalar_lea.vmem %s0, 164
  %v774 = vld [vmem:[%s773] sm:$0x4]
  %vm775 = vcmask 1042434
  %v776 = vsel %vm775, %v774, %v772
  %s777 = scalar_lea.vmem %s0, 227
  %v778 = vld [vmem:[%s777] sm:$0x8]
  %vm779 = vcmask 1043459
  %v780 = vsel %vm779, %v778, %v776
  %s781 = scalar_lea.vmem %s0, 290
  %v782 = vld [vmem:[%s781] sm:$0x10]
  %vm783 = vcmask 1044484
  %v784 = vsel %vm783, %v782, %v780
  %s785 = scalar_lea.vmem %s0, 353
  %v786 = vld [vmem:[%s785] sm:$0x20]
  %vm787 = vcmask 1045509
  %v788 = vsel %vm787, %v786, %v784
  %s789 = scalar_lea.vmem %s0, 416
  %v790 = vld [vmem:[%s789] sm:$0x40]
  %vm791 = vcmask 1046534
  %v792 = vsel %vm791, %v790, %v788
  %s793 = scalar_lea.vmem %s0, 479
  %v794 = vld [vmem:[%s793] sm:$0x80]
  %vm795 = vcmask 1047559
  %v796 = vsel %vm795, %v794, %v792
  %797 = vrot.lane.b32.xlu0 %v796, 96
  %v798 = vpop.permute.xlu0 %797
  %vm799 = vcmask 917248
  %s800 = scalar_lea.vmem %s1, 32
  %801 = vst.msk [vmem:[%s800] sm:$0xff] %vm799, %v798
  %s802 = scalar_lea.vmem %s0, 518
  %v803 = vld [vmem:[%s802] sm:$0x1]
  %s804 = scalar_lea.vmem %s0, 581
  %v805 = vld [vmem:[%s804] sm:$0x2]
  %vm806 = vcmask 1041409
  %v807 = vsel %vm806, %v805, %v803
  %s808 = scalar_lea.vmem %s0, 644
  %v809 = vld [vmem:[%s808] sm:$0x4]
  %vm810 = vcmask 1042434
  %v811 = vsel %vm810, %v809, %v807
  %s812 = scalar_lea.vmem %s0, 707
  %v813 = vld [vmem:[%s812] sm:$0x8]
  %vm814 = vcmask 1043459
  %v815 = vsel %vm814, %v813, %v811
  %s816 = scalar_lea.vmem %s0, 770
  %v817 = vld [vmem:[%s816] sm:$0x10]
  %vm818 = vcmask 1044484
  %v819 = vsel %vm818, %v817, %v815
  %s820 = scalar_lea.vmem %s0, 833
  %v821 = vld [vmem:[%s820] sm:$0x20]
  %vm822 = vcmask 1045509
  %v823 = vsel %vm822, %v821, %v819
  %s824 = scalar_lea.vmem %s0, 896
  %v825 = vld [vmem:[%s824] sm:$0x40]
  %vm826 = vcmask 1046534
  %v827 = vsel %vm826, %v825, %v823
  %s828 = scalar_lea.vmem %s0, 959
  %v829 = vld [vmem:[%s828] sm:$0x80]
  %vm830 = vcmask 1047559
  %v831 = vsel %vm830, %v829, %v827
  %832 = vrot.lane.b32.xlu0 %v831, 96
  %v833 = vpop.permute.xlu0 %832
  %vm834 = vcmask 917248
  %s835 = scalar_lea.vmem %s1, 64
  %836 = vst.msk [vmem:[%s835] sm:$0xff] %vm834, %v833
  %s837 = scalar_lea.vmem %s0, 550
  %v838 = vld [vmem:[%s837] sm:$0x1]
  %s839 = scalar_lea.vmem %s0, 613
  %v840 = vld [vmem:[%s839] sm:$0x2]
  %vm841 = vcmask 1041409
  %v842 = vsel %vm841, %v840, %v838
  %s843 = scalar_lea.vmem %s0, 676
  %v844 = vld [vmem:[%s843] sm:$0x4]
  %vm845 = vcmask 1042434
  %v846 = vsel %vm845, %v844, %v842
  %s847 = scalar_lea.vmem %s0, 739
  %v848 = vld [vmem:[%s847] sm:$0x8]
  %vm849 = vcmask 1043459
  %v850 = vsel %vm849, %v848, %v846
  %s851 = scalar_lea.vmem %s0, 802
  %v852 = vld [vmem:[%s851] sm:$0x10]
  %vm853 = vcmask 1044484
  %v854 = vsel %vm853, %v852, %v850
  %s855 = scalar_lea.vmem %s0, 865
  %v856 = vld [vmem:[%s855] sm:$0x20]
  %vm857 = vcmask 1045509
  %v858 = vsel %vm857, %v856, %v854
  %s859 = scalar_lea.vmem %s0, 928
  %v860 = vld [vmem:[%s859] sm:$0x40]
  %vm861 = vcmask 1046534
  %v862 = vsel %vm861, %v860, %v858
  %s863 = scalar_lea.vmem %s0, 991
  %v864 = vld [vmem:[%s863] sm:$0x80]
  %vm865 = vcmask 1047559
  %v866 = vsel %vm865, %v864, %v862
  %867 = vrot.lane.b32.xlu0 %v866, 96
  %v868 = vpop.permute.xlu0 %867
  %vm869 = vcmask 917248
  %s870 = scalar_lea.vmem %s1, 96
  %871 = vst.msk [vmem:[%s870] sm:$0xff] %vm869, %v868
  %s872 = scalar_lea.vmem %s0, 14
  %v873 = vld [vmem:[%s872] sm:$0x1]
  %s874 = scalar_lea.vmem %s0, 77
  %v875 = vld [vmem:[%s874] sm:$0x2]
  %vm876 = vcmask 1041409
  %v877 = vsel %vm876, %v875, %v873
  %s878 = scalar_lea.vmem %s0, 140
  %v879 = vld [vmem:[%s878] sm:$0x4]
  %vm880 = vcmask 1042434
  %v881 = vsel %vm880, %v879, %v877
  %s882 = scalar_lea.vmem %s0, 203
  %v883 = vld [vmem:[%s882] sm:$0x8]
  %vm884 = vcmask 1043459
  %v885 = vsel %vm884, %v883, %v881
  %s886 = scalar_lea.vmem %s0, 266
  %v887 = vld [vmem:[%s886] sm:$0x10]
  %vm888 = vcmask 1044484
  %v889 = vsel %vm888, %v887, %v885
  %s890 = scalar_lea.vmem %s0, 329
  %v891 = vld [vmem:[%s890] sm:$0x20]
  %vm892 = vcmask 1045509
  %v893 = vsel %vm892, %v891, %v889
  %s894 = scalar_lea.vmem %s0, 392
  %v895 = vld [vmem:[%s894] sm:$0x40]
  %vm896 = vcmask 1046534
  %v897 = vsel %vm896, %v895, %v893
  %s898 = scalar_lea.vmem %s0, 455
  %v899 = vld [vmem:[%s898] sm:$0x80]
  %vm900 = vcmask 1047559
  %v901 = vsel %vm900, %v899, %v897
  %902 = vrot.lane.b32.xlu0 %v901, 96
  %v903 = vpop.permute.xlu0 %902
  %vm904 = vcmask 917248
  %s905 = scalar_lea.vmem %s1, 8
  %906 = vst.msk [vmem:[%s905] sm:$0xff] %vm904, %v903
  %s907 = scalar_lea.vmem %s0, 46
  %v908 = vld [vmem:[%s907] sm:$0x1]
  %s909 = scalar_lea.vmem %s0, 109
  %v910 = vld [vmem:[%s909] sm:$0x2]
  %vm911 = vcmask 1041409
  %v912 = vsel %vm911, %v910, %v908
  %s913 = scalar_lea.vmem %s0, 172
  %v914 = vld [vmem:[%s913] sm:$0x4]
  %vm915 = vcmask 1042434
  %v916 = vsel %vm915, %v914, %v912
  %s917 = scalar_lea.vmem %s0, 235
  %v918 = vld [vmem:[%s917] sm:$0x8]
  %vm919 = vcmask 1043459
  %v920 = vsel %vm919, %v918, %v916
  %s921 = scalar_lea.vmem %s0, 298
  %v922 = vld [vmem:[%s921] sm:$0x10]
  %vm923 = vcmask 1044484
  %v924 = vsel %vm923, %v922, %v920
  %s925 = scalar_lea.vmem %s0, 361
  %v926 = vld [vmem:[%s925] sm:$0x20]
  %vm927 = vcmask 1045509
  %v928 = vsel %vm927, %v926, %v924
  %s929 = scalar_lea.vmem %s0, 424
  %v930 = vld [vmem:[%s929] sm:$0x40]
  %vm931 = vcmask 1046534
  %v932 = vsel %vm931, %v930, %v928
  %s933 = scalar_lea.vmem %s0, 487
  %v934 = vld [vmem:[%s933] sm:$0x80]
  %vm935 = vcmask 1047559
  %v936 = vsel %vm935, %v934, %v932
  %937 = vrot.lane.b32.xlu0 %v936, 96
  %v938 = vpop.permute.xlu0 %937
  %vm939 = vcmask 917248
  %s940 = scalar_lea.vmem %s1, 40
  %941 = vst.msk [vmem:[%s940] sm:$0xff] %vm939, %v938
  %s942 = scalar_lea.vmem %s0, 526
  %v943 = vld [vmem:[%s942] sm:$0x1]
  %s944 = scalar_lea.vmem %s0, 589
  %v945 = vld [vmem:[%s944] sm:$0x2]
  %vm946 = vcmask 1041409
  %v947 = vsel %vm946, %v945, %v943
  %s948 = scalar_lea.vmem %s0, 652
  %v949 = vld [vmem:[%s948] sm:$0x4]
  %vm950 = vcmask 1042434
  %v951 = vsel %vm950, %v949, %v947
  %s952 = scalar_lea.vmem %s0, 715
  %v953 = vld [vmem:[%s952] sm:$0x8]
  %vm954 = vcmask 1043459
  %v955 = vsel %vm954, %v953, %v951
  %s956 = scalar_lea.vmem %s0, 778
  %v957 = vld [vmem:[%s956] sm:$0x10]
  %vm958 = vcmask 1044484
  %v959 = vsel %vm958, %v957, %v955
  %s960 = scalar_lea.vmem %s0, 841
  %v961 = vld [vmem:[%s960] sm:$0x20]
  %vm962 = vcmask 1045509
  %v963 = vsel %vm962, %v961, %v959
  %s964 = scalar_lea.vmem %s0, 904
  %v965 = vld [vmem:[%s964] sm:$0x40]
  %vm966 = vcmask 1046534
  %v967 = vsel %vm966, %v965, %v963
  %s968 = scalar_lea.vmem %s0, 967
  %v969 = vld [vmem:[%s968] sm:$0x80]
  %vm970 = vcmask 1047559
  %v971 = vsel %vm970, %v969, %v967
  %972 = vrot.lane.b32.xlu0 %v971, 96
  %v973 = vpop.permute.xlu0 %972
  %vm974 = vcmask 917248
  %s975 = scalar_lea.vmem %s1, 72
  %976 = vst.msk [vmem:[%s975] sm:$0xff] %vm974, %v973
  %s977 = scalar_lea.vmem %s0, 558
  %v978 = vld [vmem:[%s977] sm:$0x1]
  %s979 = scalar_lea.vmem %s0, 621
  %v980 = vld [vmem:[%s979] sm:$0x2]
  %vm981 = vcmask 1041409
  %v982 = vsel %vm981, %v980, %v978
  %s983 = scalar_lea.vmem %s0, 684
  %v984 = vld [vmem:[%s983] sm:$0x4]
  %vm985 = vcmask 1042434
  %v986 = vsel %vm985, %v984, %v982
  %s987 = scalar_lea.vmem %s0, 747
  %v988 = vld [vmem:[%s987] sm:$0x8]
  %vm989 = vcmask 1043459
  %v990 = vsel %vm989, %v988, %v986
  %s991 = scalar_lea.vmem %s0, 810
  %v992 = vld [vmem:[%s991] sm:$0x10]
  %vm993 = vcmask 1044484
  %v994 = vsel %vm993, %v992, %v990
  %s995 = scalar_lea.vmem %s0, 873
  %v996 = vld [vmem:[%s995] sm:$0x20]
  %vm997 = vcmask 1045509
  %v998 = vsel %vm997, %v996, %v994
  %s999 = scalar_lea.vmem %s0, 936
  %v1000 = vld [vmem:[%s999] sm:$0x40]
  %vm1001 = vcmask 1046534
  %v1002 = vsel %vm1001, %v1000, %v998
  %s1003 = scalar_lea.vmem %s0, 999
  %v1004 = vld [vmem:[%s1003] sm:$0x80]
  %vm1005 = vcmask 1047559
  %v1006 = vsel %vm1005, %v1004, %v1002
  %1007 = vrot.lane.b32.xlu0 %v1006, 96
  %v1008 = vpop.permute.xlu0 %1007
  %vm1009 = vcmask 917248
  %s1010 = scalar_lea.vmem %s1, 104
  %1011 = vst.msk [vmem:[%s1010] sm:$0xff] %vm1009, %v1008
  %s1012 = scalar_lea.vmem %s0, 22
  %v1013 = vld [vmem:[%s1012] sm:$0x1]
  %s1014 = scalar_lea.vmem %s0, 85
  %v1015 = vld [vmem:[%s1014] sm:$0x2]
  %vm1016 = vcmask 1041409
  %v1017 = vsel %vm1016, %v1015, %v1013
  %s1018 = scalar_lea.vmem %s0, 148
  %v1019 = vld [vmem:[%s1018] sm:$0x4]
  %vm1020 = vcmask 1042434
  %v1021 = vsel %vm1020, %v1019, %v1017
  %s1022 = scalar_lea.vmem %s0, 211
  %v1023 = vld [vmem:[%s1022] sm:$0x8]
  %vm1024 = vcmask 1043459
  %v1025 = vsel %vm1024, %v1023, %v1021
  %s1026 = scalar_lea.vmem %s0, 274
  %v1027 = vld [vmem:[%s1026] sm:$0x10]
  %vm1028 = vcmask 1044484
  %v1029 = vsel %vm1028, %v1027, %v1025
  %s1030 = scalar_lea.vmem %s0, 337
  %v1031 = vld [vmem:[%s1030] sm:$0x20]
  %vm1032 = vcmask 1045509
  %v1033 = vsel %vm1032, %v1031, %v1029
  %s1034 = scalar_lea.vmem %s0, 400
  %v1035 = vld [vmem:[%s1034] sm:$0x40]
  %vm1036 = vcmask 1046534
  %v1037 = vsel %vm1036, %v1035, %v1033
  %s1038 = scalar_lea.vmem %s0, 463
  %v1039 = vld [vmem:[%s1038] sm:$0x80]
  %vm1040 = vcmask 1047559
  %v1041 = vsel %vm1040, %v1039, %v1037
  %1042 = vrot.lane.b32.xlu0 %v1041, 96
  %v1043 = vpop.permute.xlu0 %1042
  %vm1044 = vcmask 917248
  %s1045 = scalar_lea.vmem %s1, 16
  %1046 = vst.msk [vmem:[%s1045] sm:$0xff] %vm1044, %v1043
  %s1047 = scalar_lea.vmem %s0, 54
  %v1048 = vld [vmem:[%s1047] sm:$0x1]
  %s1049 = scalar_lea.vmem %s0, 117
  %v1050 = vld [vmem:[%s1049] sm:$0x2]
  %vm1051 = vcmask 1041409
  %v1052 = vsel %vm1051, %v1050, %v1048
  %s1053 = scalar_lea.vmem %s0, 180
  %v1054 = vld [vmem:[%s1053] sm:$0x4]
  %vm1055 = vcmask 1042434
  %v1056 = vsel %vm1055, %v1054, %v1052
  %s1057 = scalar_lea.vmem %s0, 243
  %v1058 = vld [vmem:[%s1057] sm:$0x8]
  %vm1059 = vcmask 1043459
  %v1060 = vsel %vm1059, %v1058, %v1056
  %s1061 = scalar_lea.vmem %s0, 306
  %v1062 = vld [vmem:[%s1061] sm:$0x10]
  %vm1063 = vcmask 1044484
  %v1064 = vsel %vm1063, %v1062, %v1060
  %s1065 = scalar_lea.vmem %s0, 369
  %v1066 = vld [vmem:[%s1065] sm:$0x20]
  %vm1067 = vcmask 1045509
  %v1068 = vsel %vm1067, %v1066, %v1064
  %s1069 = scalar_lea.vmem %s0, 432
  %v1070 = vld [vmem:[%s1069] sm:$0x40]
  %vm1071 = vcmask 1046534
  %v1072 = vsel %vm1071, %v1070, %v1068
  %s1073 = scalar_lea.vmem %s0, 495
  %v1074 = vld [vmem:[%s1073] sm:$0x80]
  %vm1075 = vcmask 1047559
  %v1076 = vsel %vm1075, %v1074, %v1072
  %1077 = vrot.lane.b32.xlu0 %v1076, 96
  %v1078 = vpop.permute.xlu0 %1077
  %vm1079 = vcmask 917248
  %s1080 = scalar_lea.vmem %s1, 48
  %1081 = vst.msk [vmem:[%s1080] sm:$0xff] %vm1079, %v1078
  %s1082 = scalar_lea.vmem %s0, 534
  %v1083 = vld [vmem:[%s1082] sm:$0x1]
  %s1084 = scalar_lea.vmem %s0, 597
  %v1085 = vld [vmem:[%s1084] sm:$0x2]
  %vm1086 = vcmask 1041409
  %v1087 = vsel %vm1086, %v1085, %v1083
  %s1088 = scalar_lea.vmem %s0, 660
  %v1089 = vld [vmem:[%s1088] sm:$0x4]
  %vm1090 = vcmask 1042434
  %v1091 = vsel %vm1090, %v1089, %v1087
  %s1092 = scalar_lea.vmem %s0, 723
  %v1093 = vld [vmem:[%s1092] sm:$0x8]
  %vm1094 = vcmask 1043459
  %v1095 = vsel %vm1094, %v1093, %v1091
  %s1096 = scalar_lea.vmem %s0, 786
  %v1097 = vld [vmem:[%s1096] sm:$0x10]
  %vm1098 = vcmask 1044484
  %v1099 = vsel %vm1098, %v1097, %v1095
  %s1100 = scalar_lea.vmem %s0, 849
  %v1101 = vld [vmem:[%s1100] sm:$0x20]
  %vm1102 = vcmask 1045509
  %v1103 = vsel %vm1102, %v1101, %v1099
  %s1104 = scalar_lea.vmem %s0, 912
  %v1105 = vld [vmem:[%s1104] sm:$0x40]
  %vm1106 = vcmask 1046534
  %v1107 = vsel %vm1106, %v1105, %v1103
  %s1108 = scalar_lea.vmem %s0, 975
  %v1109 = vld [vmem:[%s1108] sm:$0x80]
  %vm1110 = vcmask 1047559
  %v1111 = vsel %vm1110, %v1109, %v1107
  %1112 = vrot.lane.b32.xlu0 %v1111, 96
  %v1113 = vpop.permute.xlu0 %1112
  %vm1114 = vcmask 917248
  %s1115 = scalar_lea.vmem %s1, 80
  %1116 = vst.msk [vmem:[%s1115] sm:$0xff] %vm1114, %v1113
  %s1117 = scalar_lea.vmem %s0, 566
  %v1118 = vld [vmem:[%s1117] sm:$0x1]
  %s1119 = scalar_lea.vmem %s0, 629
  %v1120 = vld [vmem:[%s1119] sm:$0x2]
  %vm1121 = vcmask 1041409
  %v1122 = vsel %vm1121, %v1120, %v1118
  %s1123 = scalar_lea.vmem %s0, 692
  %v1124 = vld [vmem:[%s1123] sm:$0x4]
  %vm1125 = vcmask 1042434
  %v1126 = vsel %vm1125, %v1124, %v1122
  %s1127 = scalar_lea.vmem %s0, 755
  %v1128 = vld [vmem:[%s1127] sm:$0x8]
  %vm1129 = vcmask 1043459
  %v1130 = vsel %vm1129, %v1128, %v1126
  %s1131 = scalar_lea.vmem %s0, 818
  %v1132 = vld [vmem:[%s1131] sm:$0x10]
  %vm1133 = vcmask 1044484
  %v1134 = vsel %vm1133, %v1132, %v1130
  %s1135 = scalar_lea.vmem %s0, 881
  %v1136 = vld [vmem:[%s1135] sm:$0x20]
  %vm1137 = vcmask 1045509
  %v1138 = vsel %vm1137, %v1136, %v1134
  %s1139 = scalar_lea.vmem %s0, 944
  %v1140 = vld [vmem:[%s1139] sm:$0x40]
  %vm1141 = vcmask 1046534
  %v1142 = vsel %vm1141, %v1140, %v1138
  %s1143 = scalar_lea.vmem %s0, 1007
  %v1144 = vld [vmem:[%s1143] sm:$0x80]
  %vm1145 = vcmask 1047559
  %v1146 = vsel %vm1145, %v1144, %v1142
  %1147 = vrot.lane.b32.xlu0 %v1146, 96
  %v1148 = vpop.permute.xlu0 %1147
  %vm1149 = vcmask 917248
  %s1150 = scalar_lea.vmem %s1, 112
  %1151 = vst.msk [vmem:[%s1150] sm:$0xff] %vm1149, %v1148
  %s1152 = scalar_lea.vmem %s0, 30
  %v1153 = vld [vmem:[%s1152] sm:$0x1]
  %s1154 = scalar_lea.vmem %s0, 93
  %v1155 = vld [vmem:[%s1154] sm:$0x2]
  %vm1156 = vcmask 1041409
  %v1157 = vsel %vm1156, %v1155, %v1153
  %s1158 = scalar_lea.vmem %s0, 156
  %v1159 = vld [vmem:[%s1158] sm:$0x4]
  %vm1160 = vcmask 1042434
  %v1161 = vsel %vm1160, %v1159, %v1157
  %s1162 = scalar_lea.vmem %s0, 219
  %v1163 = vld [vmem:[%s1162] sm:$0x8]
  %vm1164 = vcmask 1043459
  %v1165 = vsel %vm1164, %v1163, %v1161
  %s1166 = scalar_lea.vmem %s0, 282
  %v1167 = vld [vmem:[%s1166] sm:$0x10]
  %vm1168 = vcmask 1044484
  %v1169 = vsel %vm1168, %v1167, %v1165
  %s1170 = scalar_lea.vmem %s0, 345
  %v1171 = vld [vmem:[%s1170] sm:$0x20]
  %vm1172 = vcmask 1045509
  %v1173 = vsel %vm1172, %v1171, %v1169
  %s1174 = scalar_lea.vmem %s0, 408
  %v1175 = vld [vmem:[%s1174] sm:$0x40]
  %vm1176 = vcmask 1046534
  %v1177 = vsel %vm1176, %v1175, %v1173
  %s1178 = scalar_lea.vmem %s0, 471
  %v1179 = vld [vmem:[%s1178] sm:$0x80]
  %vm1180 = vcmask 1047559
  %v1181 = vsel %vm1180, %v1179, %v1177
  %1182 = vrot.lane.b32.xlu0 %v1181, 96
  %v1183 = vpop.permute.xlu0 %1182
  %vm1184 = vcmask 917248
  %s1185 = scalar_lea.vmem %s1, 24
  %1186 = vst.msk [vmem:[%s1185] sm:$0xff] %vm1184, %v1183
  %s1187 = scalar_lea.vmem %s0, 62
  %v1188 = vld [vmem:[%s1187] sm:$0x1]
  %s1189 = scalar_lea.vmem %s0, 125
  %v1190 = vld [vmem:[%s1189] sm:$0x2]
  %vm1191 = vcmask 1041409
  %v1192 = vsel %vm1191, %v1190, %v1188
  %s1193 = scalar_lea.vmem %s0, 188
  %v1194 = vld [vmem:[%s1193] sm:$0x4]
  %vm1195 = vcmask 1042434
  %v1196 = vsel %vm1195, %v1194, %v1192
  %s1197 = scalar_lea.vmem %s0, 251
  %v1198 = vld [vmem:[%s1197] sm:$0x8]
  %vm1199 = vcmask 1043459
  %v1200 = vsel %vm1199, %v1198, %v1196
  %s1201 = scalar_lea.vmem %s0, 314
  %v1202 = vld [vmem:[%s1201] sm:$0x10]
  %vm1203 = vcmask 1044484
  %v1204 = vsel %vm1203, %v1202, %v1200
  %s1205 = scalar_lea.vmem %s0, 377
  %v1206 = vld [vmem:[%s1205] sm:$0x20]
  %vm1207 = vcmask 1045509
  %v1208 = vsel %vm1207, %v1206, %v1204
  %s1209 = scalar_lea.vmem %s0, 440
  %v1210 = vld [vmem:[%s1209] sm:$0x40]
  %vm1211 = vcmask 1046534
  %v1212 = vsel %vm1211, %v1210, %v1208
  %s1213 = scalar_lea.vmem %s0, 503
  %v1214 = vld [vmem:[%s1213] sm:$0x80]
  %vm1215 = vcmask 1047559
  %v1216 = vsel %vm1215, %v1214, %v1212
  %1217 = vrot.lane.b32.xlu0 %v1216, 96
  %v1218 = vpop.permute.xlu0 %1217
  %vm1219 = vcmask 917248
  %s1220 = scalar_lea.vmem %s1, 56
  %1221 = vst.msk [vmem:[%s1220] sm:$0xff] %vm1219, %v1218
  %s1222 = scalar_lea.vmem %s0, 542
  %v1223 = vld [vmem:[%s1222] sm:$0x1]
  %s1224 = scalar_lea.vmem %s0, 605
  %v1225 = vld [vmem:[%s1224] sm:$0x2]
  %vm1226 = vcmask 1041409
  %v1227 = vsel %vm1226, %v1225, %v1223
  %s1228 = scalar_lea.vmem %s0, 668
  %v1229 = vld [vmem:[%s1228] sm:$0x4]
  %vm1230 = vcmask 1042434
  %v1231 = vsel %vm1230, %v1229, %v1227
  %s1232 = scalar_lea.vmem %s0, 731
  %v1233 = vld [vmem:[%s1232] sm:$0x8]
  %vm1234 = vcmask 1043459
  %v1235 = vsel %vm1234, %v1233, %v1231
  %s1236 = scalar_lea.vmem %s0, 794
  %v1237 = vld [vmem:[%s1236] sm:$0x10]
  %vm1238 = vcmask 1044484
  %v1239 = vsel %vm1238, %v1237, %v1235
  %s1240 = scalar_lea.vmem %s0, 857
  %v1241 = vld [vmem:[%s1240] sm:$0x20]
  %vm1242 = vcmask 1045509
  %v1243 = vsel %vm1242, %v1241, %v1239
  %s1244 = scalar_lea.vmem %s0, 920
  %v1245 = vld [vmem:[%s1244] sm:$0x40]
  %vm1246 = vcmask 1046534
  %v1247 = vsel %vm1246, %v1245, %v1243
  %s1248 = scalar_lea.vmem %s0, 983
  %v1249 = vld [vmem:[%s1248] sm:$0x80]
  %vm1250 = vcmask 1047559
  %v1251 = vsel %vm1250, %v1249, %v1247
  %1252 = vrot.lane.b32.xlu0 %v1251, 96
  %v1253 = vpop.permute.xlu0 %1252
  %vm1254 = vcmask 917248
  %s1255 = scalar_lea.vmem %s1, 88
  %1256 = vst.msk [vmem:[%s1255] sm:$0xff] %vm1254, %v1253
  %s1257 = scalar_lea.vmem %s0, 574
  %v1258 = vld [vmem:[%s1257] sm:$0x1]
  %s1259 = scalar_lea.vmem %s0, 637
  %v1260 = vld [vmem:[%s1259] sm:$0x2]
  %vm1261 = vcmask 1041409
  %v1262 = vsel %vm1261, %v1260, %v1258
  %s1263 = scalar_lea.vmem %s0, 700
  %v1264 = vld [vmem:[%s1263] sm:$0x4]
  %vm1265 = vcmask 1042434
  %v1266 = vsel %vm1265, %v1264, %v1262
  %s1267 = scalar_lea.vmem %s0, 763
  %v1268 = vld [vmem:[%s1267] sm:$0x8]
  %vm1269 = vcmask 1043459
  %v1270 = vsel %vm1269, %v1268, %v1266
  %s1271 = scalar_lea.vmem %s0, 826
  %v1272 = vld [vmem:[%s1271] sm:$0x10]
  %vm1273 = vcmask 1044484
  %v1274 = vsel %vm1273, %v1272, %v1270
  %s1275 = scalar_lea.vmem %s0, 889
  %v1276 = vld [vmem:[%s1275] sm:$0x20]
  %vm1277 = vcmask 1045509
  %v1278 = vsel %vm1277, %v1276, %v1274
  %s1279 = scalar_lea.vmem %s0, 952
  %v1280 = vld [vmem:[%s1279] sm:$0x40]
  %vm1281 = vcmask 1046534
  %v1282 = vsel %vm1281, %v1280, %v1278
  %s1283 = scalar_lea.vmem %s0, 1015
  %v1284 = vld [vmem:[%s1283] sm:$0x80]
  %vm1285 = vcmask 1047559
  %v1286 = vsel %vm1285, %v1284, %v1282
  %1287 = vrot.lane.b32.xlu0 %v1286, 96
  %v1288 = vpop.permute.xlu0 %1287
  %vm1289 = vcmask 917248
  %s1290 = scalar_lea.vmem %s1, 120
  %1291 = vst.msk [vmem:[%s1290] sm:$0xff] %vm1289, %v1288
  %s1292 = scalar_lea.vmem %s0, 5
  %v1293 = vld [vmem:[%s1292] sm:$0x1]
  %s1294 = scalar_lea.vmem %s0, 68
  %v1295 = vld [vmem:[%s1294] sm:$0x2]
  %vm1296 = vcmask 1041409
  %v1297 = vsel %vm1296, %v1295, %v1293
  %s1298 = scalar_lea.vmem %s0, 131
  %v1299 = vld [vmem:[%s1298] sm:$0x4]
  %vm1300 = vcmask 1042434
  %v1301 = vsel %vm1300, %v1299, %v1297
  %s1302 = scalar_lea.vmem %s0, 194
  %v1303 = vld [vmem:[%s1302] sm:$0x8]
  %vm1304 = vcmask 1043459
  %v1305 = vsel %vm1304, %v1303, %v1301
  %s1306 = scalar_lea.vmem %s0, 257
  %v1307 = vld [vmem:[%s1306] sm:$0x10]
  %vm1308 = vcmask 1044484
  %v1309 = vsel %vm1308, %v1307, %v1305
  %s1310 = scalar_lea.vmem %s0, 320
  %v1311 = vld [vmem:[%s1310] sm:$0x20]
  %vm1312 = vcmask 1045509
  %v1313 = vsel %vm1312, %v1311, %v1309
  %s1314 = scalar_lea.vmem %s0, 383
  %v1315 = vld [vmem:[%s1314] sm:$0x40]
  %vm1316 = vcmask 1046534
  %v1317 = vsel %vm1316, %v1315, %v1313
  %s1318 = scalar_lea.vmem %s0, 446
  %v1319 = vld [vmem:[%s1318] sm:$0x80]
  %vm1320 = vcmask 1047559
  %v1321 = vsel %vm1320, %v1319, %v1317
  %1322 = vrot.lane.b32.xlu0 %v1321, 80
  %v1323 = vpop.permute.xlu0 %1322
  %vm1324 = vcmask 786048
  %1325 = vst.msk [vmem:[%s1] sm:$0xff] %vm1324, %v1323
  %s1326 = scalar_lea.vmem %s0, 37
  %v1327 = vld [vmem:[%s1326] sm:$0x1]
  %s1328 = scalar_lea.vmem %s0, 100
  %v1329 = vld [vmem:[%s1328] sm:$0x2]
  %vm1330 = vcmask 1041409
  %v1331 = vsel %vm1330, %v1329, %v1327
  %s1332 = scalar_lea.vmem %s0, 163
  %v1333 = vld [vmem:[%s1332] sm:$0x4]
  %vm1334 = vcmask 1042434
  %v1335 = vsel %vm1334, %v1333, %v1331
  %s1336 = scalar_lea.vmem %s0, 226
  %v1337 = vld [vmem:[%s1336] sm:$0x8]
  %vm1338 = vcmask 1043459
  %v1339 = vsel %vm1338, %v1337, %v1335
  %s1340 = scalar_lea.vmem %s0, 289
  %v1341 = vld [vmem:[%s1340] sm:$0x10]
  %vm1342 = vcmask 1044484
  %v1343 = vsel %vm1342, %v1341, %v1339
  %s1344 = scalar_lea.vmem %s0, 352
  %v1345 = vld [vmem:[%s1344] sm:$0x20]
  %vm1346 = vcmask 1045509
  %v1347 = vsel %vm1346, %v1345, %v1343
  %s1348 = scalar_lea.vmem %s0, 415
  %v1349 = vld [vmem:[%s1348] sm:$0x40]
  %vm1350 = vcmask 1046534
  %v1351 = vsel %vm1350, %v1349, %v1347
  %s1352 = scalar_lea.vmem %s0, 478
  %v1353 = vld [vmem:[%s1352] sm:$0x80]
  %vm1354 = vcmask 1047559
  %v1355 = vsel %vm1354, %v1353, %v1351
  %1356 = vrot.lane.b32.xlu0 %v1355, 80
  %v1357 = vpop.permute.xlu0 %1356
  %vm1358 = vcmask 786048
  %s1359 = scalar_lea.vmem %s1, 32
  %1360 = vst.msk [vmem:[%s1359] sm:$0xff] %vm1358, %v1357
  %s1361 = scalar_lea.vmem %s0, 517
  %v1362 = vld [vmem:[%s1361] sm:$0x1]
  %s1363 = scalar_lea.vmem %s0, 580
  %v1364 = vld [vmem:[%s1363] sm:$0x2]
  %vm1365 = vcmask 1041409
  %v1366 = vsel %vm1365, %v1364, %v1362
  %s1367 = scalar_lea.vmem %s0, 643
  %v1368 = vld [vmem:[%s1367] sm:$0x4]
  %vm1369 = vcmask 1042434
  %v1370 = vsel %vm1369, %v1368, %v1366
  %s1371 = scalar_lea.vmem %s0, 706
  %v1372 = vld [vmem:[%s1371] sm:$0x8]
  %vm1373 = vcmask 1043459
  %v1374 = vsel %vm1373, %v1372, %v1370
  %s1375 = scalar_lea.vmem %s0, 769
  %v1376 = vld [vmem:[%s1375] sm:$0x10]
  %vm1377 = vcmask 1044484
  %v1378 = vsel %vm1377, %v1376, %v1374
  %s1379 = scalar_lea.vmem %s0, 832
  %v1380 = vld [vmem:[%s1379] sm:$0x20]
  %vm1381 = vcmask 1045509
  %v1382 = vsel %vm1381, %v1380, %v1378
  %s1383 = scalar_lea.vmem %s0, 895
  %v1384 = vld [vmem:[%s1383] sm:$0x40]
  %vm1385 = vcmask 1046534
  %v1386 = vsel %vm1385, %v1384, %v1382
  %s1387 = scalar_lea.vmem %s0, 958
  %v1388 = vld [vmem:[%s1387] sm:$0x80]
  %vm1389 = vcmask 1047559
  %v1390 = vsel %vm1389, %v1388, %v1386
  %1391 = vrot.lane.b32.xlu0 %v1390, 80
  %v1392 = vpop.permute.xlu0 %1391
  %vm1393 = vcmask 786048
  %s1394 = scalar_lea.vmem %s1, 64
  %1395 = vst.msk [vmem:[%s1394] sm:$0xff] %vm1393, %v1392
  %s1396 = scalar_lea.vmem %s0, 549
  %v1397 = vld [vmem:[%s1396] sm:$0x1]
  %s1398 = scalar_lea.vmem %s0, 612
  %v1399 = vld [vmem:[%s1398] sm:$0x2]
  %vm1400 = vcmask 1041409
  %v1401 = vsel %vm1400, %v1399, %v1397
  %s1402 = scalar_lea.vmem %s0, 675
  %v1403 = vld [vmem:[%s1402] sm:$0x4]
  %vm1404 = vcmask 1042434
  %v1405 = vsel %vm1404, %v1403, %v1401
  %s1406 = scalar_lea.vmem %s0, 738
  %v1407 = vld [vmem:[%s1406] sm:$0x8]
  %vm1408 = vcmask 1043459
  %v1409 = vsel %vm1408, %v1407, %v1405
  %s1410 = scalar_lea.vmem %s0, 801
  %v1411 = vld [vmem:[%s1410] sm:$0x10]
  %vm1412 = vcmask 1044484
  %v1413 = vsel %vm1412, %v1411, %v1409
  %s1414 = scalar_lea.vmem %s0, 864
  %v1415 = vld [vmem:[%s1414] sm:$0x20]
  %vm1416 = vcmask 1045509
  %v1417 = vsel %vm1416, %v1415, %v1413
  %s1418 = scalar_lea.vmem %s0, 927
  %v1419 = vld [vmem:[%s1418] sm:$0x40]
  %vm1420 = vcmask 1046534
  %v1421 = vsel %vm1420, %v1419, %v1417
  %s1422 = scalar_lea.vmem %s0, 990
  %v1423 = vld [vmem:[%s1422] sm:$0x80]
  %vm1424 = vcmask 1047559
  %v1425 = vsel %vm1424, %v1423, %v1421
  %1426 = vrot.lane.b32.xlu0 %v1425, 80
  %v1427 = vpop.permute.xlu0 %1426
  %vm1428 = vcmask 786048
  %s1429 = scalar_lea.vmem %s1, 96
  %1430 = vst.msk [vmem:[%s1429] sm:$0xff] %vm1428, %v1427
  %s1431 = scalar_lea.vmem %s0, 13
  %v1432 = vld [vmem:[%s1431] sm:$0x1]
  %s1433 = scalar_lea.vmem %s0, 76
  %v1434 = vld [vmem:[%s1433] sm:$0x2]
  %vm1435 = vcmask 1041409
  %v1436 = vsel %vm1435, %v1434, %v1432
  %s1437 = scalar_lea.vmem %s0, 139
  %v1438 = vld [vmem:[%s1437] sm:$0x4]
  %vm1439 = vcmask 1042434
  %v1440 = vsel %vm1439, %v1438, %v1436
  %s1441 = scalar_lea.vmem %s0, 202
  %v1442 = vld [vmem:[%s1441] sm:$0x8]
  %vm1443 = vcmask 1043459
  %v1444 = vsel %vm1443, %v1442, %v1440
  %s1445 = scalar_lea.vmem %s0, 265
  %v1446 = vld [vmem:[%s1445] sm:$0x10]
  %vm1447 = vcmask 1044484
  %v1448 = vsel %vm1447, %v1446, %v1444
  %s1449 = scalar_lea.vmem %s0, 328
  %v1450 = vld [vmem:[%s1449] sm:$0x20]
  %vm1451 = vcmask 1045509
  %v1452 = vsel %vm1451, %v1450, %v1448
  %s1453 = scalar_lea.vmem %s0, 391
  %v1454 = vld [vmem:[%s1453] sm:$0x40]
  %vm1455 = vcmask 1046534
  %v1456 = vsel %vm1455, %v1454, %v1452
  %s1457 = scalar_lea.vmem %s0, 454
  %v1458 = vld [vmem:[%s1457] sm:$0x80]
  %vm1459 = vcmask 1047559
  %v1460 = vsel %vm1459, %v1458, %v1456
  %1461 = vrot.lane.b32.xlu0 %v1460, 80
  %v1462 = vpop.permute.xlu0 %1461
  %vm1463 = vcmask 786048
  %s1464 = scalar_lea.vmem %s1, 8
  %1465 = vst.msk [vmem:[%s1464] sm:$0xff] %vm1463, %v1462
  %s1466 = scalar_lea.vmem %s0, 45
  %v1467 = vld [vmem:[%s1466] sm:$0x1]
  %s1468 = scalar_lea.vmem %s0, 108
  %v1469 = vld [vmem:[%s1468] sm:$0x2]
  %vm1470 = vcmask 1041409
  %v1471 = vsel %vm1470, %v1469, %v1467
  %s1472 = scalar_lea.vmem %s0, 171
  %v1473 = vld [vmem:[%s1472] sm:$0x4]
  %vm1474 = vcmask 1042434
  %v1475 = vsel %vm1474, %v1473, %v1471
  %s1476 = scalar_lea.vmem %s0, 234
  %v1477 = vld [vmem:[%s1476] sm:$0x8]
  %vm1478 = vcmask 1043459
  %v1479 = vsel %vm1478, %v1477, %v1475
  %s1480 = scalar_lea.vmem %s0, 297
  %v1481 = vld [vmem:[%s1480] sm:$0x10]
  %vm1482 = vcmask 1044484
  %v1483 = vsel %vm1482, %v1481, %v1479
  %s1484 = scalar_lea.vmem %s0, 360
  %v1485 = vld [vmem:[%s1484] sm:$0x20]
  %vm1486 = vcmask 1045509
  %v1487 = vsel %vm1486, %v1485, %v1483
  %s1488 = scalar_lea.vmem %s0, 423
  %v1489 = vld [vmem:[%s1488] sm:$0x40]
  %vm1490 = vcmask 1046534
  %v1491 = vsel %vm1490, %v1489, %v1487
  %s1492 = scalar_lea.vmem %s0, 486
  %v1493 = vld [vmem:[%s1492] sm:$0x80]
  %vm1494 = vcmask 1047559
  %v1495 = vsel %vm1494, %v1493, %v1491
  %1496 = vrot.lane.b32.xlu0 %v1495, 80
  %v1497 = vpop.permute.xlu0 %1496
  %vm1498 = vcmask 786048
  %s1499 = scalar_lea.vmem %s1, 40
  %1500 = vst.msk [vmem:[%s1499] sm:$0xff] %vm1498, %v1497
  %s1501 = scalar_lea.vmem %s0, 525
  %v1502 = vld [vmem:[%s1501] sm:$0x1]
  %s1503 = scalar_lea.vmem %s0, 588
  %v1504 = vld [vmem:[%s1503] sm:$0x2]
  %vm1505 = vcmask 1041409
  %v1506 = vsel %vm1505, %v1504, %v1502
  %s1507 = scalar_lea.vmem %s0, 651
  %v1508 = vld [vmem:[%s1507] sm:$0x4]
  %vm1509 = vcmask 1042434
  %v1510 = vsel %vm1509, %v1508, %v1506
  %s1511 = scalar_lea.vmem %s0, 714
  %v1512 = vld [vmem:[%s1511] sm:$0x8]
  %vm1513 = vcmask 1043459
  %v1514 = vsel %vm1513, %v1512, %v1510
  %s1515 = scalar_lea.vmem %s0, 777
  %v1516 = vld [vmem:[%s1515] sm:$0x10]
  %vm1517 = vcmask 1044484
  %v1518 = vsel %vm1517, %v1516, %v1514
  %s1519 = scalar_lea.vmem %s0, 840
  %v1520 = vld [vmem:[%s1519] sm:$0x20]
  %vm1521 = vcmask 1045509
  %v1522 = vsel %vm1521, %v1520, %v1518
  %s1523 = scalar_lea.vmem %s0, 903
  %v1524 = vld [vmem:[%s1523] sm:$0x40]
  %vm1525 = vcmask 1046534
  %v1526 = vsel %vm1525, %v1524, %v1522
  %s1527 = scalar_lea.vmem %s0, 966
  %v1528 = vld [vmem:[%s1527] sm:$0x80]
  %vm1529 = vcmask 1047559
  %v1530 = vsel %vm1529, %v1528, %v1526
  %1531 = vrot.lane.b32.xlu0 %v1530, 80
  %v1532 = vpop.permute.xlu0 %1531
  %vm1533 = vcmask 786048
  %s1534 = scalar_lea.vmem %s1, 72
  %1535 = vst.msk [vmem:[%s1534] sm:$0xff] %vm1533, %v1532
  %s1536 = scalar_lea.vmem %s0, 557
  %v1537 = vld [vmem:[%s1536] sm:$0x1]
  %s1538 = scalar_lea.vmem %s0, 620
  %v1539 = vld [vmem:[%s1538] sm:$0x2]
  %vm1540 = vcmask 1041409
  %v1541 = vsel %vm1540, %v1539, %v1537
  %s1542 = scalar_lea.vmem %s0, 683
  %v1543 = vld [vmem:[%s1542] sm:$0x4]
  %vm1544 = vcmask 1042434
  %v1545 = vsel %vm1544, %v1543, %v1541
  %s1546 = scalar_lea.vmem %s0, 746
  %v1547 = vld [vmem:[%s1546] sm:$0x8]
  %vm1548 = vcmask 1043459
  %v1549 = vsel %vm1548, %v1547, %v1545
  %s1550 = scalar_lea.vmem %s0, 809
  %v1551 = vld [vmem:[%s1550] sm:$0x10]
  %vm1552 = vcmask 1044484
  %v1553 = vsel %vm1552, %v1551, %v1549
  %s1554 = scalar_lea.vmem %s0, 872
  %v1555 = vld [vmem:[%s1554] sm:$0x20]
  %vm1556 = vcmask 1045509
  %v1557 = vsel %vm1556, %v1555, %v1553
  %s1558 = scalar_lea.vmem %s0, 935
  %v1559 = vld [vmem:[%s1558] sm:$0x40]
  %vm1560 = vcmask 1046534
  %v1561 = vsel %vm1560, %v1559, %v1557
  %s1562 = scalar_lea.vmem %s0, 998
  %v1563 = vld [vmem:[%s1562] sm:$0x80]
  %vm1564 = vcmask 1047559
  %v1565 = vsel %vm1564, %v1563, %v1561
  %1566 = vrot.lane.b32.xlu0 %v1565, 80
  %v1567 = vpop.permute.xlu0 %1566
  %vm1568 = vcmask 786048
  %s1569 = scalar_lea.vmem %s1, 104
  %1570 = vst.msk [vmem:[%s1569] sm:$0xff] %vm1568, %v1567
  %s1571 = scalar_lea.vmem %s0, 21
  %v1572 = vld [vmem:[%s1571] sm:$0x1]
  %s1573 = scalar_lea.vmem %s0, 84
  %v1574 = vld [vmem:[%s1573] sm:$0x2]
  %vm1575 = vcmask 1041409
  %v1576 = vsel %vm1575, %v1574, %v1572
  %s1577 = scalar_lea.vmem %s0, 147
  %v1578 = vld [vmem:[%s1577] sm:$0x4]
  %vm1579 = vcmask 1042434
  %v1580 = vsel %vm1579, %v1578, %v1576
  %s1581 = scalar_lea.vmem %s0, 210
  %v1582 = vld [vmem:[%s1581] sm:$0x8]
  %vm1583 = vcmask 1043459
  %v1584 = vsel %vm1583, %v1582, %v1580
  %s1585 = scalar_lea.vmem %s0, 273
  %v1586 = vld [vmem:[%s1585] sm:$0x10]
  %vm1587 = vcmask 1044484
  %v1588 = vsel %vm1587, %v1586, %v1584
  %s1589 = scalar_lea.vmem %s0, 336
  %v1590 = vld [vmem:[%s1589] sm:$0x20]
  %vm1591 = vcmask 1045509
  %v1592 = vsel %vm1591, %v1590, %v1588
  %s1593 = scalar_lea.vmem %s0, 399
  %v1594 = vld [vmem:[%s1593] sm:$0x40]
  %vm1595 = vcmask 1046534
  %v1596 = vsel %vm1595, %v1594, %v1592
  %s1597 = scalar_lea.vmem %s0, 462
  %v1598 = vld [vmem:[%s1597] sm:$0x80]
  %vm1599 = vcmask 1047559
  %v1600 = vsel %vm1599, %v1598, %v1596
  %1601 = vrot.lane.b32.xlu0 %v1600, 80
  %v1602 = vpop.permute.xlu0 %1601
  %vm1603 = vcmask 786048
  %s1604 = scalar_lea.vmem %s1, 16
  %1605 = vst.msk [vmem:[%s1604] sm:$0xff] %vm1603, %v1602
  %s1606 = scalar_lea.vmem %s0, 53
  %v1607 = vld [vmem:[%s1606] sm:$0x1]
  %s1608 = scalar_lea.vmem %s0, 116
  %v1609 = vld [vmem:[%s1608] sm:$0x2]
  %vm1610 = vcmask 1041409
  %v1611 = vsel %vm1610, %v1609, %v1607
  %s1612 = scalar_lea.vmem %s0, 179
  %v1613 = vld [vmem:[%s1612] sm:$0x4]
  %vm1614 = vcmask 1042434
  %v1615 = vsel %vm1614, %v1613, %v1611
  %s1616 = scalar_lea.vmem %s0, 242
  %v1617 = vld [vmem:[%s1616] sm:$0x8]
  %vm1618 = vcmask 1043459
  %v1619 = vsel %vm1618, %v1617, %v1615
  %s1620 = scalar_lea.vmem %s0, 305
  %v1621 = vld [vmem:[%s1620] sm:$0x10]
  %vm1622 = vcmask 1044484
  %v1623 = vsel %vm1622, %v1621, %v1619
  %s1624 = scalar_lea.vmem %s0, 368
  %v1625 = vld [vmem:[%s1624] sm:$0x20]
  %vm1626 = vcmask 1045509
  %v1627 = vsel %vm1626, %v1625, %v1623
  %s1628 = scalar_lea.vmem %s0, 431
  %v1629 = vld [vmem:[%s1628] sm:$0x40]
  %vm1630 = vcmask 1046534
  %v1631 = vsel %vm1630, %v1629, %v1627
  %s1632 = scalar_lea.vmem %s0, 494
  %v1633 = vld [vmem:[%s1632] sm:$0x80]
  %vm1634 = vcmask 1047559
  %v1635 = vsel %vm1634, %v1633, %v1631
  %1636 = vrot.lane.b32.xlu0 %v1635, 80
  %v1637 = vpop.permute.xlu0 %1636
  %vm1638 = vcmask 786048
  %s1639 = scalar_lea.vmem %s1, 48
  %1640 = vst.msk [vmem:[%s1639] sm:$0xff] %vm1638, %v1637
  %s1641 = scalar_lea.vmem %s0, 533
  %v1642 = vld [vmem:[%s1641] sm:$0x1]
  %s1643 = scalar_lea.vmem %s0, 596
  %v1644 = vld [vmem:[%s1643] sm:$0x2]
  %vm1645 = vcmask 1041409
  %v1646 = vsel %vm1645, %v1644, %v1642
  %s1647 = scalar_lea.vmem %s0, 659
  %v1648 = vld [vmem:[%s1647] sm:$0x4]
  %vm1649 = vcmask 1042434
  %v1650 = vsel %vm1649, %v1648, %v1646
  %s1651 = scalar_lea.vmem %s0, 722
  %v1652 = vld [vmem:[%s1651] sm:$0x8]
  %vm1653 = vcmask 1043459
  %v1654 = vsel %vm1653, %v1652, %v1650
  %s1655 = scalar_lea.vmem %s0, 785
  %v1656 = vld [vmem:[%s1655] sm:$0x10]
  %vm1657 = vcmask 1044484
  %v1658 = vsel %vm1657, %v1656, %v1654
  %s1659 = scalar_lea.vmem %s0, 848
  %v1660 = vld [vmem:[%s1659] sm:$0x20]
  %vm1661 = vcmask 1045509
  %v1662 = vsel %vm1661, %v1660, %v1658
  %s1663 = scalar_lea.vmem %s0, 911
  %v1664 = vld [vmem:[%s1663] sm:$0x40]
  %vm1665 = vcmask 1046534
  %v1666 = vsel %vm1665, %v1664, %v1662
  %s1667 = scalar_lea.vmem %s0, 974
  %v1668 = vld [vmem:[%s1667] sm:$0x80]
  %vm1669 = vcmask 1047559
  %v1670 = vsel %vm1669, %v1668, %v1666
  %1671 = vrot.lane.b32.xlu0 %v1670, 80
  %v1672 = vpop.permute.xlu0 %1671
  %vm1673 = vcmask 786048
  %s1674 = scalar_lea.vmem %s1, 80
  %1675 = vst.msk [vmem:[%s1674] sm:$0xff] %vm1673, %v1672
  %s1676 = scalar_lea.vmem %s0, 565
  %v1677 = vld [vmem:[%s1676] sm:$0x1]
  %s1678 = scalar_lea.vmem %s0, 628
  %v1679 = vld [vmem:[%s1678] sm:$0x2]
  %vm1680 = vcmask 1041409
  %v1681 = vsel %vm1680, %v1679, %v1677
  %s1682 = scalar_lea.vmem %s0, 691
  %v1683 = vld [vmem:[%s1682] sm:$0x4]
  %vm1684 = vcmask 1042434
  %v1685 = vsel %vm1684, %v1683, %v1681
  %s1686 = scalar_lea.vmem %s0, 754
  %v1687 = vld [vmem:[%s1686] sm:$0x8]
  %vm1688 = vcmask 1043459
  %v1689 = vsel %vm1688, %v1687, %v1685
  %s1690 = scalar_lea.vmem %s0, 817
  %v1691 = vld [vmem:[%s1690] sm:$0x10]
  %vm1692 = vcmask 1044484
  %v1693 = vsel %vm1692, %v1691, %v1689
  %s1694 = scalar_lea.vmem %s0, 880
  %v1695 = vld [vmem:[%s1694] sm:$0x20]
  %vm1696 = vcmask 1045509
  %v1697 = vsel %vm1696, %v1695, %v1693
  %s1698 = scalar_lea.vmem %s0, 943
  %v1699 = vld [vmem:[%s1698] sm:$0x40]
  %vm1700 = vcmask 1046534
  %v1701 = vsel %vm1700, %v1699, %v1697
  %s1702 = scalar_lea.vmem %s0, 1006
  %v1703 = vld [vmem:[%s1702] sm:$0x80]
  %vm1704 = vcmask 1047559
  %v1705 = vsel %vm1704, %v1703, %v1701
  %1706 = vrot.lane.b32.xlu0 %v1705, 80
  %v1707 = vpop.permute.xlu0 %1706
  %vm1708 = vcmask 786048
  %s1709 = scalar_lea.vmem %s1, 112
  %1710 = vst.msk [vmem:[%s1709] sm:$0xff] %vm1708, %v1707
  %s1711 = scalar_lea.vmem %s0, 29
  %v1712 = vld [vmem:[%s1711] sm:$0x1]
  %s1713 = scalar_lea.vmem %s0, 92
  %v1714 = vld [vmem:[%s1713] sm:$0x2]
  %vm1715 = vcmask 1041409
  %v1716 = vsel %vm1715, %v1714, %v1712
  %s1717 = scalar_lea.vmem %s0, 155
  %v1718 = vld [vmem:[%s1717] sm:$0x4]
  %vm1719 = vcmask 1042434
  %v1720 = vsel %vm1719, %v1718, %v1716
  %s1721 = scalar_lea.vmem %s0, 218
  %v1722 = vld [vmem:[%s1721] sm:$0x8]
  %vm1723 = vcmask 1043459
  %v1724 = vsel %vm1723, %v1722, %v1720
  %s1725 = scalar_lea.vmem %s0, 281
  %v1726 = vld [vmem:[%s1725] sm:$0x10]
  %vm1727 = vcmask 1044484
  %v1728 = vsel %vm1727, %v1726, %v1724
  %s1729 = scalar_lea.vmem %s0, 344
  %v1730 = vld [vmem:[%s1729] sm:$0x20]
  %vm1731 = vcmask 1045509
  %v1732 = vsel %vm1731, %v1730, %v1728
  %s1733 = scalar_lea.vmem %s0, 407
  %v1734 = vld [vmem:[%s1733] sm:$0x40]
  %vm1735 = vcmask 1046534
  %v1736 = vsel %vm1735, %v1734, %v1732
  %s1737 = scalar_lea.vmem %s0, 470
  %v1738 = vld [vmem:[%s1737] sm:$0x80]
  %vm1739 = vcmask 1047559
  %v1740 = vsel %vm1739, %v1738, %v1736
  %1741 = vrot.lane.b32.xlu0 %v1740, 80
  %v1742 = vpop.permute.xlu0 %1741
  %vm1743 = vcmask 786048
  %s1744 = scalar_lea.vmem %s1, 24
  %1745 = vst.msk [vmem:[%s1744] sm:$0xff] %vm1743, %v1742
  %s1746 = scalar_lea.vmem %s0, 61
  %v1747 = vld [vmem:[%s1746] sm:$0x1]
  %s1748 = scalar_lea.vmem %s0, 124
  %v1749 = vld [vmem:[%s1748] sm:$0x2]
  %vm1750 = vcmask 1041409
  %v1751 = vsel %vm1750, %v1749, %v1747
  %s1752 = scalar_lea.vmem %s0, 187
  %v1753 = vld [vmem:[%s1752] sm:$0x4]
  %vm1754 = vcmask 1042434
  %v1755 = vsel %vm1754, %v1753, %v1751
  %s1756 = scalar_lea.vmem %s0, 250
  %v1757 = vld [vmem:[%s1756] sm:$0x8]
  %vm1758 = vcmask 1043459
  %v1759 = vsel %vm1758, %v1757, %v1755
  %s1760 = scalar_lea.vmem %s0, 313
  %v1761 = vld [vmem:[%s1760] sm:$0x10]
  %vm1762 = vcmask 1044484
  %v1763 = vsel %vm1762, %v1761, %v1759
  %s1764 = scalar_lea.vmem %s0, 376
  %v1765 = vld [vmem:[%s1764] sm:$0x20]
  %vm1766 = vcmask 1045509
  %v1767 = vsel %vm1766, %v1765, %v1763
  %s1768 = scalar_lea.vmem %s0, 439
  %v1769 = vld [vmem:[%s1768] sm:$0x40]
  %vm1770 = vcmask 1046534
  %v1771 = vsel %vm1770, %v1769, %v1767
  %s1772 = scalar_lea.vmem %s0, 502
  %v1773 = vld [vmem:[%s1772] sm:$0x80]
  %vm1774 = vcmask 1047559
  %v1775 = vsel %vm1774, %v1773, %v1771
  %1776 = vrot.lane.b32.xlu0 %v1775, 80
  %v1777 = vpop.permute.xlu0 %1776
  %vm1778 = vcmask 786048
  %s1779 = scalar_lea.vmem %s1, 56
  %1780 = vst.msk [vmem:[%s1779] sm:$0xff] %vm1778, %v1777
  %s1781 = scalar_lea.vmem %s0, 541
  %v1782 = vld [vmem:[%s1781] sm:$0x1]
  %s1783 = scalar_lea.vmem %s0, 604
  %v1784 = vld [vmem:[%s1783] sm:$0x2]
  %vm1785 = vcmask 1041409
  %v1786 = vsel %vm1785, %v1784, %v1782
  %s1787 = scalar_lea.vmem %s0, 667
  %v1788 = vld [vmem:[%s1787] sm:$0x4]
  %vm1789 = vcmask 1042434
  %v1790 = vsel %vm1789, %v1788, %v1786
  %s1791 = scalar_lea.vmem %s0, 730
  %v1792 = vld [vmem:[%s1791] sm:$0x8]
  %vm1793 = vcmask 1043459
  %v1794 = vsel %vm1793, %v1792, %v1790
  %s1795 = scalar_lea.vmem %s0, 793
  %v1796 = vld [vmem:[%s1795] sm:$0x10]
  %vm1797 = vcmask 1044484
  %v1798 = vsel %vm1797, %v1796, %v1794
  %s1799 = scalar_lea.vmem %s0, 856
  %v1800 = vld [vmem:[%s1799] sm:$0x20]
  %vm1801 = vcmask 1045509
  %v1802 = vsel %vm1801, %v1800, %v1798
  %s1803 = scalar_lea.vmem %s0, 919
  %v1804 = vld [vmem:[%s1803] sm:$0x40]
  %vm1805 = vcmask 1046534
  %v1806 = vsel %vm1805, %v1804, %v1802
  %s1807 = scalar_lea.vmem %s0, 982
  %v1808 = vld [vmem:[%s1807] sm:$0x80]
  %vm1809 = vcmask 1047559
  %v1810 = vsel %vm1809, %v1808, %v1806
  %1811 = vrot.lane.b32.xlu0 %v1810, 80
  %v1812 = vpop.permute.xlu0 %1811
  %vm1813 = vcmask 786048
  %s1814 = scalar_lea.vmem %s1, 88
  %1815 = vst.msk [vmem:[%s1814] sm:$0xff] %vm1813, %v1812
  %s1816 = scalar_lea.vmem %s0, 573
  %v1817 = vld [vmem:[%s1816] sm:$0x1]
  %s1818 = scalar_lea.vmem %s0, 636
  %v1819 = vld [vmem:[%s1818] sm:$0x2]
  %vm1820 = vcmask 1041409
  %v1821 = vsel %vm1820, %v1819, %v1817
  %s1822 = scalar_lea.vmem %s0, 699
  %v1823 = vld [vmem:[%s1822] sm:$0x4]
  %vm1824 = vcmask 1042434
  %v1825 = vsel %vm1824, %v1823, %v1821
  %s1826 = scalar_lea.vmem %s0, 762
  %v1827 = vld [vmem:[%s1826] sm:$0x8]
  %vm1828 = vcmask 1043459
  %v1829 = vsel %vm1828, %v1827, %v1825
  %s1830 = scalar_lea.vmem %s0, 825
  %v1831 = vld [vmem:[%s1830] sm:$0x10]
  %vm1832 = vcmask 1044484
  %v1833 = vsel %vm1832, %v1831, %v1829
  %s1834 = scalar_lea.vmem %s0, 888
  %v1835 = vld [vmem:[%s1834] sm:$0x20]
  %vm1836 = vcmask 1045509
  %v1837 = vsel %vm1836, %v1835, %v1833
  %s1838 = scalar_lea.vmem %s0, 951
  %v1839 = vld [vmem:[%s1838] sm:$0x40]
  %vm1840 = vcmask 1046534
  %v1841 = vsel %vm1840, %v1839, %v1837
  %s1842 = scalar_lea.vmem %s0, 1014
  %v1843 = vld [vmem:[%s1842] sm:$0x80]
  %vm1844 = vcmask 1047559
  %v1845 = vsel %vm1844, %v1843, %v1841
  %1846 = vrot.lane.b32.xlu0 %v1845, 80
  %v1847 = vpop.permute.xlu0 %1846
  %vm1848 = vcmask 786048
  %s1849 = scalar_lea.vmem %s1, 120
  %1850 = vst.msk [vmem:[%s1849] sm:$0xff] %vm1848, %v1847
  %s1851 = scalar_lea.vmem %s0, 4
  %v1852 = vld [vmem:[%s1851] sm:$0x1]
  %s1853 = scalar_lea.vmem %s0, 67
  %v1854 = vld [vmem:[%s1853] sm:$0x2]
  %vm1855 = vcmask 1041409
  %v1856 = vsel %vm1855, %v1854, %v1852
  %s1857 = scalar_lea.vmem %s0, 130
  %v1858 = vld [vmem:[%s1857] sm:$0x4]
  %vm1859 = vcmask 1042434
  %v1860 = vsel %vm1859, %v1858, %v1856
  %s1861 = scalar_lea.vmem %s0, 193
  %v1862 = vld [vmem:[%s1861] sm:$0x8]
  %vm1863 = vcmask 1043459
  %v1864 = vsel %vm1863, %v1862, %v1860
  %s1865 = scalar_lea.vmem %s0, 256
  %v1866 = vld [vmem:[%s1865] sm:$0x10]
  %vm1867 = vcmask 1044484
  %v1868 = vsel %vm1867, %v1866, %v1864
  %s1869 = scalar_lea.vmem %s0, 319
  %v1870 = vld [vmem:[%s1869] sm:$0x20]
  %vm1871 = vcmask 1045509
  %v1872 = vsel %vm1871, %v1870, %v1868
  %s1873 = scalar_lea.vmem %s0, 382
  %v1874 = vld [vmem:[%s1873] sm:$0x40]
  %vm1875 = vcmask 1046534
  %v1876 = vsel %vm1875, %v1874, %v1872
  %s1877 = scalar_lea.vmem %s0, 445
  %v1878 = vld [vmem:[%s1877] sm:$0x80]
  %vm1879 = vcmask 1047559
  %v1880 = vsel %vm1879, %v1878, %v1876
  %1881 = vrot.lane.b32.xlu0 %v1880, 64
  %v1882 = vpop.permute.xlu0 %1881
  %vm1883 = vcmask 654848
  %1884 = vst.msk [vmem:[%s1] sm:$0xff] %vm1883, %v1882
  %s1885 = scalar_lea.vmem %s0, 36
  %v1886 = vld [vmem:[%s1885] sm:$0x1]
  %s1887 = scalar_lea.vmem %s0, 99
  %v1888 = vld [vmem:[%s1887] sm:$0x2]
  %vm1889 = vcmask 1041409
  %v1890 = vsel %vm1889, %v1888, %v1886
  %s1891 = scalar_lea.vmem %s0, 162
  %v1892 = vld [vmem:[%s1891] sm:$0x4]
  %vm1893 = vcmask 1042434
  %v1894 = vsel %vm1893, %v1892, %v1890
  %s1895 = scalar_lea.vmem %s0, 225
  %v1896 = vld [vmem:[%s1895] sm:$0x8]
  %vm1897 = vcmask 1043459
  %v1898 = vsel %vm1897, %v1896, %v1894
  %s1899 = scalar_lea.vmem %s0, 288
  %v1900 = vld [vmem:[%s1899] sm:$0x10]
  %vm1901 = vcmask 1044484
  %v1902 = vsel %vm1901, %v1900, %v1898
  %s1903 = scalar_lea.vmem %s0, 351
  %v1904 = vld [vmem:[%s1903] sm:$0x20]
  %vm1905 = vcmask 1045509
  %v1906 = vsel %vm1905, %v1904, %v1902
  %s1907 = scalar_lea.vmem %s0, 414
  %v1908 = vld [vmem:[%s1907] sm:$0x40]
  %vm1909 = vcmask 1046534
  %v1910 = vsel %vm1909, %v1908, %v1906
  %s1911 = scalar_lea.vmem %s0, 477
  %v1912 = vld [vmem:[%s1911] sm:$0x80]
  %vm1913 = vcmask 1047559
  %v1914 = vsel %vm1913, %v1912, %v1910
  %1915 = vrot.lane.b32.xlu0 %v1914, 64
  %v1916 = vpop.permute.xlu0 %1915
  %vm1917 = vcmask 654848
  %s1918 = scalar_lea.vmem %s1, 32
  %1919 = vst.msk [vmem:[%s1918] sm:$0xff] %vm1917, %v1916
  %s1920 = scalar_lea.vmem %s0, 516
  %v1921 = vld [vmem:[%s1920] sm:$0x1]
  %s1922 = scalar_lea.vmem %s0, 579
  %v1923 = vld [vmem:[%s1922] sm:$0x2]
  %vm1924 = vcmask 1041409
  %v1925 = vsel %vm1924, %v1923, %v1921
  %s1926 = scalar_lea.vmem %s0, 642
  %v1927 = vld [vmem:[%s1926] sm:$0x4]
  %vm1928 = vcmask 1042434
  %v1929 = vsel %vm1928, %v1927, %v1925
  %s1930 = scalar_lea.vmem %s0, 705
  %v1931 = vld [vmem:[%s1930] sm:$0x8]
  %vm1932 = vcmask 1043459
  %v1933 = vsel %vm1932, %v1931, %v1929
  %s1934 = scalar_lea.vmem %s0, 768
  %v1935 = vld [vmem:[%s1934] sm:$0x10]
  %vm1936 = vcmask 1044484
  %v1937 = vsel %vm1936, %v1935, %v1933
  %s1938 = scalar_lea.vmem %s0, 831
  %v1939 = vld [vmem:[%s1938] sm:$0x20]
  %vm1940 = vcmask 1045509
  %v1941 = vsel %vm1940, %v1939, %v1937
  %s1942 = scalar_lea.vmem %s0, 894
  %v1943 = vld [vmem:[%s1942] sm:$0x40]
  %vm1944 = vcmask 1046534
  %v1945 = vsel %vm1944, %v1943, %v1941
  %s1946 = scalar_lea.vmem %s0, 957
  %v1947 = vld [vmem:[%s1946] sm:$0x80]
  %vm1948 = vcmask 1047559
  %v1949 = vsel %vm1948, %v1947, %v1945
  %1950 = vrot.lane.b32.xlu0 %v1949, 64
  %v1951 = vpop.permute.xlu0 %1950
  %vm1952 = vcmask 654848
  %s1953 = scalar_lea.vmem %s1, 64
  %1954 = vst.msk [vmem:[%s1953] sm:$0xff] %vm1952, %v1951
  %s1955 = scalar_lea.vmem %s0, 548
  %v1956 = vld [vmem:[%s1955] sm:$0x1]
  %s1957 = scalar_lea.vmem %s0, 611
  %v1958 = vld [vmem:[%s1957] sm:$0x2]
  %vm1959 = vcmask 1041409
  %v1960 = vsel %vm1959, %v1958, %v1956
  %s1961 = scalar_lea.vmem %s0, 674
  %v1962 = vld [vmem:[%s1961] sm:$0x4]
  %vm1963 = vcmask 1042434
  %v1964 = vsel %vm1963, %v1962, %v1960
  %s1965 = scalar_lea.vmem %s0, 737
  %v1966 = vld [vmem:[%s1965] sm:$0x8]
  %vm1967 = vcmask 1043459
  %v1968 = vsel %vm1967, %v1966, %v1964
  %s1969 = scalar_lea.vmem %s0, 800
  %v1970 = vld [vmem:[%s1969] sm:$0x10]
  %vm1971 = vcmask 1044484
  %v1972 = vsel %vm1971, %v1970, %v1968
  %s1973 = scalar_lea.vmem %s0, 863
  %v1974 = vld [vmem:[%s1973] sm:$0x20]
  %vm1975 = vcmask 1045509
  %v1976 = vsel %vm1975, %v1974, %v1972
  %s1977 = scalar_lea.vmem %s0, 926
  %v1978 = vld [vmem:[%s1977] sm:$0x40]
  %vm1979 = vcmask 1046534
  %v1980 = vsel %vm1979, %v1978, %v1976
  %s1981 = scalar_lea.vmem %s0, 989
  %v1982 = vld [vmem:[%s1981] sm:$0x80]
  %vm1983 = vcmask 1047559
  %v1984 = vsel %vm1983, %v1982, %v1980
  %1985 = vrot.lane.b32.xlu0 %v1984, 64
  %v1986 = vpop.permute.xlu0 %1985
  %vm1987 = vcmask 654848
  %s1988 = scalar_lea.vmem %s1, 96
  %1989 = vst.msk [vmem:[%s1988] sm:$0xff] %vm1987, %v1986
  %s1990 = scalar_lea.vmem %s0, 12
  %v1991 = vld [vmem:[%s1990] sm:$0x1]
  %s1992 = scalar_lea.vmem %s0, 75
  %v1993 = vld [vmem:[%s1992] sm:$0x2]
  %vm1994 = vcmask 1041409
  %v1995 = vsel %vm1994, %v1993, %v1991
  %s1996 = scalar_lea.vmem %s0, 138
  %v1997 = vld [vmem:[%s1996] sm:$0x4]
  %vm1998 = vcmask 1042434
  %v1999 = vsel %vm1998, %v1997, %v1995
  %s2000 = scalar_lea.vmem %s0, 201
  %v2001 = vld [vmem:[%s2000] sm:$0x8]
  %vm2002 = vcmask 1043459
  %v2003 = vsel %vm2002, %v2001, %v1999
  %s2004 = scalar_lea.vmem %s0, 264
  %v2005 = vld [vmem:[%s2004] sm:$0x10]
  %vm2006 = vcmask 1044484
  %v2007 = vsel %vm2006, %v2005, %v2003
  %s2008 = scalar_lea.vmem %s0, 327
  %v2009 = vld [vmem:[%s2008] sm:$0x20]
  %vm2010 = vcmask 1045509
  %v2011 = vsel %vm2010, %v2009, %v2007
  %s2012 = scalar_lea.vmem %s0, 390
  %v2013 = vld [vmem:[%s2012] sm:$0x40]
  %vm2014 = vcmask 1046534
  %v2015 = vsel %vm2014, %v2013, %v2011
  %s2016 = scalar_lea.vmem %s0, 453
  %v2017 = vld [vmem:[%s2016] sm:$0x80]
  %vm2018 = vcmask 1047559
  %v2019 = vsel %vm2018, %v2017, %v2015
  %2020 = vrot.lane.b32.xlu0 %v2019, 64
  %v2021 = vpop.permute.xlu0 %2020
  %vm2022 = vcmask 654848
  %s2023 = scalar_lea.vmem %s1, 8
  %2024 = vst.msk [vmem:[%s2023] sm:$0xff] %vm2022, %v2021
  %s2025 = scalar_lea.vmem %s0, 44
  %v2026 = vld [vmem:[%s2025] sm:$0x1]
  %s2027 = scalar_lea.vmem %s0, 107
  %v2028 = vld [vmem:[%s2027] sm:$0x2]
  %vm2029 = vcmask 1041409
  %v2030 = vsel %vm2029, %v2028, %v2026
  %s2031 = scalar_lea.vmem %s0, 170
  %v2032 = vld [vmem:[%s2031] sm:$0x4]
  %vm2033 = vcmask 1042434
  %v2034 = vsel %vm2033, %v2032, %v2030
  %s2035 = scalar_lea.vmem %s0, 233
  %v2036 = vld [vmem:[%s2035] sm:$0x8]
  %vm2037 = vcmask 1043459
  %v2038 = vsel %vm2037, %v2036, %v2034
  %s2039 = scalar_lea.vmem %s0, 296
  %v2040 = vld [vmem:[%s2039] sm:$0x10]
  %vm2041 = vcmask 1044484
  %v2042 = vsel %vm2041, %v2040, %v2038
  %s2043 = scalar_lea.vmem %s0, 359
  %v2044 = vld [vmem:[%s2043] sm:$0x20]
  %vm2045 = vcmask 1045509
  %v2046 = vsel %vm2045, %v2044, %v2042
  %s2047 = scalar_lea.vmem %s0, 422
  %v2048 = vld [vmem:[%s2047] sm:$0x40]
  %vm2049 = vcmask 1046534
  %v2050 = vsel %vm2049, %v2048, %v2046
  %s2051 = scalar_lea.vmem %s0, 485
  %v2052 = vld [vmem:[%s2051] sm:$0x80]
  %vm2053 = vcmask 1047559
  %v2054 = vsel %vm2053, %v2052, %v2050
  %2055 = vrot.lane.b32.xlu0 %v2054, 64
  %v2056 = vpop.permute.xlu0 %2055
  %vm2057 = vcmask 654848
  %s2058 = scalar_lea.vmem %s1, 40
  %2059 = vst.msk [vmem:[%s2058] sm:$0xff] %vm2057, %v2056
  %s2060 = scalar_lea.vmem %s0, 524
  %v2061 = vld [vmem:[%s2060] sm:$0x1]
  %s2062 = scalar_lea.vmem %s0, 587
  %v2063 = vld [vmem:[%s2062] sm:$0x2]
  %vm2064 = vcmask 1041409
  %v2065 = vsel %vm2064, %v2063, %v2061
  %s2066 = scalar_lea.vmem %s0, 650
  %v2067 = vld [vmem:[%s2066] sm:$0x4]
  %vm2068 = vcmask 1042434
  %v2069 = vsel %vm2068, %v2067, %v2065
  %s2070 = scalar_lea.vmem %s0, 713
  %v2071 = vld [vmem:[%s2070] sm:$0x8]
  %vm2072 = vcmask 1043459
  %v2073 = vsel %vm2072, %v2071, %v2069
  %s2074 = scalar_lea.vmem %s0, 776
  %v2075 = vld [vmem:[%s2074] sm:$0x10]
  %vm2076 = vcmask 1044484
  %v2077 = vsel %vm2076, %v2075, %v2073
  %s2078 = scalar_lea.vmem %s0, 839
  %v2079 = vld [vmem:[%s2078] sm:$0x20]
  %vm2080 = vcmask 1045509
  %v2081 = vsel %vm2080, %v2079, %v2077
  %s2082 = scalar_lea.vmem %s0, 902
  %v2083 = vld [vmem:[%s2082] sm:$0x40]
  %vm2084 = vcmask 1046534
  %v2085 = vsel %vm2084, %v2083, %v2081
  %s2086 = scalar_lea.vmem %s0, 965
  %v2087 = vld [vmem:[%s2086] sm:$0x80]
  %vm2088 = vcmask 1047559
  %v2089 = vsel %vm2088, %v2087, %v2085
  %2090 = vrot.lane.b32.xlu0 %v2089, 64
  %v2091 = vpop.permute.xlu0 %2090
  %vm2092 = vcmask 654848
  %s2093 = scalar_lea.vmem %s1, 72
  %2094 = vst.msk [vmem:[%s2093] sm:$0xff] %vm2092, %v2091
  %s2095 = scalar_lea.vmem %s0, 556
  %v2096 = vld [vmem:[%s2095] sm:$0x1]
  %s2097 = scalar_lea.vmem %s0, 619
  %v2098 = vld [vmem:[%s2097] sm:$0x2]
  %vm2099 = vcmask 1041409
  %v2100 = vsel %vm2099, %v2098, %v2096
  %s2101 = scalar_lea.vmem %s0, 682
  %v2102 = vld [vmem:[%s2101] sm:$0x4]
  %vm2103 = vcmask 1042434
  %v2104 = vsel %vm2103, %v2102, %v2100
  %s2105 = scalar_lea.vmem %s0, 745
  %v2106 = vld [vmem:[%s2105] sm:$0x8]
  %vm2107 = vcmask 1043459
  %v2108 = vsel %vm2107, %v2106, %v2104
  %s2109 = scalar_lea.vmem %s0, 808
  %v2110 = vld [vmem:[%s2109] sm:$0x10]
  %vm2111 = vcmask 1044484
  %v2112 = vsel %vm2111, %v2110, %v2108
  %s2113 = scalar_lea.vmem %s0, 871
  %v2114 = vld [vmem:[%s2113] sm:$0x20]
  %vm2115 = vcmask 1045509
  %v2116 = vsel %vm2115, %v2114, %v2112
  %s2117 = scalar_lea.vmem %s0, 934
  %v2118 = vld [vmem:[%s2117] sm:$0x40]
  %vm2119 = vcmask 1046534
  %v2120 = vsel %vm2119, %v2118, %v2116
  %s2121 = scalar_lea.vmem %s0, 997
  %v2122 = vld [vmem:[%s2121] sm:$0x80]
  %vm2123 = vcmask 1047559
  %v2124 = vsel %vm2123, %v2122, %v2120
  %2125 = vrot.lane.b32.xlu0 %v2124, 64
  %v2126 = vpop.permute.xlu0 %2125
  %vm2127 = vcmask 654848
  %s2128 = scalar_lea.vmem %s1, 104
  %2129 = vst.msk [vmem:[%s2128] sm:$0xff] %vm2127, %v2126
  %s2130 = scalar_lea.vmem %s0, 20
  %v2131 = vld [vmem:[%s2130] sm:$0x1]
  %s2132 = scalar_lea.vmem %s0, 83
  %v2133 = vld [vmem:[%s2132] sm:$0x2]
  %vm2134 = vcmask 1041409
  %v2135 = vsel %vm2134, %v2133, %v2131
  %s2136 = scalar_lea.vmem %s0, 146
  %v2137 = vld [vmem:[%s2136] sm:$0x4]
  %vm2138 = vcmask 1042434
  %v2139 = vsel %vm2138, %v2137, %v2135
  %s2140 = scalar_lea.vmem %s0, 209
  %v2141 = vld [vmem:[%s2140] sm:$0x8]
  %vm2142 = vcmask 1043459
  %v2143 = vsel %vm2142, %v2141, %v2139
  %s2144 = scalar_lea.vmem %s0, 272
  %v2145 = vld [vmem:[%s2144] sm:$0x10]
  %vm2146 = vcmask 1044484
  %v2147 = vsel %vm2146, %v2145, %v2143
  %s2148 = scalar_lea.vmem %s0, 335
  %v2149 = vld [vmem:[%s2148] sm:$0x20]
  %vm2150 = vcmask 1045509
  %v2151 = vsel %vm2150, %v2149, %v2147
  %s2152 = scalar_lea.vmem %s0, 398
  %v2153 = vld [vmem:[%s2152] sm:$0x40]
  %vm2154 = vcmask 1046534
  %v2155 = vsel %vm2154, %v2153, %v2151
  %s2156 = scalar_lea.vmem %s0, 461
  %v2157 = vld [vmem:[%s2156] sm:$0x80]
  %vm2158 = vcmask 1047559
  %v2159 = vsel %vm2158, %v2157, %v2155
  %2160 = vrot.lane.b32.xlu0 %v2159, 64
  %v2161 = vpop.permute.xlu0 %2160
  %vm2162 = vcmask 654848
  %s2163 = scalar_lea.vmem %s1, 16
  %2164 = vst.msk [vmem:[%s2163] sm:$0xff] %vm2162, %v2161
  %s2165 = scalar_lea.vmem %s0, 52
  %v2166 = vld [vmem:[%s2165] sm:$0x1]
  %s2167 = scalar_lea.vmem %s0, 115
  %v2168 = vld [vmem:[%s2167] sm:$0x2]
  %vm2169 = vcmask 1041409
  %v2170 = vsel %vm2169, %v2168, %v2166
  %s2171 = scalar_lea.vmem %s0, 178
  %v2172 = vld [vmem:[%s2171] sm:$0x4]
  %vm2173 = vcmask 1042434
  %v2174 = vsel %vm2173, %v2172, %v2170
  %s2175 = scalar_lea.vmem %s0, 241
  %v2176 = vld [vmem:[%s2175] sm:$0x8]
  %vm2177 = vcmask 1043459
  %v2178 = vsel %vm2177, %v2176, %v2174
  %s2179 = scalar_lea.vmem %s0, 304
  %v2180 = vld [vmem:[%s2179] sm:$0x10]
  %vm2181 = vcmask 1044484
  %v2182 = vsel %vm2181, %v2180, %v2178
  %s2183 = scalar_lea.vmem %s0, 367
  %v2184 = vld [vmem:[%s2183] sm:$0x20]
  %vm2185 = vcmask 1045509
  %v2186 = vsel %vm2185, %v2184, %v2182
  %s2187 = scalar_lea.vmem %s0, 430
  %v2188 = vld [vmem:[%s2187] sm:$0x40]
  %vm2189 = vcmask 1046534
  %v2190 = vsel %vm2189, %v2188, %v2186
  %s2191 = scalar_lea.vmem %s0, 493
  %v2192 = vld [vmem:[%s2191] sm:$0x80]
  %vm2193 = vcmask 1047559
  %v2194 = vsel %vm2193, %v2192, %v2190
  %2195 = vrot.lane.b32.xlu0 %v2194, 64
  %v2196 = vpop.permute.xlu0 %2195
  %vm2197 = vcmask 654848
  %s2198 = scalar_lea.vmem %s1, 48
  %2199 = vst.msk [vmem:[%s2198] sm:$0xff] %vm2197, %v2196
  %s2200 = scalar_lea.vmem %s0, 532
  %v2201 = vld [vmem:[%s2200] sm:$0x1]
  %s2202 = scalar_lea.vmem %s0, 595
  %v2203 = vld [vmem:[%s2202] sm:$0x2]
  %vm2204 = vcmask 1041409
  %v2205 = vsel %vm2204, %v2203, %v2201
  %s2206 = scalar_lea.vmem %s0, 658
  %v2207 = vld [vmem:[%s2206] sm:$0x4]
  %vm2208 = vcmask 1042434
  %v2209 = vsel %vm2208, %v2207, %v2205
  %s2210 = scalar_lea.vmem %s0, 721
  %v2211 = vld [vmem:[%s2210] sm:$0x8]
  %vm2212 = vcmask 1043459
  %v2213 = vsel %vm2212, %v2211, %v2209
  %s2214 = scalar_lea.vmem %s0, 784
  %v2215 = vld [vmem:[%s2214] sm:$0x10]
  %vm2216 = vcmask 1044484
  %v2217 = vsel %vm2216, %v2215, %v2213
  %s2218 = scalar_lea.vmem %s0, 847
  %v2219 = vld [vmem:[%s2218] sm:$0x20]
  %vm2220 = vcmask 1045509
  %v2221 = vsel %vm2220, %v2219, %v2217
  %s2222 = scalar_lea.vmem %s0, 910
  %v2223 = vld [vmem:[%s2222] sm:$0x40]
  %vm2224 = vcmask 1046534
  %v2225 = vsel %vm2224, %v2223, %v2221
  %s2226 = scalar_lea.vmem %s0, 973
  %v2227 = vld [vmem:[%s2226] sm:$0x80]
  %vm2228 = vcmask 1047559
  %v2229 = vsel %vm2228, %v2227, %v2225
  %2230 = vrot.lane.b32.xlu0 %v2229, 64
  %v2231 = vpop.permute.xlu0 %2230
  %vm2232 = vcmask 654848
  %s2233 = scalar_lea.vmem %s1, 80
  %2234 = vst.msk [vmem:[%s2233] sm:$0xff] %vm2232, %v2231
  %s2235 = scalar_lea.vmem %s0, 564
  %v2236 = vld [vmem:[%s2235] sm:$0x1]
  %s2237 = scalar_lea.vmem %s0, 627
  %v2238 = vld [vmem:[%s2237] sm:$0x2]
  %vm2239 = vcmask 1041409
  %v2240 = vsel %vm2239, %v2238, %v2236
  %s2241 = scalar_lea.vmem %s0, 690
  %v2242 = vld [vmem:[%s2241] sm:$0x4]
  %vm2243 = vcmask 1042434
  %v2244 = vsel %vm2243, %v2242, %v2240
  %s2245 = scalar_lea.vmem %s0, 753
  %v2246 = vld [vmem:[%s2245] sm:$0x8]
  %vm2247 = vcmask 1043459
  %v2248 = vsel %vm2247, %v2246, %v2244
  %s2249 = scalar_lea.vmem %s0, 816
  %v2250 = vld [vmem:[%s2249] sm:$0x10]
  %vm2251 = vcmask 1044484
  %v2252 = vsel %vm2251, %v2250, %v2248
  %s2253 = scalar_lea.vmem %s0, 879
  %v2254 = vld [vmem:[%s2253] sm:$0x20]
  %vm2255 = vcmask 1045509
  %v2256 = vsel %vm2255, %v2254, %v2252
  %s2257 = scalar_lea.vmem %s0, 942
  %v2258 = vld [vmem:[%s2257] sm:$0x40]
  %vm2259 = vcmask 1046534
  %v2260 = vsel %vm2259, %v2258, %v2256
  %s2261 = scalar_lea.vmem %s0, 1005
  %v2262 = vld [vmem:[%s2261] sm:$0x80]
  %vm2263 = vcmask 1047559
  %v2264 = vsel %vm2263, %v2262, %v2260
  %2265 = vrot.lane.b32.xlu0 %v2264, 64
  %v2266 = vpop.permute.xlu0 %2265
  %vm2267 = vcmask 654848
  %s2268 = scalar_lea.vmem %s1, 112
  %2269 = vst.msk [vmem:[%s2268] sm:$0xff] %vm2267, %v2266
  %s2270 = scalar_lea.vmem %s0, 28
  %v2271 = vld [vmem:[%s2270] sm:$0x1]
  %s2272 = scalar_lea.vmem %s0, 91
  %v2273 = vld [vmem:[%s2272] sm:$0x2]
  %vm2274 = vcmask 1041409
  %v2275 = vsel %vm2274, %v2273, %v2271
  %s2276 = scalar_lea.vmem %s0, 154
  %v2277 = vld [vmem:[%s2276] sm:$0x4]
  %vm2278 = vcmask 1042434
  %v2279 = vsel %vm2278, %v2277, %v2275
  %s2280 = scalar_lea.vmem %s0, 217
  %v2281 = vld [vmem:[%s2280] sm:$0x8]
  %vm2282 = vcmask 1043459
  %v2283 = vsel %vm2282, %v2281, %v2279
  %s2284 = scalar_lea.vmem %s0, 280
  %v2285 = vld [vmem:[%s2284] sm:$0x10]
  %vm2286 = vcmask 1044484
  %v2287 = vsel %vm2286, %v2285, %v2283
  %s2288 = scalar_lea.vmem %s0, 343
  %v2289 = vld [vmem:[%s2288] sm:$0x20]
  %vm2290 = vcmask 1045509
  %v2291 = vsel %vm2290, %v2289, %v2287
  %s2292 = scalar_lea.vmem %s0, 406
  %v2293 = vld [vmem:[%s2292] sm:$0x40]
  %vm2294 = vcmask 1046534
  %v2295 = vsel %vm2294, %v2293, %v2291
  %s2296 = scalar_lea.vmem %s0, 469
  %v2297 = vld [vmem:[%s2296] sm:$0x80]
  %vm2298 = vcmask 1047559
  %v2299 = vsel %vm2298, %v2297, %v2295
  %2300 = vrot.lane.b32.xlu0 %v2299, 64
  %v2301 = vpop.permute.xlu0 %2300
  %vm2302 = vcmask 654848
  %s2303 = scalar_lea.vmem %s1, 24
  %2304 = vst.msk [vmem:[%s2303] sm:$0xff] %vm2302, %v2301
  %s2305 = scalar_lea.vmem %s0, 60
  %v2306 = vld [vmem:[%s2305] sm:$0x1]
  %s2307 = scalar_lea.vmem %s0, 123
  %v2308 = vld [vmem:[%s2307] sm:$0x2]
  %vm2309 = vcmask 1041409
  %v2310 = vsel %vm2309, %v2308, %v2306
  %s2311 = scalar_lea.vmem %s0, 186
  %v2312 = vld [vmem:[%s2311] sm:$0x4]
  %vm2313 = vcmask 1042434
  %v2314 = vsel %vm2313, %v2312, %v2310
  %s2315 = scalar_lea.vmem %s0, 249
  %v2316 = vld [vmem:[%s2315] sm:$0x8]
  %vm2317 = vcmask 1043459
  %v2318 = vsel %vm2317, %v2316, %v2314
  %s2319 = scalar_lea.vmem %s0, 312
  %v2320 = vld [vmem:[%s2319] sm:$0x10]
  %vm2321 = vcmask 1044484
  %v2322 = vsel %vm2321, %v2320, %v2318
  %s2323 = scalar_lea.vmem %s0, 375
  %v2324 = vld [vmem:[%s2323] sm:$0x20]
  %vm2325 = vcmask 1045509
  %v2326 = vsel %vm2325, %v2324, %v2322
  %s2327 = scalar_lea.vmem %s0, 438
  %v2328 = vld [vmem:[%s2327] sm:$0x40]
  %vm2329 = vcmask 1046534
  %v2330 = vsel %vm2329, %v2328, %v2326
  %s2331 = scalar_lea.vmem %s0, 501
  %v2332 = vld [vmem:[%s2331] sm:$0x80]
  %vm2333 = vcmask 1047559
  %v2334 = vsel %vm2333, %v2332, %v2330
  %2335 = vrot.lane.b32.xlu0 %v2334, 64
  %v2336 = vpop.permute.xlu0 %2335
  %vm2337 = vcmask 654848
  %s2338 = scalar_lea.vmem %s1, 56
  %2339 = vst.msk [vmem:[%s2338] sm:$0xff] %vm2337, %v2336
  %s2340 = scalar_lea.vmem %s0, 540
  %v2341 = vld [vmem:[%s2340] sm:$0x1]
  %s2342 = scalar_lea.vmem %s0, 603
  %v2343 = vld [vmem:[%s2342] sm:$0x2]
  %vm2344 = vcmask 1041409
  %v2345 = vsel %vm2344, %v2343, %v2341
  %s2346 = scalar_lea.vmem %s0, 666
  %v2347 = vld [vmem:[%s2346] sm:$0x4]
  %vm2348 = vcmask 1042434
  %v2349 = vsel %vm2348, %v2347, %v2345
  %s2350 = scalar_lea.vmem %s0, 729
  %v2351 = vld [vmem:[%s2350] sm:$0x8]
  %vm2352 = vcmask 1043459
  %v2353 = vsel %vm2352, %v2351, %v2349
  %s2354 = scalar_lea.vmem %s0, 792
  %v2355 = vld [vmem:[%s2354] sm:$0x10]
  %vm2356 = vcmask 1044484
  %v2357 = vsel %vm2356, %v2355, %v2353
  %s2358 = scalar_lea.vmem %s0, 855
  %v2359 = vld [vmem:[%s2358] sm:$0x20]
  %vm2360 = vcmask 1045509
  %v2361 = vsel %vm2360, %v2359, %v2357
  %s2362 = scalar_lea.vmem %s0, 918
  %v2363 = vld [vmem:[%s2362] sm:$0x40]
  %vm2364 = vcmask 1046534
  %v2365 = vsel %vm2364, %v2363, %v2361
  %s2366 = scalar_lea.vmem %s0, 981
  %v2367 = vld [vmem:[%s2366] sm:$0x80]
  %vm2368 = vcmask 1047559
  %v2369 = vsel %vm2368, %v2367, %v2365
  %2370 = vrot.lane.b32.xlu0 %v2369, 64
  %v2371 = vpop.permute.xlu0 %2370
  %vm2372 = vcmask 654848
  %s2373 = scalar_lea.vmem %s1, 88
  %2374 = vst.msk [vmem:[%s2373] sm:$0xff] %vm2372, %v2371
  %s2375 = scalar_lea.vmem %s0, 572
  %v2376 = vld [vmem:[%s2375] sm:$0x1]
  %s2377 = scalar_lea.vmem %s0, 635
  %v2378 = vld [vmem:[%s2377] sm:$0x2]
  %vm2379 = vcmask 1041409
  %v2380 = vsel %vm2379, %v2378, %v2376
  %s2381 = scalar_lea.vmem %s0, 698
  %v2382 = vld [vmem:[%s2381] sm:$0x4]
  %vm2383 = vcmask 1042434
  %v2384 = vsel %vm2383, %v2382, %v2380
  %s2385 = scalar_lea.vmem %s0, 761
  %v2386 = vld [vmem:[%s2385] sm:$0x8]
  %vm2387 = vcmask 1043459
  %v2388 = vsel %vm2387, %v2386, %v2384
  %s2389 = scalar_lea.vmem %s0, 824
  %v2390 = vld [vmem:[%s2389] sm:$0x10]
  %vm2391 = vcmask 1044484
  %v2392 = vsel %vm2391, %v2390, %v2388
  %s2393 = scalar_lea.vmem %s0, 887
  %v2394 = vld [vmem:[%s2393] sm:$0x20]
  %vm2395 = vcmask 1045509
  %v2396 = vsel %vm2395, %v2394, %v2392
  %s2397 = scalar_lea.vmem %s0, 950
  %v2398 = vld [vmem:[%s2397] sm:$0x40]
  %vm2399 = vcmask 1046534
  %v2400 = vsel %vm2399, %v2398, %v2396
  %s2401 = scalar_lea.vmem %s0, 1013
  %v2402 = vld [vmem:[%s2401] sm:$0x80]
  %vm2403 = vcmask 1047559
  %v2404 = vsel %vm2403, %v2402, %v2400
  %2405 = vrot.lane.b32.xlu0 %v2404, 64
  %v2406 = vpop.permute.xlu0 %2405
  %vm2407 = vcmask 654848
  %s2408 = scalar_lea.vmem %s1, 120
  %2409 = vst.msk [vmem:[%s2408] sm:$0xff] %vm2407, %v2406
  %s2410 = scalar_lea.vmem %s0, 3
  %v2411 = vld [vmem:[%s2410] sm:$0x1]
  %s2412 = scalar_lea.vmem %s0, 66
  %v2413 = vld [vmem:[%s2412] sm:$0x2]
  %vm2414 = vcmask 1041409
  %v2415 = vsel %vm2414, %v2413, %v2411
  %s2416 = scalar_lea.vmem %s0, 129
  %v2417 = vld [vmem:[%s2416] sm:$0x4]
  %vm2418 = vcmask 1042434
  %v2419 = vsel %vm2418, %v2417, %v2415
  %s2420 = scalar_lea.vmem %s0, 192
  %v2421 = vld [vmem:[%s2420] sm:$0x8]
  %vm2422 = vcmask 1043459
  %v2423 = vsel %vm2422, %v2421, %v2419
  %s2424 = scalar_lea.vmem %s0, 255
  %v2425 = vld [vmem:[%s2424] sm:$0x10]
  %vm2426 = vcmask 1044484
  %v2427 = vsel %vm2426, %v2425, %v2423
  %s2428 = scalar_lea.vmem %s0, 318
  %v2429 = vld [vmem:[%s2428] sm:$0x20]
  %vm2430 = vcmask 1045509
  %v2431 = vsel %vm2430, %v2429, %v2427
  %s2432 = scalar_lea.vmem %s0, 381
  %v2433 = vld [vmem:[%s2432] sm:$0x40]
  %vm2434 = vcmask 1046534
  %v2435 = vsel %vm2434, %v2433, %v2431
  %s2436 = scalar_lea.vmem %s0, 444
  %v2437 = vld [vmem:[%s2436] sm:$0x80]
  %vm2438 = vcmask 1047559
  %v2439 = vsel %vm2438, %v2437, %v2435
  %2440 = vrot.lane.b32.xlu0 %v2439, 48
  %v2441 = vpop.permute.xlu0 %2440
  %vm2442 = vcmask 523648
  %2443 = vst.msk [vmem:[%s1] sm:$0xff] %vm2442, %v2441
  %s2444 = scalar_lea.vmem %s0, 35
  %v2445 = vld [vmem:[%s2444] sm:$0x1]
  %s2446 = scalar_lea.vmem %s0, 98
  %v2447 = vld [vmem:[%s2446] sm:$0x2]
  %vm2448 = vcmask 1041409
  %v2449 = vsel %vm2448, %v2447, %v2445
  %s2450 = scalar_lea.vmem %s0, 161
  %v2451 = vld [vmem:[%s2450] sm:$0x4]
  %vm2452 = vcmask 1042434
  %v2453 = vsel %vm2452, %v2451, %v2449
  %s2454 = scalar_lea.vmem %s0, 224
  %v2455 = vld [vmem:[%s2454] sm:$0x8]
  %vm2456 = vcmask 1043459
  %v2457 = vsel %vm2456, %v2455, %v2453
  %s2458 = scalar_lea.vmem %s0, 287
  %v2459 = vld [vmem:[%s2458] sm:$0x10]
  %vm2460 = vcmask 1044484
  %v2461 = vsel %vm2460, %v2459, %v2457
  %s2462 = scalar_lea.vmem %s0, 350
  %v2463 = vld [vmem:[%s2462] sm:$0x20]
  %vm2464 = vcmask 1045509
  %v2465 = vsel %vm2464, %v2463, %v2461
  %s2466 = scalar_lea.vmem %s0, 413
  %v2467 = vld [vmem:[%s2466] sm:$0x40]
  %vm2468 = vcmask 1046534
  %v2469 = vsel %vm2468, %v2467, %v2465
  %s2470 = scalar_lea.vmem %s0, 476
  %v2471 = vld [vmem:[%s2470] sm:$0x80]
  %vm2472 = vcmask 1047559
  %v2473 = vsel %vm2472, %v2471, %v2469
  %2474 = vrot.lane.b32.xlu0 %v2473, 48
  %v2475 = vpop.permute.xlu0 %2474
  %vm2476 = vcmask 523648
  %s2477 = scalar_lea.vmem %s1, 32
  %2478 = vst.msk [vmem:[%s2477] sm:$0xff] %vm2476, %v2475
  %s2479 = scalar_lea.vmem %s0, 515
  %v2480 = vld [vmem:[%s2479] sm:$0x1]
  %s2481 = scalar_lea.vmem %s0, 578
  %v2482 = vld [vmem:[%s2481] sm:$0x2]
  %vm2483 = vcmask 1041409
  %v2484 = vsel %vm2483, %v2482, %v2480
  %s2485 = scalar_lea.vmem %s0, 641
  %v2486 = vld [vmem:[%s2485] sm:$0x4]
  %vm2487 = vcmask 1042434
  %v2488 = vsel %vm2487, %v2486, %v2484
  %s2489 = scalar_lea.vmem %s0, 704
  %v2490 = vld [vmem:[%s2489] sm:$0x8]
  %vm2491 = vcmask 1043459
  %v2492 = vsel %vm2491, %v2490, %v2488
  %s2493 = scalar_lea.vmem %s0, 767
  %v2494 = vld [vmem:[%s2493] sm:$0x10]
  %vm2495 = vcmask 1044484
  %v2496 = vsel %vm2495, %v2494, %v2492
  %s2497 = scalar_lea.vmem %s0, 830
  %v2498 = vld [vmem:[%s2497] sm:$0x20]
  %vm2499 = vcmask 1045509
  %v2500 = vsel %vm2499, %v2498, %v2496
  %s2501 = scalar_lea.vmem %s0, 893
  %v2502 = vld [vmem:[%s2501] sm:$0x40]
  %vm2503 = vcmask 1046534
  %v2504 = vsel %vm2503, %v2502, %v2500
  %s2505 = scalar_lea.vmem %s0, 956
  %v2506 = vld [vmem:[%s2505] sm:$0x80]
  %vm2507 = vcmask 1047559
  %v2508 = vsel %vm2507, %v2506, %v2504
  %2509 = vrot.lane.b32.xlu0 %v2508, 48
  %v2510 = vpop.permute.xlu0 %2509
  %vm2511 = vcmask 523648
  %s2512 = scalar_lea.vmem %s1, 64
  %2513 = vst.msk [vmem:[%s2512] sm:$0xff] %vm2511, %v2510
  %s2514 = scalar_lea.vmem %s0, 547
  %v2515 = vld [vmem:[%s2514] sm:$0x1]
  %s2516 = scalar_lea.vmem %s0, 610
  %v2517 = vld [vmem:[%s2516] sm:$0x2]
  %vm2518 = vcmask 1041409
  %v2519 = vsel %vm2518, %v2517, %v2515
  %s2520 = scalar_lea.vmem %s0, 673
  %v2521 = vld [vmem:[%s2520] sm:$0x4]
  %vm2522 = vcmask 1042434
  %v2523 = vsel %vm2522, %v2521, %v2519
  %s2524 = scalar_lea.vmem %s0, 736
  %v2525 = vld [vmem:[%s2524] sm:$0x8]
  %vm2526 = vcmask 1043459
  %v2527 = vsel %vm2526, %v2525, %v2523
  %s2528 = scalar_lea.vmem %s0, 799
  %v2529 = vld [vmem:[%s2528] sm:$0x10]
  %vm2530 = vcmask 1044484
  %v2531 = vsel %vm2530, %v2529, %v2527
  %s2532 = scalar_lea.vmem %s0, 862
  %v2533 = vld [vmem:[%s2532] sm:$0x20]
  %vm2534 = vcmask 1045509
  %v2535 = vsel %vm2534, %v2533, %v2531
  %s2536 = scalar_lea.vmem %s0, 925
  %v2537 = vld [vmem:[%s2536] sm:$0x40]
  %vm2538 = vcmask 1046534
  %v2539 = vsel %vm2538, %v2537, %v2535
  %s2540 = scalar_lea.vmem %s0, 988
  %v2541 = vld [vmem:[%s2540] sm:$0x80]
  %vm2542 = vcmask 1047559
  %v2543 = vsel %vm2542, %v2541, %v2539
  %2544 = vrot.lane.b32.xlu0 %v2543, 48
  %v2545 = vpop.permute.xlu0 %2544
  %vm2546 = vcmask 523648
  %s2547 = scalar_lea.vmem %s1, 96
  %2548 = vst.msk [vmem:[%s2547] sm:$0xff] %vm2546, %v2545
  %s2549 = scalar_lea.vmem %s0, 11
  %v2550 = vld [vmem:[%s2549] sm:$0x1]
  %s2551 = scalar_lea.vmem %s0, 74
  %v2552 = vld [vmem:[%s2551] sm:$0x2]
  %vm2553 = vcmask 1041409
  %v2554 = vsel %vm2553, %v2552, %v2550
  %s2555 = scalar_lea.vmem %s0, 137
  %v2556 = vld [vmem:[%s2555] sm:$0x4]
  %vm2557 = vcmask 1042434
  %v2558 = vsel %vm2557, %v2556, %v2554
  %s2559 = scalar_lea.vmem %s0, 200
  %v2560 = vld [vmem:[%s2559] sm:$0x8]
  %vm2561 = vcmask 1043459
  %v2562 = vsel %vm2561, %v2560, %v2558
  %s2563 = scalar_lea.vmem %s0, 263
  %v2564 = vld [vmem:[%s2563] sm:$0x10]
  %vm2565 = vcmask 1044484
  %v2566 = vsel %vm2565, %v2564, %v2562
  %s2567 = scalar_lea.vmem %s0, 326
  %v2568 = vld [vmem:[%s2567] sm:$0x20]
  %vm2569 = vcmask 1045509
  %v2570 = vsel %vm2569, %v2568, %v2566
  %s2571 = scalar_lea.vmem %s0, 389
  %v2572 = vld [vmem:[%s2571] sm:$0x40]
  %vm2573 = vcmask 1046534
  %v2574 = vsel %vm2573, %v2572, %v2570
  %s2575 = scalar_lea.vmem %s0, 452
  %v2576 = vld [vmem:[%s2575] sm:$0x80]
  %vm2577 = vcmask 1047559
  %v2578 = vsel %vm2577, %v2576, %v2574
  %2579 = vrot.lane.b32.xlu0 %v2578, 48
  %v2580 = vpop.permute.xlu0 %2579
  %vm2581 = vcmask 523648
  %s2582 = scalar_lea.vmem %s1, 8
  %2583 = vst.msk [vmem:[%s2582] sm:$0xff] %vm2581, %v2580
  %s2584 = scalar_lea.vmem %s0, 43
  %v2585 = vld [vmem:[%s2584] sm:$0x1]
  %s2586 = scalar_lea.vmem %s0, 106
  %v2587 = vld [vmem:[%s2586] sm:$0x2]
  %vm2588 = vcmask 1041409
  %v2589 = vsel %vm2588, %v2587, %v2585
  %s2590 = scalar_lea.vmem %s0, 169
  %v2591 = vld [vmem:[%s2590] sm:$0x4]
  %vm2592 = vcmask 1042434
  %v2593 = vsel %vm2592, %v2591, %v2589
  %s2594 = scalar_lea.vmem %s0, 232
  %v2595 = vld [vmem:[%s2594] sm:$0x8]
  %vm2596 = vcmask 1043459
  %v2597 = vsel %vm2596, %v2595, %v2593
  %s2598 = scalar_lea.vmem %s0, 295
  %v2599 = vld [vmem:[%s2598] sm:$0x10]
  %vm2600 = vcmask 1044484
  %v2601 = vsel %vm2600, %v2599, %v2597
  %s2602 = scalar_lea.vmem %s0, 358
  %v2603 = vld [vmem:[%s2602] sm:$0x20]
  %vm2604 = vcmask 1045509
  %v2605 = vsel %vm2604, %v2603, %v2601
  %s2606 = scalar_lea.vmem %s0, 421
  %v2607 = vld [vmem:[%s2606] sm:$0x40]
  %vm2608 = vcmask 1046534
  %v2609 = vsel %vm2608, %v2607, %v2605
  %s2610 = scalar_lea.vmem %s0, 484
  %v2611 = vld [vmem:[%s2610] sm:$0x80]
  %vm2612 = vcmask 1047559
  %v2613 = vsel %vm2612, %v2611, %v2609
  %2614 = vrot.lane.b32.xlu0 %v2613, 48
  %v2615 = vpop.permute.xlu0 %2614
  %vm2616 = vcmask 523648
  %s2617 = scalar_lea.vmem %s1, 40
  %2618 = vst.msk [vmem:[%s2617] sm:$0xff] %vm2616, %v2615
  %s2619 = scalar_lea.vmem %s0, 523
  %v2620 = vld [vmem:[%s2619] sm:$0x1]
  %s2621 = scalar_lea.vmem %s0, 586
  %v2622 = vld [vmem:[%s2621] sm:$0x2]
  %vm2623 = vcmask 1041409
  %v2624 = vsel %vm2623, %v2622, %v2620
  %s2625 = scalar_lea.vmem %s0, 649
  %v2626 = vld [vmem:[%s2625] sm:$0x4]
  %vm2627 = vcmask 1042434
  %v2628 = vsel %vm2627, %v2626, %v2624
  %s2629 = scalar_lea.vmem %s0, 712
  %v2630 = vld [vmem:[%s2629] sm:$0x8]
  %vm2631 = vcmask 1043459
  %v2632 = vsel %vm2631, %v2630, %v2628
  %s2633 = scalar_lea.vmem %s0, 775
  %v2634 = vld [vmem:[%s2633] sm:$0x10]
  %vm2635 = vcmask 1044484
  %v2636 = vsel %vm2635, %v2634, %v2632
  %s2637 = scalar_lea.vmem %s0, 838
  %v2638 = vld [vmem:[%s2637] sm:$0x20]
  %vm2639 = vcmask 1045509
  %v2640 = vsel %vm2639, %v2638, %v2636
  %s2641 = scalar_lea.vmem %s0, 901
  %v2642 = vld [vmem:[%s2641] sm:$0x40]
  %vm2643 = vcmask 1046534
  %v2644 = vsel %vm2643, %v2642, %v2640
  %s2645 = scalar_lea.vmem %s0, 964
  %v2646 = vld [vmem:[%s2645] sm:$0x80]
  %vm2647 = vcmask 1047559
  %v2648 = vsel %vm2647, %v2646, %v2644
  %2649 = vrot.lane.b32.xlu0 %v2648, 48
  %v2650 = vpop.permute.xlu0 %2649
  %vm2651 = vcmask 523648
  %s2652 = scalar_lea.vmem %s1, 72
  %2653 = vst.msk [vmem:[%s2652] sm:$0xff] %vm2651, %v2650
  %s2654 = scalar_lea.vmem %s0, 555
  %v2655 = vld [vmem:[%s2654] sm:$0x1]
  %s2656 = scalar_lea.vmem %s0, 618
  %v2657 = vld [vmem:[%s2656] sm:$0x2]
  %vm2658 = vcmask 1041409
  %v2659 = vsel %vm2658, %v2657, %v2655
  %s2660 = scalar_lea.vmem %s0, 681
  %v2661 = vld [vmem:[%s2660] sm:$0x4]
  %vm2662 = vcmask 1042434
  %v2663 = vsel %vm2662, %v2661, %v2659
  %s2664 = scalar_lea.vmem %s0, 744
  %v2665 = vld [vmem:[%s2664] sm:$0x8]
  %vm2666 = vcmask 1043459
  %v2667 = vsel %vm2666, %v2665, %v2663
  %s2668 = scalar_lea.vmem %s0, 807
  %v2669 = vld [vmem:[%s2668] sm:$0x10]
  %vm2670 = vcmask 1044484
  %v2671 = vsel %vm2670, %v2669, %v2667
  %s2672 = scalar_lea.vmem %s0, 870
  %v2673 = vld [vmem:[%s2672] sm:$0x20]
  %vm2674 = vcmask 1045509
  %v2675 = vsel %vm2674, %v2673, %v2671
  %s2676 = scalar_lea.vmem %s0, 933
  %v2677 = vld [vmem:[%s2676] sm:$0x40]
  %vm2678 = vcmask 1046534
  %v2679 = vsel %vm2678, %v2677, %v2675
  %s2680 = scalar_lea.vmem %s0, 996
  %v2681 = vld [vmem:[%s2680] sm:$0x80]
  %vm2682 = vcmask 1047559
  %v2683 = vsel %vm2682, %v2681, %v2679
  %2684 = vrot.lane.b32.xlu0 %v2683, 48
  %v2685 = vpop.permute.xlu0 %2684
  %vm2686 = vcmask 523648
  %s2687 = scalar_lea.vmem %s1, 104
  %2688 = vst.msk [vmem:[%s2687] sm:$0xff] %vm2686, %v2685
  %s2689 = scalar_lea.vmem %s0, 19
  %v2690 = vld [vmem:[%s2689] sm:$0x1]
  %s2691 = scalar_lea.vmem %s0, 82
  %v2692 = vld [vmem:[%s2691] sm:$0x2]
  %vm2693 = vcmask 1041409
  %v2694 = vsel %vm2693, %v2692, %v2690
  %s2695 = scalar_lea.vmem %s0, 145
  %v2696 = vld [vmem:[%s2695] sm:$0x4]
  %vm2697 = vcmask 1042434
  %v2698 = vsel %vm2697, %v2696, %v2694
  %s2699 = scalar_lea.vmem %s0, 208
  %v2700 = vld [vmem:[%s2699] sm:$0x8]
  %vm2701 = vcmask 1043459
  %v2702 = vsel %vm2701, %v2700, %v2698
  %s2703 = scalar_lea.vmem %s0, 271
  %v2704 = vld [vmem:[%s2703] sm:$0x10]
  %vm2705 = vcmask 1044484
  %v2706 = vsel %vm2705, %v2704, %v2702
  %s2707 = scalar_lea.vmem %s0, 334
  %v2708 = vld [vmem:[%s2707] sm:$0x20]
  %vm2709 = vcmask 1045509
  %v2710 = vsel %vm2709, %v2708, %v2706
  %s2711 = scalar_lea.vmem %s0, 397
  %v2712 = vld [vmem:[%s2711] sm:$0x40]
  %vm2713 = vcmask 1046534
  %v2714 = vsel %vm2713, %v2712, %v2710
  %s2715 = scalar_lea.vmem %s0, 460
  %v2716 = vld [vmem:[%s2715] sm:$0x80]
  %vm2717 = vcmask 1047559
  %v2718 = vsel %vm2717, %v2716, %v2714
  %2719 = vrot.lane.b32.xlu0 %v2718, 48
  %v2720 = vpop.permute.xlu0 %2719
  %vm2721 = vcmask 523648
  %s2722 = scalar_lea.vmem %s1, 16
  %2723 = vst.msk [vmem:[%s2722] sm:$0xff] %vm2721, %v2720
  %s2724 = scalar_lea.vmem %s0, 51
  %v2725 = vld [vmem:[%s2724] sm:$0x1]
  %s2726 = scalar_lea.vmem %s0, 114
  %v2727 = vld [vmem:[%s2726] sm:$0x2]
  %vm2728 = vcmask 1041409
  %v2729 = vsel %vm2728, %v2727, %v2725
  %s2730 = scalar_lea.vmem %s0, 177
  %v2731 = vld [vmem:[%s2730] sm:$0x4]
  %vm2732 = vcmask 1042434
  %v2733 = vsel %vm2732, %v2731, %v2729
  %s2734 = scalar_lea.vmem %s0, 240
  %v2735 = vld [vmem:[%s2734] sm:$0x8]
  %vm2736 = vcmask 1043459
  %v2737 = vsel %vm2736, %v2735, %v2733
  %s2738 = scalar_lea.vmem %s0, 303
  %v2739 = vld [vmem:[%s2738] sm:$0x10]
  %vm2740 = vcmask 1044484
  %v2741 = vsel %vm2740, %v2739, %v2737
  %s2742 = scalar_lea.vmem %s0, 366
  %v2743 = vld [vmem:[%s2742] sm:$0x20]
  %vm2744 = vcmask 1045509
  %v2745 = vsel %vm2744, %v2743, %v2741
  %s2746 = scalar_lea.vmem %s0, 429
  %v2747 = vld [vmem:[%s2746] sm:$0x40]
  %vm2748 = vcmask 1046534
  %v2749 = vsel %vm2748, %v2747, %v2745
  %s2750 = scalar_lea.vmem %s0, 492
  %v2751 = vld [vmem:[%s2750] sm:$0x80]
  %vm2752 = vcmask 1047559
  %v2753 = vsel %vm2752, %v2751, %v2749
  %2754 = vrot.lane.b32.xlu0 %v2753, 48
  %v2755 = vpop.permute.xlu0 %2754
  %vm2756 = vcmask 523648
  %s2757 = scalar_lea.vmem %s1, 48
  %2758 = vst.msk [vmem:[%s2757] sm:$0xff] %vm2756, %v2755
  %s2759 = scalar_lea.vmem %s0, 531
  %v2760 = vld [vmem:[%s2759] sm:$0x1]
  %s2761 = scalar_lea.vmem %s0, 594
  %v2762 = vld [vmem:[%s2761] sm:$0x2]
  %vm2763 = vcmask 1041409
  %v2764 = vsel %vm2763, %v2762, %v2760
  %s2765 = scalar_lea.vmem %s0, 657
  %v2766 = vld [vmem:[%s2765] sm:$0x4]
  %vm2767 = vcmask 1042434
  %v2768 = vsel %vm2767, %v2766, %v2764
  %s2769 = scalar_lea.vmem %s0, 720
  %v2770 = vld [vmem:[%s2769] sm:$0x8]
  %vm2771 = vcmask 1043459
  %v2772 = vsel %vm2771, %v2770, %v2768
  %s2773 = scalar_lea.vmem %s0, 783
  %v2774 = vld [vmem:[%s2773] sm:$0x10]
  %vm2775 = vcmask 1044484
  %v2776 = vsel %vm2775, %v2774, %v2772
  %s2777 = scalar_lea.vmem %s0, 846
  %v2778 = vld [vmem:[%s2777] sm:$0x20]
  %vm2779 = vcmask 1045509
  %v2780 = vsel %vm2779, %v2778, %v2776
  %s2781 = scalar_lea.vmem %s0, 909
  %v2782 = vld [vmem:[%s2781] sm:$0x40]
  %vm2783 = vcmask 1046534
  %v2784 = vsel %vm2783, %v2782, %v2780
  %s2785 = scalar_lea.vmem %s0, 972
  %v2786 = vld [vmem:[%s2785] sm:$0x80]
  %vm2787 = vcmask 1047559
  %v2788 = vsel %vm2787, %v2786, %v2784
  %2789 = vrot.lane.b32.xlu0 %v2788, 48
  %v2790 = vpop.permute.xlu0 %2789
  %vm2791 = vcmask 523648
  %s2792 = scalar_lea.vmem %s1, 80
  %2793 = vst.msk [vmem:[%s2792] sm:$0xff] %vm2791, %v2790
  %s2794 = scalar_lea.vmem %s0, 563
  %v2795 = vld [vmem:[%s2794] sm:$0x1]
  %s2796 = scalar_lea.vmem %s0, 626
  %v2797 = vld [vmem:[%s2796] sm:$0x2]
  %vm2798 = vcmask 1041409
  %v2799 = vsel %vm2798, %v2797, %v2795
  %s2800 = scalar_lea.vmem %s0, 689
  %v2801 = vld [vmem:[%s2800] sm:$0x4]
  %vm2802 = vcmask 1042434
  %v2803 = vsel %vm2802, %v2801, %v2799
  %s2804 = scalar_lea.vmem %s0, 752
  %v2805 = vld [vmem:[%s2804] sm:$0x8]
  %vm2806 = vcmask 1043459
  %v2807 = vsel %vm2806, %v2805, %v2803
  %s2808 = scalar_lea.vmem %s0, 815
  %v2809 = vld [vmem:[%s2808] sm:$0x10]
  %vm2810 = vcmask 1044484
  %v2811 = vsel %vm2810, %v2809, %v2807
  %s2812 = scalar_lea.vmem %s0, 878
  %v2813 = vld [vmem:[%s2812] sm:$0x20]
  %vm2814 = vcmask 1045509
  %v2815 = vsel %vm2814, %v2813, %v2811
  %s2816 = scalar_lea.vmem %s0, 941
  %v2817 = vld [vmem:[%s2816] sm:$0x40]
  %vm2818 = vcmask 1046534
  %v2819 = vsel %vm2818, %v2817, %v2815
  %s2820 = scalar_lea.vmem %s0, 1004
  %v2821 = vld [vmem:[%s2820] sm:$0x80]
  %vm2822 = vcmask 1047559
  %v2823 = vsel %vm2822, %v2821, %v2819
  %2824 = vrot.lane.b32.xlu0 %v2823, 48
  %v2825 = vpop.permute.xlu0 %2824
  %vm2826 = vcmask 523648
  %s2827 = scalar_lea.vmem %s1, 112
  %2828 = vst.msk [vmem:[%s2827] sm:$0xff] %vm2826, %v2825
  %s2829 = scalar_lea.vmem %s0, 27
  %v2830 = vld [vmem:[%s2829] sm:$0x1]
  %s2831 = scalar_lea.vmem %s0, 90
  %v2832 = vld [vmem:[%s2831] sm:$0x2]
  %vm2833 = vcmask 1041409
  %v2834 = vsel %vm2833, %v2832, %v2830
  %s2835 = scalar_lea.vmem %s0, 153
  %v2836 = vld [vmem:[%s2835] sm:$0x4]
  %vm2837 = vcmask 1042434
  %v2838 = vsel %vm2837, %v2836, %v2834
  %s2839 = scalar_lea.vmem %s0, 216
  %v2840 = vld [vmem:[%s2839] sm:$0x8]
  %vm2841 = vcmask 1043459
  %v2842 = vsel %vm2841, %v2840, %v2838
  %s2843 = scalar_lea.vmem %s0, 279
  %v2844 = vld [vmem:[%s2843] sm:$0x10]
  %vm2845 = vcmask 1044484
  %v2846 = vsel %vm2845, %v2844, %v2842
  %s2847 = scalar_lea.vmem %s0, 342
  %v2848 = vld [vmem:[%s2847] sm:$0x20]
  %vm2849 = vcmask 1045509
  %v2850 = vsel %vm2849, %v2848, %v2846
  %s2851 = scalar_lea.vmem %s0, 405
  %v2852 = vld [vmem:[%s2851] sm:$0x40]
  %vm2853 = vcmask 1046534
  %v2854 = vsel %vm2853, %v2852, %v2850
  %s2855 = scalar_lea.vmem %s0, 468
  %v2856 = vld [vmem:[%s2855] sm:$0x80]
  %vm2857 = vcmask 1047559
  %v2858 = vsel %vm2857, %v2856, %v2854
  %2859 = vrot.lane.b32.xlu0 %v2858, 48
  %v2860 = vpop.permute.xlu0 %2859
  %vm2861 = vcmask 523648
  %s2862 = scalar_lea.vmem %s1, 24
  %2863 = vst.msk [vmem:[%s2862] sm:$0xff] %vm2861, %v2860
  %s2864 = scalar_lea.vmem %s0, 59
  %v2865 = vld [vmem:[%s2864] sm:$0x1]
  %s2866 = scalar_lea.vmem %s0, 122
  %v2867 = vld [vmem:[%s2866] sm:$0x2]
  %vm2868 = vcmask 1041409
  %v2869 = vsel %vm2868, %v2867, %v2865
  %s2870 = scalar_lea.vmem %s0, 185
  %v2871 = vld [vmem:[%s2870] sm:$0x4]
  %vm2872 = vcmask 1042434
  %v2873 = vsel %vm2872, %v2871, %v2869
  %s2874 = scalar_lea.vmem %s0, 248
  %v2875 = vld [vmem:[%s2874] sm:$0x8]
  %vm2876 = vcmask 1043459
  %v2877 = vsel %vm2876, %v2875, %v2873
  %s2878 = scalar_lea.vmem %s0, 311
  %v2879 = vld [vmem:[%s2878] sm:$0x10]
  %vm2880 = vcmask 1044484
  %v2881 = vsel %vm2880, %v2879, %v2877
  %s2882 = scalar_lea.vmem %s0, 374
  %v2883 = vld [vmem:[%s2882] sm:$0x20]
  %vm2884 = vcmask 1045509
  %v2885 = vsel %vm2884, %v2883, %v2881
  %s2886 = scalar_lea.vmem %s0, 437
  %v2887 = vld [vmem:[%s2886] sm:$0x40]
  %vm2888 = vcmask 1046534
  %v2889 = vsel %vm2888, %v2887, %v2885
  %s2890 = scalar_lea.vmem %s0, 500
  %v2891 = vld [vmem:[%s2890] sm:$0x80]
  %vm2892 = vcmask 1047559
  %v2893 = vsel %vm2892, %v2891, %v2889
  %2894 = vrot.lane.b32.xlu0 %v2893, 48
  %v2895 = vpop.permute.xlu0 %2894
  %vm2896 = vcmask 523648
  %s2897 = scalar_lea.vmem %s1, 56
  %2898 = vst.msk [vmem:[%s2897] sm:$0xff] %vm2896, %v2895
  %s2899 = scalar_lea.vmem %s0, 539
  %v2900 = vld [vmem:[%s2899] sm:$0x1]
  %s2901 = scalar_lea.vmem %s0, 602
  %v2902 = vld [vmem:[%s2901] sm:$0x2]
  %vm2903 = vcmask 1041409
  %v2904 = vsel %vm2903, %v2902, %v2900
  %s2905 = scalar_lea.vmem %s0, 665
  %v2906 = vld [vmem:[%s2905] sm:$0x4]
  %vm2907 = vcmask 1042434
  %v2908 = vsel %vm2907, %v2906, %v2904
  %s2909 = scalar_lea.vmem %s0, 728
  %v2910 = vld [vmem:[%s2909] sm:$0x8]
  %vm2911 = vcmask 1043459
  %v2912 = vsel %vm2911, %v2910, %v2908
  %s2913 = scalar_lea.vmem %s0, 791
  %v2914 = vld [vmem:[%s2913] sm:$0x10]
  %vm2915 = vcmask 1044484
  %v2916 = vsel %vm2915, %v2914, %v2912
  %s2917 = scalar_lea.vmem %s0, 854
  %v2918 = vld [vmem:[%s2917] sm:$0x20]
  %vm2919 = vcmask 1045509
  %v2920 = vsel %vm2919, %v2918, %v2916
  %s2921 = scalar_lea.vmem %s0, 917
  %v2922 = vld [vmem:[%s2921] sm:$0x40]
  %vm2923 = vcmask 1046534
  %v2924 = vsel %vm2923, %v2922, %v2920
  %s2925 = scalar_lea.vmem %s0, 980
  %v2926 = vld [vmem:[%s2925] sm:$0x80]
  %vm2927 = vcmask 1047559
  %v2928 = vsel %vm2927, %v2926, %v2924
  %2929 = vrot.lane.b32.xlu0 %v2928, 48
  %v2930 = vpop.permute.xlu0 %2929
  %vm2931 = vcmask 523648
  %s2932 = scalar_lea.vmem %s1, 88
  %2933 = vst.msk [vmem:[%s2932] sm:$0xff] %vm2931, %v2930
  %s2934 = scalar_lea.vmem %s0, 571
  %v2935 = vld [vmem:[%s2934] sm:$0x1]
  %s2936 = scalar_lea.vmem %s0, 634
  %v2937 = vld [vmem:[%s2936] sm:$0x2]
  %vm2938 = vcmask 1041409
  %v2939 = vsel %vm2938, %v2937, %v2935
  %s2940 = scalar_lea.vmem %s0, 697
  %v2941 = vld [vmem:[%s2940] sm:$0x4]
  %vm2942 = vcmask 1042434
  %v2943 = vsel %vm2942, %v2941, %v2939
  %s2944 = scalar_lea.vmem %s0, 760
  %v2945 = vld [vmem:[%s2944] sm:$0x8]
  %vm2946 = vcmask 1043459
  %v2947 = vsel %vm2946, %v2945, %v2943
  %s2948 = scalar_lea.vmem %s0, 823
  %v2949 = vld [vmem:[%s2948] sm:$0x10]
  %vm2950 = vcmask 1044484
  %v2951 = vsel %vm2950, %v2949, %v2947
  %s2952 = scalar_lea.vmem %s0, 886
  %v2953 = vld [vmem:[%s2952] sm:$0x20]
  %vm2954 = vcmask 1045509
  %v2955 = vsel %vm2954, %v2953, %v2951
  %s2956 = scalar_lea.vmem %s0, 949
  %v2957 = vld [vmem:[%s2956] sm:$0x40]
  %vm2958 = vcmask 1046534
  %v2959 = vsel %vm2958, %v2957, %v2955
  %s2960 = scalar_lea.vmem %s0, 1012
  %v2961 = vld [vmem:[%s2960] sm:$0x80]
  %vm2962 = vcmask 1047559
  %v2963 = vsel %vm2962, %v2961, %v2959
  %2964 = vrot.lane.b32.xlu0 %v2963, 48
  %v2965 = vpop.permute.xlu0 %2964
  %vm2966 = vcmask 523648
  %s2967 = scalar_lea.vmem %s1, 120
  %2968 = vst.msk [vmem:[%s2967] sm:$0xff] %vm2966, %v2965
  %s2969 = scalar_lea.vmem %s0, 2
  %v2970 = vld [vmem:[%s2969] sm:$0x1]
  %s2971 = scalar_lea.vmem %s0, 65
  %v2972 = vld [vmem:[%s2971] sm:$0x2]
  %vm2973 = vcmask 1041409
  %v2974 = vsel %vm2973, %v2972, %v2970
  %s2975 = scalar_lea.vmem %s0, 128
  %v2976 = vld [vmem:[%s2975] sm:$0x4]
  %vm2977 = vcmask 1042434
  %v2978 = vsel %vm2977, %v2976, %v2974
  %s2979 = scalar_lea.vmem %s0, 191
  %v2980 = vld [vmem:[%s2979] sm:$0x8]
  %vm2981 = vcmask 1043459
  %v2982 = vsel %vm2981, %v2980, %v2978
  %s2983 = scalar_lea.vmem %s0, 254
  %v2984 = vld [vmem:[%s2983] sm:$0x10]
  %vm2985 = vcmask 1044484
  %v2986 = vsel %vm2985, %v2984, %v2982
  %s2987 = scalar_lea.vmem %s0, 317
  %v2988 = vld [vmem:[%s2987] sm:$0x20]
  %vm2989 = vcmask 1045509
  %v2990 = vsel %vm2989, %v2988, %v2986
  %s2991 = scalar_lea.vmem %s0, 380
  %v2992 = vld [vmem:[%s2991] sm:$0x40]
  %vm2993 = vcmask 1046534
  %v2994 = vsel %vm2993, %v2992, %v2990
  %s2995 = scalar_lea.vmem %s0, 443
  %v2996 = vld [vmem:[%s2995] sm:$0x80]
  %vm2997 = vcmask 1047559
  %v2998 = vsel %vm2997, %v2996, %v2994
  %2999 = vrot.lane.b32.xlu0 %v2998, 32
  %v3000 = vpop.permute.xlu0 %2999
  %vm3001 = vcmask 392448
  %3002 = vst.msk [vmem:[%s1] sm:$0xff] %vm3001, %v3000
  %s3003 = scalar_lea.vmem %s0, 34
  %v3004 = vld [vmem:[%s3003] sm:$0x1]
  %s3005 = scalar_lea.vmem %s0, 97
  %v3006 = vld [vmem:[%s3005] sm:$0x2]
  %vm3007 = vcmask 1041409
  %v3008 = vsel %vm3007, %v3006, %v3004
  %s3009 = scalar_lea.vmem %s0, 160
  %v3010 = vld [vmem:[%s3009] sm:$0x4]
  %vm3011 = vcmask 1042434
  %v3012 = vsel %vm3011, %v3010, %v3008
  %s3013 = scalar_lea.vmem %s0, 223
  %v3014 = vld [vmem:[%s3013] sm:$0x8]
  %vm3015 = vcmask 1043459
  %v3016 = vsel %vm3015, %v3014, %v3012
  %s3017 = scalar_lea.vmem %s0, 286
  %v3018 = vld [vmem:[%s3017] sm:$0x10]
  %vm3019 = vcmask 1044484
  %v3020 = vsel %vm3019, %v3018, %v3016
  %s3021 = scalar_lea.vmem %s0, 349
  %v3022 = vld [vmem:[%s3021] sm:$0x20]
  %vm3023 = vcmask 1045509
  %v3024 = vsel %vm3023, %v3022, %v3020
  %s3025 = scalar_lea.vmem %s0, 412
  %v3026 = vld [vmem:[%s3025] sm:$0x40]
  %vm3027 = vcmask 1046534
  %v3028 = vsel %vm3027, %v3026, %v3024
  %s3029 = scalar_lea.vmem %s0, 475
  %v3030 = vld [vmem:[%s3029] sm:$0x80]
  %vm3031 = vcmask 1047559
  %v3032 = vsel %vm3031, %v3030, %v3028
  %3033 = vrot.lane.b32.xlu0 %v3032, 32
  %v3034 = vpop.permute.xlu0 %3033
  %vm3035 = vcmask 392448
  %s3036 = scalar_lea.vmem %s1, 32
  %3037 = vst.msk [vmem:[%s3036] sm:$0xff] %vm3035, %v3034
  %s3038 = scalar_lea.vmem %s0, 514
  %v3039 = vld [vmem:[%s3038] sm:$0x1]
  %s3040 = scalar_lea.vmem %s0, 577
  %v3041 = vld [vmem:[%s3040] sm:$0x2]
  %vm3042 = vcmask 1041409
  %v3043 = vsel %vm3042, %v3041, %v3039
  %s3044 = scalar_lea.vmem %s0, 640
  %v3045 = vld [vmem:[%s3044] sm:$0x4]
  %vm3046 = vcmask 1042434
  %v3047 = vsel %vm3046, %v3045, %v3043
  %s3048 = scalar_lea.vmem %s0, 703
  %v3049 = vld [vmem:[%s3048] sm:$0x8]
  %vm3050 = vcmask 1043459
  %v3051 = vsel %vm3050, %v3049, %v3047
  %s3052 = scalar_lea.vmem %s0, 766
  %v3053 = vld [vmem:[%s3052] sm:$0x10]
  %vm3054 = vcmask 1044484
  %v3055 = vsel %vm3054, %v3053, %v3051
  %s3056 = scalar_lea.vmem %s0, 829
  %v3057 = vld [vmem:[%s3056] sm:$0x20]
  %vm3058 = vcmask 1045509
  %v3059 = vsel %vm3058, %v3057, %v3055
  %s3060 = scalar_lea.vmem %s0, 892
  %v3061 = vld [vmem:[%s3060] sm:$0x40]
  %vm3062 = vcmask 1046534
  %v3063 = vsel %vm3062, %v3061, %v3059
  %s3064 = scalar_lea.vmem %s0, 955
  %v3065 = vld [vmem:[%s3064] sm:$0x80]
  %vm3066 = vcmask 1047559
  %v3067 = vsel %vm3066, %v3065, %v3063
  %3068 = vrot.lane.b32.xlu0 %v3067, 32
  %v3069 = vpop.permute.xlu0 %3068
  %vm3070 = vcmask 392448
  %s3071 = scalar_lea.vmem %s1, 64
  %3072 = vst.msk [vmem:[%s3071] sm:$0xff] %vm3070, %v3069
  %s3073 = scalar_lea.vmem %s0, 546
  %v3074 = vld [vmem:[%s3073] sm:$0x1]
  %s3075 = scalar_lea.vmem %s0, 609
  %v3076 = vld [vmem:[%s3075] sm:$0x2]
  %vm3077 = vcmask 1041409
  %v3078 = vsel %vm3077, %v3076, %v3074
  %s3079 = scalar_lea.vmem %s0, 672
  %v3080 = vld [vmem:[%s3079] sm:$0x4]
  %vm3081 = vcmask 1042434
  %v3082 = vsel %vm3081, %v3080, %v3078
  %s3083 = scalar_lea.vmem %s0, 735
  %v3084 = vld [vmem:[%s3083] sm:$0x8]
  %vm3085 = vcmask 1043459
  %v3086 = vsel %vm3085, %v3084, %v3082
  %s3087 = scalar_lea.vmem %s0, 798
  %v3088 = vld [vmem:[%s3087] sm:$0x10]
  %vm3089 = vcmask 1044484
  %v3090 = vsel %vm3089, %v3088, %v3086
  %s3091 = scalar_lea.vmem %s0, 861
  %v3092 = vld [vmem:[%s3091] sm:$0x20]
  %vm3093 = vcmask 1045509
  %v3094 = vsel %vm3093, %v3092, %v3090
  %s3095 = scalar_lea.vmem %s0, 924
  %v3096 = vld [vmem:[%s3095] sm:$0x40]
  %vm3097 = vcmask 1046534
  %v3098 = vsel %vm3097, %v3096, %v3094
  %s3099 = scalar_lea.vmem %s0, 987
  %v3100 = vld [vmem:[%s3099] sm:$0x80]
  %vm3101 = vcmask 1047559
  %v3102 = vsel %vm3101, %v3100, %v3098
  %3103 = vrot.lane.b32.xlu0 %v3102, 32
  %v3104 = vpop.permute.xlu0 %3103
  %vm3105 = vcmask 392448
  %s3106 = scalar_lea.vmem %s1, 96
  %3107 = vst.msk [vmem:[%s3106] sm:$0xff] %vm3105, %v3104
  %s3108 = scalar_lea.vmem %s0, 10
  %v3109 = vld [vmem:[%s3108] sm:$0x1]
  %s3110 = scalar_lea.vmem %s0, 73
  %v3111 = vld [vmem:[%s3110] sm:$0x2]
  %vm3112 = vcmask 1041409
  %v3113 = vsel %vm3112, %v3111, %v3109
  %s3114 = scalar_lea.vmem %s0, 136
  %v3115 = vld [vmem:[%s3114] sm:$0x4]
  %vm3116 = vcmask 1042434
  %v3117 = vsel %vm3116, %v3115, %v3113
  %s3118 = scalar_lea.vmem %s0, 199
  %v3119 = vld [vmem:[%s3118] sm:$0x8]
  %vm3120 = vcmask 1043459
  %v3121 = vsel %vm3120, %v3119, %v3117
  %s3122 = scalar_lea.vmem %s0, 262
  %v3123 = vld [vmem:[%s3122] sm:$0x10]
  %vm3124 = vcmask 1044484
  %v3125 = vsel %vm3124, %v3123, %v3121
  %s3126 = scalar_lea.vmem %s0, 325
  %v3127 = vld [vmem:[%s3126] sm:$0x20]
  %vm3128 = vcmask 1045509
  %v3129 = vsel %vm3128, %v3127, %v3125
  %s3130 = scalar_lea.vmem %s0, 388
  %v3131 = vld [vmem:[%s3130] sm:$0x40]
  %vm3132 = vcmask 1046534
  %v3133 = vsel %vm3132, %v3131, %v3129
  %s3134 = scalar_lea.vmem %s0, 451
  %v3135 = vld [vmem:[%s3134] sm:$0x80]
  %vm3136 = vcmask 1047559
  %v3137 = vsel %vm3136, %v3135, %v3133
  %3138 = vrot.lane.b32.xlu0 %v3137, 32
  %v3139 = vpop.permute.xlu0 %3138
  %vm3140 = vcmask 392448
  %s3141 = scalar_lea.vmem %s1, 8
  %3142 = vst.msk [vmem:[%s3141] sm:$0xff] %vm3140, %v3139
  %s3143 = scalar_lea.vmem %s0, 42
  %v3144 = vld [vmem:[%s3143] sm:$0x1]
  %s3145 = scalar_lea.vmem %s0, 105
  %v3146 = vld [vmem:[%s3145] sm:$0x2]
  %vm3147 = vcmask 1041409
  %v3148 = vsel %vm3147, %v3146, %v3144
  %s3149 = scalar_lea.vmem %s0, 168
  %v3150 = vld [vmem:[%s3149] sm:$0x4]
  %vm3151 = vcmask 1042434
  %v3152 = vsel %vm3151, %v3150, %v3148
  %s3153 = scalar_lea.vmem %s0, 231
  %v3154 = vld [vmem:[%s3153] sm:$0x8]
  %vm3155 = vcmask 1043459
  %v3156 = vsel %vm3155, %v3154, %v3152
  %s3157 = scalar_lea.vmem %s0, 294
  %v3158 = vld [vmem:[%s3157] sm:$0x10]
  %vm3159 = vcmask 1044484
  %v3160 = vsel %vm3159, %v3158, %v3156
  %s3161 = scalar_lea.vmem %s0, 357
  %v3162 = vld [vmem:[%s3161] sm:$0x20]
  %vm3163 = vcmask 1045509
  %v3164 = vsel %vm3163, %v3162, %v3160
  %s3165 = scalar_lea.vmem %s0, 420
  %v3166 = vld [vmem:[%s3165] sm:$0x40]
  %vm3167 = vcmask 1046534
  %v3168 = vsel %vm3167, %v3166, %v3164
  %s3169 = scalar_lea.vmem %s0, 483
  %v3170 = vld [vmem:[%s3169] sm:$0x80]
  %vm3171 = vcmask 1047559
  %v3172 = vsel %vm3171, %v3170, %v3168
  %3173 = vrot.lane.b32.xlu0 %v3172, 32
  %v3174 = vpop.permute.xlu0 %3173
  %vm3175 = vcmask 392448
  %s3176 = scalar_lea.vmem %s1, 40
  %3177 = vst.msk [vmem:[%s3176] sm:$0xff] %vm3175, %v3174
  %s3178 = scalar_lea.vmem %s0, 522
  %v3179 = vld [vmem:[%s3178] sm:$0x1]
  %s3180 = scalar_lea.vmem %s0, 585
  %v3181 = vld [vmem:[%s3180] sm:$0x2]
  %vm3182 = vcmask 1041409
  %v3183 = vsel %vm3182, %v3181, %v3179
  %s3184 = scalar_lea.vmem %s0, 648
  %v3185 = vld [vmem:[%s3184] sm:$0x4]
  %vm3186 = vcmask 1042434
  %v3187 = vsel %vm3186, %v3185, %v3183
  %s3188 = scalar_lea.vmem %s0, 711
  %v3189 = vld [vmem:[%s3188] sm:$0x8]
  %vm3190 = vcmask 1043459
  %v3191 = vsel %vm3190, %v3189, %v3187
  %s3192 = scalar_lea.vmem %s0, 774
  %v3193 = vld [vmem:[%s3192] sm:$0x10]
  %vm3194 = vcmask 1044484
  %v3195 = vsel %vm3194, %v3193, %v3191
  %s3196 = scalar_lea.vmem %s0, 837
  %v3197 = vld [vmem:[%s3196] sm:$0x20]
  %vm3198 = vcmask 1045509
  %v3199 = vsel %vm3198, %v3197, %v3195
  %s3200 = scalar_lea.vmem %s0, 900
  %v3201 = vld [vmem:[%s3200] sm:$0x40]
  %vm3202 = vcmask 1046534
  %v3203 = vsel %vm3202, %v3201, %v3199
  %s3204 = scalar_lea.vmem %s0, 963
  %v3205 = vld [vmem:[%s3204] sm:$0x80]
  %vm3206 = vcmask 1047559
  %v3207 = vsel %vm3206, %v3205, %v3203
  %3208 = vrot.lane.b32.xlu0 %v3207, 32
  %v3209 = vpop.permute.xlu0 %3208
  %vm3210 = vcmask 392448
  %s3211 = scalar_lea.vmem %s1, 72
  %3212 = vst.msk [vmem:[%s3211] sm:$0xff] %vm3210, %v3209
  %s3213 = scalar_lea.vmem %s0, 554
  %v3214 = vld [vmem:[%s3213] sm:$0x1]
  %s3215 = scalar_lea.vmem %s0, 617
  %v3216 = vld [vmem:[%s3215] sm:$0x2]
  %vm3217 = vcmask 1041409
  %v3218 = vsel %vm3217, %v3216, %v3214
  %s3219 = scalar_lea.vmem %s0, 680
  %v3220 = vld [vmem:[%s3219] sm:$0x4]
  %vm3221 = vcmask 1042434
  %v3222 = vsel %vm3221, %v3220, %v3218
  %s3223 = scalar_lea.vmem %s0, 743
  %v3224 = vld [vmem:[%s3223] sm:$0x8]
  %vm3225 = vcmask 1043459
  %v3226 = vsel %vm3225, %v3224, %v3222
  %s3227 = scalar_lea.vmem %s0, 806
  %v3228 = vld [vmem:[%s3227] sm:$0x10]
  %vm3229 = vcmask 1044484
  %v3230 = vsel %vm3229, %v3228, %v3226
  %s3231 = scalar_lea.vmem %s0, 869
  %v3232 = vld [vmem:[%s3231] sm:$0x20]
  %vm3233 = vcmask 1045509
  %v3234 = vsel %vm3233, %v3232, %v3230
  %s3235 = scalar_lea.vmem %s0, 932
  %v3236 = vld [vmem:[%s3235] sm:$0x40]
  %vm3237 = vcmask 1046534
  %v3238 = vsel %vm3237, %v3236, %v3234
  %s3239 = scalar_lea.vmem %s0, 995
  %v3240 = vld [vmem:[%s3239] sm:$0x80]
  %vm3241 = vcmask 1047559
  %v3242 = vsel %vm3241, %v3240, %v3238
  %3243 = vrot.lane.b32.xlu0 %v3242, 32
  %v3244 = vpop.permute.xlu0 %3243
  %vm3245 = vcmask 392448
  %s3246 = scalar_lea.vmem %s1, 104
  %3247 = vst.msk [vmem:[%s3246] sm:$0xff] %vm3245, %v3244
  %s3248 = scalar_lea.vmem %s0, 18
  %v3249 = vld [vmem:[%s3248] sm:$0x1]
  %s3250 = scalar_lea.vmem %s0, 81
  %v3251 = vld [vmem:[%s3250] sm:$0x2]
  %vm3252 = vcmask 1041409
  %v3253 = vsel %vm3252, %v3251, %v3249
  %s3254 = scalar_lea.vmem %s0, 144
  %v3255 = vld [vmem:[%s3254] sm:$0x4]
  %vm3256 = vcmask 1042434
  %v3257 = vsel %vm3256, %v3255, %v3253
  %s3258 = scalar_lea.vmem %s0, 207
  %v3259 = vld [vmem:[%s3258] sm:$0x8]
  %vm3260 = vcmask 1043459
  %v3261 = vsel %vm3260, %v3259, %v3257
  %s3262 = scalar_lea.vmem %s0, 270
  %v3263 = vld [vmem:[%s3262] sm:$0x10]
  %vm3264 = vcmask 1044484
  %v3265 = vsel %vm3264, %v3263, %v3261
  %s3266 = scalar_lea.vmem %s0, 333
  %v3267 = vld [vmem:[%s3266] sm:$0x20]
  %vm3268 = vcmask 1045509
  %v3269 = vsel %vm3268, %v3267, %v3265
  %s3270 = scalar_lea.vmem %s0, 396
  %v3271 = vld [vmem:[%s3270] sm:$0x40]
  %vm3272 = vcmask 1046534
  %v3273 = vsel %vm3272, %v3271, %v3269
  %s3274 = scalar_lea.vmem %s0, 459
  %v3275 = vld [vmem:[%s3274] sm:$0x80]
  %vm3276 = vcmask 1047559
  %v3277 = vsel %vm3276, %v3275, %v3273
  %3278 = vrot.lane.b32.xlu0 %v3277, 32
  %v3279 = vpop.permute.xlu0 %3278
  %vm3280 = vcmask 392448
  %s3281 = scalar_lea.vmem %s1, 16
  %3282 = vst.msk [vmem:[%s3281] sm:$0xff] %vm3280, %v3279
  %s3283 = scalar_lea.vmem %s0, 50
  %v3284 = vld [vmem:[%s3283] sm:$0x1]
  %s3285 = scalar_lea.vmem %s0, 113
  %v3286 = vld [vmem:[%s3285] sm:$0x2]
  %vm3287 = vcmask 1041409
  %v3288 = vsel %vm3287, %v3286, %v3284
  %s3289 = scalar_lea.vmem %s0, 176
  %v3290 = vld [vmem:[%s3289] sm:$0x4]
  %vm3291 = vcmask 1042434
  %v3292 = vsel %vm3291, %v3290, %v3288
  %s3293 = scalar_lea.vmem %s0, 239
  %v3294 = vld [vmem:[%s3293] sm:$0x8]
  %vm3295 = vcmask 1043459
  %v3296 = vsel %vm3295, %v3294, %v3292
  %s3297 = scalar_lea.vmem %s0, 302
  %v3298 = vld [vmem:[%s3297] sm:$0x10]
  %vm3299 = vcmask 1044484
  %v3300 = vsel %vm3299, %v3298, %v3296
  %s3301 = scalar_lea.vmem %s0, 365
  %v3302 = vld [vmem:[%s3301] sm:$0x20]
  %vm3303 = vcmask 1045509
  %v3304 = vsel %vm3303, %v3302, %v3300
  %s3305 = scalar_lea.vmem %s0, 428
  %v3306 = vld [vmem:[%s3305] sm:$0x40]
  %vm3307 = vcmask 1046534
  %v3308 = vsel %vm3307, %v3306, %v3304
  %s3309 = scalar_lea.vmem %s0, 491
  %v3310 = vld [vmem:[%s3309] sm:$0x80]
  %vm3311 = vcmask 1047559
  %v3312 = vsel %vm3311, %v3310, %v3308
  %3313 = vrot.lane.b32.xlu0 %v3312, 32
  %v3314 = vpop.permute.xlu0 %3313
  %vm3315 = vcmask 392448
  %s3316 = scalar_lea.vmem %s1, 48
  %3317 = vst.msk [vmem:[%s3316] sm:$0xff] %vm3315, %v3314
  %s3318 = scalar_lea.vmem %s0, 530
  %v3319 = vld [vmem:[%s3318] sm:$0x1]
  %s3320 = scalar_lea.vmem %s0, 593
  %v3321 = vld [vmem:[%s3320] sm:$0x2]
  %vm3322 = vcmask 1041409
  %v3323 = vsel %vm3322, %v3321, %v3319
  %s3324 = scalar_lea.vmem %s0, 656
  %v3325 = vld [vmem:[%s3324] sm:$0x4]
  %vm3326 = vcmask 1042434
  %v3327 = vsel %vm3326, %v3325, %v3323
  %s3328 = scalar_lea.vmem %s0, 719
  %v3329 = vld [vmem:[%s3328] sm:$0x8]
  %vm3330 = vcmask 1043459
  %v3331 = vsel %vm3330, %v3329, %v3327
  %s3332 = scalar_lea.vmem %s0, 782
  %v3333 = vld [vmem:[%s3332] sm:$0x10]
  %vm3334 = vcmask 1044484
  %v3335 = vsel %vm3334, %v3333, %v3331
  %s3336 = scalar_lea.vmem %s0, 845
  %v3337 = vld [vmem:[%s3336] sm:$0x20]
  %vm3338 = vcmask 1045509
  %v3339 = vsel %vm3338, %v3337, %v3335
  %s3340 = scalar_lea.vmem %s0, 908
  %v3341 = vld [vmem:[%s3340] sm:$0x40]
  %vm3342 = vcmask 1046534
  %v3343 = vsel %vm3342, %v3341, %v3339
  %s3344 = scalar_lea.vmem %s0, 971
  %v3345 = vld [vmem:[%s3344] sm:$0x80]
  %vm3346 = vcmask 1047559
  %v3347 = vsel %vm3346, %v3345, %v3343
  %3348 = vrot.lane.b32.xlu0 %v3347, 32
  %v3349 = vpop.permute.xlu0 %3348
  %vm3350 = vcmask 392448
  %s3351 = scalar_lea.vmem %s1, 80
  %3352 = vst.msk [vmem:[%s3351] sm:$0xff] %vm3350, %v3349
  %s3353 = scalar_lea.vmem %s0, 562
  %v3354 = vld [vmem:[%s3353] sm:$0x1]
  %s3355 = scalar_lea.vmem %s0, 625
  %v3356 = vld [vmem:[%s3355] sm:$0x2]
  %vm3357 = vcmask 1041409
  %v3358 = vsel %vm3357, %v3356, %v3354
  %s3359 = scalar_lea.vmem %s0, 688
  %v3360 = vld [vmem:[%s3359] sm:$0x4]
  %vm3361 = vcmask 1042434
  %v3362 = vsel %vm3361, %v3360, %v3358
  %s3363 = scalar_lea.vmem %s0, 751
  %v3364 = vld [vmem:[%s3363] sm:$0x8]
  %vm3365 = vcmask 1043459
  %v3366 = vsel %vm3365, %v3364, %v3362
  %s3367 = scalar_lea.vmem %s0, 814
  %v3368 = vld [vmem:[%s3367] sm:$0x10]
  %vm3369 = vcmask 1044484
  %v3370 = vsel %vm3369, %v3368, %v3366
  %s3371 = scalar_lea.vmem %s0, 877
  %v3372 = vld [vmem:[%s3371] sm:$0x20]
  %vm3373 = vcmask 1045509
  %v3374 = vsel %vm3373, %v3372, %v3370
  %s3375 = scalar_lea.vmem %s0, 940
  %v3376 = vld [vmem:[%s3375] sm:$0x40]
  %vm3377 = vcmask 1046534
  %v3378 = vsel %vm3377, %v3376, %v3374
  %s3379 = scalar_lea.vmem %s0, 1003
  %v3380 = vld [vmem:[%s3379] sm:$0x80]
  %vm3381 = vcmask 1047559
  %v3382 = vsel %vm3381, %v3380, %v3378
  %3383 = vrot.lane.b32.xlu0 %v3382, 32
  %v3384 = vpop.permute.xlu0 %3383
  %vm3385 = vcmask 392448
  %s3386 = scalar_lea.vmem %s1, 112
  %3387 = vst.msk [vmem:[%s3386] sm:$0xff] %vm3385, %v3384
  %s3388 = scalar_lea.vmem %s0, 26
  %v3389 = vld [vmem:[%s3388] sm:$0x1]
  %s3390 = scalar_lea.vmem %s0, 89
  %v3391 = vld [vmem:[%s3390] sm:$0x2]
  %vm3392 = vcmask 1041409
  %v3393 = vsel %vm3392, %v3391, %v3389
  %s3394 = scalar_lea.vmem %s0, 152
  %v3395 = vld [vmem:[%s3394] sm:$0x4]
  %vm3396 = vcmask 1042434
  %v3397 = vsel %vm3396, %v3395, %v3393
  %s3398 = scalar_lea.vmem %s0, 215
  %v3399 = vld [vmem:[%s3398] sm:$0x8]
  %vm3400 = vcmask 1043459
  %v3401 = vsel %vm3400, %v3399, %v3397
  %s3402 = scalar_lea.vmem %s0, 278
  %v3403 = vld [vmem:[%s3402] sm:$0x10]
  %vm3404 = vcmask 1044484
  %v3405 = vsel %vm3404, %v3403, %v3401
  %s3406 = scalar_lea.vmem %s0, 341
  %v3407 = vld [vmem:[%s3406] sm:$0x20]
  %vm3408 = vcmask 1045509
  %v3409 = vsel %vm3408, %v3407, %v3405
  %s3410 = scalar_lea.vmem %s0, 404
  %v3411 = vld [vmem:[%s3410] sm:$0x40]
  %vm3412 = vcmask 1046534
  %v3413 = vsel %vm3412, %v3411, %v3409
  %s3414 = scalar_lea.vmem %s0, 467
  %v3415 = vld [vmem:[%s3414] sm:$0x80]
  %vm3416 = vcmask 1047559
  %v3417 = vsel %vm3416, %v3415, %v3413
  %3418 = vrot.lane.b32.xlu0 %v3417, 32
  %v3419 = vpop.permute.xlu0 %3418
  %vm3420 = vcmask 392448
  %s3421 = scalar_lea.vmem %s1, 24
  %3422 = vst.msk [vmem:[%s3421] sm:$0xff] %vm3420, %v3419
  %s3423 = scalar_lea.vmem %s0, 58
  %v3424 = vld [vmem:[%s3423] sm:$0x1]
  %s3425 = scalar_lea.vmem %s0, 121
  %v3426 = vld [vmem:[%s3425] sm:$0x2]
  %vm3427 = vcmask 1041409
  %v3428 = vsel %vm3427, %v3426, %v3424
  %s3429 = scalar_lea.vmem %s0, 184
  %v3430 = vld [vmem:[%s3429] sm:$0x4]
  %vm3431 = vcmask 1042434
  %v3432 = vsel %vm3431, %v3430, %v3428
  %s3433 = scalar_lea.vmem %s0, 247
  %v3434 = vld [vmem:[%s3433] sm:$0x8]
  %vm3435 = vcmask 1043459
  %v3436 = vsel %vm3435, %v3434, %v3432
  %s3437 = scalar_lea.vmem %s0, 310
  %v3438 = vld [vmem:[%s3437] sm:$0x10]
  %vm3439 = vcmask 1044484
  %v3440 = vsel %vm3439, %v3438, %v3436
  %s3441 = scalar_lea.vmem %s0, 373
  %v3442 = vld [vmem:[%s3441] sm:$0x20]
  %vm3443 = vcmask 1045509
  %v3444 = vsel %vm3443, %v3442, %v3440
  %s3445 = scalar_lea.vmem %s0, 436
  %v3446 = vld [vmem:[%s3445] sm:$0x40]
  %vm3447 = vcmask 1046534
  %v3448 = vsel %vm3447, %v3446, %v3444
  %s3449 = scalar_lea.vmem %s0, 499
  %v3450 = vld [vmem:[%s3449] sm:$0x80]
  %vm3451 = vcmask 1047559
  %v3452 = vsel %vm3451, %v3450, %v3448
  %3453 = vrot.lane.b32.xlu0 %v3452, 32
  %v3454 = vpop.permute.xlu0 %3453
  %vm3455 = vcmask 392448
  %s3456 = scalar_lea.vmem %s1, 56
  %3457 = vst.msk [vmem:[%s3456] sm:$0xff] %vm3455, %v3454
  %s3458 = scalar_lea.vmem %s0, 538
  %v3459 = vld [vmem:[%s3458] sm:$0x1]
  %s3460 = scalar_lea.vmem %s0, 601
  %v3461 = vld [vmem:[%s3460] sm:$0x2]
  %vm3462 = vcmask 1041409
  %v3463 = vsel %vm3462, %v3461, %v3459
  %s3464 = scalar_lea.vmem %s0, 664
  %v3465 = vld [vmem:[%s3464] sm:$0x4]
  %vm3466 = vcmask 1042434
  %v3467 = vsel %vm3466, %v3465, %v3463
  %s3468 = scalar_lea.vmem %s0, 727
  %v3469 = vld [vmem:[%s3468] sm:$0x8]
  %vm3470 = vcmask 1043459
  %v3471 = vsel %vm3470, %v3469, %v3467
  %s3472 = scalar_lea.vmem %s0, 790
  %v3473 = vld [vmem:[%s3472] sm:$0x10]
  %vm3474 = vcmask 1044484
  %v3475 = vsel %vm3474, %v3473, %v3471
  %s3476 = scalar_lea.vmem %s0, 853
  %v3477 = vld [vmem:[%s3476] sm:$0x20]
  %vm3478 = vcmask 1045509
  %v3479 = vsel %vm3478, %v3477, %v3475
  %s3480 = scalar_lea.vmem %s0, 916
  %v3481 = vld [vmem:[%s3480] sm:$0x40]
  %vm3482 = vcmask 1046534
  %v3483 = vsel %vm3482, %v3481, %v3479
  %s3484 = scalar_lea.vmem %s0, 979
  %v3485 = vld [vmem:[%s3484] sm:$0x80]
  %vm3486 = vcmask 1047559
  %v3487 = vsel %vm3486, %v3485, %v3483
  %3488 = vrot.lane.b32.xlu0 %v3487, 32
  %v3489 = vpop.permute.xlu0 %3488
  %vm3490 = vcmask 392448
  %s3491 = scalar_lea.vmem %s1, 88
  %3492 = vst.msk [vmem:[%s3491] sm:$0xff] %vm3490, %v3489
  %s3493 = scalar_lea.vmem %s0, 570
  %v3494 = vld [vmem:[%s3493] sm:$0x1]
  %s3495 = scalar_lea.vmem %s0, 633
  %v3496 = vld [vmem:[%s3495] sm:$0x2]
  %vm3497 = vcmask 1041409
  %v3498 = vsel %vm3497, %v3496, %v3494
  %s3499 = scalar_lea.vmem %s0, 696
  %v3500 = vld [vmem:[%s3499] sm:$0x4]
  %vm3501 = vcmask 1042434
  %v3502 = vsel %vm3501, %v3500, %v3498
  %s3503 = scalar_lea.vmem %s0, 759
  %v3504 = vld [vmem:[%s3503] sm:$0x8]
  %vm3505 = vcmask 1043459
  %v3506 = vsel %vm3505, %v3504, %v3502
  %s3507 = scalar_lea.vmem %s0, 822
  %v3508 = vld [vmem:[%s3507] sm:$0x10]
  %vm3509 = vcmask 1044484
  %v3510 = vsel %vm3509, %v3508, %v3506
  %s3511 = scalar_lea.vmem %s0, 885
  %v3512 = vld [vmem:[%s3511] sm:$0x20]
  %vm3513 = vcmask 1045509
  %v3514 = vsel %vm3513, %v3512, %v3510
  %s3515 = scalar_lea.vmem %s0, 948
  %v3516 = vld [vmem:[%s3515] sm:$0x40]
  %vm3517 = vcmask 1046534
  %v3518 = vsel %vm3517, %v3516, %v3514
  %s3519 = scalar_lea.vmem %s0, 1011
  %v3520 = vld [vmem:[%s3519] sm:$0x80]
  %vm3521 = vcmask 1047559
  %v3522 = vsel %vm3521, %v3520, %v3518
  %3523 = vrot.lane.b32.xlu0 %v3522, 32
  %v3524 = vpop.permute.xlu0 %3523
  %vm3525 = vcmask 392448
  %s3526 = scalar_lea.vmem %s1, 120
  %3527 = vst.msk [vmem:[%s3526] sm:$0xff] %vm3525, %v3524
  %s3528 = scalar_lea.vmem %s0, 1
  %v3529 = vld [vmem:[%s3528] sm:$0x1]
  %s3530 = scalar_lea.vmem %s0, 64
  %v3531 = vld [vmem:[%s3530] sm:$0x2]
  %vm3532 = vcmask 1041409
  %v3533 = vsel %vm3532, %v3531, %v3529
  %s3534 = scalar_lea.vmem %s0, 127
  %v3535 = vld [vmem:[%s3534] sm:$0x4]
  %vm3536 = vcmask 1042434
  %v3537 = vsel %vm3536, %v3535, %v3533
  %s3538 = scalar_lea.vmem %s0, 190
  %v3539 = vld [vmem:[%s3538] sm:$0x8]
  %vm3540 = vcmask 1043459
  %v3541 = vsel %vm3540, %v3539, %v3537
  %s3542 = scalar_lea.vmem %s0, 253
  %v3543 = vld [vmem:[%s3542] sm:$0x10]
  %vm3544 = vcmask 1044484
  %v3545 = vsel %vm3544, %v3543, %v3541
  %s3546 = scalar_lea.vmem %s0, 316
  %v3547 = vld [vmem:[%s3546] sm:$0x20]
  %vm3548 = vcmask 1045509
  %v3549 = vsel %vm3548, %v3547, %v3545
  %s3550 = scalar_lea.vmem %s0, 379
  %v3551 = vld [vmem:[%s3550] sm:$0x40]
  %vm3552 = vcmask 1046534
  %v3553 = vsel %vm3552, %v3551, %v3549
  %s3554 = scalar_lea.vmem %s0, 442
  %v3555 = vld [vmem:[%s3554] sm:$0x80]
  %vm3556 = vcmask 1047559
  %v3557 = vsel %vm3556, %v3555, %v3553
  %3558 = vrot.lane.b32.xlu0 %v3557, 16
  %v3559 = vpop.permute.xlu0 %3558
  %vm3560 = vcmask 261248
  %3561 = vst.msk [vmem:[%s1] sm:$0xff] %vm3560, %v3559
  %s3562 = scalar_lea.vmem %s0, 33
  %v3563 = vld [vmem:[%s3562] sm:$0x1]
  %s3564 = scalar_lea.vmem %s0, 96
  %v3565 = vld [vmem:[%s3564] sm:$0x2]
  %vm3566 = vcmask 1041409
  %v3567 = vsel %vm3566, %v3565, %v3563
  %s3568 = scalar_lea.vmem %s0, 159
  %v3569 = vld [vmem:[%s3568] sm:$0x4]
  %vm3570 = vcmask 1042434
  %v3571 = vsel %vm3570, %v3569, %v3567
  %s3572 = scalar_lea.vmem %s0, 222
  %v3573 = vld [vmem:[%s3572] sm:$0x8]
  %vm3574 = vcmask 1043459
  %v3575 = vsel %vm3574, %v3573, %v3571
  %s3576 = scalar_lea.vmem %s0, 285
  %v3577 = vld [vmem:[%s3576] sm:$0x10]
  %vm3578 = vcmask 1044484
  %v3579 = vsel %vm3578, %v3577, %v3575
  %s3580 = scalar_lea.vmem %s0, 348
  %v3581 = vld [vmem:[%s3580] sm:$0x20]
  %vm3582 = vcmask 1045509
  %v3583 = vsel %vm3582, %v3581, %v3579
  %s3584 = scalar_lea.vmem %s0, 411
  %v3585 = vld [vmem:[%s3584] sm:$0x40]
  %vm3586 = vcmask 1046534
  %v3587 = vsel %vm3586, %v3585, %v3583
  %s3588 = scalar_lea.vmem %s0, 474
  %v3589 = vld [vmem:[%s3588] sm:$0x80]
  %vm3590 = vcmask 1047559
  %v3591 = vsel %vm3590, %v3589, %v3587
  %3592 = vrot.lane.b32.xlu0 %v3591, 16
  %v3593 = vpop.permute.xlu0 %3592
  %vm3594 = vcmask 261248
  %s3595 = scalar_lea.vmem %s1, 32
  %3596 = vst.msk [vmem:[%s3595] sm:$0xff] %vm3594, %v3593
  %s3597 = scalar_lea.vmem %s0, 513
  %v3598 = vld [vmem:[%s3597] sm:$0x1]
  %s3599 = scalar_lea.vmem %s0, 576
  %v3600 = vld [vmem:[%s3599] sm:$0x2]
  %vm3601 = vcmask 1041409
  %v3602 = vsel %vm3601, %v3600, %v3598
  %s3603 = scalar_lea.vmem %s0, 639
  %v3604 = vld [vmem:[%s3603] sm:$0x4]
  %vm3605 = vcmask 1042434
  %v3606 = vsel %vm3605, %v3604, %v3602
  %s3607 = scalar_lea.vmem %s0, 702
  %v3608 = vld [vmem:[%s3607] sm:$0x8]
  %vm3609 = vcmask 1043459
  %v3610 = vsel %vm3609, %v3608, %v3606
  %s3611 = scalar_lea.vmem %s0, 765
  %v3612 = vld [vmem:[%s3611] sm:$0x10]
  %vm3613 = vcmask 1044484
  %v3614 = vsel %vm3613, %v3612, %v3610
  %s3615 = scalar_lea.vmem %s0, 828
  %v3616 = vld [vmem:[%s3615] sm:$0x20]
  %vm3617 = vcmask 1045509
  %v3618 = vsel %vm3617, %v3616, %v3614
  %s3619 = scalar_lea.vmem %s0, 891
  %v3620 = vld [vmem:[%s3619] sm:$0x40]
  %vm3621 = vcmask 1046534
  %v3622 = vsel %vm3621, %v3620, %v3618
  %s3623 = scalar_lea.vmem %s0, 954
  %v3624 = vld [vmem:[%s3623] sm:$0x80]
  %vm3625 = vcmask 1047559
  %v3626 = vsel %vm3625, %v3624, %v3622
  %3627 = vrot.lane.b32.xlu0 %v3626, 16
  %v3628 = vpop.permute.xlu0 %3627
  %vm3629 = vcmask 261248
  %s3630 = scalar_lea.vmem %s1, 64
  %3631 = vst.msk [vmem:[%s3630] sm:$0xff] %vm3629, %v3628
  %s3632 = scalar_lea.vmem %s0, 545
  %v3633 = vld [vmem:[%s3632] sm:$0x1]
  %s3634 = scalar_lea.vmem %s0, 608
  %v3635 = vld [vmem:[%s3634] sm:$0x2]
  %vm3636 = vcmask 1041409
  %v3637 = vsel %vm3636, %v3635, %v3633
  %s3638 = scalar_lea.vmem %s0, 671
  %v3639 = vld [vmem:[%s3638] sm:$0x4]
  %vm3640 = vcmask 1042434
  %v3641 = vsel %vm3640, %v3639, %v3637
  %s3642 = scalar_lea.vmem %s0, 734
  %v3643 = vld [vmem:[%s3642] sm:$0x8]
  %vm3644 = vcmask 1043459
  %v3645 = vsel %vm3644, %v3643, %v3641
  %s3646 = scalar_lea.vmem %s0, 797
  %v3647 = vld [vmem:[%s3646] sm:$0x10]
  %vm3648 = vcmask 1044484
  %v3649 = vsel %vm3648, %v3647, %v3645
  %s3650 = scalar_lea.vmem %s0, 860
  %v3651 = vld [vmem:[%s3650] sm:$0x20]
  %vm3652 = vcmask 1045509
  %v3653 = vsel %vm3652, %v3651, %v3649
  %s3654 = scalar_lea.vmem %s0, 923
  %v3655 = vld [vmem:[%s3654] sm:$0x40]
  %vm3656 = vcmask 1046534
  %v3657 = vsel %vm3656, %v3655, %v3653
  %s3658 = scalar_lea.vmem %s0, 986
  %v3659 = vld [vmem:[%s3658] sm:$0x80]
  %vm3660 = vcmask 1047559
  %v3661 = vsel %vm3660, %v3659, %v3657
  %3662 = vrot.lane.b32.xlu0 %v3661, 16
  %v3663 = vpop.permute.xlu0 %3662
  %vm3664 = vcmask 261248
  %s3665 = scalar_lea.vmem %s1, 96
  %3666 = vst.msk [vmem:[%s3665] sm:$0xff] %vm3664, %v3663
  %s3667 = scalar_lea.vmem %s0, 9
  %v3668 = vld [vmem:[%s3667] sm:$0x1]
  %s3669 = scalar_lea.vmem %s0, 72
  %v3670 = vld [vmem:[%s3669] sm:$0x2]
  %vm3671 = vcmask 1041409
  %v3672 = vsel %vm3671, %v3670, %v3668
  %s3673 = scalar_lea.vmem %s0, 135
  %v3674 = vld [vmem:[%s3673] sm:$0x4]
  %vm3675 = vcmask 1042434
  %v3676 = vsel %vm3675, %v3674, %v3672
  %s3677 = scalar_lea.vmem %s0, 198
  %v3678 = vld [vmem:[%s3677] sm:$0x8]
  %vm3679 = vcmask 1043459
  %v3680 = vsel %vm3679, %v3678, %v3676
  %s3681 = scalar_lea.vmem %s0, 261
  %v3682 = vld [vmem:[%s3681] sm:$0x10]
  %vm3683 = vcmask 1044484
  %v3684 = vsel %vm3683, %v3682, %v3680
  %s3685 = scalar_lea.vmem %s0, 324
  %v3686 = vld [vmem:[%s3685] sm:$0x20]
  %vm3687 = vcmask 1045509
  %v3688 = vsel %vm3687, %v3686, %v3684
  %s3689 = scalar_lea.vmem %s0, 387
  %v3690 = vld [vmem:[%s3689] sm:$0x40]
  %vm3691 = vcmask 1046534
  %v3692 = vsel %vm3691, %v3690, %v3688
  %s3693 = scalar_lea.vmem %s0, 450
  %v3694 = vld [vmem:[%s3693] sm:$0x80]
  %vm3695 = vcmask 1047559
  %v3696 = vsel %vm3695, %v3694, %v3692
  %3697 = vrot.lane.b32.xlu0 %v3696, 16
  %v3698 = vpop.permute.xlu0 %3697
  %vm3699 = vcmask 261248
  %s3700 = scalar_lea.vmem %s1, 8
  %3701 = vst.msk [vmem:[%s3700] sm:$0xff] %vm3699, %v3698
  %s3702 = scalar_lea.vmem %s0, 41
  %v3703 = vld [vmem:[%s3702] sm:$0x1]
  %s3704 = scalar_lea.vmem %s0, 104
  %v3705 = vld [vmem:[%s3704] sm:$0x2]
  %vm3706 = vcmask 1041409
  %v3707 = vsel %vm3706, %v3705, %v3703
  %s3708 = scalar_lea.vmem %s0, 167
  %v3709 = vld [vmem:[%s3708] sm:$0x4]
  %vm3710 = vcmask 1042434
  %v3711 = vsel %vm3710, %v3709, %v3707
  %s3712 = scalar_lea.vmem %s0, 230
  %v3713 = vld [vmem:[%s3712] sm:$0x8]
  %vm3714 = vcmask 1043459
  %v3715 = vsel %vm3714, %v3713, %v3711
  %s3716 = scalar_lea.vmem %s0, 293
  %v3717 = vld [vmem:[%s3716] sm:$0x10]
  %vm3718 = vcmask 1044484
  %v3719 = vsel %vm3718, %v3717, %v3715
  %s3720 = scalar_lea.vmem %s0, 356
  %v3721 = vld [vmem:[%s3720] sm:$0x20]
  %vm3722 = vcmask 1045509
  %v3723 = vsel %vm3722, %v3721, %v3719
  %s3724 = scalar_lea.vmem %s0, 419
  %v3725 = vld [vmem:[%s3724] sm:$0x40]
  %vm3726 = vcmask 1046534
  %v3727 = vsel %vm3726, %v3725, %v3723
  %s3728 = scalar_lea.vmem %s0, 482
  %v3729 = vld [vmem:[%s3728] sm:$0x80]
  %vm3730 = vcmask 1047559
  %v3731 = vsel %vm3730, %v3729, %v3727
  %3732 = vrot.lane.b32.xlu0 %v3731, 16
  %v3733 = vpop.permute.xlu0 %3732
  %vm3734 = vcmask 261248
  %s3735 = scalar_lea.vmem %s1, 40
  %3736 = vst.msk [vmem:[%s3735] sm:$0xff] %vm3734, %v3733
  %s3737 = scalar_lea.vmem %s0, 521
  %v3738 = vld [vmem:[%s3737] sm:$0x1]
  %s3739 = scalar_lea.vmem %s0, 584
  %v3740 = vld [vmem:[%s3739] sm:$0x2]
  %vm3741 = vcmask 1041409
  %v3742 = vsel %vm3741, %v3740, %v3738
  %s3743 = scalar_lea.vmem %s0, 647
  %v3744 = vld [vmem:[%s3743] sm:$0x4]
  %vm3745 = vcmask 1042434
  %v3746 = vsel %vm3745, %v3744, %v3742
  %s3747 = scalar_lea.vmem %s0, 710
  %v3748 = vld [vmem:[%s3747] sm:$0x8]
  %vm3749 = vcmask 1043459
  %v3750 = vsel %vm3749, %v3748, %v3746
  %s3751 = scalar_lea.vmem %s0, 773
  %v3752 = vld [vmem:[%s3751] sm:$0x10]
  %vm3753 = vcmask 1044484
  %v3754 = vsel %vm3753, %v3752, %v3750
  %s3755 = scalar_lea.vmem %s0, 836
  %v3756 = vld [vmem:[%s3755] sm:$0x20]
  %vm3757 = vcmask 1045509
  %v3758 = vsel %vm3757, %v3756, %v3754
  %s3759 = scalar_lea.vmem %s0, 899
  %v3760 = vld [vmem:[%s3759] sm:$0x40]
  %vm3761 = vcmask 1046534
  %v3762 = vsel %vm3761, %v3760, %v3758
  %s3763 = scalar_lea.vmem %s0, 962
  %v3764 = vld [vmem:[%s3763] sm:$0x80]
  %vm3765 = vcmask 1047559
  %v3766 = vsel %vm3765, %v3764, %v3762
  %3767 = vrot.lane.b32.xlu0 %v3766, 16
  %v3768 = vpop.permute.xlu0 %3767
  %vm3769 = vcmask 261248
  %s3770 = scalar_lea.vmem %s1, 72
  %3771 = vst.msk [vmem:[%s3770] sm:$0xff] %vm3769, %v3768
  %s3772 = scalar_lea.vmem %s0, 553
  %v3773 = vld [vmem:[%s3772] sm:$0x1]
  %s3774 = scalar_lea.vmem %s0, 616
  %v3775 = vld [vmem:[%s3774] sm:$0x2]
  %vm3776 = vcmask 1041409
  %v3777 = vsel %vm3776, %v3775, %v3773
  %s3778 = scalar_lea.vmem %s0, 679
  %v3779 = vld [vmem:[%s3778] sm:$0x4]
  %vm3780 = vcmask 1042434
  %v3781 = vsel %vm3780, %v3779, %v3777
  %s3782 = scalar_lea.vmem %s0, 742
  %v3783 = vld [vmem:[%s3782] sm:$0x8]
  %vm3784 = vcmask 1043459
  %v3785 = vsel %vm3784, %v3783, %v3781
  %s3786 = scalar_lea.vmem %s0, 805
  %v3787 = vld [vmem:[%s3786] sm:$0x10]
  %vm3788 = vcmask 1044484
  %v3789 = vsel %vm3788, %v3787, %v3785
  %s3790 = scalar_lea.vmem %s0, 868
  %v3791 = vld [vmem:[%s3790] sm:$0x20]
  %vm3792 = vcmask 1045509
  %v3793 = vsel %vm3792, %v3791, %v3789
  %s3794 = scalar_lea.vmem %s0, 931
  %v3795 = vld [vmem:[%s3794] sm:$0x40]
  %vm3796 = vcmask 1046534
  %v3797 = vsel %vm3796, %v3795, %v3793
  %s3798 = scalar_lea.vmem %s0, 994
  %v3799 = vld [vmem:[%s3798] sm:$0x80]
  %vm3800 = vcmask 1047559
  %v3801 = vsel %vm3800, %v3799, %v3797
  %3802 = vrot.lane.b32.xlu0 %v3801, 16
  %v3803 = vpop.permute.xlu0 %3802
  %vm3804 = vcmask 261248
  %s3805 = scalar_lea.vmem %s1, 104
  %3806 = vst.msk [vmem:[%s3805] sm:$0xff] %vm3804, %v3803
  %s3807 = scalar_lea.vmem %s0, 17
  %v3808 = vld [vmem:[%s3807] sm:$0x1]
  %s3809 = scalar_lea.vmem %s0, 80
  %v3810 = vld [vmem:[%s3809] sm:$0x2]
  %vm3811 = vcmask 1041409
  %v3812 = vsel %vm3811, %v3810, %v3808
  %s3813 = scalar_lea.vmem %s0, 143
  %v3814 = vld [vmem:[%s3813] sm:$0x4]
  %vm3815 = vcmask 1042434
  %v3816 = vsel %vm3815, %v3814, %v3812
  %s3817 = scalar_lea.vmem %s0, 206
  %v3818 = vld [vmem:[%s3817] sm:$0x8]
  %vm3819 = vcmask 1043459
  %v3820 = vsel %vm3819, %v3818, %v3816
  %s3821 = scalar_lea.vmem %s0, 269
  %v3822 = vld [vmem:[%s3821] sm:$0x10]
  %vm3823 = vcmask 1044484
  %v3824 = vsel %vm3823, %v3822, %v3820
  %s3825 = scalar_lea.vmem %s0, 332
  %v3826 = vld [vmem:[%s3825] sm:$0x20]
  %vm3827 = vcmask 1045509
  %v3828 = vsel %vm3827, %v3826, %v3824
  %s3829 = scalar_lea.vmem %s0, 395
  %v3830 = vld [vmem:[%s3829] sm:$0x40]
  %vm3831 = vcmask 1046534
  %v3832 = vsel %vm3831, %v3830, %v3828
  %s3833 = scalar_lea.vmem %s0, 458
  %v3834 = vld [vmem:[%s3833] sm:$0x80]
  %vm3835 = vcmask 1047559
  %v3836 = vsel %vm3835, %v3834, %v3832
  %3837 = vrot.lane.b32.xlu0 %v3836, 16
  %v3838 = vpop.permute.xlu0 %3837
  %vm3839 = vcmask 261248
  %s3840 = scalar_lea.vmem %s1, 16
  %3841 = vst.msk [vmem:[%s3840] sm:$0xff] %vm3839, %v3838
  %s3842 = scalar_lea.vmem %s0, 49
  %v3843 = vld [vmem:[%s3842] sm:$0x1]
  %s3844 = scalar_lea.vmem %s0, 112
  %v3845 = vld [vmem:[%s3844] sm:$0x2]
  %vm3846 = vcmask 1041409
  %v3847 = vsel %vm3846, %v3845, %v3843
  %s3848 = scalar_lea.vmem %s0, 175
  %v3849 = vld [vmem:[%s3848] sm:$0x4]
  %vm3850 = vcmask 1042434
  %v3851 = vsel %vm3850, %v3849, %v3847
  %s3852 = scalar_lea.vmem %s0, 238
  %v3853 = vld [vmem:[%s3852] sm:$0x8]
  %vm3854 = vcmask 1043459
  %v3855 = vsel %vm3854, %v3853, %v3851
  %s3856 = scalar_lea.vmem %s0, 301
  %v3857 = vld [vmem:[%s3856] sm:$0x10]
  %vm3858 = vcmask 1044484
  %v3859 = vsel %vm3858, %v3857, %v3855
  %s3860 = scalar_lea.vmem %s0, 364
  %v3861 = vld [vmem:[%s3860] sm:$0x20]
  %vm3862 = vcmask 1045509
  %v3863 = vsel %vm3862, %v3861, %v3859
  %s3864 = scalar_lea.vmem %s0, 427
  %v3865 = vld [vmem:[%s3864] sm:$0x40]
  %vm3866 = vcmask 1046534
  %v3867 = vsel %vm3866, %v3865, %v3863
  %s3868 = scalar_lea.vmem %s0, 490
  %v3869 = vld [vmem:[%s3868] sm:$0x80]
  %vm3870 = vcmask 1047559
  %v3871 = vsel %vm3870, %v3869, %v3867
  %3872 = vrot.lane.b32.xlu0 %v3871, 16
  %v3873 = vpop.permute.xlu0 %3872
  %vm3874 = vcmask 261248
  %s3875 = scalar_lea.vmem %s1, 48
  %3876 = vst.msk [vmem:[%s3875] sm:$0xff] %vm3874, %v3873
  %s3877 = scalar_lea.vmem %s0, 529
  %v3878 = vld [vmem:[%s3877] sm:$0x1]
  %s3879 = scalar_lea.vmem %s0, 592
  %v3880 = vld [vmem:[%s3879] sm:$0x2]
  %vm3881 = vcmask 1041409
  %v3882 = vsel %vm3881, %v3880, %v3878
  %s3883 = scalar_lea.vmem %s0, 655
  %v3884 = vld [vmem:[%s3883] sm:$0x4]
  %vm3885 = vcmask 1042434
  %v3886 = vsel %vm3885, %v3884, %v3882
  %s3887 = scalar_lea.vmem %s0, 718
  %v3888 = vld [vmem:[%s3887] sm:$0x8]
  %vm3889 = vcmask 1043459
  %v3890 = vsel %vm3889, %v3888, %v3886
  %s3891 = scalar_lea.vmem %s0, 781
  %v3892 = vld [vmem:[%s3891] sm:$0x10]
  %vm3893 = vcmask 1044484
  %v3894 = vsel %vm3893, %v3892, %v3890
  %s3895 = scalar_lea.vmem %s0, 844
  %v3896 = vld [vmem:[%s3895] sm:$0x20]
  %vm3897 = vcmask 1045509
  %v3898 = vsel %vm3897, %v3896, %v3894
  %s3899 = scalar_lea.vmem %s0, 907
  %v3900 = vld [vmem:[%s3899] sm:$0x40]
  %vm3901 = vcmask 1046534
  %v3902 = vsel %vm3901, %v3900, %v3898
  %s3903 = scalar_lea.vmem %s0, 970
  %v3904 = vld [vmem:[%s3903] sm:$0x80]
  %vm3905 = vcmask 1047559
  %v3906 = vsel %vm3905, %v3904, %v3902
  %3907 = vrot.lane.b32.xlu0 %v3906, 16
  %v3908 = vpop.permute.xlu0 %3907
  %vm3909 = vcmask 261248
  %s3910 = scalar_lea.vmem %s1, 80
  %3911 = vst.msk [vmem:[%s3910] sm:$0xff] %vm3909, %v3908
  %s3912 = scalar_lea.vmem %s0, 561
  %v3913 = vld [vmem:[%s3912] sm:$0x1]
  %s3914 = scalar_lea.vmem %s0, 624
  %v3915 = vld [vmem:[%s3914] sm:$0x2]
  %vm3916 = vcmask 1041409
  %v3917 = vsel %vm3916, %v3915, %v3913
  %s3918 = scalar_lea.vmem %s0, 687
  %v3919 = vld [vmem:[%s3918] sm:$0x4]
  %vm3920 = vcmask 1042434
  %v3921 = vsel %vm3920, %v3919, %v3917
  %s3922 = scalar_lea.vmem %s0, 750
  %v3923 = vld [vmem:[%s3922] sm:$0x8]
  %vm3924 = vcmask 1043459
  %v3925 = vsel %vm3924, %v3923, %v3921
  %s3926 = scalar_lea.vmem %s0, 813
  %v3927 = vld [vmem:[%s3926] sm:$0x10]
  %vm3928 = vcmask 1044484
  %v3929 = vsel %vm3928, %v3927, %v3925
  %s3930 = scalar_lea.vmem %s0, 876
  %v3931 = vld [vmem:[%s3930] sm:$0x20]
  %vm3932 = vcmask 1045509
  %v3933 = vsel %vm3932, %v3931, %v3929
  %s3934 = scalar_lea.vmem %s0, 939
  %v3935 = vld [vmem:[%s3934] sm:$0x40]
  %vm3936 = vcmask 1046534
  %v3937 = vsel %vm3936, %v3935, %v3933
  %s3938 = scalar_lea.vmem %s0, 1002
  %v3939 = vld [vmem:[%s3938] sm:$0x80]
  %vm3940 = vcmask 1047559
  %v3941 = vsel %vm3940, %v3939, %v3937
  %3942 = vrot.lane.b32.xlu0 %v3941, 16
  %v3943 = vpop.permute.xlu0 %3942
  %vm3944 = vcmask 261248
  %s3945 = scalar_lea.vmem %s1, 112
  %3946 = vst.msk [vmem:[%s3945] sm:$0xff] %vm3944, %v3943
  %s3947 = scalar_lea.vmem %s0, 25
  %v3948 = vld [vmem:[%s3947] sm:$0x1]
  %s3949 = scalar_lea.vmem %s0, 88
  %v3950 = vld [vmem:[%s3949] sm:$0x2]
  %vm3951 = vcmask 1041409
  %v3952 = vsel %vm3951, %v3950, %v3948
  %s3953 = scalar_lea.vmem %s0, 151
  %v3954 = vld [vmem:[%s3953] sm:$0x4]
  %vm3955 = vcmask 1042434
  %v3956 = vsel %vm3955, %v3954, %v3952
  %s3957 = scalar_lea.vmem %s0, 214
  %v3958 = vld [vmem:[%s3957] sm:$0x8]
  %vm3959 = vcmask 1043459
  %v3960 = vsel %vm3959, %v3958, %v3956
  %s3961 = scalar_lea.vmem %s0, 277
  %v3962 = vld [vmem:[%s3961] sm:$0x10]
  %vm3963 = vcmask 1044484
  %v3964 = vsel %vm3963, %v3962, %v3960
  %s3965 = scalar_lea.vmem %s0, 340
  %v3966 = vld [vmem:[%s3965] sm:$0x20]
  %vm3967 = vcmask 1045509
  %v3968 = vsel %vm3967, %v3966, %v3964
  %s3969 = scalar_lea.vmem %s0, 403
  %v3970 = vld [vmem:[%s3969] sm:$0x40]
  %vm3971 = vcmask 1046534
  %v3972 = vsel %vm3971, %v3970, %v3968
  %s3973 = scalar_lea.vmem %s0, 466
  %v3974 = vld [vmem:[%s3973] sm:$0x80]
  %vm3975 = vcmask 1047559
  %v3976 = vsel %vm3975, %v3974, %v3972
  %3977 = vrot.lane.b32.xlu0 %v3976, 16
  %v3978 = vpop.permute.xlu0 %3977
  %vm3979 = vcmask 261248
  %s3980 = scalar_lea.vmem %s1, 24
  %3981 = vst.msk [vmem:[%s3980] sm:$0xff] %vm3979, %v3978
  %s3982 = scalar_lea.vmem %s0, 57
  %v3983 = vld [vmem:[%s3982] sm:$0x1]
  %s3984 = scalar_lea.vmem %s0, 120
  %v3985 = vld [vmem:[%s3984] sm:$0x2]
  %vm3986 = vcmask 1041409
  %v3987 = vsel %vm3986, %v3985, %v3983
  %s3988 = scalar_lea.vmem %s0, 183
  %v3989 = vld [vmem:[%s3988] sm:$0x4]
  %vm3990 = vcmask 1042434
  %v3991 = vsel %vm3990, %v3989, %v3987
  %s3992 = scalar_lea.vmem %s0, 246
  %v3993 = vld [vmem:[%s3992] sm:$0x8]
  %vm3994 = vcmask 1043459
  %v3995 = vsel %vm3994, %v3993, %v3991
  %s3996 = scalar_lea.vmem %s0, 309
  %v3997 = vld [vmem:[%s3996] sm:$0x10]
  %vm3998 = vcmask 1044484
  %v3999 = vsel %vm3998, %v3997, %v3995
  %s4000 = scalar_lea.vmem %s0, 372
  %v4001 = vld [vmem:[%s4000] sm:$0x20]
  %vm4002 = vcmask 1045509
  %v4003 = vsel %vm4002, %v4001, %v3999
  %s4004 = scalar_lea.vmem %s0, 435
  %v4005 = vld [vmem:[%s4004] sm:$0x40]
  %vm4006 = vcmask 1046534
  %v4007 = vsel %vm4006, %v4005, %v4003
  %s4008 = scalar_lea.vmem %s0, 498
  %v4009 = vld [vmem:[%s4008] sm:$0x80]
  %vm4010 = vcmask 1047559
  %v4011 = vsel %vm4010, %v4009, %v4007
  %4012 = vrot.lane.b32.xlu0 %v4011, 16
  %v4013 = vpop.permute.xlu0 %4012
  %vm4014 = vcmask 261248
  %s4015 = scalar_lea.vmem %s1, 56
  %4016 = vst.msk [vmem:[%s4015] sm:$0xff] %vm4014, %v4013
  %s4017 = scalar_lea.vmem %s0, 537
  %v4018 = vld [vmem:[%s4017] sm:$0x1]
  %s4019 = scalar_lea.vmem %s0, 600
  %v4020 = vld [vmem:[%s4019] sm:$0x2]
  %vm4021 = vcmask 1041409
  %v4022 = vsel %vm4021, %v4020, %v4018
  %s4023 = scalar_lea.vmem %s0, 663
  %v4024 = vld [vmem:[%s4023] sm:$0x4]
  %vm4025 = vcmask 1042434
  %v4026 = vsel %vm4025, %v4024, %v4022
  %s4027 = scalar_lea.vmem %s0, 726
  %v4028 = vld [vmem:[%s4027] sm:$0x8]
  %vm4029 = vcmask 1043459
  %v4030 = vsel %vm4029, %v4028, %v4026
  %s4031 = scalar_lea.vmem %s0, 789
  %v4032 = vld [vmem:[%s4031] sm:$0x10]
  %vm4033 = vcmask 1044484
  %v4034 = vsel %vm4033, %v4032, %v4030
  %s4035 = scalar_lea.vmem %s0, 852
  %v4036 = vld [vmem:[%s4035] sm:$0x20]
  %vm4037 = vcmask 1045509
  %v4038 = vsel %vm4037, %v4036, %v4034
  %s4039 = scalar_lea.vmem %s0, 915
  %v4040 = vld [vmem:[%s4039] sm:$0x40]
  %vm4041 = vcmask 1046534
  %v4042 = vsel %vm4041, %v4040, %v4038
  %s4043 = scalar_lea.vmem %s0, 978
  %v4044 = vld [vmem:[%s4043] sm:$0x80]
  %vm4045 = vcmask 1047559
  %v4046 = vsel %vm4045, %v4044, %v4042
  %4047 = vrot.lane.b32.xlu0 %v4046, 16
  %v4048 = vpop.permute.xlu0 %4047
  %vm4049 = vcmask 261248
  %s4050 = scalar_lea.vmem %s1, 88
  %4051 = vst.msk [vmem:[%s4050] sm:$0xff] %vm4049, %v4048
  %s4052 = scalar_lea.vmem %s0, 569
  %v4053 = vld [vmem:[%s4052] sm:$0x1]
  %s4054 = scalar_lea.vmem %s0, 632
  %v4055 = vld [vmem:[%s4054] sm:$0x2]
  %vm4056 = vcmask 1041409
  %v4057 = vsel %vm4056, %v4055, %v4053
  %s4058 = scalar_lea.vmem %s0, 695
  %v4059 = vld [vmem:[%s4058] sm:$0x4]
  %vm4060 = vcmask 1042434
  %v4061 = vsel %vm4060, %v4059, %v4057
  %s4062 = scalar_lea.vmem %s0, 758
  %v4063 = vld [vmem:[%s4062] sm:$0x8]
  %vm4064 = vcmask 1043459
  %v4065 = vsel %vm4064, %v4063, %v4061
  %s4066 = scalar_lea.vmem %s0, 821
  %v4067 = vld [vmem:[%s4066] sm:$0x10]
  %vm4068 = vcmask 1044484
  %v4069 = vsel %vm4068, %v4067, %v4065
  %s4070 = scalar_lea.vmem %s0, 884
  %v4071 = vld [vmem:[%s4070] sm:$0x20]
  %vm4072 = vcmask 1045509
  %v4073 = vsel %vm4072, %v4071, %v4069
  %s4074 = scalar_lea.vmem %s0, 947
  %v4075 = vld [vmem:[%s4074] sm:$0x40]
  %vm4076 = vcmask 1046534
  %v4077 = vsel %vm4076, %v4075, %v4073
  %s4078 = scalar_lea.vmem %s0, 1010
  %v4079 = vld [vmem:[%s4078] sm:$0x80]
  %vm4080 = vcmask 1047559
  %v4081 = vsel %vm4080, %v4079, %v4077
  %4082 = vrot.lane.b32.xlu0 %v4081, 16
  %v4083 = vpop.permute.xlu0 %4082
  %vm4084 = vcmask 261248
  %s4085 = scalar_lea.vmem %s1, 120
  %4086 = vst.msk [vmem:[%s4085] sm:$0xff] %vm4084, %v4083

// kernel: tile.24
$region0: #{tile.24}
  %s0 = inlined_call_operand.vmem [shape: f32[8,64,8], index: 0, kind: input, shape index: {}]
  %s1 = inlined_call_operand.vmem [shape: f32[8,512], index: 1, kind: output, shape index: {}]
  %s2 = smov 3
  %v3 = vld [vmem:[%s0] ss:$16 sm:%s2]
  %s4 = smov 12
  %v5 = vld [vmem:[%s0] ss:$16 sm:%s4]
  %vm6 = vcmask 1043458
  %v7 = vsel %vm6, %v5, %v3
  %s8 = smov 48
  %v9 = vld [vmem:[%s0] ss:$16 sm:%s8]
  %vm10 = vcmask 1045508
  %v11 = vsel %vm10, %v9, %v7
  %s12 = smov 192
  %v13 = vld [vmem:[%s0] ss:$16 sm:%s12]
  %vm14 = vcmask 1047558
  %v15 = vsel %vm14, %v13, %v11
  %vm16 = vcmask 64512
  %17 = vst.msk [vmem:[%s1] ss:$8 sm:$0xf] %vm16, %v15
  %s18 = scalar_lea.vmem %s1, 4294967265
  %19 = vst.msk [vmem:[%s18] ss:$8 sm:$0xf0] %vm16, %v15
  %s20 = scalar_lea.vmem %s0, 128
  %s21 = smov 3
  %v22 = vld [vmem:[%s20] ss:$16 sm:%s21]
  %s23 = scalar_lea.vmem %s0, 128
  %s24 = smov 12
  %v25 = vld [vmem:[%s23] ss:$16 sm:%s24]
  %vm26 = vcmask 1043458
  %v27 = vsel %vm26, %v25, %v22
  %s28 = scalar_lea.vmem %s0, 128
  %s29 = smov 48
  %v30 = vld [vmem:[%s28] ss:$16 sm:%s29]
  %vm31 = vcmask 1045508
  %v32 = vsel %vm31, %v30, %v27
  %s33 = scalar_lea.vmem %s0, 128
  %s34 = smov 192
  %v35 = vld [vmem:[%s33] ss:$16 sm:%s34]
  %vm36 = vcmask 1047558
  %v37 = vsel %vm36, %v35, %v32
  %vm38 = vcmask 64512
  %s39 = scalar_lea.vmem %s1, 2
  %40 = vst.msk [vmem:[%s39] ss:$8 sm:$0xf] %vm38, %v37
  %s41 = scalar_lea.vmem %s1, 4294967267
  %42 = vst.msk [vmem:[%s41] ss:$8 sm:$0xf0] %vm38, %v37
  %s43 = scalar_lea.vmem %s0, 256
  %s44 = smov 3
  %v45 = vld [vmem:[%s43] ss:$16 sm:%s44]
  %s46 = scalar_lea.vmem %s0, 256
  %s47 = smov 12
  %v48 = vld [vmem:[%s46] ss:$16 sm:%s47]
  %vm49 = vcmask 1043458
  %v50 = vsel %vm49, %v48, %v45
  %s51 = scalar_lea.vmem %s0, 256
  %s52 = smov 48
  %v53 = vld [vmem:[%s51] ss:$16 sm:%s52]
  %vm54 = vcmask 1045508
  %v55 = vsel %vm54, %v53, %v50
  %s56 = scalar_lea.vmem %s0, 256
  %s57 = smov 192
  %v58 = vld [vmem:[%s56] ss:$16 sm:%s57]
  %vm59 = vcmask 1047558
  %v60 = vsel %vm59, %v58, %v55
  %vm61 = vcmask 64512
  %s62 = scalar_lea.vmem %s1, 4
  %63 = vst.msk [vmem:[%s62] ss:$8 sm:$0xf] %vm61, %v60
  %s64 = scalar_lea.vmem %s1, 4294967269
  %65 = vst.msk [vmem:[%s64] ss:$8 sm:$0xf0] %vm61, %v60
  %s66 = scalar_lea.vmem %s0, 384
  %s67 = smov 3
  %v68 = vld [vmem:[%s66] ss:$16 sm:%s67]
  %s69 = scalar_lea.vmem %s0, 384
  %s70 = smov 12
  %v71 = vld [vmem:[%s69] ss:$16 sm:%s70]
  %vm72 = vcmask 1043458
  %v73 = vsel %vm72, %v71, %v68
  %s74 = scalar_lea.vmem %s0, 384
  %s75 = smov 48
  %v76 = vld [vmem:[%s74] ss:$16 sm:%s75]
  %vm77 = vcmask 1045508
  %v78 = vsel %vm77, %v76, %v73
  %s79 = scalar_lea.vmem %s0, 384
  %s80 = smov 192
  %v81 = vld [vmem:[%s79] ss:$16 sm:%s80]
  %vm82 = vcmask 1047558
  %v83 = vsel %vm82, %v81, %v78
  %vm84 = vcmask 64512
  %s85 = scalar_lea.vmem %s1, 6
  %86 = vst.msk [vmem:[%s85] ss:$8 sm:$0xf] %vm84, %v83
  %s87 = scalar_lea.vmem %s1, 4294967271
  %88 = vst.msk [vmem:[%s87] ss:$8 sm:$0xf0] %vm84, %v83
  %s89 = scalar_lea.vmem %s0, 15
  %v90 = vld [vmem:[%s89] sm:$0x1]
  %s91 = scalar_lea.vmem %s0, 78
  %v92 = vld [vmem:[%s91] sm:$0x2]
  %vm93 = vcmask 1041409
  %v94 = vsel %vm93, %v92, %v90
  %s95 = scalar_lea.vmem %s0, 141
  %v96 = vld [vmem:[%s95] sm:$0x4]
  %vm97 = vcmask 1042434
  %v98 = vsel %vm97, %v96, %v94
  %s99 = scalar_lea.vmem %s0, 204
  %v100 = vld [vmem:[%s99] sm:$0x8]
  %vm101 = vcmask 1043459
  %v102 = vsel %vm101, %v100, %v98
  %s103 = scalar_lea.vmem %s0, 267
  %v104 = vld [vmem:[%s103] sm:$0x10]
  %vm105 = vcmask 1044484
  %v106 = vsel %vm105, %v104, %v102
  %s107 = scalar_lea.vmem %s0, 330
  %v108 = vld [vmem:[%s107] sm:$0x20]
  %vm109 = vcmask 1045509
  %v110 = vsel %vm109, %v108, %v106
  %s111 = scalar_lea.vmem %s0, 393
  %v112 = vld [vmem:[%s111] sm:$0x40]
  %vm113 = vcmask 1046534
  %v114 = vsel %vm113, %v112, %v110
  %s115 = scalar_lea.vmem %s0, 456
  %v116 = vld [vmem:[%s115] sm:$0x80]
  %vm117 = vcmask 1047559
  %v118 = vsel %vm117, %v116, %v114
  %119 = vrot.lane.b32.xlu0 %v118, 120
  %v120 = vpop.permute.xlu0 %119
  %vm121 = vcmask 1048512
  %122 = vst.msk [vmem:[%s1] sm:$0xff] %vm121, %v120
  %s123 = scalar_lea.vmem %s0, 31
  %v124 = vld [vmem:[%s123] sm:$0x1]
  %s125 = scalar_lea.vmem %s0, 94
  %v126 = vld [vmem:[%s125] sm:$0x2]
  %vm127 = vcmask 1041409
  %v128 = vsel %vm127, %v126, %v124
  %s129 = scalar_lea.vmem %s0, 157
  %v130 = vld [vmem:[%s129] sm:$0x4]
  %vm131 = vcmask 1042434
  %v132 = vsel %vm131, %v130, %v128
  %s133 = scalar_lea.vmem %s0, 220
  %v134 = vld [vmem:[%s133] sm:$0x8]
  %vm135 = vcmask 1043459
  %v136 = vsel %vm135, %v134, %v132
  %s137 = scalar_lea.vmem %s0, 283
  %v138 = vld [vmem:[%s137] sm:$0x10]
  %vm139 = vcmask 1044484
  %v140 = vsel %vm139, %v138, %v136
  %s141 = scalar_lea.vmem %s0, 346
  %v142 = vld [vmem:[%s141] sm:$0x20]
  %vm143 = vcmask 1045509
  %v144 = vsel %vm143, %v142, %v140
  %s145 = scalar_lea.vmem %s0, 409
  %v146 = vld [vmem:[%s145] sm:$0x40]
  %vm147 = vcmask 1046534
  %v148 = vsel %vm147, %v146, %v144
  %s149 = scalar_lea.vmem %s0, 472
  %v150 = vld [vmem:[%s149] sm:$0x80]
  %vm151 = vcmask 1047559
  %v152 = vsel %vm151, %v150, %v148
  %153 = vrot.lane.b32.xlu0 %v152, 120
  %v154 = vpop.permute.xlu0 %153
  %vm155 = vcmask 1048512
  %s156 = scalar_lea.vmem %s1, 8
  %157 = vst.msk [vmem:[%s156] sm:$0xff] %vm155, %v154
  %s158 = scalar_lea.vmem %s0, 47
  %v159 = vld [vmem:[%s158] sm:$0x1]
  %s160 = scalar_lea.vmem %s0, 110
  %v161 = vld [vmem:[%s160] sm:$0x2]
  %vm162 = vcmask 1041409
  %v163 = vsel %vm162, %v161, %v159
  %s164 = scalar_lea.vmem %s0, 173
  %v165 = vld [vmem:[%s164] sm:$0x4]
  %vm166 = vcmask 1042434
  %v167 = vsel %vm166, %v165, %v163
  %s168 = scalar_lea.vmem %s0, 236
  %v169 = vld [vmem:[%s168] sm:$0x8]
  %vm170 = vcmask 1043459
  %v171 = vsel %vm170, %v169, %v167
  %s172 = scalar_lea.vmem %s0, 299
  %v173 = vld [vmem:[%s172] sm:$0x10]
  %vm174 = vcmask 1044484
  %v175 = vsel %vm174, %v173, %v171
  %s176 = scalar_lea.vmem %s0, 362
  %v177 = vld [vmem:[%s176] sm:$0x20]
  %vm178 = vcmask 1045509
  %v179 = vsel %vm178, %v177, %v175
  %s180 = scalar_lea.vmem %s0, 425
  %v181 = vld [vmem:[%s180] sm:$0x40]
  %vm182 = vcmask 1046534
  %v183 = vsel %vm182, %v181, %v179
  %s184 = scalar_lea.vmem %s0, 488
  %v185 = vld [vmem:[%s184] sm:$0x80]
  %vm186 = vcmask 1047559
  %v187 = vsel %vm186, %v185, %v183
  %188 = vrot.lane.b32.xlu0 %v187, 120
  %v189 = vpop.permute.xlu0 %188
  %vm190 = vcmask 1048512
  %s191 = scalar_lea.vmem %s1, 16
  %192 = vst.msk [vmem:[%s191] sm:$0xff] %vm190, %v189
  %s193 = scalar_lea.vmem %s0, 63
  %v194 = vld [vmem:[%s193] sm:$0x1]
  %s195 = scalar_lea.vmem %s0, 126
  %v196 = vld [vmem:[%s195] sm:$0x2]
  %vm197 = vcmask 1041409
  %v198 = vsel %vm197, %v196, %v194
  %s199 = scalar_lea.vmem %s0, 189
  %v200 = vld [vmem:[%s199] sm:$0x4]
  %vm201 = vcmask 1042434
  %v202 = vsel %vm201, %v200, %v198
  %s203 = scalar_lea.vmem %s0, 252
  %v204 = vld [vmem:[%s203] sm:$0x8]
  %vm205 = vcmask 1043459
  %v206 = vsel %vm205, %v204, %v202
  %s207 = scalar_lea.vmem %s0, 315
  %v208 = vld [vmem:[%s207] sm:$0x10]
  %vm209 = vcmask 1044484
  %v210 = vsel %vm209, %v208, %v206
  %s211 = scalar_lea.vmem %s0, 378
  %v212 = vld [vmem:[%s211] sm:$0x20]
  %vm213 = vcmask 1045509
  %v214 = vsel %vm213, %v212, %v210
  %s215 = scalar_lea.vmem %s0, 441
  %v216 = vld [vmem:[%s215] sm:$0x40]
  %vm217 = vcmask 1046534
  %v218 = vsel %vm217, %v216, %v214
  %s219 = scalar_lea.vmem %s0, 504
  %v220 = vld [vmem:[%s219] sm:$0x80]
  %vm221 = vcmask 1047559
  %v222 = vsel %vm221, %v220, %v218
  %223 = vrot.lane.b32.xlu0 %v222, 120
  %v224 = vpop.permute.xlu0 %223
  %vm225 = vcmask 1048512
  %s226 = scalar_lea.vmem %s1, 24
  %227 = vst.msk [vmem:[%s226] sm:$0xff] %vm225, %v224
  %s228 = scalar_lea.vmem %s0, 14
  %v229 = vld [vmem:[%s228] sm:$0x1]
  %s230 = scalar_lea.vmem %s0, 77
  %v231 = vld [vmem:[%s230] sm:$0x2]
  %vm232 = vcmask 1041409
  %v233 = vsel %vm232, %v231, %v229
  %s234 = scalar_lea.vmem %s0, 140
  %v235 = vld [vmem:[%s234] sm:$0x4]
  %vm236 = vcmask 1042434
  %v237 = vsel %vm236, %v235, %v233
  %s238 = scalar_lea.vmem %s0, 203
  %v239 = vld [vmem:[%s238] sm:$0x8]
  %vm240 = vcmask 1043459
  %v241 = vsel %vm240, %v239, %v237
  %s242 = scalar_lea.vmem %s0, 266
  %v243 = vld [vmem:[%s242] sm:$0x10]
  %vm244 = vcmask 1044484
  %v245 = vsel %vm244, %v243, %v241
  %s246 = scalar_lea.vmem %s0, 329
  %v247 = vld [vmem:[%s246] sm:$0x20]
  %vm248 = vcmask 1045509
  %v249 = vsel %vm248, %v247, %v245
  %s250 = scalar_lea.vmem %s0, 392
  %v251 = vld [vmem:[%s250] sm:$0x40]
  %vm252 = vcmask 1046534
  %v253 = vsel %vm252, %v251, %v249
  %s254 = scalar_lea.vmem %s0, 455
  %v255 = vld [vmem:[%s254] sm:$0x80]
  %vm256 = vcmask 1047559
  %v257 = vsel %vm256, %v255, %v253
  %258 = vrot.lane.b32.xlu0 %v257, 112
  %v259 = vpop.permute.xlu0 %258
  %vm260 = vcmask 982912
  %261 = vst.msk [vmem:[%s1] sm:$0xff] %vm260, %v259
  %s262 = scalar_lea.vmem %s0, 30
  %v263 = vld [vmem:[%s262] sm:$0x1]
  %s264 = scalar_lea.vmem %s0, 93
  %v265 = vld [vmem:[%s264] sm:$0x2]
  %vm266 = vcmask 1041409
  %v267 = vsel %vm266, %v265, %v263
  %s268 = scalar_lea.vmem %s0, 156
  %v269 = vld [vmem:[%s268] sm:$0x4]
  %vm270 = vcmask 1042434
  %v271 = vsel %vm270, %v269, %v267
  %s272 = scalar_lea.vmem %s0, 219
  %v273 = vld [vmem:[%s272] sm:$0x8]
  %vm274 = vcmask 1043459
  %v275 = vsel %vm274, %v273, %v271
  %s276 = scalar_lea.vmem %s0, 282
  %v277 = vld [vmem:[%s276] sm:$0x10]
  %vm278 = vcmask 1044484
  %v279 = vsel %vm278, %v277, %v275
  %s280 = scalar_lea.vmem %s0, 345
  %v281 = vld [vmem:[%s280] sm:$0x20]
  %vm282 = vcmask 1045509
  %v283 = vsel %vm282, %v281, %v279
  %s284 = scalar_lea.vmem %s0, 408
  %v285 = vld [vmem:[%s284] sm:$0x40]
  %vm286 = vcmask 1046534
  %v287 = vsel %vm286, %v285, %v283
  %s288 = scalar_lea.vmem %s0, 471
  %v289 = vld [vmem:[%s288] sm:$0x80]
  %vm290 = vcmask 1047559
  %v291 = vsel %vm290, %v289, %v287
  %292 = vrot.lane.b32.xlu0 %v291, 112
  %v293 = vpop.permute.xlu0 %292
  %vm294 = vcmask 982912
  %s295 = scalar_lea.vmem %s1, 8
  %296 = vst.msk [vmem:[%s295] sm:$0xff] %vm294, %v293
  %s297 = scalar_lea.vmem %s0, 46
  %v298 = vld [vmem:[%s297] sm:$0x1]
  %s299 = scalar_lea.vmem %s0, 109
  %v300 = vld [vmem:[%s299] sm:$0x2]
  %vm301 = vcmask 1041409
  %v302 = vsel %vm301, %v300, %v298
  %s303 = scalar_lea.vmem %s0, 172
  %v304 = vld [vmem:[%s303] sm:$0x4]
  %vm305 = vcmask 1042434
  %v306 = vsel %vm305, %v304, %v302
  %s307 = scalar_lea.vmem %s0, 235
  %v308 = vld [vmem:[%s307] sm:$0x8]
  %vm309 = vcmask 1043459
  %v310 = vsel %vm309, %v308, %v306
  %s311 = scalar_lea.vmem %s0, 298
  %v312 = vld [vmem:[%s311] sm:$0x10]
  %vm313 = vcmask 1044484
  %v314 = vsel %vm313, %v312, %v310
  %s315 = scalar_lea.vmem %s0, 361
  %v316 = vld [vmem:[%s315] sm:$0x20]
  %vm317 = vcmask 1045509
  %v318 = vsel %vm317, %v316, %v314
  %s319 = scalar_lea.vmem %s0, 424
  %v320 = vld [vmem:[%s319] sm:$0x40]
  %vm321 = vcmask 1046534
  %v322 = vsel %vm321, %v320, %v318
  %s323 = scalar_lea.vmem %s0, 487
  %v324 = vld [vmem:[%s323] sm:$0x80]
  %vm325 = vcmask 1047559
  %v326 = vsel %vm325, %v324, %v322
  %327 = vrot.lane.b32.xlu0 %v326, 112
  %v328 = vpop.permute.xlu0 %327
  %vm329 = vcmask 982912
  %s330 = scalar_lea.vmem %s1, 16
  %331 = vst.msk [vmem:[%s330] sm:$0xff] %vm329, %v328
  %s332 = scalar_lea.vmem %s0, 62
  %v333 = vld [vmem:[%s332] sm:$0x1]
  %s334 = scalar_lea.vmem %s0, 125
  %v335 = vld [vmem:[%s334] sm:$0x2]
  %vm336 = vcmask 1041409
  %v337 = vsel %vm336, %v335, %v333
  %s338 = scalar_lea.vmem %s0, 188
  %v339 = vld [vmem:[%s338] sm:$0x4]
  %vm340 = vcmask 1042434
  %v341 = vsel %vm340, %v339, %v337
  %s342 = scalar_lea.vmem %s0, 251
  %v343 = vld [vmem:[%s342] sm:$0x8]
  %vm344 = vcmask 1043459
  %v345 = vsel %vm344, %v343, %v341
  %s346 = scalar_lea.vmem %s0, 314
  %v347 = vld [vmem:[%s346] sm:$0x10]
  %vm348 = vcmask 1044484
  %v349 = vsel %vm348, %v347, %v345
  %s350 = scalar_lea.vmem %s0, 377
  %v351 = vld [vmem:[%s350] sm:$0x20]
  %vm352 = vcmask 1045509
  %v353 = vsel %vm352, %v351, %v349
  %s354 = scalar_lea.vmem %s0, 440
  %v355 = vld [vmem:[%s354] sm:$0x40]
  %vm356 = vcmask 1046534
  %v357 = vsel %vm356, %v355, %v353
  %s358 = scalar_lea.vmem %s0, 503
  %v359 = vld [vmem:[%s358] sm:$0x80]
  %vm360 = vcmask 1047559
  %v361 = vsel %vm360, %v359, %v357
  %362 = vrot.lane.b32.xlu0 %v361, 112
  %v363 = vpop.permute.xlu0 %362
  %vm364 = vcmask 982912
  %s365 = scalar_lea.vmem %s1, 24
  %366 = vst.msk [vmem:[%s365] sm:$0xff] %vm364, %v363
  %s367 = scalar_lea.vmem %s0, 13
  %v368 = vld [vmem:[%s367] sm:$0x1]
  %s369 = scalar_lea.vmem %s0, 76
  %v370 = vld [vmem:[%s369] sm:$0x2]
  %vm371 = vcmask 1041409
  %v372 = vsel %vm371, %v370, %v368
  %s373 = scalar_lea.vmem %s0, 139
  %v374 = vld [vmem:[%s373] sm:$0x4]
  %vm375 = vcmask 1042434
  %v376 = vsel %vm375, %v374, %v372
  %s377 = scalar_lea.vmem %s0, 202
  %v378 = vld [vmem:[%s377] sm:$0x8]
  %vm379 = vcmask 1043459
  %v380 = vsel %vm379, %v378, %v376
  %s381 = scalar_lea.vmem %s0, 265
  %v382 = vld [vmem:[%s381] sm:$0x10]
  %vm383 = vcmask 1044484
  %v384 = vsel %vm383, %v382, %v380
  %s385 = scalar_lea.vmem %s0, 328
  %v386 = vld [vmem:[%s385] sm:$0x20]
  %vm387 = vcmask 1045509
  %v388 = vsel %vm387, %v386, %v384
  %s389 = scalar_lea.vmem %s0, 391
  %v390 = vld [vmem:[%s389] sm:$0x40]
  %vm391 = vcmask 1046534
  %v392 = vsel %vm391, %v390, %v388
  %s393 = scalar_lea.vmem %s0, 454
  %v394 = vld [vmem:[%s393] sm:$0x80]
  %vm395 = vcmask 1047559
  %v396 = vsel %vm395, %v394, %v392
  %397 = vrot.lane.b32.xlu0 %v396, 104
  %v398 = vpop.permute.xlu0 %397
  %vm399 = vcmask 917312
  %400 = vst.msk [vmem:[%s1] sm:$0xff] %vm399, %v398
  %s401 = scalar_lea.vmem %s0, 29
  %v402 = vld [vmem:[%s401] sm:$0x1]
  %s403 = scalar_lea.vmem %s0, 92
  %v404 = vld [vmem:[%s403] sm:$0x2]
  %vm405 = vcmask 1041409
  %v406 = vsel %vm405, %v404, %v402
  %s407 = scalar_lea.vmem %s0, 155
  %v408 = vld [vmem:[%s407] sm:$0x4]
  %vm409 = vcmask 1042434
  %v410 = vsel %vm409, %v408, %v406
  %s411 = scalar_lea.vmem %s0, 218
  %v412 = vld [vmem:[%s411] sm:$0x8]
  %vm413 = vcmask 1043459
  %v414 = vsel %vm413, %v412, %v410
  %s415 = scalar_lea.vmem %s0, 281
  %v416 = vld [vmem:[%s415] sm:$0x10]
  %vm417 = vcmask 1044484
  %v418 = vsel %vm417, %v416, %v414
  %s419 = scalar_lea.vmem %s0, 344
  %v420 = vld [vmem:[%s419] sm:$0x20]
  %vm421 = vcmask 1045509
  %v422 = vsel %vm421, %v420, %v418
  %s423 = scalar_lea.vmem %s0, 407
  %v424 = vld [vmem:[%s423] sm:$0x40]
  %vm425 = vcmask 1046534
  %v426 = vsel %vm425, %v424, %v422
  %s427 = scalar_lea.vmem %s0, 470
  %v428 = vld [vmem:[%s427] sm:$0x80]
  %vm429 = vcmask 1047559
  %v430 = vsel %vm429, %v428, %v426
  %431 = vrot.lane.b32.xlu0 %v430, 104
  %v432 = vpop.permute.xlu0 %431
  %vm433 = vcmask 917312
  %s434 = scalar_lea.vmem %s1, 8
  %435 = vst.msk [vmem:[%s434] sm:$0xff] %vm433, %v432
  %s436 = scalar_lea.vmem %s0, 45
  %v437 = vld [vmem:[%s436] sm:$0x1]
  %s438 = scalar_lea.vmem %s0, 108
  %v439 = vld [vmem:[%s438] sm:$0x2]
  %vm440 = vcmask 1041409
  %v441 = vsel %vm440, %v439, %v437
  %s442 = scalar_lea.vmem %s0, 171
  %v443 = vld [vmem:[%s442] sm:$0x4]
  %vm444 = vcmask 1042434
  %v445 = vsel %vm444, %v443, %v441
  %s446 = scalar_lea.vmem %s0, 234
  %v447 = vld [vmem:[%s446] sm:$0x8]
  %vm448 = vcmask 1043459
  %v449 = vsel %vm448, %v447, %v445
  %s450 = scalar_lea.vmem %s0, 297
  %v451 = vld [vmem:[%s450] sm:$0x10]
  %vm452 = vcmask 1044484
  %v453 = vsel %vm452, %v451, %v449
  %s454 = scalar_lea.vmem %s0, 360
  %v455 = vld [vmem:[%s454] sm:$0x20]
  %vm456 = vcmask 1045509
  %v457 = vsel %vm456, %v455, %v453
  %s458 = scalar_lea.vmem %s0, 423
  %v459 = vld [vmem:[%s458] sm:$0x40]
  %vm460 = vcmask 1046534
  %v461 = vsel %vm460, %v459, %v457
  %s462 = scalar_lea.vmem %s0, 486
  %v463 = vld [vmem:[%s462] sm:$0x80]
  %vm464 = vcmask 1047559
  %v465 = vsel %vm464, %v463, %v461
  %466 = vrot.lane.b32.xlu0 %v465, 104
  %v467 = vpop.permute.xlu0 %466
  %vm468 = vcmask 917312
  %s469 = scalar_lea.vmem %s1, 16
  %470 = vst.msk [vmem:[%s469] sm:$0xff] %vm468, %v467
  %s471 = scalar_lea.vmem %s0, 61
  %v472 = vld [vmem:[%s471] sm:$0x1]
  %s473 = scalar_lea.vmem %s0, 124
  %v474 = vld [vmem:[%s473] sm:$0x2]
  %vm475 = vcmask 1041409
  %v476 = vsel %vm475, %v474, %v472
  %s477 = scalar_lea.vmem %s0, 187
  %v478 = vld [vmem:[%s477] sm:$0x4]
  %vm479 = vcmask 1042434
  %v480 = vsel %vm479, %v478, %v476
  %s481 = scalar_lea.vmem %s0, 250
  %v482 = vld [vmem:[%s481] sm:$0x8]
  %vm483 = vcmask 1043459
  %v484 = vsel %vm483, %v482, %v480
  %s485 = scalar_lea.vmem %s0, 313
  %v486 = vld [vmem:[%s485] sm:$0x10]
  %vm487 = vcmask 1044484
  %v488 = vsel %vm487, %v486, %v484
  %s489 = scalar_lea.vmem %s0, 376
  %v490 = vld [vmem:[%s489] sm:$0x20]
  %vm491 = vcmask 1045509
  %v492 = vsel %vm491, %v490, %v488
  %s493 = scalar_lea.vmem %s0, 439
  %v494 = vld [vmem:[%s493] sm:$0x40]
  %vm495 = vcmask 1046534
  %v496 = vsel %vm495, %v494, %v492
  %s497 = scalar_lea.vmem %s0, 502
  %v498 = vld [vmem:[%s497] sm:$0x80]
  %vm499 = vcmask 1047559
  %v500 = vsel %vm499, %v498, %v496
  %501 = vrot.lane.b32.xlu0 %v500, 104
  %v502 = vpop.permute.xlu0 %501
  %vm503 = vcmask 917312
  %s504 = scalar_lea.vmem %s1, 24
  %505 = vst.msk [vmem:[%s504] sm:$0xff] %vm503, %v502
  %s506 = scalar_lea.vmem %s0, 12
  %v507 = vld [vmem:[%s506] sm:$0x1]
  %s508 = scalar_lea.vmem %s0, 75
  %v509 = vld [vmem:[%s508] sm:$0x2]
  %vm510 = vcmask 1041409
  %v511 = vsel %vm510, %v509, %v507
  %s512 = scalar_lea.vmem %s0, 138
  %v513 = vld [vmem:[%s512] sm:$0x4]
  %vm514 = vcmask 1042434
  %v515 = vsel %vm514, %v513, %v511
  %s516 = scalar_lea.vmem %s0, 201
  %v517 = vld [vmem:[%s516] sm:$0x8]
  %vm518 = vcmask 1043459
  %v519 = vsel %vm518, %v517, %v515
  %s520 = scalar_lea.vmem %s0, 264
  %v521 = vld [vmem:[%s520] sm:$0x10]
  %vm522 = vcmask 1044484
  %v523 = vsel %vm522, %v521, %v519
  %s524 = scalar_lea.vmem %s0, 327
  %v525 = vld [vmem:[%s524] sm:$0x20]
  %vm526 = vcmask 1045509
  %v527 = vsel %vm526, %v525, %v523
  %s528 = scalar_lea.vmem %s0, 390
  %v529 = vld [vmem:[%s528] sm:$0x40]
  %vm530 = vcmask 1046534
  %v531 = vsel %vm530, %v529, %v527
  %s532 = scalar_lea.vmem %s0, 453
  %v533 = vld [vmem:[%s532] sm:$0x80]
  %vm534 = vcmask 1047559
  %v535 = vsel %vm534, %v533, %v531
  %536 = vrot.lane.b32.xlu0 %v535, 96
  %v537 = vpop.permute.xlu0 %536
  %vm538 = vcmask 851712
  %539 = vst.msk [vmem:[%s1] sm:$0xff] %vm538, %v537
  %s540 = scalar_lea.vmem %s0, 28
  %v541 = vld [vmem:[%s540] sm:$0x1]
  %s542 = scalar_lea.vmem %s0, 91
  %v543 = vld [vmem:[%s542] sm:$0x2]
  %vm544 = vcmask 1041409
  %v545 = vsel %vm544, %v543, %v541
  %s546 = scalar_lea.vmem %s0, 154
  %v547 = vld [vmem:[%s546] sm:$0x4]
  %vm548 = vcmask 1042434
  %v549 = vsel %vm548, %v547, %v545
  %s550 = scalar_lea.vmem %s0, 217
  %v551 = vld [vmem:[%s550] sm:$0x8]
  %vm552 = vcmask 1043459
  %v553 = vsel %vm552, %v551, %v549
  %s554 = scalar_lea.vmem %s0, 280
  %v555 = vld [vmem:[%s554] sm:$0x10]
  %vm556 = vcmask 1044484
  %v557 = vsel %vm556, %v555, %v553
  %s558 = scalar_lea.vmem %s0, 343
  %v559 = vld [vmem:[%s558] sm:$0x20]
  %vm560 = vcmask 1045509
  %v561 = vsel %vm560, %v559, %v557
  %s562 = scalar_lea.vmem %s0, 406
  %v563 = vld [vmem:[%s562] sm:$0x40]
  %vm564 = vcmask 1046534
  %v565 = vsel %vm564, %v563, %v561
  %s566 = scalar_lea.vmem %s0, 469
  %v567 = vld [vmem:[%s566] sm:$0x80]
  %vm568 = vcmask 1047559
  %v569 = vsel %vm568, %v567, %v565
  %570 = vrot.lane.b32.xlu0 %v569, 96
  %v571 = vpop.permute.xlu0 %570
  %vm572 = vcmask 851712
  %s573 = scalar_lea.vmem %s1, 8
  %574 = vst.msk [vmem:[%s573] sm:$0xff] %vm572, %v571
  %s575 = scalar_lea.vmem %s0, 44
  %v576 = vld [vmem:[%s575] sm:$0x1]
  %s577 = scalar_lea.vmem %s0, 107
  %v578 = vld [vmem:[%s577] sm:$0x2]
  %vm579 = vcmask 1041409
  %v580 = vsel %vm579, %v578, %v576
  %s581 = scalar_lea.vmem %s0, 170
  %v582 = vld [vmem:[%s581] sm:$0x4]
  %vm583 = vcmask 1042434
  %v584 = vsel %vm583, %v582, %v580
  %s585 = scalar_lea.vmem %s0, 233
  %v586 = vld [vmem:[%s585] sm:$0x8]
  %vm587 = vcmask 1043459
  %v588 = vsel %vm587, %v586, %v584
  %s589 = scalar_lea.vmem %s0, 296
  %v590 = vld [vmem:[%s589] sm:$0x10]
  %vm591 = vcmask 1044484
  %v592 = vsel %vm591, %v590, %v588
  %s593 = scalar_lea.vmem %s0, 359
  %v594 = vld [vmem:[%s593] sm:$0x20]
  %vm595 = vcmask 1045509
  %v596 = vsel %vm595, %v594, %v592
  %s597 = scalar_lea.vmem %s0, 422
  %v598 = vld [vmem:[%s597] sm:$0x40]
  %vm599 = vcmask 1046534
  %v600 = vsel %vm599, %v598, %v596
  %s601 = scalar_lea.vmem %s0, 485
  %v602 = vld [vmem:[%s601] sm:$0x80]
  %vm603 = vcmask 1047559
  %v604 = vsel %vm603, %v602, %v600
  %605 = vrot.lane.b32.xlu0 %v604, 96
  %v606 = vpop.permute.xlu0 %605
  %vm607 = vcmask 851712
  %s608 = scalar_lea.vmem %s1, 16
  %609 = vst.msk [vmem:[%s608] sm:$0xff] %vm607, %v606
  %s610 = scalar_lea.vmem %s0, 60
  %v611 = vld [vmem:[%s610] sm:$0x1]
  %s612 = scalar_lea.vmem %s0, 123
  %v613 = vld [vmem:[%s612] sm:$0x2]
  %vm614 = vcmask 1041409
  %v615 = vsel %vm614, %v613, %v611
  %s616 = scalar_lea.vmem %s0, 186
  %v617 = vld [vmem:[%s616] sm:$0x4]
  %vm618 = vcmask 1042434
  %v619 = vsel %vm618, %v617, %v615
  %s620 = scalar_lea.vmem %s0, 249
  %v621 = vld [vmem:[%s620] sm:$0x8]
  %vm622 = vcmask 1043459
  %v623 = vsel %vm622, %v621, %v619
  %s624 = scalar_lea.vmem %s0, 312
  %v625 = vld [vmem:[%s624] sm:$0x10]
  %vm626 = vcmask 1044484
  %v627 = vsel %vm626, %v625, %v623
  %s628 = scalar_lea.vmem %s0, 375
  %v629 = vld [vmem:[%s628] sm:$0x20]
  %vm630 = vcmask 1045509
  %v631 = vsel %vm630, %v629, %v627
  %s632 = scalar_lea.vmem %s0, 438
  %v633 = vld [vmem:[%s632] sm:$0x40]
  %vm634 = vcmask 1046534
  %v635 = vsel %vm634, %v633, %v631
  %s636 = scalar_lea.vmem %s0, 501
  %v637 = vld [vmem:[%s636] sm:$0x80]
  %vm638 = vcmask 1047559
  %v639 = vsel %vm638, %v637, %v635
  %640 = vrot.lane.b32.xlu0 %v639, 96
  %v641 = vpop.permute.xlu0 %640
  %vm642 = vcmask 851712
  %s643 = scalar_lea.vmem %s1, 24
  %644 = vst.msk [vmem:[%s643] sm:$0xff] %vm642, %v641
  %s645 = scalar_lea.vmem %s0, 11
  %v646 = vld [vmem:[%s645] sm:$0x1]
  %s647 = scalar_lea.vmem %s0, 74
  %v648 = vld [vmem:[%s647] sm:$0x2]
  %vm649 = vcmask 1041409
  %v650 = vsel %vm649, %v648, %v646
  %s651 = scalar_lea.vmem %s0, 137
  %v652 = vld [vmem:[%s651] sm:$0x4]
  %vm653 = vcmask 1042434
  %v654 = vsel %vm653, %v652, %v650
  %s655 = scalar_lea.vmem %s0, 200
  %v656 = vld [vmem:[%s655] sm:$0x8]
  %vm657 = vcmask 1043459
  %v658 = vsel %vm657, %v656, %v654
  %s659 = scalar_lea.vmem %s0, 263
  %v660 = vld [vmem:[%s659] sm:$0x10]
  %vm661 = vcmask 1044484
  %v662 = vsel %vm661, %v660, %v658
  %s663 = scalar_lea.vmem %s0, 326
  %v664 = vld [vmem:[%s663] sm:$0x20]
  %vm665 = vcmask 1045509
  %v666 = vsel %vm665, %v664, %v662
  %s667 = scalar_lea.vmem %s0, 389
  %v668 = vld [vmem:[%s667] sm:$0x40]
  %vm669 = vcmask 1046534
  %v670 = vsel %vm669, %v668, %v666
  %s671 = scalar_lea.vmem %s0, 452
  %v672 = vld [vmem:[%s671] sm:$0x80]
  %vm673 = vcmask 1047559
  %v674 = vsel %vm673, %v672, %v670
  %675 = vrot.lane.b32.xlu0 %v674, 88
  %v676 = vpop.permute.xlu0 %675
  %vm677 = vcmask 786112
  %678 = vst.msk [vmem:[%s1] sm:$0xff] %vm677, %v676
  %s679 = scalar_lea.vmem %s0, 27
  %v680 = vld [vmem:[%s679] sm:$0x1]
  %s681 = scalar_lea.vmem %s0, 90
  %v682 = vld [vmem:[%s681] sm:$0x2]
  %vm683 = vcmask 1041409
  %v684 = vsel %vm683, %v682, %v680
  %s685 = scalar_lea.vmem %s0, 153
  %v686 = vld [vmem:[%s685] sm:$0x4]
  %vm687 = vcmask 1042434
  %v688 = vsel %vm687, %v686, %v684
  %s689 = scalar_lea.vmem %s0, 216
  %v690 = vld [vmem:[%s689] sm:$0x8]
  %vm691 = vcmask 1043459
  %v692 = vsel %vm691, %v690, %v688
  %s693 = scalar_lea.vmem %s0, 279
  %v694 = vld [vmem:[%s693] sm:$0x10]
  %vm695 = vcmask 1044484
  %v696 = vsel %vm695, %v694, %v692
  %s697 = scalar_lea.vmem %s0, 342
  %v698 = vld [vmem:[%s697] sm:$0x20]
  %vm699 = vcmask 1045509
  %v700 = vsel %vm699, %v698, %v696
  %s701 = scalar_lea.vmem %s0, 405
  %v702 = vld [vmem:[%s701] sm:$0x40]
  %vm703 = vcmask 1046534
  %v704 = vsel %vm703, %v702, %v700
  %s705 = scalar_lea.vmem %s0, 468
  %v706 = vld [vmem:[%s705] sm:$0x80]
  %vm707 = vcmask 1047559
  %v708 = vsel %vm707, %v706, %v704
  %709 = vrot.lane.b32.xlu0 %v708, 88
  %v710 = vpop.permute.xlu0 %709
  %vm711 = vcmask 786112
  %s712 = scalar_lea.vmem %s1, 8
  %713 = vst.msk [vmem:[%s712] sm:$0xff] %vm711, %v710
  %s714 = scalar_lea.vmem %s0, 43
  %v715 = vld [vmem:[%s714] sm:$0x1]
  %s716 = scalar_lea.vmem %s0, 106
  %v717 = vld [vmem:[%s716] sm:$0x2]
  %vm718 = vcmask 1041409
  %v719 = vsel %vm718, %v717, %v715
  %s720 = scalar_lea.vmem %s0, 169
  %v721 = vld [vmem:[%s720] sm:$0x4]
  %vm722 = vcmask 1042434
  %v723 = vsel %vm722, %v721, %v719
  %s724 = scalar_lea.vmem %s0, 232
  %v725 = vld [vmem:[%s724] sm:$0x8]
  %vm726 = vcmask 1043459
  %v727 = vsel %vm726, %v725, %v723
  %s728 = scalar_lea.vmem %s0, 295
  %v729 = vld [vmem:[%s728] sm:$0x10]
  %vm730 = vcmask 1044484
  %v731 = vsel %vm730, %v729, %v727
  %s732 = scalar_lea.vmem %s0, 358
  %v733 = vld [vmem:[%s732] sm:$0x20]
  %vm734 = vcmask 1045509
  %v735 = vsel %vm734, %v733, %v731
  %s736 = scalar_lea.vmem %s0, 421
  %v737 = vld [vmem:[%s736] sm:$0x40]
  %vm738 = vcmask 1046534
  %v739 = vsel %vm738, %v737, %v735
  %s740 = scalar_lea.vmem %s0, 484
  %v741 = vld [vmem:[%s740] sm:$0x80]
  %vm742 = vcmask 1047559
  %v743 = vsel %vm742, %v741, %v739
  %744 = vrot.lane.b32.xlu0 %v743, 88
  %v745 = vpop.permute.xlu0 %744
  %vm746 = vcmask 786112
  %s747 = scalar_lea.vmem %s1, 16
  %748 = vst.msk [vmem:[%s747] sm:$0xff] %vm746, %v745
  %s749 = scalar_lea.vmem %s0, 59
  %v750 = vld [vmem:[%s749] sm:$0x1]
  %s751 = scalar_lea.vmem %s0, 122
  %v752 = vld [vmem:[%s751] sm:$0x2]
  %vm753 = vcmask 1041409
  %v754 = vsel %vm753, %v752, %v750
  %s755 = scalar_lea.vmem %s0, 185
  %v756 = vld [vmem:[%s755] sm:$0x4]
  %vm757 = vcmask 1042434
  %v758 = vsel %vm757, %v756, %v754
  %s759 = scalar_lea.vmem %s0, 248
  %v760 = vld [vmem:[%s759] sm:$0x8]
  %vm761 = vcmask 1043459
  %v762 = vsel %vm761, %v760, %v758
  %s763 = scalar_lea.vmem %s0, 311
  %v764 = vld [vmem:[%s763] sm:$0x10]
  %vm765 = vcmask 1044484
  %v766 = vsel %vm765, %v764, %v762
  %s767 = scalar_lea.vmem %s0, 374
  %v768 = vld [vmem:[%s767] sm:$0x20]
  %vm769 = vcmask 1045509
  %v770 = vsel %vm769, %v768, %v766
  %s771 = scalar_lea.vmem %s0, 437
  %v772 = vld [vmem:[%s771] sm:$0x40]
  %vm773 = vcmask 1046534
  %v774 = vsel %vm773, %v772, %v770
  %s775 = scalar_lea.vmem %s0, 500
  %v776 = vld [vmem:[%s775] sm:$0x80]
  %vm777 = vcmask 1047559
  %v778 = vsel %vm777, %v776, %v774
  %779 = vrot.lane.b32.xlu0 %v778, 88
  %v780 = vpop.permute.xlu0 %779
  %vm781 = vcmask 786112
  %s782 = scalar_lea.vmem %s1, 24
  %783 = vst.msk [vmem:[%s782] sm:$0xff] %vm781, %v780
  %s784 = scalar_lea.vmem %s0, 10
  %v785 = vld [vmem:[%s784] sm:$0x1]
  %s786 = scalar_lea.vmem %s0, 73
  %v787 = vld [vmem:[%s786] sm:$0x2]
  %vm788 = vcmask 1041409
  %v789 = vsel %vm788, %v787, %v785
  %s790 = scalar_lea.vmem %s0, 136
  %v791 = vld [vmem:[%s790] sm:$0x4]
  %vm792 = vcmask 1042434
  %v793 = vsel %vm792, %v791, %v789
  %s794 = scalar_lea.vmem %s0, 199
  %v795 = vld [vmem:[%s794] sm:$0x8]
  %vm796 = vcmask 1043459
  %v797 = vsel %vm796, %v795, %v793
  %s798 = scalar_lea.vmem %s0, 262
  %v799 = vld [vmem:[%s798] sm:$0x10]
  %vm800 = vcmask 1044484
  %v801 = vsel %vm800, %v799, %v797
  %s802 = scalar_lea.vmem %s0, 325
  %v803 = vld [vmem:[%s802] sm:$0x20]
  %vm804 = vcmask 1045509
  %v805 = vsel %vm804, %v803, %v801
  %s806 = scalar_lea.vmem %s0, 388
  %v807 = vld [vmem:[%s806] sm:$0x40]
  %vm808 = vcmask 1046534
  %v809 = vsel %vm808, %v807, %v805
  %s810 = scalar_lea.vmem %s0, 451
  %v811 = vld [vmem:[%s810] sm:$0x80]
  %vm812 = vcmask 1047559
  %v813 = vsel %vm812, %v811, %v809
  %814 = vrot.lane.b32.xlu0 %v813, 80
  %v815 = vpop.permute.xlu0 %814
  %vm816 = vcmask 720512
  %817 = vst.msk [vmem:[%s1] sm:$0xff] %vm816, %v815
  %s818 = scalar_lea.vmem %s0, 26
  %v819 = vld [vmem:[%s818] sm:$0x1]
  %s820 = scalar_lea.vmem %s0, 89
  %v821 = vld [vmem:[%s820] sm:$0x2]
  %vm822 = vcmask 1041409
  %v823 = vsel %vm822, %v821, %v819
  %s824 = scalar_lea.vmem %s0, 152
  %v825 = vld [vmem:[%s824] sm:$0x4]
  %vm826 = vcmask 1042434
  %v827 = vsel %vm826, %v825, %v823
  %s828 = scalar_lea.vmem %s0, 215
  %v829 = vld [vmem:[%s828] sm:$0x8]
  %vm830 = vcmask 1043459
  %v831 = vsel %vm830, %v829, %v827
  %s832 = scalar_lea.vmem %s0, 278
  %v833 = vld [vmem:[%s832] sm:$0x10]
  %vm834 = vcmask 1044484
  %v835 = vsel %vm834, %v833, %v831
  %s836 = scalar_lea.vmem %s0, 341
  %v837 = vld [vmem:[%s836] sm:$0x20]
  %vm838 = vcmask 1045509
  %v839 = vsel %vm838, %v837, %v835
  %s840 = scalar_lea.vmem %s0, 404
  %v841 = vld [vmem:[%s840] sm:$0x40]
  %vm842 = vcmask 1046534
  %v843 = vsel %vm842, %v841, %v839
  %s844 = scalar_lea.vmem %s0, 467
  %v845 = vld [vmem:[%s844] sm:$0x80]
  %vm846 = vcmask 1047559
  %v847 = vsel %vm846, %v845, %v843
  %848 = vrot.lane.b32.xlu0 %v847, 80
  %v849 = vpop.permute.xlu0 %848
  %vm850 = vcmask 720512
  %s851 = scalar_lea.vmem %s1, 8
  %852 = vst.msk [vmem:[%s851] sm:$0xff] %vm850, %v849
  %s853 = scalar_lea.vmem %s0, 42
  %v854 = vld [vmem:[%s853] sm:$0x1]
  %s855 = scalar_lea.vmem %s0, 105
  %v856 = vld [vmem:[%s855] sm:$0x2]
  %vm857 = vcmask 1041409
  %v858 = vsel %vm857, %v856, %v854
  %s859 = scalar_lea.vmem %s0, 168
  %v860 = vld [vmem:[%s859] sm:$0x4]
  %vm861 = vcmask 1042434
  %v862 = vsel %vm861, %v860, %v858
  %s863 = scalar_lea.vmem %s0, 231
  %v864 = vld [vmem:[%s863] sm:$0x8]
  %vm865 = vcmask 1043459
  %v866 = vsel %vm865, %v864, %v862
  %s867 = scalar_lea.vmem %s0, 294
  %v868 = vld [vmem:[%s867] sm:$0x10]
  %vm869 = vcmask 1044484
  %v870 = vsel %vm869, %v868, %v866
  %s871 = scalar_lea.vmem %s0, 357
  %v872 = vld [vmem:[%s871] sm:$0x20]
  %vm873 = vcmask 1045509
  %v874 = vsel %vm873, %v872, %v870
  %s875 = scalar_lea.vmem %s0, 420
  %v876 = vld [vmem:[%s875] sm:$0x40]
  %vm877 = vcmask 1046534
  %v878 = vsel %vm877, %v876, %v874
  %s879 = scalar_lea.vmem %s0, 483
  %v880 = vld [vmem:[%s879] sm:$0x80]
  %vm881 = vcmask 1047559
  %v882 = vsel %vm881, %v880, %v878
  %883 = vrot.lane.b32.xlu0 %v882, 80
  %v884 = vpop.permute.xlu0 %883
  %vm885 = vcmask 720512
  %s886 = scalar_lea.vmem %s1, 16
  %887 = vst.msk [vmem:[%s886] sm:$0xff] %vm885, %v884
  %s888 = scalar_lea.vmem %s0, 58
  %v889 = vld [vmem:[%s888] sm:$0x1]
  %s890 = scalar_lea.vmem %s0, 121
  %v891 = vld [vmem:[%s890] sm:$0x2]
  %vm892 = vcmask 1041409
  %v893 = vsel %vm892, %v891, %v889
  %s894 = scalar_lea.vmem %s0, 184
  %v895 = vld [vmem:[%s894] sm:$0x4]
  %vm896 = vcmask 1042434
  %v897 = vsel %vm896, %v895, %v893
  %s898 = scalar_lea.vmem %s0, 247
  %v899 = vld [vmem:[%s898] sm:$0x8]
  %vm900 = vcmask 1043459
  %v901 = vsel %vm900, %v899, %v897
  %s902 = scalar_lea.vmem %s0, 310
  %v903 = vld [vmem:[%s902] sm:$0x10]
  %vm904 = vcmask 1044484
  %v905 = vsel %vm904, %v903, %v901
  %s906 = scalar_lea.vmem %s0, 373
  %v907 = vld [vmem:[%s906] sm:$0x20]
  %vm908 = vcmask 1045509
  %v909 = vsel %vm908, %v907, %v905
  %s910 = scalar_lea.vmem %s0, 436
  %v911 = vld [vmem:[%s910] sm:$0x40]
  %vm912 = vcmask 1046534
  %v913 = vsel %vm912, %v911, %v909
  %s914 = scalar_lea.vmem %s0, 499
  %v915 = vld [vmem:[%s914] sm:$0x80]
  %vm916 = vcmask 1047559
  %v917 = vsel %vm916, %v915, %v913
  %918 = vrot.lane.b32.xlu0 %v917, 80
  %v919 = vpop.permute.xlu0 %918
  %vm920 = vcmask 720512
  %s921 = scalar_lea.vmem %s1, 24
  %922 = vst.msk [vmem:[%s921] sm:$0xff] %vm920, %v919
  %s923 = scalar_lea.vmem %s0, 9
  %v924 = vld [vmem:[%s923] sm:$0x1]
  %s925 = scalar_lea.vmem %s0, 72
  %v926 = vld [vmem:[%s925] sm:$0x2]
  %vm927 = vcmask 1041409
  %v928 = vsel %vm927, %v926, %v924
  %s929 = scalar_lea.vmem %s0, 135
  %v930 = vld [vmem:[%s929] sm:$0x4]
  %vm931 = vcmask 1042434
  %v932 = vsel %vm931, %v930, %v928
  %s933 = scalar_lea.vmem %s0, 198
  %v934 = vld [vmem:[%s933] sm:$0x8]
  %vm935 = vcmask 1043459
  %v936 = vsel %vm935, %v934, %v932
  %s937 = scalar_lea.vmem %s0, 261
  %v938 = vld [vmem:[%s937] sm:$0x10]
  %vm939 = vcmask 1044484
  %v940 = vsel %vm939, %v938, %v936
  %s941 = scalar_lea.vmem %s0, 324
  %v942 = vld [vmem:[%s941] sm:$0x20]
  %vm943 = vcmask 1045509
  %v944 = vsel %vm943, %v942, %v940
  %s945 = scalar_lea.vmem %s0, 387
  %v946 = vld [vmem:[%s945] sm:$0x40]
  %vm947 = vcmask 1046534
  %v948 = vsel %vm947, %v946, %v944
  %s949 = scalar_lea.vmem %s0, 450
  %v950 = vld [vmem:[%s949] sm:$0x80]
  %vm951 = vcmask 1047559
  %v952 = vsel %vm951, %v950, %v948
  %953 = vrot.lane.b32.xlu0 %v952, 72
  %v954 = vpop.permute.xlu0 %953
  %vm955 = vcmask 654912
  %956 = vst.msk [vmem:[%s1] sm:$0xff] %vm955, %v954
  %s957 = scalar_lea.vmem %s0, 25
  %v958 = vld [vmem:[%s957] sm:$0x1]
  %s959 = scalar_lea.vmem %s0, 88
  %v960 = vld [vmem:[%s959] sm:$0x2]
  %vm961 = vcmask 1041409
  %v962 = vsel %vm961, %v960, %v958
  %s963 = scalar_lea.vmem %s0, 151
  %v964 = vld [vmem:[%s963] sm:$0x4]
  %vm965 = vcmask 1042434
  %v966 = vsel %vm965, %v964, %v962
  %s967 = scalar_lea.vmem %s0, 214
  %v968 = vld [vmem:[%s967] sm:$0x8]
  %vm969 = vcmask 1043459
  %v970 = vsel %vm969, %v968, %v966
  %s971 = scalar_lea.vmem %s0, 277
  %v972 = vld [vmem:[%s971] sm:$0x10]
  %vm973 = vcmask 1044484
  %v974 = vsel %vm973, %v972, %v970
  %s975 = scalar_lea.vmem %s0, 340
  %v976 = vld [vmem:[%s975] sm:$0x20]
  %vm977 = vcmask 1045509
  %v978 = vsel %vm977, %v976, %v974
  %s979 = scalar_lea.vmem %s0, 403
  %v980 = vld [vmem:[%s979] sm:$0x40]
  %vm981 = vcmask 1046534
  %v982 = vsel %vm981, %v980, %v978
  %s983 = scalar_lea.vmem %s0, 466
  %v984 = vld [vmem:[%s983] sm:$0x80]
  %vm985 = vcmask 1047559
  %v986 = vsel %vm985, %v984, %v982
  %987 = vrot.lane.b32.xlu0 %v986, 72
  %v988 = vpop.permute.xlu0 %987
  %vm989 = vcmask 654912
  %s990 = scalar_lea.vmem %s1, 8
  %991 = vst.msk [vmem:[%s990] sm:$0xff] %vm989, %v988
  %s992 = scalar_lea.vmem %s0, 41
  %v993 = vld [vmem:[%s992] sm:$0x1]
  %s994 = scalar_lea.vmem %s0, 104
  %v995 = vld [vmem:[%s994] sm:$0x2]
  %vm996 = vcmask 1041409
  %v997 = vsel %vm996, %v995, %v993
  %s998 = scalar_lea.vmem %s0, 167
  %v999 = vld [vmem:[%s998] sm:$0x4]
  %vm1000 = vcmask 1042434
  %v1001 = vsel %vm1000, %v999, %v997
  %s1002 = scalar_lea.vmem %s0, 230
  %v1003 = vld [vmem:[%s1002] sm:$0x8]
  %vm1004 = vcmask 1043459
  %v1005 = vsel %vm1004, %v1003, %v1001
  %s1006 = scalar_lea.vmem %s0, 293
  %v1007 = vld [vmem:[%s1006] sm:$0x10]
  %vm1008 = vcmask 1044484
  %v1009 = vsel %vm1008, %v1007, %v1005
  %s1010 = scalar_lea.vmem %s0, 356
  %v1011 = vld [vmem:[%s1010] sm:$0x20]
  %vm1012 = vcmask 1045509
  %v1013 = vsel %vm1012, %v1011, %v1009
  %s1014 = scalar_lea.vmem %s0, 419
  %v1015 = vld [vmem:[%s1014] sm:$0x40]
  %vm1016 = vcmask 1046534
  %v1017 = vsel %vm1016, %v1015, %v1013
  %s1018 = scalar_lea.vmem %s0, 482
  %v1019 = vld [vmem:[%s1018] sm:$0x80]
  %vm1020 = vcmask 1047559
  %v1021 = vsel %vm1020, %v1019, %v1017
  %1022 = vrot.lane.b32.xlu0 %v1021, 72
  %v1023 = vpop.permute.xlu0 %1022
  %vm1024 = vcmask 654912
  %s1025 = scalar_lea.vmem %s1, 16
  %1026 = vst.msk [vmem:[%s1025] sm:$0xff] %vm1024, %v1023
  %s1027 = scalar_lea.vmem %s0, 57
  %v1028 = vld [vmem:[%s1027] sm:$0x1]
  %s1029 = scalar_lea.vmem %s0, 120
  %v1030 = vld [vmem:[%s1029] sm:$0x2]
  %vm1031 = vcmask 1041409
  %v1032 = vsel %vm1031, %v1030, %v1028
  %s1033 = scalar_lea.vmem %s0, 183
  %v1034 = vld [vmem:[%s1033] sm:$0x4]
  %vm1035 = vcmask 1042434
  %v1036 = vsel %vm1035, %v1034, %v1032
  %s1037 = scalar_lea.vmem %s0, 246
  %v1038 = vld [vmem:[%s1037] sm:$0x8]
  %vm1039 = vcmask 1043459
  %v1040 = vsel %vm1039, %v1038, %v1036
  %s1041 = scalar_lea.vmem %s0, 309
  %v1042 = vld [vmem:[%s1041] sm:$0x10]
  %vm1043 = vcmask 1044484
  %v1044 = vsel %vm1043, %v1042, %v1040
  %s1045 = scalar_lea.vmem %s0, 372
  %v1046 = vld [vmem:[%s1045] sm:$0x20]
  %vm1047 = vcmask 1045509
  %v1048 = vsel %vm1047, %v1046, %v1044
  %s1049 = scalar_lea.vmem %s0, 435
  %v1050 = vld [vmem:[%s1049] sm:$0x40]
  %vm1051 = vcmask 1046534
  %v1052 = vsel %vm1051, %v1050, %v1048
  %s1053 = scalar_lea.vmem %s0, 498
  %v1054 = vld [vmem:[%s1053] sm:$0x80]
  %vm1055 = vcmask 1047559
  %v1056 = vsel %vm1055, %v1054, %v1052
  %1057 = vrot.lane.b32.xlu0 %v1056, 72
  %v1058 = vpop.permute.xlu0 %1057
  %vm1059 = vcmask 654912
  %s1060 = scalar_lea.vmem %s1, 24
  %1061 = vst.msk [vmem:[%s1060] sm:$0xff] %vm1059, %v1058
  %s1062 = scalar_lea.vmem %s0, 8
  %v1063 = vld [vmem:[%s1062] sm:$0x1]
  %s1064 = scalar_lea.vmem %s0, 71
  %v1065 = vld [vmem:[%s1064] sm:$0x2]
  %vm1066 = vcmask 1041409
  %v1067 = vsel %vm1066, %v1065, %v1063
  %s1068 = scalar_lea.vmem %s0, 134
  %v1069 = vld [vmem:[%s1068] sm:$0x4]
  %vm1070 = vcmask 1042434
  %v1071 = vsel %vm1070, %v1069, %v1067
  %s1072 = scalar_lea.vmem %s0, 197
  %v1073 = vld [vmem:[%s1072] sm:$0x8]
  %vm1074 = vcmask 1043459
  %v1075 = vsel %vm1074, %v1073, %v1071
  %s1076 = scalar_lea.vmem %s0, 260
  %v1077 = vld [vmem:[%s1076] sm:$0x10]
  %vm1078 = vcmask 1044484
  %v1079 = vsel %vm1078, %v1077, %v1075
  %s1080 = scalar_lea.vmem %s0, 323
  %v1081 = vld [vmem:[%s1080] sm:$0x20]
  %vm1082 = vcmask 1045509
  %v1083 = vsel %vm1082, %v1081, %v1079
  %s1084 = scalar_lea.vmem %s0, 386
  %v1085 = vld [vmem:[%s1084] sm:$0x40]
  %vm1086 = vcmask 1046534
  %v1087 = vsel %vm1086, %v1085, %v1083
  %s1088 = scalar_lea.vmem %s0, 449
  %v1089 = vld [vmem:[%s1088] sm:$0x80]
  %vm1090 = vcmask 1047559
  %v1091 = vsel %vm1090, %v1089, %v1087
  %1092 = vrot.lane.b32.xlu0 %v1091, 64
  %v1093 = vpop.permute.xlu0 %1092
  %vm1094 = vcmask 589312
  %1095 = vst.msk [vmem:[%s1] sm:$0xff] %vm1094, %v1093
  %s1096 = scalar_lea.vmem %s0, 24
  %v1097 = vld [vmem:[%s1096] sm:$0x1]
  %s1098 = scalar_lea.vmem %s0, 87
  %v1099 = vld [vmem:[%s1098] sm:$0x2]
  %vm1100 = vcmask 1041409
  %v1101 = vsel %vm1100, %v1099, %v1097
  %s1102 = scalar_lea.vmem %s0, 150
  %v1103 = vld [vmem:[%s1102] sm:$0x4]
  %vm1104 = vcmask 1042434
  %v1105 = vsel %vm1104, %v1103, %v1101
  %s1106 = scalar_lea.vmem %s0, 213
  %v1107 = vld [vmem:[%s1106] sm:$0x8]
  %vm1108 = vcmask 1043459
  %v1109 = vsel %vm1108, %v1107, %v1105
  %s1110 = scalar_lea.vmem %s0, 276
  %v1111 = vld [vmem:[%s1110] sm:$0x10]
  %vm1112 = vcmask 1044484
  %v1113 = vsel %vm1112, %v1111, %v1109
  %s1114 = scalar_lea.vmem %s0, 339
  %v1115 = vld [vmem:[%s1114] sm:$0x20]
  %vm1116 = vcmask 1045509
  %v1117 = vsel %vm1116, %v1115, %v1113
  %s1118 = scalar_lea.vmem %s0, 402
  %v1119 = vld [vmem:[%s1118] sm:$0x40]
  %vm1120 = vcmask 1046534
  %v1121 = vsel %vm1120, %v1119, %v1117
  %s1122 = scalar_lea.vmem %s0, 465
  %v1123 = vld [vmem:[%s1122] sm:$0x80]
  %vm1124 = vcmask 1047559
  %v1125 = vsel %vm1124, %v1123, %v1121
  %1126 = vrot.lane.b32.xlu0 %v1125, 64
  %v1127 = vpop.permute.xlu0 %1126
  %vm1128 = vcmask 589312
  %s1129 = scalar_lea.vmem %s1, 8
  %1130 = vst.msk [vmem:[%s1129] sm:$0xff] %vm1128, %v1127
  %s1131 = scalar_lea.vmem %s0, 40
  %v1132 = vld [vmem:[%s1131] sm:$0x1]
  %s1133 = scalar_lea.vmem %s0, 103
  %v1134 = vld [vmem:[%s1133] sm:$0x2]
  %vm1135 = vcmask 1041409
  %v1136 = vsel %vm1135, %v1134, %v1132
  %s1137 = scalar_lea.vmem %s0, 166
  %v1138 = vld [vmem:[%s1137] sm:$0x4]
  %vm1139 = vcmask 1042434
  %v1140 = vsel %vm1139, %v1138, %v1136
  %s1141 = scalar_lea.vmem %s0, 229
  %v1142 = vld [vmem:[%s1141] sm:$0x8]
  %vm1143 = vcmask 1043459
  %v1144 = vsel %vm1143, %v1142, %v1140
  %s1145 = scalar_lea.vmem %s0, 292
  %v1146 = vld [vmem:[%s1145] sm:$0x10]
  %vm1147 = vcmask 1044484
  %v1148 = vsel %vm1147, %v1146, %v1144
  %s1149 = scalar_lea.vmem %s0, 355
  %v1150 = vld [vmem:[%s1149] sm:$0x20]
  %vm1151 = vcmask 1045509
  %v1152 = vsel %vm1151, %v1150, %v1148
  %s1153 = scalar_lea.vmem %s0, 418
  %v1154 = vld [vmem:[%s1153] sm:$0x40]
  %vm1155 = vcmask 1046534
  %v1156 = vsel %vm1155, %v1154, %v1152
  %s1157 = scalar_lea.vmem %s0, 481
  %v1158 = vld [vmem:[%s1157] sm:$0x80]
  %vm1159 = vcmask 1047559
  %v1160 = vsel %vm1159, %v1158, %v1156
  %1161 = vrot.lane.b32.xlu0 %v1160, 64
  %v1162 = vpop.permute.xlu0 %1161
  %vm1163 = vcmask 589312
  %s1164 = scalar_lea.vmem %s1, 16
  %1165 = vst.msk [vmem:[%s1164] sm:$0xff] %vm1163, %v1162
  %s1166 = scalar_lea.vmem %s0, 56
  %v1167 = vld [vmem:[%s1166] sm:$0x1]
  %s1168 = scalar_lea.vmem %s0, 119
  %v1169 = vld [vmem:[%s1168] sm:$0x2]
  %vm1170 = vcmask 1041409
  %v1171 = vsel %vm1170, %v1169, %v1167
  %s1172 = scalar_lea.vmem %s0, 182
  %v1173 = vld [vmem:[%s1172] sm:$0x4]
  %vm1174 = vcmask 1042434
  %v1175 = vsel %vm1174, %v1173, %v1171
  %s1176 = scalar_lea.vmem %s0, 245
  %v1177 = vld [vmem:[%s1176] sm:$0x8]
  %vm1178 = vcmask 1043459
  %v1179 = vsel %vm1178, %v1177, %v1175
  %s1180 = scalar_lea.vmem %s0, 308
  %v1181 = vld [vmem:[%s1180] sm:$0x10]
  %vm1182 = vcmask 1044484
  %v1183 = vsel %vm1182, %v1181, %v1179
  %s1184 = scalar_lea.vmem %s0, 371
  %v1185 = vld [vmem:[%s1184] sm:$0x20]
  %vm1186 = vcmask 1045509
  %v1187 = vsel %vm1186, %v1185, %v1183
  %s1188 = scalar_lea.vmem %s0, 434
  %v1189 = vld [vmem:[%s1188] sm:$0x40]
  %vm1190 = vcmask 1046534
  %v1191 = vsel %vm1190, %v1189, %v1187
  %s1192 = scalar_lea.vmem %s0, 497
  %v1193 = vld [vmem:[%s1192] sm:$0x80]
  %vm1194 = vcmask 1047559
  %v1195 = vsel %vm1194, %v1193, %v1191
  %1196 = vrot.lane.b32.xlu0 %v1195, 64
  %v1197 = vpop.permute.xlu0 %1196
  %vm1198 = vcmask 589312
  %s1199 = scalar_lea.vmem %s1, 24
  %1200 = vst.msk [vmem:[%s1199] sm:$0xff] %vm1198, %v1197
  %s1201 = scalar_lea.vmem %s0, 7
  %v1202 = vld [vmem:[%s1201] sm:$0x1]
  %s1203 = scalar_lea.vmem %s0, 70
  %v1204 = vld [vmem:[%s1203] sm:$0x2]
  %vm1205 = vcmask 1041409
  %v1206 = vsel %vm1205, %v1204, %v1202
  %s1207 = scalar_lea.vmem %s0, 133
  %v1208 = vld [vmem:[%s1207] sm:$0x4]
  %vm1209 = vcmask 1042434
  %v1210 = vsel %vm1209, %v1208, %v1206
  %s1211 = scalar_lea.vmem %s0, 196
  %v1212 = vld [vmem:[%s1211] sm:$0x8]
  %vm1213 = vcmask 1043459
  %v1214 = vsel %vm1213, %v1212, %v1210
  %s1215 = scalar_lea.vmem %s0, 259
  %v1216 = vld [vmem:[%s1215] sm:$0x10]
  %vm1217 = vcmask 1044484
  %v1218 = vsel %vm1217, %v1216, %v1214
  %s1219 = scalar_lea.vmem %s0, 322
  %v1220 = vld [vmem:[%s1219] sm:$0x20]
  %vm1221 = vcmask 1045509
  %v1222 = vsel %vm1221, %v1220, %v1218
  %s1223 = scalar_lea.vmem %s0, 385
  %v1224 = vld [vmem:[%s1223] sm:$0x40]
  %vm1225 = vcmask 1046534
  %v1226 = vsel %vm1225, %v1224, %v1222
  %s1227 = scalar_lea.vmem %s0, 448
  %v1228 = vld [vmem:[%s1227] sm:$0x80]
  %vm1229 = vcmask 1047559
  %v1230 = vsel %vm1229, %v1228, %v1226
  %1231 = vrot.lane.b32.xlu0 %v1230, 56
  %v1232 = vpop.permute.xlu0 %1231
  %vm1233 = vcmask 523712
  %1234 = vst.msk [vmem:[%s1] sm:$0xff] %vm1233, %v1232
  %s1235 = scalar_lea.vmem %s0, 23
  %v1236 = vld [vmem:[%s1235] sm:$0x1]
  %s1237 = scalar_lea.vmem %s0, 86
  %v1238 = vld [vmem:[%s1237] sm:$0x2]
  %vm1239 = vcmask 1041409
  %v1240 = vsel %vm1239, %v1238, %v1236
  %s1241 = scalar_lea.vmem %s0, 149
  %v1242 = vld [vmem:[%s1241] sm:$0x4]
  %vm1243 = vcmask 1042434
  %v1244 = vsel %vm1243, %v1242, %v1240
  %s1245 = scalar_lea.vmem %s0, 212
  %v1246 = vld [vmem:[%s1245] sm:$0x8]
  %vm1247 = vcmask 1043459
  %v1248 = vsel %vm1247, %v1246, %v1244
  %s1249 = scalar_lea.vmem %s0, 275
  %v1250 = vld [vmem:[%s1249] sm:$0x10]
  %vm1251 = vcmask 1044484
  %v1252 = vsel %vm1251, %v1250, %v1248
  %s1253 = scalar_lea.vmem %s0, 338
  %v1254 = vld [vmem:[%s1253] sm:$0x20]
  %vm1255 = vcmask 1045509
  %v1256 = vsel %vm1255, %v1254, %v1252
  %s1257 = scalar_lea.vmem %s0, 401
  %v1258 = vld [vmem:[%s1257] sm:$0x40]
  %vm1259 = vcmask 1046534
  %v1260 = vsel %vm1259, %v1258, %v1256
  %s1261 = scalar_lea.vmem %s0, 464
  %v1262 = vld [vmem:[%s1261] sm:$0x80]
  %vm1263 = vcmask 1047559
  %v1264 = vsel %vm1263, %v1262, %v1260
  %1265 = vrot.lane.b32.xlu0 %v1264, 56
  %v1266 = vpop.permute.xlu0 %1265
  %vm1267 = vcmask 523712
  %s1268 = scalar_lea.vmem %s1, 8
  %1269 = vst.msk [vmem:[%s1268] sm:$0xff] %vm1267, %v1266
  %s1270 = scalar_lea.vmem %s0, 39
  %v1271 = vld [vmem:[%s1270] sm:$0x1]
  %s1272 = scalar_lea.vmem %s0, 102
  %v1273 = vld [vmem:[%s1272] sm:$0x2]
  %vm1274 = vcmask 1041409
  %v1275 = vsel %vm1274, %v1273, %v1271
  %s1276 = scalar_lea.vmem %s0, 165
  %v1277 = vld [vmem:[%s1276] sm:$0x4]
  %vm1278 = vcmask 1042434
  %v1279 = vsel %vm1278, %v1277, %v1275
  %s1280 = scalar_lea.vmem %s0, 228
  %v1281 = vld [vmem:[%s1280] sm:$0x8]
  %vm1282 = vcmask 1043459
  %v1283 = vsel %vm1282, %v1281, %v1279
  %s1284 = scalar_lea.vmem %s0, 291
  %v1285 = vld [vmem:[%s1284] sm:$0x10]
  %vm1286 = vcmask 1044484
  %v1287 = vsel %vm1286, %v1285, %v1283
  %s1288 = scalar_lea.vmem %s0, 354
  %v1289 = vld [vmem:[%s1288] sm:$0x20]
  %vm1290 = vcmask 1045509
  %v1291 = vsel %vm1290, %v1289, %v1287
  %s1292 = scalar_lea.vmem %s0, 417
  %v1293 = vld [vmem:[%s1292] sm:$0x40]
  %vm1294 = vcmask 1046534
  %v1295 = vsel %vm1294, %v1293, %v1291
  %s1296 = scalar_lea.vmem %s0, 480
  %v1297 = vld [vmem:[%s1296] sm:$0x80]
  %vm1298 = vcmask 1047559
  %v1299 = vsel %vm1298, %v1297, %v1295
  %1300 = vrot.lane.b32.xlu0 %v1299, 56
  %v1301 = vpop.permute.xlu0 %1300
  %vm1302 = vcmask 523712
  %s1303 = scalar_lea.vmem %s1, 16
  %1304 = vst.msk [vmem:[%s1303] sm:$0xff] %vm1302, %v1301
  %s1305 = scalar_lea.vmem %s0, 55
  %v1306 = vld [vmem:[%s1305] sm:$0x1]
  %s1307 = scalar_lea.vmem %s0, 118
  %v1308 = vld [vmem:[%s1307] sm:$0x2]
  %vm1309 = vcmask 1041409
  %v1310 = vsel %vm1309, %v1308, %v1306
  %s1311 = scalar_lea.vmem %s0, 181
  %v1312 = vld [vmem:[%s1311] sm:$0x4]
  %vm1313 = vcmask 1042434
  %v1314 = vsel %vm1313, %v1312, %v1310
  %s1315 = scalar_lea.vmem %s0, 244
  %v1316 = vld [vmem:[%s1315] sm:$0x8]
  %vm1317 = vcmask 1043459
  %v1318 = vsel %vm1317, %v1316, %v1314
  %s1319 = scalar_lea.vmem %s0, 307
  %v1320 = vld [vmem:[%s1319] sm:$0x10]
  %vm1321 = vcmask 1044484
  %v1322 = vsel %vm1321, %v1320, %v1318
  %s1323 = scalar_lea.vmem %s0, 370
  %v1324 = vld [vmem:[%s1323] sm:$0x20]
  %vm1325 = vcmask 1045509
  %v1326 = vsel %vm1325, %v1324, %v1322
  %s1327 = scalar_lea.vmem %s0, 433
  %v1328 = vld [vmem:[%s1327] sm:$0x40]
  %vm1329 = vcmask 1046534
  %v1330 = vsel %vm1329, %v1328, %v1326
  %s1331 = scalar_lea.vmem %s0, 496
  %v1332 = vld [vmem:[%s1331] sm:$0x80]
  %vm1333 = vcmask 1047559
  %v1334 = vsel %vm1333, %v1332, %v1330
  %1335 = vrot.lane.b32.xlu0 %v1334, 56
  %v1336 = vpop.permute.xlu0 %1335
  %vm1337 = vcmask 523712
  %s1338 = scalar_lea.vmem %s1, 24
  %1339 = vst.msk [vmem:[%s1338] sm:$0xff] %vm1337, %v1336
  %s1340 = scalar_lea.vmem %s0, 6
  %v1341 = vld [vmem:[%s1340] sm:$0x1]
  %s1342 = scalar_lea.vmem %s0, 69
  %v1343 = vld [vmem:[%s1342] sm:$0x2]
  %vm1344 = vcmask 1041409
  %v1345 = vsel %vm1344, %v1343, %v1341
  %s1346 = scalar_lea.vmem %s0, 132
  %v1347 = vld [vmem:[%s1346] sm:$0x4]
  %vm1348 = vcmask 1042434
  %v1349 = vsel %vm1348, %v1347, %v1345
  %s1350 = scalar_lea.vmem %s0, 195
  %v1351 = vld [vmem:[%s1350] sm:$0x8]
  %vm1352 = vcmask 1043459
  %v1353 = vsel %vm1352, %v1351, %v1349
  %s1354 = scalar_lea.vmem %s0, 258
  %v1355 = vld [vmem:[%s1354] sm:$0x10]
  %vm1356 = vcmask 1044484
  %v1357 = vsel %vm1356, %v1355, %v1353
  %s1358 = scalar_lea.vmem %s0, 321
  %v1359 = vld [vmem:[%s1358] sm:$0x20]
  %vm1360 = vcmask 1045509
  %v1361 = vsel %vm1360, %v1359, %v1357
  %s1362 = scalar_lea.vmem %s0, 384
  %v1363 = vld [vmem:[%s1362] sm:$0x40]
  %vm1364 = vcmask 1046534
  %v1365 = vsel %vm1364, %v1363, %v1361
  %s1366 = scalar_lea.vmem %s0, 447
  %v1367 = vld [vmem:[%s1366] sm:$0x80]
  %vm1368 = vcmask 1047559
  %v1369 = vsel %vm1368, %v1367, %v1365
  %1370 = vrot.lane.b32.xlu0 %v1369, 48
  %v1371 = vpop.permute.xlu0 %1370
  %vm1372 = vcmask 458112
  %1373 = vst.msk [vmem:[%s1] sm:$0xff] %vm1372, %v1371
  %s1374 = scalar_lea.vmem %s0, 22
  %v1375 = vld [vmem:[%s1374] sm:$0x1]
  %s1376 = scalar_lea.vmem %s0, 85
  %v1377 = vld [vmem:[%s1376] sm:$0x2]
  %vm1378 = vcmask 1041409
  %v1379 = vsel %vm1378, %v1377, %v1375
  %s1380 = scalar_lea.vmem %s0, 148
  %v1381 = vld [vmem:[%s1380] sm:$0x4]
  %vm1382 = vcmask 1042434
  %v1383 = vsel %vm1382, %v1381, %v1379
  %s1384 = scalar_lea.vmem %s0, 211
  %v1385 = vld [vmem:[%s1384] sm:$0x8]
  %vm1386 = vcmask 1043459
  %v1387 = vsel %vm1386, %v1385, %v1383
  %s1388 = scalar_lea.vmem %s0, 274
  %v1389 = vld [vmem:[%s1388] sm:$0x10]
  %vm1390 = vcmask 1044484
  %v1391 = vsel %vm1390, %v1389, %v1387
  %s1392 = scalar_lea.vmem %s0, 337
  %v1393 = vld [vmem:[%s1392] sm:$0x20]
  %vm1394 = vcmask 1045509
  %v1395 = vsel %vm1394, %v1393, %v1391
  %s1396 = scalar_lea.vmem %s0, 400
  %v1397 = vld [vmem:[%s1396] sm:$0x40]
  %vm1398 = vcmask 1046534
  %v1399 = vsel %vm1398, %v1397, %v1395
  %s1400 = scalar_lea.vmem %s0, 463
  %v1401 = vld [vmem:[%s1400] sm:$0x80]
  %vm1402 = vcmask 1047559
  %v1403 = vsel %vm1402, %v1401, %v1399
  %1404 = vrot.lane.b32.xlu0 %v1403, 48
  %v1405 = vpop.permute.xlu0 %1404
  %vm1406 = vcmask 458112
  %s1407 = scalar_lea.vmem %s1, 8
  %1408 = vst.msk [vmem:[%s1407] sm:$0xff] %vm1406, %v1405
  %s1409 = scalar_lea.vmem %s0, 38
  %v1410 = vld [vmem:[%s1409] sm:$0x1]
  %s1411 = scalar_lea.vmem %s0, 101
  %v1412 = vld [vmem:[%s1411] sm:$0x2]
  %vm1413 = vcmask 1041409
  %v1414 = vsel %vm1413, %v1412, %v1410
  %s1415 = scalar_lea.vmem %s0, 164
  %v1416 = vld [vmem:[%s1415] sm:$0x4]
  %vm1417 = vcmask 1042434
  %v1418 = vsel %vm1417, %v1416, %v1414
  %s1419 = scalar_lea.vmem %s0, 227
  %v1420 = vld [vmem:[%s1419] sm:$0x8]
  %vm1421 = vcmask 1043459
  %v1422 = vsel %vm1421, %v1420, %v1418
  %s1423 = scalar_lea.vmem %s0, 290
  %v1424 = vld [vmem:[%s1423] sm:$0x10]
  %vm1425 = vcmask 1044484
  %v1426 = vsel %vm1425, %v1424, %v1422
  %s1427 = scalar_lea.vmem %s0, 353
  %v1428 = vld [vmem:[%s1427] sm:$0x20]
  %vm1429 = vcmask 1045509
  %v1430 = vsel %vm1429, %v1428, %v1426
  %s1431 = scalar_lea.vmem %s0, 416
  %v1432 = vld [vmem:[%s1431] sm:$0x40]
  %vm1433 = vcmask 1046534
  %v1434 = vsel %vm1433, %v1432, %v1430
  %s1435 = scalar_lea.vmem %s0, 479
  %v1436 = vld [vmem:[%s1435] sm:$0x80]
  %vm1437 = vcmask 1047559
  %v1438 = vsel %vm1437, %v1436, %v1434
  %1439 = vrot.lane.b32.xlu0 %v1438, 48
  %v1440 = vpop.permute.xlu0 %1439
  %vm1441 = vcmask 458112
  %s1442 = scalar_lea.vmem %s1, 16
  %1443 = vst.msk [vmem:[%s1442] sm:$0xff] %vm1441, %v1440
  %s1444 = scalar_lea.vmem %s0, 54
  %v1445 = vld [vmem:[%s1444] sm:$0x1]
  %s1446 = scalar_lea.vmem %s0, 117
  %v1447 = vld [vmem:[%s1446] sm:$0x2]
  %vm1448 = vcmask 1041409
  %v1449 = vsel %vm1448, %v1447, %v1445
  %s1450 = scalar_lea.vmem %s0, 180
  %v1451 = vld [vmem:[%s1450] sm:$0x4]
  %vm1452 = vcmask 1042434
  %v1453 = vsel %vm1452, %v1451, %v1449
  %s1454 = scalar_lea.vmem %s0, 243
  %v1455 = vld [vmem:[%s1454] sm:$0x8]
  %vm1456 = vcmask 1043459
  %v1457 = vsel %vm1456, %v1455, %v1453
  %s1458 = scalar_lea.vmem %s0, 306
  %v1459 = vld [vmem:[%s1458] sm:$0x10]
  %vm1460 = vcmask 1044484
  %v1461 = vsel %vm1460, %v1459, %v1457
  %s1462 = scalar_lea.vmem %s0, 369
  %v1463 = vld [vmem:[%s1462] sm:$0x20]
  %vm1464 = vcmask 1045509
  %v1465 = vsel %vm1464, %v1463, %v1461
  %s1466 = scalar_lea.vmem %s0, 432
  %v1467 = vld [vmem:[%s1466] sm:$0x40]
  %vm1468 = vcmask 1046534
  %v1469 = vsel %vm1468, %v1467, %v1465
  %s1470 = scalar_lea.vmem %s0, 495
  %v1471 = vld [vmem:[%s1470] sm:$0x80]
  %vm1472 = vcmask 1047559
  %v1473 = vsel %vm1472, %v1471, %v1469
  %1474 = vrot.lane.b32.xlu0 %v1473, 48
  %v1475 = vpop.permute.xlu0 %1474
  %vm1476 = vcmask 458112
  %s1477 = scalar_lea.vmem %s1, 24
  %1478 = vst.msk [vmem:[%s1477] sm:$0xff] %vm1476, %v1475
  %s1479 = scalar_lea.vmem %s0, 5
  %v1480 = vld [vmem:[%s1479] sm:$0x1]
  %s1481 = scalar_lea.vmem %s0, 68
  %v1482 = vld [vmem:[%s1481] sm:$0x2]
  %vm1483 = vcmask 1041409
  %v1484 = vsel %vm1483, %v1482, %v1480
  %s1485 = scalar_lea.vmem %s0, 131
  %v1486 = vld [vmem:[%s1485] sm:$0x4]
  %vm1487 = vcmask 1042434
  %v1488 = vsel %vm1487, %v1486, %v1484
  %s1489 = scalar_lea.vmem %s0, 194
  %v1490 = vld [vmem:[%s1489] sm:$0x8]
  %vm1491 = vcmask 1043459
  %v1492 = vsel %vm1491, %v1490, %v1488
  %s1493 = scalar_lea.vmem %s0, 257
  %v1494 = vld [vmem:[%s1493] sm:$0x10]
  %vm1495 = vcmask 1044484
  %v1496 = vsel %vm1495, %v1494, %v1492
  %s1497 = scalar_lea.vmem %s0, 320
  %v1498 = vld [vmem:[%s1497] sm:$0x20]
  %vm1499 = vcmask 1045509
  %v1500 = vsel %vm1499, %v1498, %v1496
  %s1501 = scalar_lea.vmem %s0, 383
  %v1502 = vld [vmem:[%s1501] sm:$0x40]
  %vm1503 = vcmask 1046534
  %v1504 = vsel %vm1503, %v1502, %v1500
  %s1505 = scalar_lea.vmem %s0, 446
  %v1506 = vld [vmem:[%s1505] sm:$0x80]
  %vm1507 = vcmask 1047559
  %v1508 = vsel %vm1507, %v1506, %v1504
  %1509 = vrot.lane.b32.xlu0 %v1508, 40
  %v1510 = vpop.permute.xlu0 %1509
  %vm1511 = vcmask 392512
  %1512 = vst.msk [vmem:[%s1] sm:$0xff] %vm1511, %v1510
  %s1513 = scalar_lea.vmem %s0, 21
  %v1514 = vld [vmem:[%s1513] sm:$0x1]
  %s1515 = scalar_lea.vmem %s0, 84
  %v1516 = vld [vmem:[%s1515] sm:$0x2]
  %vm1517 = vcmask 1041409
  %v1518 = vsel %vm1517, %v1516, %v1514
  %s1519 = scalar_lea.vmem %s0, 147
  %v1520 = vld [vmem:[%s1519] sm:$0x4]
  %vm1521 = vcmask 1042434
  %v1522 = vsel %vm1521, %v1520, %v1518
  %s1523 = scalar_lea.vmem %s0, 210
  %v1524 = vld [vmem:[%s1523] sm:$0x8]
  %vm1525 = vcmask 1043459
  %v1526 = vsel %vm1525, %v1524, %v1522
  %s1527 = scalar_lea.vmem %s0, 273
  %v1528 = vld [vmem:[%s1527] sm:$0x10]
  %vm1529 = vcmask 1044484
  %v1530 = vsel %vm1529, %v1528, %v1526
  %s1531 = scalar_lea.vmem %s0, 336
  %v1532 = vld [vmem:[%s1531] sm:$0x20]
  %vm1533 = vcmask 1045509
  %v1534 = vsel %vm1533, %v1532, %v1530
  %s1535 = scalar_lea.vmem %s0, 399
  %v1536 = vld [vmem:[%s1535] sm:$0x40]
  %vm1537 = vcmask 1046534
  %v1538 = vsel %vm1537, %v1536, %v1534
  %s1539 = scalar_lea.vmem %s0, 462
  %v1540 = vld [vmem:[%s1539] sm:$0x80]
  %vm1541 = vcmask 1047559
  %v1542 = vsel %vm1541, %v1540, %v1538
  %1543 = vrot.lane.b32.xlu0 %v1542, 40
  %v1544 = vpop.permute.xlu0 %1543
  %vm1545 = vcmask 392512
  %s1546 = scalar_lea.vmem %s1, 8
  %1547 = vst.msk [vmem:[%s1546] sm:$0xff] %vm1545, %v1544
  %s1548 = scalar_lea.vmem %s0, 37
  %v1549 = vld [vmem:[%s1548] sm:$0x1]
  %s1550 = scalar_lea.vmem %s0, 100
  %v1551 = vld [vmem:[%s1550] sm:$0x2]
  %vm1552 = vcmask 1041409
  %v1553 = vsel %vm1552, %v1551, %v1549
  %s1554 = scalar_lea.vmem %s0, 163
  %v1555 = vld [vmem:[%s1554] sm:$0x4]
  %vm1556 = vcmask 1042434
  %v1557 = vsel %vm1556, %v1555, %v1553
  %s1558 = scalar_lea.vmem %s0, 226
  %v1559 = vld [vmem:[%s1558] sm:$0x8]
  %vm1560 = vcmask 1043459
  %v1561 = vsel %vm1560, %v1559, %v1557
  %s1562 = scalar_lea.vmem %s0, 289
  %v1563 = vld [vmem:[%s1562] sm:$0x10]
  %vm1564 = vcmask 1044484
  %v1565 = vsel %vm1564, %v1563, %v1561
  %s1566 = scalar_lea.vmem %s0, 352
  %v1567 = vld [vmem:[%s1566] sm:$0x20]
  %vm1568 = vcmask 1045509
  %v1569 = vsel %vm1568, %v1567, %v1565
  %s1570 = scalar_lea.vmem %s0, 415
  %v1571 = vld [vmem:[%s1570] sm:$0x40]
  %vm1572 = vcmask 1046534
  %v1573 = vsel %vm1572, %v1571, %v1569
  %s1574 = scalar_lea.vmem %s0, 478
  %v1575 = vld [vmem:[%s1574] sm:$0x80]
  %vm1576 = vcmask 1047559
  %v1577 = vsel %vm1576, %v1575, %v1573
  %1578 = vrot.lane.b32.xlu0 %v1577, 40
  %v1579 = vpop.permute.xlu0 %1578
  %vm1580 = vcmask 392512
  %s1581 = scalar_lea.vmem %s1, 16
  %1582 = vst.msk [vmem:[%s1581] sm:$0xff] %vm1580, %v1579
  %s1583 = scalar_lea.vmem %s0, 53
  %v1584 = vld [vmem:[%s1583] sm:$0x1]
  %s1585 = scalar_lea.vmem %s0, 116
  %v1586 = vld [vmem:[%s1585] sm:$0x2]
  %vm1587 = vcmask 1041409
  %v1588 = vsel %vm1587, %v1586, %v1584
  %s1589 = scalar_lea.vmem %s0, 179
  %v1590 = vld [vmem:[%s1589] sm:$0x4]
  %vm1591 = vcmask 1042434
  %v1592 = vsel %vm1591, %v1590, %v1588
  %s1593 = scalar_lea.vmem %s0, 242
  %v1594 = vld [vmem:[%s1593] sm:$0x8]
  %vm1595 = vcmask 1043459
  %v1596 = vsel %vm1595, %v1594, %v1592
  %s1597 = scalar_lea.vmem %s0, 305
  %v1598 = vld [vmem:[%s1597] sm:$0x10]
  %vm1599 = vcmask 1044484
  %v1600 = vsel %vm1599, %v1598, %v1596
  %s1601 = scalar_lea.vmem %s0, 368
  %v1602 = vld [vmem:[%s1601] sm:$0x20]
  %vm1603 = vcmask 1045509
  %v1604 = vsel %vm1603, %v1602, %v1600
  %s1605 = scalar_lea.vmem %s0, 431
  %v1606 = vld [vmem:[%s1605] sm:$0x40]
  %vm1607 = vcmask 1046534
  %v1608 = vsel %vm1607, %v1606, %v1604
  %s1609 = scalar_lea.vmem %s0, 494
  %v1610 = vld [vmem:[%s1609] sm:$0x80]
  %vm1611 = vcmask 1047559
  %v1612 = vsel %vm1611, %v1610, %v1608
  %1613 = vrot.lane.b32.xlu0 %v1612, 40
  %v1614 = vpop.permute.xlu0 %1613
  %vm1615 = vcmask 392512
  %s1616 = scalar_lea.vmem %s1, 24
  %1617 = vst.msk [vmem:[%s1616] sm:$0xff] %vm1615, %v1614
  %s1618 = scalar_lea.vmem %s0, 4
  %v1619 = vld [vmem:[%s1618] sm:$0x1]
  %s1620 = scalar_lea.vmem %s0, 67
  %v1621 = vld [vmem:[%s1620] sm:$0x2]
  %vm1622 = vcmask 1041409
  %v1623 = vsel %vm1622, %v1621, %v1619
  %s1624 = scalar_lea.vmem %s0, 130
  %v1625 = vld [vmem:[%s1624] sm:$0x4]
  %vm1626 = vcmask 1042434
  %v1627 = vsel %vm1626, %v1625, %v1623
  %s1628 = scalar_lea.vmem %s0, 193
  %v1629 = vld [vmem:[%s1628] sm:$0x8]
  %vm1630 = vcmask 1043459
  %v1631 = vsel %vm1630, %v1629, %v1627
  %s1632 = scalar_lea.vmem %s0, 256
  %v1633 = vld [vmem:[%s1632] sm:$0x10]
  %vm1634 = vcmask 1044484
  %v1635 = vsel %vm1634, %v1633, %v1631
  %s1636 = scalar_lea.vmem %s0, 319
  %v1637 = vld [vmem:[%s1636] sm:$0x20]
  %vm1638 = vcmask 1045509
  %v1639 = vsel %vm1638, %v1637, %v1635
  %s1640 = scalar_lea.vmem %s0, 382
  %v1641 = vld [vmem:[%s1640] sm:$0x40]
  %vm1642 = vcmask 1046534
  %v1643 = vsel %vm1642, %v1641, %v1639
  %s1644 = scalar_lea.vmem %s0, 445
  %v1645 = vld [vmem:[%s1644] sm:$0x80]
  %vm1646 = vcmask 1047559
  %v1647 = vsel %vm1646, %v1645, %v1643
  %1648 = vrot.lane.b32.xlu0 %v1647, 32
  %v1649 = vpop.permute.xlu0 %1648
  %vm1650 = vcmask 326912
  %1651 = vst.msk [vmem:[%s1] sm:$0xff] %vm1650, %v1649
  %s1652 = scalar_lea.vmem %s0, 20
  %v1653 = vld [vmem:[%s1652] sm:$0x1]
  %s1654 = scalar_lea.vmem %s0, 83
  %v1655 = vld [vmem:[%s1654] sm:$0x2]
  %vm1656 = vcmask 1041409
  %v1657 = vsel %vm1656, %v1655, %v1653
  %s1658 = scalar_lea.vmem %s0, 146
  %v1659 = vld [vmem:[%s1658] sm:$0x4]
  %vm1660 = vcmask 1042434
  %v1661 = vsel %vm1660, %v1659, %v1657
  %s1662 = scalar_lea.vmem %s0, 209
  %v1663 = vld [vmem:[%s1662] sm:$0x8]
  %vm1664 = vcmask 1043459
  %v1665 = vsel %vm1664, %v1663, %v1661
  %s1666 = scalar_lea.vmem %s0, 272
  %v1667 = vld [vmem:[%s1666] sm:$0x10]
  %vm1668 = vcmask 1044484
  %v1669 = vsel %vm1668, %v1667, %v1665
  %s1670 = scalar_lea.vmem %s0, 335
  %v1671 = vld [vmem:[%s1670] sm:$0x20]
  %vm1672 = vcmask 1045509
  %v1673 = vsel %vm1672, %v1671, %v1669
  %s1674 = scalar_lea.vmem %s0, 398
  %v1675 = vld [vmem:[%s1674] sm:$0x40]
  %vm1676 = vcmask 1046534
  %v1677 = vsel %vm1676, %v1675, %v1673
  %s1678 = scalar_lea.vmem %s0, 461
  %v1679 = vld [vmem:[%s1678] sm:$0x80]
  %vm1680 = vcmask 1047559
  %v1681 = vsel %vm1680, %v1679, %v1677
  %1682 = vrot.lane.b32.xlu0 %v1681, 32
  %v1683 = vpop.permute.xlu0 %1682
  %vm1684 = vcmask 326912
  %s1685 = scalar_lea.vmem %s1, 8
  %1686 = vst.msk [vmem:[%s1685] sm:$0xff] %vm1684, %v1683
  %s1687 = scalar_lea.vmem %s0, 36
  %v1688 = vld [vmem:[%s1687] sm:$0x1]
  %s1689 = scalar_lea.vmem %s0, 99
  %v1690 = vld [vmem:[%s1689] sm:$0x2]
  %vm1691 = vcmask 1041409
  %v1692 = vsel %vm1691, %v1690, %v1688
  %s1693 = scalar_lea.vmem %s0, 162
  %v1694 = vld [vmem:[%s1693] sm:$0x4]
  %vm1695 = vcmask 1042434
  %v1696 = vsel %vm1695, %v1694, %v1692
  %s1697 = scalar_lea.vmem %s0, 225
  %v1698 = vld [vmem:[%s1697] sm:$0x8]
  %vm1699 = vcmask 1043459
  %v1700 = vsel %vm1699, %v1698, %v1696
  %s1701 = scalar_lea.vmem %s0, 288
  %v1702 = vld [vmem:[%s1701] sm:$0x10]
  %vm1703 = vcmask 1044484
  %v1704 = vsel %vm1703, %v1702, %v1700
  %s1705 = scalar_lea.vmem %s0, 351
  %v1706 = vld [vmem:[%s1705] sm:$0x20]
  %vm1707 = vcmask 1045509
  %v1708 = vsel %vm1707, %v1706, %v1704
  %s1709 = scalar_lea.vmem %s0, 414
  %v1710 = vld [vmem:[%s1709] sm:$0x40]
  %vm1711 = vcmask 1046534
  %v1712 = vsel %vm1711, %v1710, %v1708
  %s1713 = scalar_lea.vmem %s0, 477
  %v1714 = vld [vmem:[%s1713] sm:$0x80]
  %vm1715 = vcmask 1047559
  %v1716 = vsel %vm1715, %v1714, %v1712
  %1717 = vrot.lane.b32.xlu0 %v1716, 32
  %v1718 = vpop.permute.xlu0 %1717
  %vm1719 = vcmask 326912
  %s1720 = scalar_lea.vmem %s1, 16
  %1721 = vst.msk [vmem:[%s1720] sm:$0xff] %vm1719, %v1718
  %s1722 = scalar_lea.vmem %s0, 52
  %v1723 = vld [vmem:[%s1722] sm:$0x1]
  %s1724 = scalar_lea.vmem %s0, 115
  %v1725 = vld [vmem:[%s1724] sm:$0x2]
  %vm1726 = vcmask 1041409
  %v1727 = vsel %vm1726, %v1725, %v1723
  %s1728 = scalar_lea.vmem %s0, 178
  %v1729 = vld [vmem:[%s1728] sm:$0x4]
  %vm1730 = vcmask 1042434
  %v1731 = vsel %vm1730, %v1729, %v1727
  %s1732 = scalar_lea.vmem %s0, 241
  %v1733 = vld [vmem:[%s1732] sm:$0x8]
  %vm1734 = vcmask 1043459
  %v1735 = vsel %vm1734, %v1733, %v1731
  %s1736 = scalar_lea.vmem %s0, 304
  %v1737 = vld [vmem:[%s1736] sm:$0x10]
  %vm1738 = vcmask 1044484
  %v1739 = vsel %vm1738, %v1737, %v1735
  %s1740 = scalar_lea.vmem %s0, 367
  %v1741 = vld [vmem:[%s1740] sm:$0x20]
  %vm1742 = vcmask 1045509
  %v1743 = vsel %vm1742, %v1741, %v1739
  %s1744 = scalar_lea.vmem %s0, 430
  %v1745 = vld [vmem:[%s1744] sm:$0x40]
  %vm1746 = vcmask 1046534
  %v1747 = vsel %vm1746, %v1745, %v1743
  %s1748 = scalar_lea.vmem %s0, 493
  %v1749 = vld [vmem:[%s1748] sm:$0x80]
  %vm1750 = vcmask 1047559
  %v1751 = vsel %vm1750, %v1749, %v1747
  %1752 = vrot.lane.b32.xlu0 %v1751, 32
  %v1753 = vpop.permute.xlu0 %1752
  %vm1754 = vcmask 326912
  %s1755 = scalar_lea.vmem %s1, 24
  %1756 = vst.msk [vmem:[%s1755] sm:$0xff] %vm1754, %v1753
  %s1757 = scalar_lea.vmem %s0, 3
  %v1758 = vld [vmem:[%s1757] sm:$0x1]
  %s1759 = scalar_lea.vmem %s0, 66
  %v1760 = vld [vmem:[%s1759] sm:$0x2]
  %vm1761 = vcmask 1041409
  %v1762 = vsel %vm1761, %v1760, %v1758
  %s1763 = scalar_lea.vmem %s0, 129
  %v1764 = vld [vmem:[%s1763] sm:$0x4]
  %vm1765 = vcmask 1042434
  %v1766 = vsel %vm1765, %v1764, %v1762
  %s1767 = scalar_lea.vmem %s0, 192
  %v1768 = vld [vmem:[%s1767] sm:$0x8]
  %vm1769 = vcmask 1043459
  %v1770 = vsel %vm1769, %v1768, %v1766
  %s1771 = scalar_lea.vmem %s0, 255
  %v1772 = vld [vmem:[%s1771] sm:$0x10]
  %vm1773 = vcmask 1044484
  %v1774 = vsel %vm1773, %v1772, %v1770
  %s1775 = scalar_lea.vmem %s0, 318
  %v1776 = vld [vmem:[%s1775] sm:$0x20]
  %vm1777 = vcmask 1045509
  %v1778 = vsel %vm1777, %v1776, %v1774
  %s1779 = scalar_lea.vmem %s0, 381
  %v1780 = vld [vmem:[%s1779] sm:$0x40]
  %vm1781 = vcmask 1046534
  %v1782 = vsel %vm1781, %v1780, %v1778
  %s1783 = scalar_lea.vmem %s0, 444
  %v1784 = vld [vmem:[%s1783] sm:$0x80]
  %vm1785 = vcmask 1047559
  %v1786 = vsel %vm1785, %v1784, %v1782
  %1787 = vrot.lane.b32.xlu0 %v1786, 24
  %v1788 = vpop.permute.xlu0 %1787
  %vm1789 = vcmask 261312
  %1790 = vst.msk [vmem:[%s1] sm:$0xff] %vm1789, %v1788
  %s1791 = scalar_lea.vmem %s0, 19
  %v1792 = vld [vmem:[%s1791] sm:$0x1]
  %s1793 = scalar_lea.vmem %s0, 82
  %v1794 = vld [vmem:[%s1793] sm:$0x2]
  %vm1795 = vcmask 1041409
  %v1796 = vsel %vm1795, %v1794, %v1792
  %s1797 = scalar_lea.vmem %s0, 145
  %v1798 = vld [vmem:[%s1797] sm:$0x4]
  %vm1799 = vcmask 1042434
  %v1800 = vsel %vm1799, %v1798, %v1796
  %s1801 = scalar_lea.vmem %s0, 208
  %v1802 = vld [vmem:[%s1801] sm:$0x8]
  %vm1803 = vcmask 1043459
  %v1804 = vsel %vm1803, %v1802, %v1800
  %s1805 = scalar_lea.vmem %s0, 271
  %v1806 = vld [vmem:[%s1805] sm:$0x10]
  %vm1807 = vcmask 1044484
  %v1808 = vsel %vm1807, %v1806, %v1804
  %s1809 = scalar_lea.vmem %s0, 334
  %v1810 = vld [vmem:[%s1809] sm:$0x20]
  %vm1811 = vcmask 1045509
  %v1812 = vsel %vm1811, %v1810, %v1808
  %s1813 = scalar_lea.vmem %s0, 397
  %v1814 = vld [vmem:[%s1813] sm:$0x40]
  %vm1815 = vcmask 1046534
  %v1816 = vsel %vm1815, %v1814, %v1812
  %s1817 = scalar_lea.vmem %s0, 460
  %v1818 = vld [vmem:[%s1817] sm:$0x80]
  %vm1819 = vcmask 1047559
  %v1820 = vsel %vm1819, %v1818, %v1816
  %1821 = vrot.lane.b32.xlu0 %v1820, 24
  %v1822 = vpop.permute.xlu0 %1821
  %vm1823 = vcmask 261312
  %s1824 = scalar_lea.vmem %s1, 8
  %1825 = vst.msk [vmem:[%s1824] sm:$0xff] %vm1823, %v1822
  %s1826 = scalar_lea.vmem %s0, 35
  %v1827 = vld [vmem:[%s1826] sm:$0x1]
  %s1828 = scalar_lea.vmem %s0, 98
  %v1829 = vld [vmem:[%s1828] sm:$0x2]
  %vm1830 = vcmask 1041409
  %v1831 = vsel %vm1830, %v1829, %v1827
  %s1832 = scalar_lea.vmem %s0, 161
  %v1833 = vld [vmem:[%s1832] sm:$0x4]
  %vm1834 = vcmask 1042434
  %v1835 = vsel %vm1834, %v1833, %v1831
  %s1836 = scalar_lea.vmem %s0, 224
  %v1837 = vld [vmem:[%s1836] sm:$0x8]
  %vm1838 = vcmask 1043459
  %v1839 = vsel %vm1838, %v1837, %v1835
  %s1840 = scalar_lea.vmem %s0, 287
  %v1841 = vld [vmem:[%s1840] sm:$0x10]
  %vm1842 = vcmask 1044484
  %v1843 = vsel %vm1842, %v1841, %v1839
  %s1844 = scalar_lea.vmem %s0, 350
  %v1845 = vld [vmem:[%s1844] sm:$0x20]
  %vm1846 = vcmask 1045509
  %v1847 = vsel %vm1846, %v1845, %v1843
  %s1848 = scalar_lea.vmem %s0, 413
  %v1849 = vld [vmem:[%s1848] sm:$0x40]
  %vm1850 = vcmask 1046534
  %v1851 = vsel %vm1850, %v1849, %v1847
  %s1852 = scalar_lea.vmem %s0, 476
  %v1853 = vld [vmem:[%s1852] sm:$0x80]
  %vm1854 = vcmask 1047559
  %v1855 = vsel %vm1854, %v1853, %v1851
  %1856 = vrot.lane.b32.xlu0 %v1855, 24
  %v1857 = vpop.permute.xlu0 %1856
  %vm1858 = vcmask 261312
  %s1859 = scalar_lea.vmem %s1, 16
  %1860 = vst.msk [vmem:[%s1859] sm:$0xff] %vm1858, %v1857
  %s1861 = scalar_lea.vmem %s0, 51
  %v1862 = vld [vmem:[%s1861] sm:$0x1]
  %s1863 = scalar_lea.vmem %s0, 114
  %v1864 = vld [vmem:[%s1863] sm:$0x2]
  %vm1865 = vcmask 1041409
  %v1866 = vsel %vm1865, %v1864, %v1862
  %s1867 = scalar_lea.vmem %s0, 177
  %v1868 = vld [vmem:[%s1867] sm:$0x4]
  %vm1869 = vcmask 1042434
  %v1870 = vsel %vm1869, %v1868, %v1866
  %s1871 = scalar_lea.vmem %s0, 240
  %v1872 = vld [vmem:[%s1871] sm:$0x8]
  %vm1873 = vcmask 1043459
  %v1874 = vsel %vm1873, %v1872, %v1870
  %s1875 = scalar_lea.vmem %s0, 303
  %v1876 = vld [vmem:[%s1875] sm:$0x10]
  %vm1877 = vcmask 1044484
  %v1878 = vsel %vm1877, %v1876, %v1874
  %s1879 = scalar_lea.vmem %s0, 366
  %v1880 = vld [vmem:[%s1879] sm:$0x20]
  %vm1881 = vcmask 1045509
  %v1882 = vsel %vm1881, %v1880, %v1878
  %s1883 = scalar_lea.vmem %s0, 429
  %v1884 = vld [vmem:[%s1883] sm:$0x40]
  %vm1885 = vcmask 1046534
  %v1886 = vsel %vm1885, %v1884, %v1882
  %s1887 = scalar_lea.vmem %s0, 492
  %v1888 = vld [vmem:[%s1887] sm:$0x80]
  %vm1889 = vcmask 1047559
  %v1890 = vsel %vm1889, %v1888, %v1886
  %1891 = vrot.lane.b32.xlu0 %v1890, 24
  %v1892 = vpop.permute.xlu0 %1891
  %vm1893 = vcmask 261312
  %s1894 = scalar_lea.vmem %s1, 24
  %1895 = vst.msk [vmem:[%s1894] sm:$0xff] %vm1893, %v1892
  %s1896 = scalar_lea.vmem %s0, 2
  %v1897 = vld [vmem:[%s1896] sm:$0x1]
  %s1898 = scalar_lea.vmem %s0, 65
  %v1899 = vld [vmem:[%s1898] sm:$0x2]
  %vm1900 = vcmask 1041409
  %v1901 = vsel %vm1900, %v1899, %v1897
  %s1902 = scalar_lea.vmem %s0, 128
  %v1903 = vld [vmem:[%s1902] sm:$0x4]
  %vm1904 = vcmask 1042434
  %v1905 = vsel %vm1904, %v1903, %v1901
  %s1906 = scalar_lea.vmem %s0, 191
  %v1907 = vld [vmem:[%s1906] sm:$0x8]
  %vm1908 = vcmask 1043459
  %v1909 = vsel %vm1908, %v1907, %v1905
  %s1910 = scalar_lea.vmem %s0, 254
  %v1911 = vld [vmem:[%s1910] sm:$0x10]
  %vm1912 = vcmask 1044484
  %v1913 = vsel %vm1912, %v1911, %v1909
  %s1914 = scalar_lea.vmem %s0, 317
  %v1915 = vld [vmem:[%s1914] sm:$0x20]
  %vm1916 = vcmask 1045509
  %v1917 = vsel %vm1916, %v1915, %v1913
  %s1918 = scalar_lea.vmem %s0, 380
  %v1919 = vld [vmem:[%s1918] sm:$0x40]
  %vm1920 = vcmask 1046534
  %v1921 = vsel %vm1920, %v1919, %v1917
  %s1922 = scalar_lea.vmem %s0, 443
  %v1923 = vld [vmem:[%s1922] sm:$0x80]
  %vm1924 = vcmask 1047559
  %v1925 = vsel %vm1924, %v1923, %v1921
  %1926 = vrot.lane.b32.xlu0 %v1925, 16
  %v1927 = vpop.permute.xlu0 %1926
  %vm1928 = vcmask 195712
  %1929 = vst.msk [vmem:[%s1] sm:$0xff] %vm1928, %v1927
  %s1930 = scalar_lea.vmem %s0, 18
  %v1931 = vld [vmem:[%s1930] sm:$0x1]
  %s1932 = scalar_lea.vmem %s0, 81
  %v1933 = vld [vmem:[%s1932] sm:$0x2]
  %vm1934 = vcmask 1041409
  %v1935 = vsel %vm1934, %v1933, %v1931
  %s1936 = scalar_lea.vmem %s0, 144
  %v1937 = vld [vmem:[%s1936] sm:$0x4]
  %vm1938 = vcmask 1042434
  %v1939 = vsel %vm1938, %v1937, %v1935
  %s1940 = scalar_lea.vmem %s0, 207
  %v1941 = vld [vmem:[%s1940] sm:$0x8]
  %vm1942 = vcmask 1043459
  %v1943 = vsel %vm1942, %v1941, %v1939
  %s1944 = scalar_lea.vmem %s0, 270
  %v1945 = vld [vmem:[%s1944] sm:$0x10]
  %vm1946 = vcmask 1044484
  %v1947 = vsel %vm1946, %v1945, %v1943
  %s1948 = scalar_lea.vmem %s0, 333
  %v1949 = vld [vmem:[%s1948] sm:$0x20]
  %vm1950 = vcmask 1045509
  %v1951 = vsel %vm1950, %v1949, %v1947
  %s1952 = scalar_lea.vmem %s0, 396
  %v1953 = vld [vmem:[%s1952] sm:$0x40]
  %vm1954 = vcmask 1046534
  %v1955 = vsel %vm1954, %v1953, %v1951
  %s1956 = scalar_lea.vmem %s0, 459
  %v1957 = vld [vmem:[%s1956] sm:$0x80]
  %vm1958 = vcmask 1047559
  %v1959 = vsel %vm1958, %v1957, %v1955
  %1960 = vrot.lane.b32.xlu0 %v1959, 16
  %v1961 = vpop.permute.xlu0 %1960
  %vm1962 = vcmask 195712
  %s1963 = scalar_lea.vmem %s1, 8
  %1964 = vst.msk [vmem:[%s1963] sm:$0xff] %vm1962, %v1961
  %s1965 = scalar_lea.vmem %s0, 34
  %v1966 = vld [vmem:[%s1965] sm:$0x1]
  %s1967 = scalar_lea.vmem %s0, 97
  %v1968 = vld [vmem:[%s1967] sm:$0x2]
  %vm1969 = vcmask 1041409
  %v1970 = vsel %vm1969, %v1968, %v1966
  %s1971 = scalar_lea.vmem %s0, 160
  %v1972 = vld [vmem:[%s1971] sm:$0x4]
  %vm1973 = vcmask 1042434
  %v1974 = vsel %vm1973, %v1972, %v1970
  %s1975 = scalar_lea.vmem %s0, 223
  %v1976 = vld [vmem:[%s1975] sm:$0x8]
  %vm1977 = vcmask 1043459
  %v1978 = vsel %vm1977, %v1976, %v1974
  %s1979 = scalar_lea.vmem %s0, 286
  %v1980 = vld [vmem:[%s1979] sm:$0x10]
  %vm1981 = vcmask 1044484
  %v1982 = vsel %vm1981, %v1980, %v1978
  %s1983 = scalar_lea.vmem %s0, 349
  %v1984 = vld [vmem:[%s1983] sm:$0x20]
  %vm1985 = vcmask 1045509
  %v1986 = vsel %vm1985, %v1984, %v1982
  %s1987 = scalar_lea.vmem %s0, 412
  %v1988 = vld [vmem:[%s1987] sm:$0x40]
  %vm1989 = vcmask 1046534
  %v1990 = vsel %vm1989, %v1988, %v1986
  %s1991 = scalar_lea.vmem %s0, 475
  %v1992 = vld [vmem:[%s1991] sm:$0x80]
  %vm1993 = vcmask 1047559
  %v1994 = vsel %vm1993, %v1992, %v1990
  %1995 = vrot.lane.b32.xlu0 %v1994, 16
  %v1996 = vpop.permute.xlu0 %1995
  %vm1997 = vcmask 195712
  %s1998 = scalar_lea.vmem %s1, 16
  %1999 = vst.msk [vmem:[%s1998] sm:$0xff] %vm1997, %v1996
  %s2000 = scalar_lea.vmem %s0, 50
  %v2001 = vld [vmem:[%s2000] sm:$0x1]
  %s2002 = scalar_lea.vmem %s0, 113
  %v2003 = vld [vmem:[%s2002] sm:$0x2]
  %vm2004 = vcmask 1041409
  %v2005 = vsel %vm2004, %v2003, %v2001
  %s2006 = scalar_lea.vmem %s0, 176
  %v2007 = vld [vmem:[%s2006] sm:$0x4]
  %vm2008 = vcmask 1042434
  %v2009 = vsel %vm2008, %v2007, %v2005
  %s2010 = scalar_lea.vmem %s0, 239
  %v2011 = vld [vmem:[%s2010] sm:$0x8]
  %vm2012 = vcmask 1043459
  %v2013 = vsel %vm2012, %v2011, %v2009
  %s2014 = scalar_lea.vmem %s0, 302
  %v2015 = vld [vmem:[%s2014] sm:$0x10]
  %vm2016 = vcmask 1044484
  %v2017 = vsel %vm2016, %v2015, %v2013
  %s2018 = scalar_lea.vmem %s0, 365
  %v2019 = vld [vmem:[%s2018] sm:$0x20]
  %vm2020 = vcmask 1045509
  %v2021 = vsel %vm2020, %v2019, %v2017
  %s2022 = scalar_lea.vmem %s0, 428
  %v2023 = vld [vmem:[%s2022] sm:$0x40]
  %vm2024 = vcmask 1046534
  %v2025 = vsel %vm2024, %v2023, %v2021
  %s2026 = scalar_lea.vmem %s0, 491
  %v2027 = vld [vmem:[%s2026] sm:$0x80]
  %vm2028 = vcmask 1047559
  %v2029 = vsel %vm2028, %v2027, %v2025
  %2030 = vrot.lane.b32.xlu0 %v2029, 16
  %v2031 = vpop.permute.xlu0 %2030
  %vm2032 = vcmask 195712
  %s2033 = scalar_lea.vmem %s1, 24
  %2034 = vst.msk [vmem:[%s2033] sm:$0xff] %vm2032, %v2031
  %s2035 = scalar_lea.vmem %s0, 1
  %v2036 = vld [vmem:[%s2035] sm:$0x1]
  %s2037 = scalar_lea.vmem %s0, 64
  %v2038 = vld [vmem:[%s2037] sm:$0x2]
  %vm2039 = vcmask 1041409
  %v2040 = vsel %vm2039, %v2038, %v2036
  %s2041 = scalar_lea.vmem %s0, 127
  %v2042 = vld [vmem:[%s2041] sm:$0x4]
  %vm2043 = vcmask 1042434
  %v2044 = vsel %vm2043, %v2042, %v2040
  %s2045 = scalar_lea.vmem %s0, 190
  %v2046 = vld [vmem:[%s2045] sm:$0x8]
  %vm2047 = vcmask 1043459
  %v2048 = vsel %vm2047, %v2046, %v2044
  %s2049 = scalar_lea.vmem %s0, 253
  %v2050 = vld [vmem:[%s2049] sm:$0x10]
  %vm2051 = vcmask 1044484
  %v2052 = vsel %vm2051, %v2050, %v2048
  %s2053 = scalar_lea.vmem %s0, 316
  %v2054 = vld [vmem:[%s2053] sm:$0x20]
  %vm2055 = vcmask 1045509
  %v2056 = vsel %vm2055, %v2054, %v2052
  %s2057 = scalar_lea.vmem %s0, 379
  %v2058 = vld [vmem:[%s2057] sm:$0x40]
  %vm2059 = vcmask 1046534
  %v2060 = vsel %vm2059, %v2058, %v2056
  %s2061 = scalar_lea.vmem %s0, 442
  %v2062 = vld [vmem:[%s2061] sm:$0x80]
  %vm2063 = vcmask 1047559
  %v2064 = vsel %vm2063, %v2062, %v2060
  %2065 = vrot.lane.b32.xlu0 %v2064, 8
  %v2066 = vpop.permute.xlu0 %2065
  %vm2067 = vcmask 130112
  %2068 = vst.msk [vmem:[%s1] sm:$0xff] %vm2067, %v2066
  %s2069 = scalar_lea.vmem %s0, 17
  %v2070 = vld [vmem:[%s2069] sm:$0x1]
  %s2071 = scalar_lea.vmem %s0, 80
  %v2072 = vld [vmem:[%s2071] sm:$0x2]
  %vm2073 = vcmask 1041409
  %v2074 = vsel %vm2073, %v2072, %v2070
  %s2075 = scalar_lea.vmem %s0, 143
  %v2076 = vld [vmem:[%s2075] sm:$0x4]
  %vm2077 = vcmask 1042434
  %v2078 = vsel %vm2077, %v2076, %v2074
  %s2079 = scalar_lea.vmem %s0, 206
  %v2080 = vld [vmem:[%s2079] sm:$0x8]
  %vm2081 = vcmask 1043459
  %v2082 = vsel %vm2081, %v2080, %v2078
  %s2083 = scalar_lea.vmem %s0, 269
  %v2084 = vld [vmem:[%s2083] sm:$0x10]
  %vm2085 = vcmask 1044484
  %v2086 = vsel %vm2085, %v2084, %v2082
  %s2087 = scalar_lea.vmem %s0, 332
  %v2088 = vld [vmem:[%s2087] sm:$0x20]
  %vm2089 = vcmask 1045509
  %v2090 = vsel %vm2089, %v2088, %v2086
  %s2091 = scalar_lea.vmem %s0, 395
  %v2092 = vld [vmem:[%s2091] sm:$0x40]
  %vm2093 = vcmask 1046534
  %v2094 = vsel %vm2093, %v2092, %v2090
  %s2095 = scalar_lea.vmem %s0, 458
  %v2096 = vld [vmem:[%s2095] sm:$0x80]
  %vm2097 = vcmask 1047559
  %v2098 = vsel %vm2097, %v2096, %v2094
  %2099 = vrot.lane.b32.xlu0 %v2098, 8
  %v2100 = vpop.permute.xlu0 %2099
  %vm2101 = vcmask 130112
  %s2102 = scalar_lea.vmem %s1, 8
  %2103 = vst.msk [vmem:[%s2102] sm:$0xff] %vm2101, %v2100
  %s2104 = scalar_lea.vmem %s0, 33
  %v2105 = vld [vmem:[%s2104] sm:$0x1]
  %s2106 = scalar_lea.vmem %s0, 96
  %v2107 = vld [vmem:[%s2106] sm:$0x2]
  %vm2108 = vcmask 1041409
  %v2109 = vsel %vm2108, %v2107, %v2105
  %s2110 = scalar_lea.vmem %s0, 159
  %v2111 = vld [vmem:[%s2110] sm:$0x4]
  %vm2112 = vcmask 1042434
  %v2113 = vsel %vm2112, %v2111, %v2109
  %s2114 = scalar_lea.vmem %s0, 222
  %v2115 = vld [vmem:[%s2114] sm:$0x8]
  %vm2116 = vcmask 1043459
  %v2117 = vsel %vm2116, %v2115, %v2113
  %s2118 = scalar_lea.vmem %s0, 285
  %v2119 = vld [vmem:[%s2118] sm:$0x10]
  %vm2120 = vcmask 1044484
  %v2121 = vsel %vm2120, %v2119, %v2117
  %s2122 = scalar_lea.vmem %s0, 348
  %v2123 = vld [vmem:[%s2122] sm:$0x20]
  %vm2124 = vcmask 1045509
  %v2125 = vsel %vm2124, %v2123, %v2121
  %s2126 = scalar_lea.vmem %s0, 411
  %v2127 = vld [vmem:[%s2126] sm:$0x40]
  %vm2128 = vcmask 1046534
  %v2129 = vsel %vm2128, %v2127, %v2125
  %s2130 = scalar_lea.vmem %s0, 474
  %v2131 = vld [vmem:[%s2130] sm:$0x80]
  %vm2132 = vcmask 1047559
  %v2133 = vsel %vm2132, %v2131, %v2129
  %2134 = vrot.lane.b32.xlu0 %v2133, 8
  %v2135 = vpop.permute.xlu0 %2134
  %vm2136 = vcmask 130112
  %s2137 = scalar_lea.vmem %s1, 16
  %2138 = vst.msk [vmem:[%s2137] sm:$0xff] %vm2136, %v2135
  %s2139 = scalar_lea.vmem %s0, 49
  %v2140 = vld [vmem:[%s2139] sm:$0x1]
  %s2141 = scalar_lea.vmem %s0, 112
  %v2142 = vld [vmem:[%s2141] sm:$0x2]
  %vm2143 = vcmask 1041409
  %v2144 = vsel %vm2143, %v2142, %v2140
  %s2145 = scalar_lea.vmem %s0, 175
  %v2146 = vld [vmem:[%s2145] sm:$0x4]
  %vm2147 = vcmask 1042434
  %v2148 = vsel %vm2147, %v2146, %v2144
  %s2149 = scalar_lea.vmem %s0, 238
  %v2150 = vld [vmem:[%s2149] sm:$0x8]
  %vm2151 = vcmask 1043459
  %v2152 = vsel %vm2151, %v2150, %v2148
  %s2153 = scalar_lea.vmem %s0, 301
  %v2154 = vld [vmem:[%s2153] sm:$0x10]
  %vm2155 = vcmask 1044484
  %v2156 = vsel %vm2155, %v2154, %v2152
  %s2157 = scalar_lea.vmem %s0, 364
  %v2158 = vld [vmem:[%s2157] sm:$0x20]
  %vm2159 = vcmask 1045509
  %v2160 = vsel %vm2159, %v2158, %v2156
  %s2161 = scalar_lea.vmem %s0, 427
  %v2162 = vld [vmem:[%s2161] sm:$0x40]
  %vm2163 = vcmask 1046534
  %v2164 = vsel %vm2163, %v2162, %v2160
  %s2165 = scalar_lea.vmem %s0, 490
  %v2166 = vld [vmem:[%s2165] sm:$0x80]
  %vm2167 = vcmask 1047559
  %v2168 = vsel %vm2167, %v2166, %v2164
  %2169 = vrot.lane.b32.xlu0 %v2168, 8
  %v2170 = vpop.permute.xlu0 %2169
  %vm2171 = vcmask 130112
  %s2172 = scalar_lea.vmem %s1, 24
  %2173 = vst.msk [vmem:[%s2172] sm:$0xff] %vm2171, %v2170

// kernel: tile.19
$region0: #{tile.19}
  %s0 = inlined_call_operand.vmem [shape: f32[8,16,8], index: 0, kind: input, shape index: {}]
  %s1 = inlined_call_operand.vmem [shape: f32[8,128], index: 1, kind: output, shape index: {}]
  %s2 = smov 3
  %v3 = vld [vmem:[%s0] ss:$16 sm:%s2]
  %s4 = smov 12
  %v5 = vld [vmem:[%s0] ss:$16 sm:%s4]
  %vm6 = vcmask 1043458
  %v7 = vsel %vm6, %v5, %v3
  %s8 = smov 48
  %v9 = vld [vmem:[%s0] ss:$16 sm:%s8]
  %vm10 = vcmask 1045508
  %v11 = vsel %vm10, %v9, %v7
  %s12 = smov 192
  %v13 = vld [vmem:[%s0] ss:$16 sm:%s12]
  %vm14 = vcmask 1047558
  %v15 = vsel %vm14, %v13, %v11
  %vm16 = vcmask 64512
  %17 = vst.msk [vmem:[%s1] sm:$0xff] %vm16, %v15
  %s18 = scalar_lea.vmem %s0, 15
  %s19 = smov 3
  %v20 = vld [vmem:[%s18] ss:$16 sm:%s19]
  %s21 = scalar_lea.vmem %s0, 15
  %s22 = smov 12
  %v23 = vld [vmem:[%s21] ss:$16 sm:%s22]
  %vm24 = vcmask 1043458
  %v25 = vsel %vm24, %v23, %v20
  %s26 = scalar_lea.vmem %s0, 15
  %s27 = smov 48
  %v28 = vld [vmem:[%s26] ss:$16 sm:%s27]
  %vm29 = vcmask 1045508
  %v30 = vsel %vm29, %v28, %v25
  %s31 = scalar_lea.vmem %s0, 15
  %s32 = smov 192
  %v33 = vld [vmem:[%s31] ss:$16 sm:%s32]
  %vm34 = vcmask 1047558
  %v35 = vsel %vm34, %v33, %v30
  %36 = vrot.lane.b32.xlu0 %v35, 120
  %v37 = vpop.permute.xlu0 %36
  %vm38 = vcmask 1048512
  %39 = vst.msk [vmem:[%s1] sm:$0xff] %vm38, %v37
  %s40 = scalar_lea.vmem %s0, 14
  %s41 = smov 3
  %v42 = vld [vmem:[%s40] ss:$16 sm:%s41]
  %s43 = scalar_lea.vmem %s0, 14
  %s44 = smov 12
  %v45 = vld [vmem:[%s43] ss:$16 sm:%s44]
  %vm46 = vcmask 1043458
  %v47 = vsel %vm46, %v45, %v42
  %s48 = scalar_lea.vmem %s0, 14
  %s49 = smov 48
  %v50 = vld [vmem:[%s48] ss:$16 sm:%s49]
  %vm51 = vcmask 1045508
  %v52 = vsel %vm51, %v50, %v47
  %s53 = scalar_lea.vmem %s0, 14
  %s54 = smov 192
  %v55 = vld [vmem:[%s53] ss:$16 sm:%s54]
  %vm56 = vcmask 1047558
  %v57 = vsel %vm56, %v55, %v52
  %58 = vrot.lane.b32.xlu0 %v57, 112
  %v59 = vpop.permute.xlu0 %58
  %vm60 = vcmask 982912
  %61 = vst.msk [vmem:[%s1] sm:$0xff] %vm60, %v59
  %s62 = scalar_lea.vmem %s0, 13
  %s63 = smov 3
  %v64 = vld [vmem:[%s62] ss:$16 sm:%s63]
  %s65 = scalar_lea.vmem %s0, 13
  %s66 = smov 12
  %v67 = vld [vmem:[%s65] ss:$16 sm:%s66]
  %vm68 = vcmask 1043458
  %v69 = vsel %vm68, %v67, %v64
  %s70 = scalar_lea.vmem %s0, 13
  %s71 = smov 48
  %v72 = vld [vmem:[%s70] ss:$16 sm:%s71]
  %vm73 = vcmask 1045508
  %v74 = vsel %vm73, %v72, %v69
  %s75 = scalar_lea.vmem %s0, 13
  %s76 = smov 192
  %v77 = vld [vmem:[%s75] ss:$16 sm:%s76]
  %vm78 = vcmask 1047558
  %v79 = vsel %vm78, %v77, %v74
  %80 = vrot.lane.b32.xlu0 %v79, 104
  %v81 = vpop.permute.xlu0 %80
  %vm82 = vcmask 917312
  %83 = vst.msk [vmem:[%s1] sm:$0xff] %vm82, %v81
  %s84 = scalar_lea.vmem %s0, 12
  %s85 = smov 3
  %v86 = vld [vmem:[%s84] ss:$16 sm:%s85]
  %s87 = scalar_lea.vmem %s0, 12
  %s88 = smov 12
  %v89 = vld [vmem:[%s87] ss:$16 sm:%s88]
  %vm90 = vcmask 1043458
  %v91 = vsel %vm90, %v89, %v86
  %s92 = scalar_lea.vmem %s0, 12
  %s93 = smov 48
  %v94 = vld [vmem:[%s92] ss:$16 sm:%s93]
  %vm95 = vcmask 1045508
  %v96 = vsel %vm95, %v94, %v91
  %s97 = scalar_lea.vmem %s0, 12
  %s98 = smov 192
  %v99 = vld [vmem:[%s97] ss:$16 sm:%s98]
  %vm100 = vcmask 1047558
  %v101 = vsel %vm100, %v99, %v96
  %102 = vrot.lane.b32.xlu0 %v101, 96
  %v103 = vpop.permute.xlu0 %102
  %vm104 = vcmask 851712
  %105 = vst.msk [vmem:[%s1] sm:$0xff] %vm104, %v103
  %s106 = scalar_lea.vmem %s0, 11
  %s107 = smov 3
  %v108 = vld [vmem:[%s106] ss:$16 sm:%s107]
  %s109 = scalar_lea.vmem %s0, 11
  %s110 = smov 12
  %v111 = vld [vmem:[%s109] ss:$16 sm:%s110]
  %vm112 = vcmask 1043458
  %v113 = vsel %vm112, %v111, %v108
  %s114 = scalar_lea.vmem %s0, 11
  %s115 = smov 48
  %v116 = vld [vmem:[%s114] ss:$16 sm:%s115]
  %vm117 = vcmask 1045508
  %v118 = vsel %vm117, %v116, %v113
  %s119 = scalar_lea.vmem %s0, 11
  %s120 = smov 192
  %v121 = vld [vmem:[%s119] ss:$16 sm:%s120]
  %vm122 = vcmask 1047558
  %v123 = vsel %vm122, %v121, %v118
  %124 = vrot.lane.b32.xlu0 %v123, 88
  %v125 = vpop.permute.xlu0 %124
  %vm126 = vcmask 786112
  %127 = vst.msk [vmem:[%s1] sm:$0xff] %vm126, %v125
  %s128 = scalar_lea.vmem %s0, 10
  %s129 = smov 3
  %v130 = vld [vmem:[%s128] ss:$16 sm:%s129]
  %s131 = scalar_lea.vmem %s0, 10
  %s132 = smov 12
  %v133 = vld [vmem:[%s131] ss:$16 sm:%s132]
  %vm134 = vcmask 1043458
  %v135 = vsel %vm134, %v133, %v130
  %s136 = scalar_lea.vmem %s0, 10
  %s137 = smov 48
  %v138 = vld [vmem:[%s136] ss:$16 sm:%s137]
  %vm139 = vcmask 1045508
  %v140 = vsel %vm139, %v138, %v135
  %s141 = scalar_lea.vmem %s0, 10
  %s142 = smov 192
  %v143 = vld [vmem:[%s141] ss:$16 sm:%s142]
  %vm144 = vcmask 1047558
  %v145 = vsel %vm144, %v143, %v140
  %146 = vrot.lane.b32.xlu0 %v145, 80
  %v147 = vpop.permute.xlu0 %146
  %vm148 = vcmask 720512
  %149 = vst.msk [vmem:[%s1] sm:$0xff] %vm148, %v147
  %s150 = scalar_lea.vmem %s0, 9
  %s151 = smov 3
  %v152 = vld [vmem:[%s150] ss:$16 sm:%s151]
  %s153 = scalar_lea.vmem %s0, 9
  %s154 = smov 12
  %v155 = vld [vmem:[%s153] ss:$16 sm:%s154]
  %vm156 = vcmask 1043458
  %v157 = vsel %vm156, %v155, %v152
  %s158 = scalar_lea.vmem %s0, 9
  %s159 = smov 48
  %v160 = vld [vmem:[%s158] ss:$16 sm:%s159]
  %vm161 = vcmask 1045508
  %v162 = vsel %vm161, %v160, %v157
  %s163 = scalar_lea.vmem %s0, 9
  %s164 = smov 192
  %v165 = vld [vmem:[%s163] ss:$16 sm:%s164]
  %vm166 = vcmask 1047558
  %v167 = vsel %vm166, %v165, %v162
  %168 = vrot.lane.b32.xlu0 %v167, 72
  %v169 = vpop.permute.xlu0 %168
  %vm170 = vcmask 654912
  %171 = vst.msk [vmem:[%s1] sm:$0xff] %vm170, %v169
  %s172 = scalar_lea.vmem %s0, 8
  %s173 = smov 3
  %v174 = vld [vmem:[%s172] ss:$16 sm:%s173]
  %s175 = scalar_lea.vmem %s0, 8
  %s176 = smov 12
  %v177 = vld [vmem:[%s175] ss:$16 sm:%s176]
  %vm178 = vcmask 1043458
  %v179 = vsel %vm178, %v177, %v174
  %s180 = scalar_lea.vmem %s0, 8
  %s181 = smov 48
  %v182 = vld [vmem:[%s180] ss:$16 sm:%s181]
  %vm183 = vcmask 1045508
  %v184 = vsel %vm183, %v182, %v179
  %s185 = scalar_lea.vmem %s0, 8
  %s186 = smov 192
  %v187 = vld [vmem:[%s185] ss:$16 sm:%s186]
  %vm188 = vcmask 1047558
  %v189 = vsel %vm188, %v187, %v184
  %190 = vrot.lane.b32.xlu0 %v189, 64
  %v191 = vpop.permute.xlu0 %190
  %vm192 = vcmask 589312
  %193 = vst.msk [vmem:[%s1] sm:$0xff] %vm192, %v191
  %s194 = scalar_lea.vmem %s0, 7
  %s195 = smov 3
  %v196 = vld [vmem:[%s194] ss:$16 sm:%s195]
  %s197 = scalar_lea.vmem %s0, 7
  %s198 = smov 12
  %v199 = vld [vmem:[%s197] ss:$16 sm:%s198]
  %vm200 = vcmask 1043458
  %v201 = vsel %vm200, %v199, %v196
  %s202 = scalar_lea.vmem %s0, 7
  %s203 = smov 48
  %v204 = vld [vmem:[%s202] ss:$16 sm:%s203]
  %vm205 = vcmask 1045508
  %v206 = vsel %vm205, %v204, %v201
  %s207 = scalar_lea.vmem %s0, 7
  %s208 = smov 192
  %v209 = vld [vmem:[%s207] ss:$16 sm:%s208]
  %vm210 = vcmask 1047558
  %v211 = vsel %vm210, %v209, %v206
  %212 = vrot.lane.b32.xlu0 %v211, 56
  %v213 = vpop.permute.xlu0 %212
  %vm214 = vcmask 523712
  %215 = vst.msk [vmem:[%s1] sm:$0xff] %vm214, %v213
  %s216 = scalar_lea.vmem %s0, 6
  %s217 = smov 3
  %v218 = vld [vmem:[%s216] ss:$16 sm:%s217]
  %s219 = scalar_lea.vmem %s0, 6
  %s220 = smov 12
  %v221 = vld [vmem:[%s219] ss:$16 sm:%s220]
  %vm222 = vcmask 1043458
  %v223 = vsel %vm222, %v221, %v218
  %s224 = scalar_lea.vmem %s0, 6
  %s225 = smov 48
  %v226 = vld [vmem:[%s224] ss:$16 sm:%s225]
  %vm227 = vcmask 1045508
  %v228 = vsel %vm227, %v226, %v223
  %s229 = scalar_lea.vmem %s0, 6
  %s230 = smov 192
  %v231 = vld [vmem:[%s229] ss:$16 sm:%s230]
  %vm232 = vcmask 1047558
  %v233 = vsel %vm232, %v231, %v228
  %234 = vrot.lane.b32.xlu0 %v233, 48
  %v235 = vpop.permute.xlu0 %234
  %vm236 = vcmask 458112
  %237 = vst.msk [vmem:[%s1] sm:$0xff] %vm236, %v235
  %s238 = scalar_lea.vmem %s0, 5
  %s239 = smov 3
  %v240 = vld [vmem:[%s238] ss:$16 sm:%s239]
  %s241 = scalar_lea.vmem %s0, 5
  %s242 = smov 12
  %v243 = vld [vmem:[%s241] ss:$16 sm:%s242]
  %vm244 = vcmask 1043458
  %v245 = vsel %vm244, %v243, %v240
  %s246 = scalar_lea.vmem %s0, 5
  %s247 = smov 48
  %v248 = vld [vmem:[%s246] ss:$16 sm:%s247]
  %vm249 = vcmask 1045508
  %v250 = vsel %vm249, %v248, %v245
  %s251 = scalar_lea.vmem %s0, 5
  %s252 = smov 192
  %v253 = vld [vmem:[%s251] ss:$16 sm:%s252]
  %vm254 = vcmask 1047558
  %v255 = vsel %vm254, %v253, %v250
  %256 = vrot.lane.b32.xlu0 %v255, 40
  %v257 = vpop.permute.xlu0 %256
  %vm258 = vcmask 392512
  %259 = vst.msk [vmem:[%s1] sm:$0xff] %vm258, %v257
  %s260 = scalar_lea.vmem %s0, 4
  %s261 = smov 3
  %v262 = vld [vmem:[%s260] ss:$16 sm:%s261]
  %s263 = scalar_lea.vmem %s0, 4
  %s264 = smov 12
  %v265 = vld [vmem:[%s263] ss:$16 sm:%s264]
  %vm266 = vcmask 1043458
  %v267 = vsel %vm266, %v265, %v262
  %s268 = scalar_lea.vmem %s0, 4
  %s269 = smov 48
  %v270 = vld [vmem:[%s268] ss:$16 sm:%s269]
  %vm271 = vcmask 1045508
  %v272 = vsel %vm271, %v270, %v267
  %s273 = scalar_lea.vmem %s0, 4
  %s274 = smov 192
  %v275 = vld [vmem:[%s273] ss:$16 sm:%s274]
  %vm276 = vcmask 1047558
  %v277 = vsel %vm276, %v275, %v272
  %278 = vrot.lane.b32.xlu0 %v277, 32
  %v279 = vpop.permute.xlu0 %278
  %vm280 = vcmask 326912
  %281 = vst.msk [vmem:[%s1] sm:$0xff] %vm280, %v279
  %s282 = scalar_lea.vmem %s0, 3
  %s283 = smov 3
  %v284 = vld [vmem:[%s282] ss:$16 sm:%s283]
  %s285 = scalar_lea.vmem %s0, 3
  %s286 = smov 12
  %v287 = vld [vmem:[%s285] ss:$16 sm:%s286]
  %vm288 = vcmask 1043458
  %v289 = vsel %vm288, %v287, %v284
  %s290 = scalar_lea.vmem %s0, 3
  %s291 = smov 48
  %v292 = vld [vmem:[%s290] ss:$16 sm:%s291]
  %vm293 = vcmask 1045508
  %v294 = vsel %vm293, %v292, %v289
  %s295 = scalar_lea.vmem %s0, 3
  %s296 = smov 192
  %v297 = vld [vmem:[%s295] ss:$16 sm:%s296]
  %vm298 = vcmask 1047558
  %v299 = vsel %vm298, %v297, %v294
  %300 = vrot.lane.b32.xlu0 %v299, 24
  %v301 = vpop.permute.xlu0 %300
  %vm302 = vcmask 261312
  %303 = vst.msk [vmem:[%s1] sm:$0xff] %vm302, %v301
  %s304 = scalar_lea.vmem %s0, 2
  %s305 = smov 3
  %v306 = vld [vmem:[%s304] ss:$16 sm:%s305]
  %s307 = scalar_lea.vmem %s0, 2
  %s308 = smov 12
  %v309 = vld [vmem:[%s307] ss:$16 sm:%s308]
  %vm310 = vcmask 1043458
  %v311 = vsel %vm310, %v309, %v306
  %s312 = scalar_lea.vmem %s0, 2
  %s313 = smov 48
  %v314 = vld [vmem:[%s312] ss:$16 sm:%s313]
  %vm315 = vcmask 1045508
  %v316 = vsel %vm315, %v314, %v311
  %s317 = scalar_lea.vmem %s0, 2
  %s318 = smov 192
  %v319 = vld [vmem:[%s317] ss:$16 sm:%s318]
  %vm320 = vcmask 1047558
  %v321 = vsel %vm320, %v319, %v316
  %322 = vrot.lane.b32.xlu0 %v321, 16
  %v323 = vpop.permute.xlu0 %322
  %vm324 = vcmask 195712
  %325 = vst.msk [vmem:[%s1] sm:$0xff] %vm324, %v323
  %s326 = scalar_lea.vmem %s0, 1
  %s327 = smov 3
  %v328 = vld [vmem:[%s326] ss:$16 sm:%s327]
  %s329 = scalar_lea.vmem %s0, 1
  %s330 = smov 12
  %v331 = vld [vmem:[%s329] ss:$16 sm:%s330]
  %vm332 = vcmask 1043458
  %v333 = vsel %vm332, %v331, %v328
  %s334 = scalar_lea.vmem %s0, 1
  %s335 = smov 48
  %v336 = vld [vmem:[%s334] ss:$16 sm:%s335]
  %vm337 = vcmask 1045508
  %v338 = vsel %vm337, %v336, %v333
  %s339 = scalar_lea.vmem %s0, 1
  %s340 = smov 192
  %v341 = vld [vmem:[%s339] ss:$16 sm:%s340]
  %vm342 = vcmask 1047558
  %v343 = vsel %vm342, %v341, %v338
  %344 = vrot.lane.b32.xlu0 %v343, 8
  %v345 = vpop.permute.xlu0 %344
  %vm346 = vcmask 130112
  %347 = vst.msk [vmem:[%s1] sm:$0xff] %vm346, %v345

// kernel: decoder_block_pallas.1
$region0: #{decoder_block_pallas.1}
  #allocation0 [shape = 'u32[]', space=smem, size = 0x4, offset = 0x4, fixed_abs, tag = 'smem constant byte address 0x4 - core index']
  #allocation1 [shape = 'u32[144,128]{1,0:T(1,128)}', space=vmem, size = 0x12000, scoped, tag = 'internal scratch']
  %s0 = inlined_call_operand.vmem [shape: f32[32,512], index: 0, kind: input, shape index: {}]
  %s1 = inlined_call_operand.vmem [shape: f32[512,128], index: 1, kind: input, shape index: {}]
  %s2 = inlined_call_operand.vmem [shape: f32[1,8], index: 2, kind: input, shape index: {}]
  %s3 = inlined_call_operand.vmem [shape: f32[1,8], index: 3, kind: input, shape index: {}]
  %s4 = inlined_call_operand.vmem [shape: f32[8,128], index: 4, kind: input, shape index: {}]
  %s5 = inlined_call_operand.vmem [shape: f32[256,512], index: 5, kind: input, shape index: {}]
  %s6 = inlined_call_operand.vmem [shape: f32[1,8], index: 6, kind: input, shape index: {}]
  %s7 = inlined_call_operand.vmem [shape: f32[1,8], index: 7, kind: input, shape index: {}]
  %s8 = inlined_call_operand.vmem [shape: f32[8,512], index: 8, kind: input, shape index: {}]
  %s9 = inlined_call_operand.vmem [shape: f32[512,1024], index: 9, kind: input, shape index: {}]
  %s10 = inlined_call_operand.vmem [shape: f32[1,16], index: 10, kind: input, shape index: {}]
  %s11 = inlined_call_operand.vmem [shape: f32[1,16], index: 11, kind: input, shape index: {}]
  %s12 = inlined_call_operand.vmem [shape: f32[16,1024], index: 12, kind: input, shape index: {}]
  %s13 = inlined_call_operand.vmem [shape: f32[32,1024], index: 13, kind: output, shape index: {}]
  %s14 = sld [smem:[#allocation0]]
  $region62: #{decoder_block_pallas.1} parent=0
    _
  %s16 = ssub.s32 1, %s14
  %s17 = scalar_select 0, %s16, %s14
  // Predicated region
  $region2: #{decoder_block_pallas.1} parent=0 // pred_check
    _
  $region3: #{decoder_block_pallas.1} parent=0 // pred_check_branch
    %19 = sbr.rel (0) target = $region5
  $region4: #{decoder_block_pallas.1} parent=0 // pred_region
    _
  $region5: #{decoder_block_pallas.1} parent=0 // pred_fallthru
    _
  // Predicated region
  $region6: #{decoder_block_pallas.1} parent=0 // pred_check
    _
  $region7: #{decoder_block_pallas.1} parent=0 // pred_check_branch
    %21 = sbr.rel (0) target = $region9
  $region8: #{decoder_block_pallas.1} parent=0 // pred_region
    _
  $region9: #{decoder_block_pallas.1} parent=0 // pred_fallthru
    _
  // Predicated region
  $region10: #{decoder_block_pallas.1} parent=0 // pred_check
    _
  $region11: #{decoder_block_pallas.1} parent=0 // pred_check_branch
    %23 = sbr.rel (0) target = $region13
  $region12: #{decoder_block_pallas.1} parent=0 // pred_region
    _
  $region13: #{decoder_block_pallas.1} parent=0 // pred_fallthru
    _
  // Predicated region
  $region14: #{decoder_block_pallas.1} parent=0 // pred_check
    _
  $region15: #{decoder_block_pallas.1} parent=0 // pred_check_branch
    %25 = sbr.rel (0) target = $region17
  $region16: #{decoder_block_pallas.1} parent=0 // pred_region
    _
  $region17: #{decoder_block_pallas.1} parent=0 // pred_fallthru
    _
  // Predicated region
  $region18: #{decoder_block_pallas.1} parent=0 // pred_check
    _
  $region19: #{decoder_block_pallas.1} parent=0 // pred_check_branch
    %27 = sbr.rel (0) target = $region21
  $region20: #{decoder_block_pallas.1} parent=0 // pred_region
    _
  $region21: #{decoder_block_pallas.1} parent=0 // pred_fallthru
    _
  // Predicated region
  $region22: #{decoder_block_pallas.1} parent=0 // pred_check
    _
  $region23: #{decoder_block_pallas.1} parent=0 // pred_check_branch
    %29 = sbr.rel (0) target = $region25
  $region24: #{decoder_block_pallas.1} parent=0 // pred_region
    _
  $region25: #{decoder_block_pallas.1} parent=0 // pred_fallthru
    _
  // Predicated region
  $region26: #{decoder_block_pallas.1} parent=0 // pred_check
    _
  $region27: #{decoder_block_pallas.1} parent=0 // pred_check_branch
    %31 = sbr.rel (0) target = $region29
  $region28: #{decoder_block_pallas.1} parent=0 // pred_region
    _
  $region29: #{decoder_block_pallas.1} parent=0 // pred_fallthru
    _
  // Predicated region
  $region30: #{decoder_block_pallas.1} parent=0 // pred_check
    _
  $region31: #{decoder_block_pallas.1} parent=0 // pred_check_branch
    %33 = sbr.rel (0) target = $region33
  $region32: #{decoder_block_pallas.1} parent=0 // pred_region
    _
  $region33: #{decoder_block_pallas.1} parent=0 // pred_fallthru
    _
  // Predicated region
  $region34: #{decoder_block_pallas.1} parent=0 // pred_check
    _
  $region35: #{decoder_block_pallas.1} parent=0 // pred_check_branch
    %35 = sbr.rel (0) target = $region37
  $region36: #{decoder_block_pallas.1} parent=0 // pred_region
    _
  $region37: #{decoder_block_pallas.1} parent=0 // pred_fallthru
    _
  // Predicated region
  $region38: #{decoder_block_pallas.1} parent=0 // pred_check
    _
  $region39: #{decoder_block_pallas.1} parent=0 // pred_check_branch
    %37 = sbr.rel (0) target = $region41
  $region40: #{decoder_block_pallas.1} parent=0 // pred_region
    _
  $region41: #{decoder_block_pallas.1} parent=0 // pred_fallthru
    _
  // Predicated region
  $region42: #{decoder_block_pallas.1} parent=0 // pred_check
    _
  $region43: #{decoder_block_pallas.1} parent=0 // pred_check_branch
    %39 = sbr.rel (0) target = $region45
  $region44: #{decoder_block_pallas.1} parent=0 // pred_region
    _
  $region45: #{decoder_block_pallas.1} parent=0 // pred_fallthru
    _
  // Predicated region
  $region46: #{decoder_block_pallas.1} parent=0 // pred_check
    _
  $region47: #{decoder_block_pallas.1} parent=0 // pred_check_branch
    %41 = sbr.rel (0) target = $region49
  $region48: #{decoder_block_pallas.1} parent=0 // pred_region
    _
  $region49: #{decoder_block_pallas.1} parent=0 // pred_fallthru
    _
  // Predicated region
  $region50: #{decoder_block_pallas.1} parent=0 // pred_check
    _
  $region51: #{decoder_block_pallas.1} parent=0 // pred_check_branch
    %43 = sbr.rel (0) target = $region53
  $region52: #{decoder_block_pallas.1} parent=0 // pred_region
    _
  $region53: #{decoder_block_pallas.1} parent=0 // pred_fallthru
    _
  %v44 = vld [vmem:[%s0] sm:$0xff]
  %v45 = vld [vmem:[%s0 + $0x8] sm:$0xff]
  %v46 = vld [vmem:[%s0 + $0x10] sm:$0xff]
  %v47 = vld [vmem:[%s0 + $0x18] sm:$0xff]
  %v48 = vld [vmem:[%s0 + $0x20] sm:$0xff]
  %v49 = vld [vmem:[%s0 + $0x28] sm:$0xff]
  %v50 = vld [vmem:[%s0 + $0x30] sm:$0xff]
  %v51 = vld [vmem:[%s0 + $0x38] sm:$0xff]
  %v52 = vld [vmem:[%s0 + $0x40] sm:$0xff]
  %v53 = vld [vmem:[%s0 + $0x48] sm:$0xff]
  %v54 = vld [vmem:[%s0 + $0x50] sm:$0xff]
  %v55 = vld [vmem:[%s0 + $0x58] sm:$0xff]
  %v56 = vld [vmem:[%s0 + $0x60] sm:$0xff]
  %v57 = vld [vmem:[%s0 + $0x68] sm:$0xff]
  %v58 = vld [vmem:[%s0 + $0x70] sm:$0xff]
  %v59 = vld [vmem:[%s0 + $0x78] sm:$0xff]
  %v60 = vld [vmem:[%s1] sm:$0xff]
  %v61 = vld [vmem:[%s1 + $0x8] sm:$0xff]
  %v62 = vld [vmem:[%s1 + $0x10] sm:$0xff]
  %v63 = vld [vmem:[%s1 + $0x18] sm:$0xff]
  %v64 = vld [vmem:[%s1 + $0x20] sm:$0xff]
  %v65 = vld [vmem:[%s1 + $0x28] sm:$0xff]
  %v66 = vld [vmem:[%s1 + $0x30] sm:$0xff]
  %v67 = vld [vmem:[%s1 + $0x38] sm:$0xff]
  %v68 = vld [vmem:[%s1 + $0x40] sm:$0xff]
  %v69 = vld [vmem:[%s1 + $0x48] sm:$0xff]
  %v70 = vld [vmem:[%s1 + $0x50] sm:$0xff]
  %v71 = vld [vmem:[%s1 + $0x58] sm:$0xff]
  %v72 = vld [vmem:[%s1 + $0x60] sm:$0xff]
  %v73 = vld [vmem:[%s1 + $0x68] sm:$0xff]
  %v74 = vld [vmem:[%s1 + $0x70] sm:$0xff]
  %v75 = vld [vmem:[%s1 + $0x78] sm:$0xff]
  %v76 = vld [vmem:[%s1 + $0x80] sm:$0xff]
  %v77 = vld [vmem:[%s1 + $0x88] sm:$0xff]
  %v78 = vld [vmem:[%s1 + $0x90] sm:$0xff]
  %v79 = vld [vmem:[%s1 + $0x98] sm:$0xff]
  %v80 = vld [vmem:[%s1 + $0xa0] sm:$0xff]
  %v81 = vld [vmem:[%s1 + $0xa8] sm:$0xff]
  %v82 = vld [vmem:[%s1 + $0xb0] sm:$0xff]
  %v83 = vld [vmem:[%s1 + $0xb8] sm:$0xff]
  %v84 = vld [vmem:[%s1 + $0xc0] sm:$0xff]
  %v85 = vld [vmem:[%s1 + $0xc8] sm:$0xff]
  %v86 = vld [vmem:[%s1 + $0xd0] sm:$0xff]
  %v87 = vld [vmem:[%s1 + $0xd8] sm:$0xff]
  %v88 = vld [vmem:[%s1 + $0xe0] sm:$0xff]
  %v89 = vld [vmem:[%s1 + $0xe8] sm:$0xff]
  %v90 = vld [vmem:[%s1 + $0xf0] sm:$0xff]
  %v91 = vld [vmem:[%s1 + $0xf8] sm:$0xff]
  %v92 = vld [vmem:[%s1 + $0x100] sm:$0xff]
  %v93 = vld [vmem:[%s1 + $0x108] sm:$0xff]
  %v94 = vld [vmem:[%s1 + $0x110] sm:$0xff]
  %v95 = vld [vmem:[%s1 + $0x118] sm:$0xff]
  %v96 = vld [vmem:[%s1 + $0x120] sm:$0xff]
  %v97 = vld [vmem:[%s1 + $0x128] sm:$0xff]
  %v98 = vld [vmem:[%s1 + $0x130] sm:$0xff]
  %v99 = vld [vmem:[%s1 + $0x138] sm:$0xff]
  %v100 = vld [vmem:[%s1 + $0x140] sm:$0xff]
  %v101 = vld [vmem:[%s1 + $0x148] sm:$0xff]
  %v102 = vld [vmem:[%s1 + $0x150] sm:$0xff]
  %v103 = vld [vmem:[%s1 + $0x158] sm:$0xff]
  %v104 = vld [vmem:[%s1 + $0x160] sm:$0xff]
  %v105 = vld [vmem:[%s1 + $0x168] sm:$0xff]
  %v106 = vld [vmem:[%s1 + $0x170] sm:$0xff]
  %v107 = vld [vmem:[%s1 + $0x178] sm:$0xff]
  %v108 = vld [vmem:[%s1 + $0x180] sm:$0xff]
  %v109 = vld [vmem:[%s1 + $0x188] sm:$0xff]
  %v110 = vld [vmem:[%s1 + $0x190] sm:$0xff]
  %v111 = vld [vmem:[%s1 + $0x198] sm:$0xff]
  %v112 = vld [vmem:[%s1 + $0x1a0] sm:$0xff]
  %v113 = vld [vmem:[%s1 + $0x1a8] sm:$0xff]
  %v114 = vld [vmem:[%s1 + $0x1b0] sm:$0xff]
  %v115 = vld [vmem:[%s1 + $0x1b8] sm:$0xff]
  %v116 = vld [vmem:[%s1 + $0x1c0] sm:$0xff]
  %v117 = vld [vmem:[%s1 + $0x1c8] sm:$0xff]
  %v118 = vld [vmem:[%s1 + $0x1d0] sm:$0xff]
  %v119 = vld [vmem:[%s1 + $0x1d8] sm:$0xff]
  %v120 = vld [vmem:[%s1 + $0x1e0] sm:$0xff]
  %v121 = vld [vmem:[%s1 + $0x1e8] sm:$0xff]
  %v122 = vld [vmem:[%s1 + $0x1f0] sm:$0xff]
  %v123 = vld [vmem:[%s1 + $0x1f8] sm:$0xff]
  %124 = vmatprep.subr.mxu0 0.0
  %125 = vmatpush1.msra.mxu0 %v75
  %126 = vmatprep.subr.mxu0 0.0
  %127 = vmatpush1.msra.mxu0 %v74
  %128 = vmatprep.subr.mxu0 0.0
  %129 = vmatpush1.msra.mxu0 %v73
  %130 = vmatprep.subr.mxu0 0.0
  %131 = vmatpush1.msra.mxu0 %v72
  %132 = vmatprep.subr.mxu0 0.0
  %133 = vmatpush1.msra.mxu0 %v71
  %134 = vmatprep.subr.mxu0 0.0
  %135 = vmatpush1.msra.mxu0 %v70
  %136 = vmatprep.subr.mxu0 0.0
  %137 = vmatpush1.msra.mxu0 %v69
  %138 = vmatprep.subr.mxu0 0.0
  %139 = vmatpush1.msra.mxu0 %v68
  %140 = vmatprep.subr.mxu0 0.0
  %141 = vmatpush1.msra.mxu0 %v67
  %142 = vmatprep.subr.mxu0 0.0
  %143 = vmatpush1.msra.mxu0 %v66
  %144 = vmatprep.subr.mxu0 0.0
  %145 = vmatpush1.msra.mxu0 %v65
  %146 = vmatprep.subr.mxu0 0.0
  %147 = vmatpush1.msra.mxu0 %v64
  %148 = vmatprep.subr.mxu0 0.0
  %149 = vmatpush1.msra.mxu0 %v63
  %150 = vmatprep.subr.mxu0 0.0
  %151 = vmatpush1.msra.mxu0 %v62
  %152 = vmatprep.subr.mxu0 0.0
  %153 = vmatpush1.msra.mxu0 %v61
  %154 = vmatprep.subr.mxu0 0.0
  %155 = vmatpush1.msra.mxu0 %v60
  %156 = vmatprep.subr.mxu0 0.0
  %157 = vmatpush2.msra.mxu0 %v91
  %158 = vmatprep.subr.mxu0 0.0
  %159 = vmatpush2.msra.mxu0 %v90
  %160 = vmatprep.subr.mxu0 0.0
  %161 = vmatpush2.msra.mxu0 %v89
  %162 = vmatprep.subr.mxu0 0.0
  %163 = vmatpush2.msra.mxu0 %v88
  %164 = vmatprep.subr.mxu0 0.0
  %165 = vmatpush2.msra.mxu0 %v87
  %166 = vmatprep.subr.mxu0 0.0
  %167 = vmatpush2.msra.mxu0 %v86
  %168 = vmatprep.subr.mxu0 0.0
  %169 = vmatpush2.msra.mxu0 %v85
  %170 = vmatprep.subr.mxu0 0.0
  %171 = vmatpush2.msra.mxu0 %v84
  %172 = vmatprep.subr.mxu0 0.0
  %173 = vmatpush2.msra.mxu0 %v83
  %174 = vmatprep.subr.mxu0 0.0
  %175 = vmatpush2.msra.mxu0 %v82
  %176 = vmatprep.subr.mxu0 0.0
  %177 = vmatpush2.msra.mxu0 %v81
  %178 = vmatprep.subr.mxu0 0.0
  %179 = vmatpush2.msra.mxu0 %v80
  %180 = vmatprep.subr.mxu0 0.0
  %181 = vmatpush2.msra.mxu0 %v79
  %182 = vmatprep.subr.mxu0 0.0
  %183 = vmatpush2.msra.mxu0 %v78
  %184 = vmatprep.subr.mxu0 0.0
  %185 = vmatpush2.msra.mxu0 %v77
  %186 = vmatprep.subr.mxu0 0.0
  %187 = vmatpush2.msra.mxu0 %v76
  %188 = vmatprep.mubr.f32.mxu0 %v45
  %189 = vmatmul.mubr.f32.gmra.mxu0 %v44
  %v190 = vpop.f32.mrf.mxu0
  %v191 = vadd.f32 0.0, %v190
  %v192 = vpop.f32.mrf.mxu0
  %193 = vmatprep.mubr.f32.mxu0 %v49
  %194 = vmatmul.mubr.f32.gmra.mxu0 %v48
  %v195 = vpop.f32.mrf.mxu0
  %v196 = vadd.f32 0.0, %v195
  %v197 = vpop.f32.mrf.mxu0
  %198 = vmatprep.mubr.f32.mxu0 %v53
  %199 = vmatmul.mubr.f32.gmra.mxu0 %v52
  %v200 = vpop.f32.mrf.mxu0
  %v201 = vadd.f32 0.0, %v200
  %v202 = vpop.f32.mrf.mxu0
  %203 = vmatprep.mubr.f32.mxu0 %v57
  %204 = vmatmul.mubr.f32.gmra.mxu0 %v56
  %v205 = vpop.f32.mrf.mxu0
  %v206 = vadd.f32 0.0, %v205
  %v207 = vpop.f32.mrf.mxu0
  %208 = vdwg.mxu0
  %209 = vmatprep.subr.mxu0 0.0
  %210 = vmatpush1.msra.mxu0 %v107
  %211 = vmatprep.subr.mxu0 0.0
  %212 = vmatpush1.msra.mxu0 %v106
  %213 = vmatprep.subr.mxu0 0.0
  %214 = vmatpush1.msra.mxu0 %v105
  %215 = vmatprep.subr.mxu0 0.0
  %216 = vmatpush1.msra.mxu0 %v104
  %217 = vmatprep.subr.mxu0 0.0
  %218 = vmatpush1.msra.mxu0 %v103
  %219 = vmatprep.subr.mxu0 0.0
  %220 = vmatpush1.msra.mxu0 %v102
  %221 = vmatprep.subr.mxu0 0.0
  %222 = vmatpush1.msra.mxu0 %v101
  %223 = vmatprep.subr.mxu0 0.0
  %224 = vmatpush1.msra.mxu0 %v100
  %225 = vmatprep.subr.mxu0 0.0
  %226 = vmatpush1.msra.mxu0 %v99
  %227 = vmatprep.subr.mxu0 0.0
  %228 = vmatpush1.msra.mxu0 %v98
  %229 = vmatprep.subr.mxu0 0.0
  %230 = vmatpush1.msra.mxu0 %v97
  %231 = vmatprep.subr.mxu0 0.0
  %232 = vmatpush1.msra.mxu0 %v96
  %233 = vmatprep.subr.mxu0 0.0
  %234 = vmatpush1.msra.mxu0 %v95
  %235 = vmatprep.subr.mxu0 0.0
  %236 = vmatpush1.msra.mxu0 %v94
  %237 = vmatprep.subr.mxu0 0.0
  %238 = vmatpush1.msra.mxu0 %v93
  %239 = vmatprep.subr.mxu0 0.0
  %240 = vmatpush1.msra.mxu0 %v92
  %241 = vmatprep.subr.mxu0 0.0
  %242 = vmatpush2.msra.mxu0 %v123
  %243 = vmatprep.subr.mxu0 0.0
  %244 = vmatpush2.msra.mxu0 %v122
  %245 = vmatprep.subr.mxu0 0.0
  %246 = vmatpush2.msra.mxu0 %v121
  %247 = vmatprep.subr.mxu0 0.0
  %248 = vmatpush2.msra.mxu0 %v120
  %249 = vmatprep.subr.mxu0 0.0
  %250 = vmatpush2.msra.mxu0 %v119
  %251 = vmatprep.subr.mxu0 0.0
  %252 = vmatpush2.msra.mxu0 %v118
  %253 = vmatprep.subr.mxu0 0.0
  %254 = vmatpush2.msra.mxu0 %v117
  %255 = vmatprep.subr.mxu0 0.0
  %256 = vmatpush2.msra.mxu0 %v116
  %257 = vmatprep.subr.mxu0 0.0
  %258 = vmatpush2.msra.mxu0 %v115
  %259 = vmatprep.subr.mxu0 0.0
  %260 = vmatpush2.msra.mxu0 %v114
  %261 = vmatprep.subr.mxu0 0.0
  %262 = vmatpush2.msra.mxu0 %v113
  %263 = vmatprep.subr.mxu0 0.0
  %264 = vmatpush2.msra.mxu0 %v112
  %265 = vmatprep.subr.mxu0 0.0
  %266 = vmatpush2.msra.mxu0 %v111
  %267 = vmatprep.subr.mxu0 0.0
  %268 = vmatpush2.msra.mxu0 %v110
  %269 = vmatprep.subr.mxu0 0.0
  %270 = vmatpush2.msra.mxu0 %v109
  %271 = vmatprep.subr.mxu0 0.0
  %272 = vmatpush2.msra.mxu0 %v108
  %273 = vmatprep.mubr.f32.mxu0 %v47
  %274 = vmatmul.mubr.f32.gmra.mxu0 %v46
  %v275 = vpop.f32.mrf.mxu0
  %v276 = vadd.f32 %v191, %v275
  %v277 = vpop.f32.mrf.mxu0
  %278 = vmatprep.mubr.f32.mxu0 %v51
  %279 = vmatmul.mubr.f32.gmra.mxu0 %v50
  %v280 = vpop.f32.mrf.mxu0
  %v281 = vadd.f32 %v196, %v280
  %v282 = vpop.f32.mrf.mxu0
  %283 = vmatprep.mubr.f32.mxu0 %v55
  %284 = vmatmul.mubr.f32.gmra.mxu0 %v54
  %v285 = vpop.f32.mrf.mxu0
  %v286 = vadd.f32 %v201, %v285
  %v287 = vpop.f32.mrf.mxu0
  %288 = vmatprep.mubr.f32.mxu0 %v59
  %289 = vmatmul.mubr.f32.gmra.mxu0 %v58
  %v290 = vpop.f32.mrf.mxu0
  %v291 = vadd.f32 %v206, %v290
  %v292 = vpop.f32.mrf.mxu0
  %293 = vdwg.mxu0
  %v294 = vld [vmem:[%s2] sm:$0x1]
  %v295 = vld [vmem:[%s3] sm:$0x1]
  %v296 = vld [vmem:[%s4] sm:$0xff]
  %297 = vmatprep.subr.mxu0 0.0
  %298 = vmatpush1.xpose.msra.mxu0 0.0
  %299 = vmatprep.subr.mxu0 0.0
  %300 = vmatpush1.xpose.msra.mxu0 0.0
  %301 = vmatprep.subr.mxu0 0.0
  %302 = vmatpush1.xpose.msra.mxu0 0.0
  %303 = vmatprep.subr.mxu0 0.0
  %304 = vmatpush1.xpose.msra.mxu0 0.0
  %305 = vmatprep.subr.mxu0 0.0
  %306 = vmatpush1.xpose.msra.mxu0 0.0
  %307 = vmatprep.subr.mxu0 0.0
  %308 = vmatpush1.xpose.msra.mxu0 0.0
  %309 = vmatprep.subr.mxu0 0.0
  %310 = vmatpush1.xpose.msra.mxu0 0.0
  %311 = vmatprep.subr.mxu0 0.0
  %312 = vmatpush1.xpose.msra.mxu0 0.0
  %313 = vmatprep.subr.mxu0 0.0
  %314 = vmatpush1.xpose.msra.mxu0 0.0
  %315 = vmatprep.subr.mxu0 0.0
  %316 = vmatpush1.xpose.msra.mxu0 0.0
  %317 = vmatprep.subr.mxu0 0.0
  %318 = vmatpush1.xpose.msra.mxu0 0.0
  %319 = vmatprep.subr.mxu0 0.0
  %320 = vmatpush1.xpose.msra.mxu0 0.0
  %321 = vmatprep.subr.mxu0 0.0
  %322 = vmatpush1.xpose.msra.mxu0 0.0
  %323 = vmatprep.subr.mxu0 0.0
  %324 = vmatpush1.xpose.msra.mxu0 0.0
  %325 = vmatprep.subr.mxu0 0.0
  %326 = vmatpush1.xpose.msra.mxu0 0.0
  %327 = vmatprep.subr.mxu0 0.0
  %328 = vmatpush1.xpose.msra.mxu0 %v296
  %329 = vmatprep.subr.mxu0 0.0
  %330 = vmatpush2.xpose.msra.mxu0 0.0
  %331 = vmatprep.subr.mxu0 0.0
  %332 = vmatpush2.xpose.msra.mxu0 0.0
  %333 = vmatprep.subr.mxu0 0.0
  %334 = vmatpush2.xpose.msra.mxu0 0.0
  %335 = vmatprep.subr.mxu0 0.0
  %336 = vmatpush2.xpose.msra.mxu0 0.0
  %337 = vmatprep.subr.mxu0 0.0
  %338 = vmatpush2.xpose.msra.mxu0 0.0
  %339 = vmatprep.subr.mxu0 0.0
  %340 = vmatpush2.xpose.msra.mxu0 0.0
  %341 = vmatprep.subr.mxu0 0.0
  %342 = vmatpush2.xpose.msra.mxu0 0.0
  %343 = vmatprep.subr.mxu0 0.0
  %344 = vmatpush2.xpose.msra.mxu0 0.0
  %345 = vmatprep.subr.mxu0 0.0
  %346 = vmatpush2.xpose.msra.mxu0 0.0
  %347 = vmatprep.subr.mxu0 0.0
  %348 = vmatpush2.xpose.msra.mxu0 0.0
  %349 = vmatprep.subr.mxu0 0.0
  %350 = vmatpush2.xpose.msra.mxu0 0.0
  %351 = vmatprep.subr.mxu0 0.0
  %352 = vmatpush2.xpose.msra.mxu0 0.0
  %353 = vmatprep.subr.mxu0 0.0
  %354 = vmatpush2.xpose.msra.mxu0 0.0
  %355 = vmatprep.subr.mxu0 0.0
  %356 = vmatpush2.xpose.msra.mxu0 0.0
  %357 = vmatprep.subr.mxu0 0.0
  %358 = vmatpush2.xpose.msra.mxu0 0.0
  %359 = vmatprep.subr.mxu0 0.0
  %360 = vmatpush2.xpose.msra.mxu0 0.0
  %361 = vmatprep.mubr.f32.mxu0 0.0
  %362 = vmatmul.mubr.f32.gmra.mxu0 %v276
  %v363 = vpop.f32.mrf.mxu0
  %v364 = vadd.f32 0.0, %v363
  %v365 = vpop.f32.mrf.mxu0
  %366 = vmatprep.mubr.f32.mxu0 0.0
  %367 = vmatmul.mubr.f32.gmra.mxu0 %v281
  %v368 = vpop.f32.mrf.mxu0
  %v369 = vadd.f32 0.0, %v368
  %v370 = vpop.f32.mrf.mxu0
  %371 = vmatprep.mubr.f32.mxu0 0.0
  %372 = vmatmul.mubr.f32.gmra.mxu0 %v286
  %v373 = vpop.f32.mrf.mxu0
  %v374 = vadd.f32 0.0, %v373
  %v375 = vpop.f32.mrf.mxu0
  %376 = vmatprep.mubr.f32.mxu0 0.0
  %377 = vmatmul.mubr.f32.gmra.mxu0 %v291
  %v378 = vpop.f32.mrf.mxu0
  %v379 = vadd.f32 0.0, %v378
  %v380 = vpop.f32.mrf.mxu0
  %381 = vdwg.mxu0
  %v382 = vmul.f32 %v276, %v276
  %v383 = vmul.f32 %v281, %v281
  %v384 = vmul.f32 %v286, %v286
  %v385 = vmul.f32 %v291, %v291
  %386 = vmatprep.subr.mxu0 0.0
  %387 = vmatpush1.xpose.msra.mxu0 0.0
  %388 = vmatprep.subr.mxu0 0.0
  %389 = vmatpush1.xpose.msra.mxu0 0.0
  %390 = vmatprep.subr.mxu0 0.0
  %391 = vmatpush1.xpose.msra.mxu0 0.0
  %392 = vmatprep.subr.mxu0 0.0
  %393 = vmatpush1.xpose.msra.mxu0 0.0
  %394 = vmatprep.subr.mxu0 0.0
  %395 = vmatpush1.xpose.msra.mxu0 0.0
  %396 = vmatprep.subr.mxu0 0.0
  %397 = vmatpush1.xpose.msra.mxu0 0.0
  %398 = vmatprep.subr.mxu0 0.0
  %399 = vmatpush1.xpose.msra.mxu0 0.0
  %400 = vmatprep.subr.mxu0 0.0
  %401 = vmatpush1.xpose.msra.mxu0 0.0
  %402 = vmatprep.subr.mxu0 0.0
  %403 = vmatpush1.xpose.msra.mxu0 0.0
  %404 = vmatprep.subr.mxu0 0.0
  %405 = vmatpush1.xpose.msra.mxu0 0.0
  %406 = vmatprep.subr.mxu0 0.0
  %407 = vmatpush1.xpose.msra.mxu0 0.0
  %408 = vmatprep.subr.mxu0 0.0
  %409 = vmatpush1.xpose.msra.mxu0 0.0
  %410 = vmatprep.subr.mxu0 0.0
  %411 = vmatpush1.xpose.msra.mxu0 0.0
  %412 = vmatprep.subr.mxu0 0.0
  %413 = vmatpush1.xpose.msra.mxu0 0.0
  %414 = vmatprep.subr.mxu0 0.0
  %415 = vmatpush1.xpose.msra.mxu0 0.0
  %416 = vmatprep.subr.mxu0 0.0
  %417 = vmatpush1.xpose.msra.mxu0 %v296
  %418 = vmatprep.subr.mxu0 0.0
  %419 = vmatpush2.xpose.msra.mxu0 0.0
  %420 = vmatprep.subr.mxu0 0.0
  %421 = vmatpush2.xpose.msra.mxu0 0.0
  %422 = vmatprep.subr.mxu0 0.0
  %423 = vmatpush2.xpose.msra.mxu0 0.0
  %424 = vmatprep.subr.mxu0 0.0
  %425 = vmatpush2.xpose.msra.mxu0 0.0
  %426 = vmatprep.subr.mxu0 0.0
  %427 = vmatpush2.xpose.msra.mxu0 0.0
  %428 = vmatprep.subr.mxu0 0.0
  %429 = vmatpush2.xpose.msra.mxu0 0.0
  %430 = vmatprep.subr.mxu0 0.0
  %431 = vmatpush2.xpose.msra.mxu0 0.0
  %432 = vmatprep.subr.mxu0 0.0
  %433 = vmatpush2.xpose.msra.mxu0 0.0
  %434 = vmatprep.subr.mxu0 0.0
  %435 = vmatpush2.xpose.msra.mxu0 0.0
  %436 = vmatprep.subr.mxu0 0.0
  %437 = vmatpush2.xpose.msra.mxu0 0.0
  %438 = vmatprep.subr.mxu0 0.0
  %439 = vmatpush2.xpose.msra.mxu0 0.0
  %440 = vmatprep.subr.mxu0 0.0
  %441 = vmatpush2.xpose.msra.mxu0 0.0
  %442 = vmatprep.subr.mxu0 0.0
  %443 = vmatpush2.xpose.msra.mxu0 0.0
  %444 = vmatprep.subr.mxu0 0.0
  %445 = vmatpush2.xpose.msra.mxu0 0.0
  %446 = vmatprep.subr.mxu0 0.0
  %447 = vmatpush2.xpose.msra.mxu0 0.0
  %448 = vmatprep.subr.mxu0 0.0
  %449 = vmatpush2.xpose.msra.mxu0 0.0
  %450 = vmatprep.mubr.f32.mxu0 0.0
  %451 = vmatmul.mubr.f32.gmra.mxu0 %v382
  %v452 = vpop.f32.mrf.mxu0
  %v453 = vadd.f32 0.0, %v452
  %v454 = vpop.f32.mrf.mxu0
  %455 = vmatprep.mubr.f32.mxu0 0.0
  %456 = vmatmul.mubr.f32.gmra.mxu0 %v383
  %v457 = vpop.f32.mrf.mxu0
  %v458 = vadd.f32 0.0, %v457
  %v459 = vpop.f32.mrf.mxu0
  %460 = vmatprep.mubr.f32.mxu0 0.0
  %461 = vmatmul.mubr.f32.gmra.mxu0 %v384
  %v462 = vpop.f32.mrf.mxu0
  %v463 = vadd.f32 0.0, %v462
  %v464 = vpop.f32.mrf.mxu0
  %465 = vmatprep.mubr.f32.mxu0 0.0
  %466 = vmatmul.mubr.f32.gmra.mxu0 %v385
  %v467 = vpop.f32.mrf.mxu0
  %v468 = vadd.f32 0.0, %v467
  %v469 = vpop.f32.mrf.mxu0
  %470 = vdwg.mxu0
  %vm471 = vcmask 64512
  %v472 = vsel %vm471, %v364, 0.0
  %v473 = vsel %vm471, %v369, 0.0
  %v474 = vadd.f32 %v472, %v473
  %v475 = vsel %vm471, %v374, 0.0
  %v476 = vadd.f32 %v474, %v475
  %v477 = vsel %vm471, %v379, 0.0
  %v478 = vadd.f32 %v476, %v477
  %v479 = vrot.slane %v478, 4
  %v480 = vadd.f32 %v478, %v479
  %v481 = vrot.slane %v480, 2
  %v482 = vadd.f32 %v480, %v481
  %v483 = vrot.slane %v482, 1
  %v484 = vadd.f32 %v482, %v483
  %v485 = vmul.f32 %v484, 0.001953125
  %v486 = vsel %vm471, %v453, 0.0
  %v487 = vsel %vm471, %v458, 0.0
  %v488 = vadd.f32 %v486, %v487
  %v489 = vsel %vm471, %v463, 0.0
  %v490 = vadd.f32 %v488, %v489
  %v491 = vsel %vm471, %v468, 0.0
  %v492 = vadd.f32 %v490, %v491
  %v493 = vrot.slane %v492, 4
  %v494 = vadd.f32 %v492, %v493
  %v495 = vrot.slane %v494, 2
  %v496 = vadd.f32 %v494, %v495
  %v497 = vrot.slane %v496, 1
  %v498 = vadd.f32 %v496, %v497
  %v499 = vmul.f32 %v498, 0.001953125
  %v500 = vmul.f32 %v485, %v485
  %v501 = vsub.f32 %v499, %v500
  %v502 = vmax.f32 %v501, 0.0
  %v503 = vadd.f32 %v502, 1e-05
  %v504 = vrsqrt.pop %v503
  %v505 = vmul.f32 %v294, %v504
  %v506 = vmul.f32 %v485, %v505
  %v507 = vsub.f32 %v295, %v506
  %v509 = vsel %vm471, %v505, 0
  %511 = vmatprep.subr.mxu0 0.0
  %512 = vmatpush1.msra.mxu0 0.0
  %513 = vmatprep.subr.mxu0 0.0
  %514 = vmatpush1.msra.mxu0 0.0
  %515 = vmatprep.subr.mxu0 0.0
  %516 = vmatpush1.msra.mxu0 0.0
  %517 = vmatprep.subr.mxu0 0.0
  %518 = vmatpush1.msra.mxu0 0.0
  %519 = vmatprep.subr.mxu0 0.0
  %520 = vmatpush1.msra.mxu0 0.0
  %521 = vmatprep.subr.mxu0 0.0
  %522 = vmatpush1.msra.mxu0 0.0
  %523 = vmatprep.subr.mxu0 0.0
  %524 = vmatpush1.msra.mxu0 0.0
  %525 = vmatprep.subr.mxu0 0.0
  %526 = vmatpush1.msra.mxu0 0.0
  %527 = vmatprep.subr.mxu0 0.0
  %528 = vmatpush1.msra.mxu0 0.0
  %529 = vmatprep.subr.mxu0 0.0
  %530 = vmatpush1.msra.mxu0 0.0
  %531 = vmatprep.subr.mxu0 0.0
  %532 = vmatpush1.msra.mxu0 0.0
  %533 = vmatprep.subr.mxu0 0.0
  %534 = vmatpush1.msra.mxu0 0.0
  %535 = vmatprep.subr.mxu0 0.0
  %536 = vmatpush1.msra.mxu0 0.0
  %537 = vmatprep.subr.mxu0 0.0
  %538 = vmatpush1.msra.mxu0 0.0
  %539 = vmatprep.subr.mxu0 0.0
  %540 = vmatpush1.msra.mxu0 0.0
  %541 = vmatprep.subr.mxu0 0.0
  %542 = vmatpush1.msra.mxu0 %v296
  %543 = vmatprep.subr.mxu0 0.0
  %544 = vmatpush2.msra.mxu0 0.0
  %545 = vmatprep.subr.mxu0 0.0
  %546 = vmatpush2.msra.mxu0 0.0
  %547 = vmatprep.subr.mxu0 0.0
  %548 = vmatpush2.msra.mxu0 0.0
  %549 = vmatprep.subr.mxu0 0.0
  %550 = vmatpush2.msra.mxu0 0.0
  %551 = vmatprep.subr.mxu0 0.0
  %552 = vmatpush2.msra.mxu0 0.0
  %553 = vmatprep.subr.mxu0 0.0
  %554 = vmatpush2.msra.mxu0 0.0
  %555 = vmatprep.subr.mxu0 0.0
  %556 = vmatpush2.msra.mxu0 0.0
  %557 = vmatprep.subr.mxu0 0.0
  %558 = vmatpush2.msra.mxu0 0.0
  %559 = vmatprep.subr.mxu0 0.0
  %560 = vmatpush2.msra.mxu0 0.0
  %561 = vmatprep.subr.mxu0 0.0
  %562 = vmatpush2.msra.mxu0 0.0
  %563 = vmatprep.subr.mxu0 0.0
  %564 = vmatpush2.msra.mxu0 0.0
  %565 = vmatprep.subr.mxu0 0.0
  %566 = vmatpush2.msra.mxu0 0.0
  %567 = vmatprep.subr.mxu0 0.0
  %568 = vmatpush2.msra.mxu0 0.0
  %569 = vmatprep.subr.mxu0 0.0
  %570 = vmatpush2.msra.mxu0 0.0
  %571 = vmatprep.subr.mxu0 0.0
  %572 = vmatpush2.msra.mxu0 0.0
  %573 = vmatprep.subr.mxu0 0.0
  %574 = vmatpush2.msra.mxu0 0.0
  %575 = vmatprep.mubr.f32.mxu0 0.0
  %576 = vmatmul.mubr.f32.gmra.mxu0 %v509
  %v577 = vpop.f32.mrf.mxu0
  %v578 = vadd.f32 0.0, %v577
  %v579 = vpop.f32.mrf.mxu0
  %580 = vdwg.mxu0
  %v582 = vsel %vm471, %v507, 0
  %584 = vmatprep.subr.mxu0 0.0
  %585 = vmatpush1.msra.mxu0 0.0
  %586 = vmatprep.subr.mxu0 0.0
  %587 = vmatpush1.msra.mxu0 0.0
  %588 = vmatprep.subr.mxu0 0.0
  %589 = vmatpush1.msra.mxu0 0.0
  %590 = vmatprep.subr.mxu0 0.0
  %591 = vmatpush1.msra.mxu0 0.0
  %592 = vmatprep.subr.mxu0 0.0
  %593 = vmatpush1.msra.mxu0 0.0
  %594 = vmatprep.subr.mxu0 0.0
  %595 = vmatpush1.msra.mxu0 0.0
  %596 = vmatprep.subr.mxu0 0.0
  %597 = vmatpush1.msra.mxu0 0.0
  %598 = vmatprep.subr.mxu0 0.0
  %599 = vmatpush1.msra.mxu0 0.0
  %600 = vmatprep.subr.mxu0 0.0
  %601 = vmatpush1.msra.mxu0 0.0
  %602 = vmatprep.subr.mxu0 0.0
  %603 = vmatpush1.msra.mxu0 0.0
  %604 = vmatprep.subr.mxu0 0.0
  %605 = vmatpush1.msra.mxu0 0.0
  %606 = vmatprep.subr.mxu0 0.0
  %607 = vmatpush1.msra.mxu0 0.0
  %608 = vmatprep.subr.mxu0 0.0
  %609 = vmatpush1.msra.mxu0 0.0
  %610 = vmatprep.subr.mxu0 0.0
  %611 = vmatpush1.msra.mxu0 0.0
  %612 = vmatprep.subr.mxu0 0.0
  %613 = vmatpush1.msra.mxu0 0.0
  %614 = vmatprep.subr.mxu0 0.0
  %615 = vmatpush1.msra.mxu0 %v296
  %616 = vmatprep.subr.mxu0 0.0
  %617 = vmatpush2.msra.mxu0 0.0
  %618 = vmatprep.subr.mxu0 0.0
  %619 = vmatpush2.msra.mxu0 0.0
  %620 = vmatprep.subr.mxu0 0.0
  %621 = vmatpush2.msra.mxu0 0.0
  %622 = vmatprep.subr.mxu0 0.0
  %623 = vmatpush2.msra.mxu0 0.0
  %624 = vmatprep.subr.mxu0 0.0
  %625 = vmatpush2.msra.mxu0 0.0
  %626 = vmatprep.subr.mxu0 0.0
  %627 = vmatpush2.msra.mxu0 0.0
  %628 = vmatprep.subr.mxu0 0.0
  %629 = vmatpush2.msra.mxu0 0.0
  %630 = vmatprep.subr.mxu0 0.0
  %631 = vmatpush2.msra.mxu0 0.0
  %632 = vmatprep.subr.mxu0 0.0
  %633 = vmatpush2.msra.mxu0 0.0
  %634 = vmatprep.subr.mxu0 0.0
  %635 = vmatpush2.msra.mxu0 0.0
  %636 = vmatprep.subr.mxu0 0.0
  %637 = vmatpush2.msra.mxu0 0.0
  %638 = vmatprep.subr.mxu0 0.0
  %639 = vmatpush2.msra.mxu0 0.0
  %640 = vmatprep.subr.mxu0 0.0
  %641 = vmatpush2.msra.mxu0 0.0
  %642 = vmatprep.subr.mxu0 0.0
  %643 = vmatpush2.msra.mxu0 0.0
  %644 = vmatprep.subr.mxu0 0.0
  %645 = vmatpush2.msra.mxu0 0.0
  %646 = vmatprep.subr.mxu0 0.0
  %647 = vmatpush2.msra.mxu0 0.0
  %648 = vmatprep.mubr.f32.mxu0 0.0
  %649 = vmatmul.mubr.f32.gmra.mxu0 %v582
  %v650 = vpop.f32.mrf.mxu0
  %v651 = vadd.f32 0.0, %v650
  %v652 = vpop.f32.mrf.mxu0
  %653 = vdwg.mxu0
  %v654 = vlaneseq
  %v655 = vshrl.u32 %v654, 7
  %v656 = vsub.s32 0, %v655
  %v657 = vrot.slane %v578, %v656
  %v658 = vmul.f32 %v276, %v657
  %v659 = vmul.f32 %v281, %v657
  %v660 = vmul.f32 %v286, %v657
  %v661 = vmul.f32 %v291, %v657
  %v662 = vlaneseq
  %v663 = vshrl.u32 %v662, 7
  %v664 = vsub.s32 0, %v663
  %v665 = vrot.slane %v651, %v664
  %v666 = vadd.f32 %v658, %v665
  %v667 = vadd.f32 %v659, %v665
  %v668 = vadd.f32 %v660, %v665
  %v669 = vadd.f32 %v661, %v665
  %v670 = vmax.f32 %v666, 0.0
  %v671 = vmax.f32 %v667, 0.0
  %v672 = vmax.f32 %v668, 0.0
  %v673 = vmax.f32 %v669, 0.0
  %vm678 = vcmask 1046528
  %v679 = vrot.slane %v670, 1
  %v680 = vrot.slane %v671, 1
  %v681 = vsel %vm678, %v679, %v680
  %v682 = vrot.slane %v672, 1
  %v683 = vsel %vm678, %v680, %v682
  %v684 = vrot.slane %v673, 1
  %v685 = vsel %vm678, %v682, %v684
  %v690 = vsel %vm678, %v684, 0.0
  %v691 = vlaneseq
  %v692 = vshrl.u32 %v691, 7
  %v693 = vadd.s32 %v692, 8
  %v694 = vadd.s32 %v692, 16
  %v695 = vadd.s32 %v692, 24
  %vm696 = vcmp.lt.s32.totalorder %v692, 0
  %v697 = vsub.s32 0, %v692
  %v698 = vsel %vm696, %v697, %v692
  %v699 = vshrl.u32 %v698, 4
  %v700 = vand.u32 %v698, 15
  %v701 = vsub.s32 0, %v700
  %v702 = vsel %vm696, %v701, %v700
  %vm703 = vcmp.lt.s32.totalorder %v693, 0
  %v704 = vsub.s32 0, %v693
  %v705 = vsel %vm703, %v704, %v693
  %v706 = vshrl.u32 %v705, 4
  %v707 = vand.u32 %v705, 15
  %v708 = vsub.s32 0, %v707
  %v709 = vsel %vm703, %v708, %v707
  %vm710 = vcmp.lt.s32.totalorder %v694, 0
  %v711 = vsub.s32 0, %v694
  %v712 = vsel %vm710, %v711, %v694
  %v713 = vshrl.u32 %v712, 4
  %v714 = vand.u32 %v712, 15
  %v715 = vsub.s32 0, %v714
  %v716 = vsel %vm710, %v715, %v714
  %vm717 = vcmp.lt.s32.totalorder %v695, 0
  %v718 = vsub.s32 0, %v695
  %v719 = vsel %vm717, %v718, %v695
  %v720 = vshrl.u32 %v719, 4
  %v721 = vand.u32 %v719, 15
  %v722 = vsub.s32 0, %v721
  %v723 = vsel %vm717, %v722, %v721
  %vm724 = vcmp.ne.s32.totalorder %v702, 0
  %vm725 = vcmp.ne.s32.totalorder %v709, 0
  %vm726 = vcmp.ne.s32.totalorder %v716, 0
  %vm727 = vcmp.ne.s32.totalorder %v723, 0
  %vm728 = vcmp.lt.s32.totalorder %v702, 0
  %vm729 = vcmp.lt.s32.totalorder %v709, 0
  %vm730 = vcmp.lt.s32.totalorder %v716, 0
  %vm731 = vcmp.lt.s32.totalorder %v723, 0
  %vm732 = vmand %vm728, %vm724
  %vm733 = vmand %vm729, %vm725
  %vm734 = vmand %vm730, %vm726
  %vm735 = vmand %vm731, %vm727
  %v736 = vadd.s32 %v702, 16
  %v737 = vadd.s32 %v709, 16
  %v738 = vadd.s32 %v716, 16
  %v739 = vadd.s32 %v723, 16
  %v740 = vsel %vm732, %v736, %v702
  %v741 = vsel %vm733, %v737, %v709
  %v742 = vsel %vm734, %v738, %v716
  %v743 = vsel %vm735, %v739, %v723
  %vm744 = vcmp.ne.s32.totalorder %v740, 15
  %vm745 = vcmp.ne.s32.totalorder %v741, 15
  %vm746 = vcmp.ne.s32.totalorder %v742, 15
  %vm747 = vcmp.ne.s32.totalorder %v743, 15
  %v748 = vsel %vm744, 1, 0
  %v749 = vsel %vm745, 1, 0
  %v750 = vsel %vm746, 1, 0
  %v751 = vsel %vm747, 1, 0
  %vm752 = vcmp.eq.s32.totalorder %v748, 1
  %vm753 = vcmp.eq.s32.totalorder %v749, 1
  %vm754 = vcmp.eq.s32.totalorder %v750, 1
  %vm755 = vcmp.eq.s32.totalorder %v751, 1
  %v756 = vsel %vm752, %v681, 0.0
  %v757 = vsel %vm753, %v683, 0.0
  %v758 = vsel %vm754, %v685, 0.0
  %v759 = vsel %vm755, %v690, 0.0
  %v760 = vld [vmem:[%s5] sm:$0xff]
  %v761 = vld [vmem:[%s5 + $0x8] sm:$0xff]
  %v762 = vld [vmem:[%s5 + $0x10] sm:$0xff]
  %v763 = vld [vmem:[%s5 + $0x18] sm:$0xff]
  %v764 = vld [vmem:[%s5 + $0x20] sm:$0xff]
  %v765 = vld [vmem:[%s5 + $0x28] sm:$0xff]
  %v766 = vld [vmem:[%s5 + $0x30] sm:$0xff]
  %v767 = vld [vmem:[%s5 + $0x38] sm:$0xff]
  %v768 = vld [vmem:[%s5 + $0x40] sm:$0xff]
  %v769 = vld [vmem:[%s5 + $0x48] sm:$0xff]
  %v770 = vld [vmem:[%s5 + $0x50] sm:$0xff]
  %v771 = vld [vmem:[%s5 + $0x58] sm:$0xff]
  %v772 = vld [vmem:[%s5 + $0x60] sm:$0xff]
  %v773 = vld [vmem:[%s5 + $0x68] sm:$0xff]
  %v774 = vld [vmem:[%s5 + $0x70] sm:$0xff]
  %v775 = vld [vmem:[%s5 + $0x78] sm:$0xff]
  %v776 = vld [vmem:[%s5 + $0x80] sm:$0xff]
  %v777 = vld [vmem:[%s5 + $0x88] sm:$0xff]
  %v778 = vld [vmem:[%s5 + $0x90] sm:$0xff]
  %v779 = vld [vmem:[%s5 + $0x98] sm:$0xff]
  %v780 = vld [vmem:[%s5 + $0xa0] sm:$0xff]
  %v781 = vld [vmem:[%s5 + $0xa8] sm:$0xff]
  %v782 = vld [vmem:[%s5 + $0xb0] sm:$0xff]
  %v783 = vld [vmem:[%s5 + $0xb8] sm:$0xff]
  %v784 = vld [vmem:[%s5 + $0xc0] sm:$0xff]
  %v785 = vld [vmem:[%s5 + $0xc8] sm:$0xff]
  %v786 = vld [vmem:[%s5 + $0xd0] sm:$0xff]
  %v787 = vld [vmem:[%s5 + $0xd8] sm:$0xff]
  %v788 = vld [vmem:[%s5 + $0xe0] sm:$0xff]
  %v789 = vld [vmem:[%s5 + $0xe8] sm:$0xff]
  %v790 = vld [vmem:[%s5 + $0xf0] sm:$0xff]
  %v791 = vld [vmem:[%s5 + $0xf8] sm:$0xff]
  %v792 = vld [vmem:[%s5 + $0x100] sm:$0xff]
  %v793 = vld [vmem:[%s5 + $0x108] sm:$0xff]
  %v794 = vld [vmem:[%s5 + $0x110] sm:$0xff]
  %v795 = vld [vmem:[%s5 + $0x118] sm:$0xff]
  %v796 = vld [vmem:[%s5 + $0x120] sm:$0xff]
  %v797 = vld [vmem:[%s5 + $0x128] sm:$0xff]
  %v798 = vld [vmem:[%s5 + $0x130] sm:$0xff]
  %v799 = vld [vmem:[%s5 + $0x138] sm:$0xff]
  %v800 = vld [vmem:[%s5 + $0x140] sm:$0xff]
  %v801 = vld [vmem:[%s5 + $0x148] sm:$0xff]
  %v802 = vld [vmem:[%s5 + $0x150] sm:$0xff]
  %v803 = vld [vmem:[%s5 + $0x158] sm:$0xff]
  %v804 = vld [vmem:[%s5 + $0x160] sm:$0xff]
  %v805 = vld [vmem:[%s5 + $0x168] sm:$0xff]
  %v806 = vld [vmem:[%s5 + $0x170] sm:$0xff]
  %v807 = vld [vmem:[%s5 + $0x178] sm:$0xff]
  %v808 = vld [vmem:[%s5 + $0x180] sm:$0xff]
  %v809 = vld [vmem:[%s5 + $0x188] sm:$0xff]
  %v810 = vld [vmem:[%s5 + $0x190] sm:$0xff]
  %v811 = vld [vmem:[%s5 + $0x198] sm:$0xff]
  %v812 = vld [vmem:[%s5 + $0x1a0] sm:$0xff]
  %v813 = vld [vmem:[%s5 + $0x1a8] sm:$0xff]
  %v814 = vld [vmem:[%s5 + $0x1b0] sm:$0xff]
  %v815 = vld [vmem:[%s5 + $0x1b8] sm:$0xff]
  %v816 = vld [vmem:[%s5 + $0x1c0] sm:$0xff]
  %v817 = vld [vmem:[%s5 + $0x1c8] sm:$0xff]
  %v818 = vld [vmem:[%s5 + $0x1d0] sm:$0xff]
  %v819 = vld [vmem:[%s5 + $0x1d8] sm:$0xff]
  %v820 = vld [vmem:[%s5 + $0x1e0] sm:$0xff]
  %v821 = vld [vmem:[%s5 + $0x1e8] sm:$0xff]
  %v822 = vld [vmem:[%s5 + $0x1f0] sm:$0xff]
  %v823 = vld [vmem:[%s5 + $0x1f8] sm:$0xff]
  %v824 = vld [vmem:[%s5 + $0x200] sm:$0xff]
  %v825 = vld [vmem:[%s5 + $0x208] sm:$0xff]
  %v826 = vld [vmem:[%s5 + $0x210] sm:$0xff]
  %v827 = vld [vmem:[%s5 + $0x218] sm:$0xff]
  %v828 = vld [vmem:[%s5 + $0x220] sm:$0xff]
  %v829 = vld [vmem:[%s5 + $0x228] sm:$0xff]
  %v830 = vld [vmem:[%s5 + $0x230] sm:$0xff]
  %v831 = vld [vmem:[%s5 + $0x238] sm:$0xff]
  %v832 = vld [vmem:[%s5 + $0x240] sm:$0xff]
  %v833 = vld [vmem:[%s5 + $0x248] sm:$0xff]
  %v834 = vld [vmem:[%s5 + $0x250] sm:$0xff]
  %v835 = vld [vmem:[%s5 + $0x258] sm:$0xff]
  %v836 = vld [vmem:[%s5 + $0x260] sm:$0xff]
  %v837 = vld [vmem:[%s5 + $0x268] sm:$0xff]
  %v838 = vld [vmem:[%s5 + $0x270] sm:$0xff]
  %v839 = vld [vmem:[%s5 + $0x278] sm:$0xff]
  %v840 = vld [vmem:[%s5 + $0x280] sm:$0xff]
  %v841 = vld [vmem:[%s5 + $0x288] sm:$0xff]
  %v842 = vld [vmem:[%s5 + $0x290] sm:$0xff]
  %v843 = vld [vmem:[%s5 + $0x298] sm:$0xff]
  %v844 = vld [vmem:[%s5 + $0x2a0] sm:$0xff]
  %v845 = vld [vmem:[%s5 + $0x2a8] sm:$0xff]
  %v846 = vld [vmem:[%s5 + $0x2b0] sm:$0xff]
  %v847 = vld [vmem:[%s5 + $0x2b8] sm:$0xff]
  %v848 = vld [vmem:[%s5 + $0x2c0] sm:$0xff]
  %v849 = vld [vmem:[%s5 + $0x2c8] sm:$0xff]
  %v850 = vld [vmem:[%s5 + $0x2d0] sm:$0xff]
  %v851 = vld [vmem:[%s5 + $0x2d8] sm:$0xff]
  %v852 = vld [vmem:[%s5 + $0x2e0] sm:$0xff]
  %v853 = vld [vmem:[%s5 + $0x2e8] sm:$0xff]
  %v854 = vld [vmem:[%s5 + $0x2f0] sm:$0xff]
  %v855 = vld [vmem:[%s5 + $0x2f8] sm:$0xff]
  %v856 = vld [vmem:[%s5 + $0x300] sm:$0xff]
  %v857 = vld [vmem:[%s5 + $0x308] sm:$0xff]
  %v858 = vld [vmem:[%s5 + $0x310] sm:$0xff]
  %v859 = vld [vmem:[%s5 + $0x318] sm:$0xff]
  %v860 = vld [vmem:[%s5 + $0x320] sm:$0xff]
  %v861 = vld [vmem:[%s5 + $0x328] sm:$0xff]
  %v862 = vld [vmem:[%s5 + $0x330] sm:$0xff]
  %v863 = vld [vmem:[%s5 + $0x338] sm:$0xff]
  %v864 = vld [vmem:[%s5 + $0x340] sm:$0xff]
  %v865 = vld [vmem:[%s5 + $0x348] sm:$0xff]
  %v866 = vld [vmem:[%s5 + $0x350] sm:$0xff]
  %v867 = vld [vmem:[%s5 + $0x358] sm:$0xff]
  %v868 = vld [vmem:[%s5 + $0x360] sm:$0xff]
  %v869 = vld [vmem:[%s5 + $0x368] sm:$0xff]
  %v870 = vld [vmem:[%s5 + $0x370] sm:$0xff]
  %v871 = vld [vmem:[%s5 + $0x378] sm:$0xff]
  %v872 = vld [vmem:[%s5 + $0x380] sm:$0xff]
  %v873 = vld [vmem:[%s5 + $0x388] sm:$0xff]
  %v874 = vld [vmem:[%s5 + $0x390] sm:$0xff]
  %v875 = vld [vmem:[%s5 + $0x398] sm:$0xff]
  %v876 = vld [vmem:[%s5 + $0x3a0] sm:$0xff]
  %v877 = vld [vmem:[%s5 + $0x3a8] sm:$0xff]
  %v878 = vld [vmem:[%s5 + $0x3b0] sm:$0xff]
  %v879 = vld [vmem:[%s5 + $0x3b8] sm:$0xff]
  %v880 = vld [vmem:[%s5 + $0x3c0] sm:$0xff]
  %v881 = vld [vmem:[%s5 + $0x3c8] sm:$0xff]
  %v882 = vld [vmem:[%s5 + $0x3d0] sm:$0xff]
  %v883 = vld [vmem:[%s5 + $0x3d8] sm:$0xff]
  %v884 = vld [vmem:[%s5 + $0x3e0] sm:$0xff]
  %v885 = vld [vmem:[%s5 + $0x3e8] sm:$0xff]
  %v886 = vld [vmem:[%s5 + $0x3f0] sm:$0xff]
  %v887 = vld [vmem:[%s5 + $0x3f8] sm:$0xff]
  %888 = vmatprep.subr.mxu0 %v821
  %889 = vmatpush1.msra.mxu0 %v820
  %890 = vmatprep.subr.mxu0 %v817
  %891 = vmatpush1.msra.mxu0 %v816
  %892 = vmatprep.subr.mxu0 %v813
  %893 = vmatpush1.msra.mxu0 %v812
  %894 = vmatprep.subr.mxu0 %v809
  %895 = vmatpush1.msra.mxu0 %v808
  %896 = vmatprep.subr.mxu0 %v805
  %897 = vmatpush1.msra.mxu0 %v804
  %898 = vmatprep.subr.mxu0 %v801
  %899 = vmatpush1.msra.mxu0 %v800
  %900 = vmatprep.subr.mxu0 %v797
  %901 = vmatpush1.msra.mxu0 %v796
  %902 = vmatprep.subr.mxu0 %v793
  %903 = vmatpush1.msra.mxu0 %v792
  %904 = vmatprep.subr.mxu0 %v789
  %905 = vmatpush1.msra.mxu0 %v788
  %906 = vmatprep.subr.mxu0 %v785
  %907 = vmatpush1.msra.mxu0 %v784
  %908 = vmatprep.subr.mxu0 %v781
  %909 = vmatpush1.msra.mxu0 %v780
  %910 = vmatprep.subr.mxu0 %v777
  %911 = vmatpush1.msra.mxu0 %v776
  %912 = vmatprep.subr.mxu0 %v773
  %913 = vmatpush1.msra.mxu0 %v772
  %914 = vmatprep.subr.mxu0 %v769
  %915 = vmatpush1.msra.mxu0 %v768
  %916 = vmatprep.subr.mxu0 %v765
  %917 = vmatpush1.msra.mxu0 %v764
  %918 = vmatprep.subr.mxu0 %v761
  %919 = vmatpush1.msra.mxu0 %v760
  %920 = vmatprep.subr.mxu0 %v885
  %921 = vmatpush2.msra.mxu0 %v884
  %922 = vmatprep.subr.mxu0 %v881
  %923 = vmatpush2.msra.mxu0 %v880
  %924 = vmatprep.subr.mxu0 %v877
  %925 = vmatpush2.msra.mxu0 %v876
  %926 = vmatprep.subr.mxu0 %v873
  %927 = vmatpush2.msra.mxu0 %v872
  %928 = vmatprep.subr.mxu0 %v869
  %929 = vmatpush2.msra.mxu0 %v868
  %930 = vmatprep.subr.mxu0 %v865
  %931 = vmatpush2.msra.mxu0 %v864
  %932 = vmatprep.subr.mxu0 %v861
  %933 = vmatpush2.msra.mxu0 %v860
  %934 = vmatprep.subr.mxu0 %v857
  %935 = vmatpush2.msra.mxu0 %v856
  %936 = vmatprep.subr.mxu0 %v853
  %937 = vmatpush2.msra.mxu0 %v852
  %938 = vmatprep.subr.mxu0 %v849
  %939 = vmatpush2.msra.mxu0 %v848
  %940 = vmatprep.subr.mxu0 %v845
  %941 = vmatpush2.msra.mxu0 %v844
  %942 = vmatprep.subr.mxu0 %v841
  %943 = vmatpush2.msra.mxu0 %v840
  %944 = vmatprep.subr.mxu0 %v837
  %945 = vmatpush2.msra.mxu0 %v836
  %946 = vmatprep.subr.mxu0 %v833
  %947 = vmatpush2.msra.mxu0 %v832
  %948 = vmatprep.subr.mxu0 %v829
  %949 = vmatpush2.msra.mxu0 %v828
  %950 = vmatprep.subr.mxu0 %v825
  %951 = vmatpush2.msra.mxu0 %v824
  %952 = vmatprep.mubr.f32.mxu0 %v756
  %953 = vmatmul.mubr.f32.gmra.mxu0 %v670
  %v954 = vpop.f32.mrf.mxu0
  %v955 = vadd.f32 0.0, %v954
  %v956 = vpop.f32.mrf.mxu0
  %v957 = vadd.f32 0.0, %v956
  %958 = vmatprep.mubr.f32.mxu0 %v757
  %959 = vmatmul.mubr.f32.gmra.mxu0 %v671
  %v960 = vpop.f32.mrf.mxu0
  %v961 = vadd.f32 0.0, %v960
  %v962 = vpop.f32.mrf.mxu0
  %v963 = vadd.f32 0.0, %v962
  %964 = vmatprep.mubr.f32.mxu0 %v758
  %965 = vmatmul.mubr.f32.gmra.mxu0 %v672
  %v966 = vpop.f32.mrf.mxu0
  %v967 = vadd.f32 0.0, %v966
  %v968 = vpop.f32.mrf.mxu0
  %v969 = vadd.f32 0.0, %v968
  %970 = vmatprep.mubr.f32.mxu0 %v759
  %971 = vmatmul.mubr.f32.gmra.mxu0 %v673
  %v972 = vpop.f32.mrf.mxu0
  %v973 = vadd.f32 0.0, %v972
  %v974 = vpop.f32.mrf.mxu0
  %v975 = vadd.f32 0.0, %v974
  %976 = vdwg.mxu0
  %977 = vmatprep.subr.mxu0 %v823
  %978 = vmatpush1.msra.mxu0 %v822
  %979 = vmatprep.subr.mxu0 %v819
  %980 = vmatpush1.msra.mxu0 %v818
  %981 = vmatprep.subr.mxu0 %v815
  %982 = vmatpush1.msra.mxu0 %v814
  %983 = vmatprep.subr.mxu0 %v811
  %984 = vmatpush1.msra.mxu0 %v810
  %985 = vmatprep.subr.mxu0 %v807
  %986 = vmatpush1.msra.mxu0 %v806
  %987 = vmatprep.subr.mxu0 %v803
  %988 = vmatpush1.msra.mxu0 %v802
  %989 = vmatprep.subr.mxu0 %v799
  %990 = vmatpush1.msra.mxu0 %v798
  %991 = vmatprep.subr.mxu0 %v795
  %992 = vmatpush1.msra.mxu0 %v794
  %993 = vmatprep.subr.mxu0 %v791
  %994 = vmatpush1.msra.mxu0 %v790
  %995 = vmatprep.subr.mxu0 %v787
  %996 = vmatpush1.msra.mxu0 %v786
  %997 = vmatprep.subr.mxu0 %v783
  %998 = vmatpush1.msra.mxu0 %v782
  %999 = vmatprep.subr.mxu0 %v779
  %1000 = vmatpush1.msra.mxu0 %v778
  %1001 = vmatprep.subr.mxu0 %v775
  %1002 = vmatpush1.msra.mxu0 %v774
  %1003 = vmatprep.subr.mxu0 %v771
  %1004 = vmatpush1.msra.mxu0 %v770
  %1005 = vmatprep.subr.mxu0 %v767
  %1006 = vmatpush1.msra.mxu0 %v766
  %1007 = vmatprep.subr.mxu0 %v763
  %1008 = vmatpush1.msra.mxu0 %v762
  %1009 = vmatprep.subr.mxu0 %v887
  %1010 = vmatpush2.msra.mxu0 %v886
  %1011 = vmatprep.subr.mxu0 %v883
  %1012 = vmatpush2.msra.mxu0 %v882
  %1013 = vmatprep.subr.mxu0 %v879
  %1014 = vmatpush2.msra.mxu0 %v878
  %1015 = vmatprep.subr.mxu0 %v875
  %1016 = vmatpush2.msra.mxu0 %v874
  %1017 = vmatprep.subr.mxu0 %v871
  %1018 = vmatpush2.msra.mxu0 %v870
  %1019 = vmatprep.subr.mxu0 %v867
  %1020 = vmatpush2.msra.mxu0 %v866
  %1021 = vmatprep.subr.mxu0 %v863
  %1022 = vmatpush2.msra.mxu0 %v862
  %1023 = vmatprep.subr.mxu0 %v859
  %1024 = vmatpush2.msra.mxu0 %v858
  %1025 = vmatprep.subr.mxu0 %v855
  %1026 = vmatpush2.msra.mxu0 %v854
  %1027 = vmatprep.subr.mxu0 %v851
  %1028 = vmatpush2.msra.mxu0 %v850
  %1029 = vmatprep.subr.mxu0 %v847
  %1030 = vmatpush2.msra.mxu0 %v846
  %1031 = vmatprep.subr.mxu0 %v843
  %1032 = vmatpush2.msra.mxu0 %v842
  %1033 = vmatprep.subr.mxu0 %v839
  %1034 = vmatpush2.msra.mxu0 %v838
  %1035 = vmatprep.subr.mxu0 %v835
  %1036 = vmatpush2.msra.mxu0 %v834
  %1037 = vmatprep.subr.mxu0 %v831
  %1038 = vmatpush2.msra.mxu0 %v830
  %1039 = vmatprep.subr.mxu0 %v827
  %1040 = vmatpush2.msra.mxu0 %v826
  %1041 = vmatprep.mubr.f32.mxu0 %v756
  %1042 = vmatmul.mubr.f32.gmra.mxu0 %v670
  %v1043 = vpop.f32.mrf.mxu0
  %v1044 = vadd.f32 0.0, %v1043
  %v1045 = vpop.f32.mrf.mxu0
  %v1046 = vadd.f32 0.0, %v1045
  %1047 = vmatprep.mubr.f32.mxu0 %v757
  %1048 = vmatmul.mubr.f32.gmra.mxu0 %v671
  %v1049 = vpop.f32.mrf.mxu0
  %v1050 = vadd.f32 0.0, %v1049
  %v1051 = vpop.f32.mrf.mxu0
  %v1052 = vadd.f32 0.0, %v1051
  %1053 = vmatprep.mubr.f32.mxu0 %v758
  %1054 = vmatmul.mubr.f32.gmra.mxu0 %v672
  %v1055 = vpop.f32.mrf.mxu0
  %v1056 = vadd.f32 0.0, %v1055
  %v1057 = vpop.f32.mrf.mxu0
  %v1058 = vadd.f32 0.0, %v1057
  %1059 = vmatprep.mubr.f32.mxu0 %v759
  %1060 = vmatmul.mubr.f32.gmra.mxu0 %v673
  %v1061 = vpop.f32.mrf.mxu0
  %v1062 = vadd.f32 0.0, %v1061
  %v1063 = vpop.f32.mrf.mxu0
  %v1064 = vadd.f32 0.0, %v1063
  %1065 = vdwg.mxu0
  %v1066 = vld [vmem:[%s6] sm:$0x1]
  %v1067 = vld [vmem:[%s7] sm:$0x1]
  %v1068 = vld [vmem:[%s8] sm:$0xff]
  %v1069 = vld [vmem:[%s8 + $0x8] sm:$0xff]
  %v1070 = vld [vmem:[%s8 + $0x10] sm:$0xff]
  %v1071 = vld [vmem:[%s8 + $0x18] sm:$0xff]
  %1072 = vmatprep.subr.mxu0 0.0
  %1073 = vmatpush1.xpose.msra.mxu0 0.0
  %1074 = vmatprep.subr.mxu0 0.0
  %1075 = vmatpush1.xpose.msra.mxu0 0.0
  %1076 = vmatprep.subr.mxu0 0.0
  %1077 = vmatpush1.xpose.msra.mxu0 0.0
  %1078 = vmatprep.subr.mxu0 0.0
  %1079 = vmatpush1.xpose.msra.mxu0 0.0
  %1080 = vmatprep.subr.mxu0 0.0
  %1081 = vmatpush1.xpose.msra.mxu0 0.0
  %1082 = vmatprep.subr.mxu0 0.0
  %1083 = vmatpush1.xpose.msra.mxu0 0.0
  %1084 = vmatprep.subr.mxu0 0.0
  %1085 = vmatpush1.xpose.msra.mxu0 0.0
  %1086 = vmatprep.subr.mxu0 0.0
  %1087 = vmatpush1.xpose.msra.mxu0 0.0
  %1088 = vmatprep.subr.mxu0 0.0
  %1089 = vmatpush1.xpose.msra.mxu0 0.0
  %1090 = vmatprep.subr.mxu0 0.0
  %1091 = vmatpush1.xpose.msra.mxu0 0.0
  %1092 = vmatprep.subr.mxu0 0.0
  %1093 = vmatpush1.xpose.msra.mxu0 0.0
  %1094 = vmatprep.subr.mxu0 0.0
  %1095 = vmatpush1.xpose.msra.mxu0 0.0
  %1096 = vmatprep.subr.mxu0 0.0
  %1097 = vmatpush1.xpose.msra.mxu0 0.0
  %1098 = vmatprep.subr.mxu0 0.0
  %1099 = vmatpush1.xpose.msra.mxu0 0.0
  %1100 = vmatprep.subr.mxu0 0.0
  %1101 = vmatpush1.xpose.msra.mxu0 0.0
  %1102 = vmatprep.subr.mxu0 %v1069
  %1103 = vmatpush1.xpose.msra.mxu0 %v1068
  %1104 = vmatprep.subr.mxu0 0.0
  %1105 = vmatpush2.xpose.msra.mxu0 0.0
  %1106 = vmatprep.subr.mxu0 0.0
  %1107 = vmatpush2.xpose.msra.mxu0 0.0
  %1108 = vmatprep.subr.mxu0 0.0
  %1109 = vmatpush2.xpose.msra.mxu0 0.0
  %1110 = vmatprep.subr.mxu0 0.0
  %1111 = vmatpush2.xpose.msra.mxu0 0.0
  %1112 = vmatprep.subr.mxu0 0.0
  %1113 = vmatpush2.xpose.msra.mxu0 0.0
  %1114 = vmatprep.subr.mxu0 0.0
  %1115 = vmatpush2.xpose.msra.mxu0 0.0
  %1116 = vmatprep.subr.mxu0 0.0
  %1117 = vmatpush2.xpose.msra.mxu0 0.0
  %1118 = vmatprep.subr.mxu0 0.0
  %1119 = vmatpush2.xpose.msra.mxu0 0.0
  %1120 = vmatprep.subr.mxu0 0.0
  %1121 = vmatpush2.xpose.msra.mxu0 0.0
  %1122 = vmatprep.subr.mxu0 0.0
  %1123 = vmatpush2.xpose.msra.mxu0 0.0
  %1124 = vmatprep.subr.mxu0 0.0
  %1125 = vmatpush2.xpose.msra.mxu0 0.0
  %1126 = vmatprep.subr.mxu0 0.0
  %1127 = vmatpush2.xpose.msra.mxu0 0.0
  %1128 = vmatprep.subr.mxu0 0.0
  %1129 = vmatpush2.xpose.msra.mxu0 0.0
  %1130 = vmatprep.subr.mxu0 0.0
  %1131 = vmatpush2.xpose.msra.mxu0 0.0
  %1132 = vmatprep.subr.mxu0 0.0
  %1133 = vmatpush2.xpose.msra.mxu0 0.0
  %1134 = vmatprep.subr.mxu0 0.0
  %1135 = vmatpush2.xpose.msra.mxu0 0.0
  %1136 = vmatprep.mubr.f32.mxu0 %v957
  %1137 = vmatmul.mubr.f32.gmra.mxu0 %v955
  %v1138 = vpop.f32.mrf.mxu0
  %v1139 = vadd.f32 0.0, %v1138
  %v1140 = vpop.f32.mrf.mxu0
  %1141 = vmatprep.mubr.f32.mxu0 %v963
  %1142 = vmatmul.mubr.f32.gmra.mxu0 %v961
  %v1143 = vpop.f32.mrf.mxu0
  %v1144 = vadd.f32 0.0, %v1143
  %v1145 = vpop.f32.mrf.mxu0
  %1146 = vmatprep.mubr.f32.mxu0 %v969
  %1147 = vmatmul.mubr.f32.gmra.mxu0 %v967
  %v1148 = vpop.f32.mrf.mxu0
  %v1149 = vadd.f32 0.0, %v1148
  %v1150 = vpop.f32.mrf.mxu0
  %1151 = vmatprep.mubr.f32.mxu0 %v975
  %1152 = vmatmul.mubr.f32.gmra.mxu0 %v973
  %v1153 = vpop.f32.mrf.mxu0
  %v1154 = vadd.f32 0.0, %v1153
  %v1155 = vpop.f32.mrf.mxu0
  %1156 = vdwg.mxu0
  %1157 = vmatprep.subr.mxu0 0.0
  %1158 = vmatpush1.xpose.msra.mxu0 0.0
  %1159 = vmatprep.subr.mxu0 0.0
  %1160 = vmatpush1.xpose.msra.mxu0 0.0
  %1161 = vmatprep.subr.mxu0 0.0
  %1162 = vmatpush1.xpose.msra.mxu0 0.0
  %1163 = vmatprep.subr.mxu0 0.0
  %1164 = vmatpush1.xpose.msra.mxu0 0.0
  %1165 = vmatprep.subr.mxu0 0.0
  %1166 = vmatpush1.xpose.msra.mxu0 0.0
  %1167 = vmatprep.subr.mxu0 0.0
  %1168 = vmatpush1.xpose.msra.mxu0 0.0
  %1169 = vmatprep.subr.mxu0 0.0
  %1170 = vmatpush1.xpose.msra.mxu0 0.0
  %1171 = vmatprep.subr.mxu0 0.0
  %1172 = vmatpush1.xpose.msra.mxu0 0.0
  %1173 = vmatprep.subr.mxu0 0.0
  %1174 = vmatpush1.xpose.msra.mxu0 0.0
  %1175 = vmatprep.subr.mxu0 0.0
  %1176 = vmatpush1.xpose.msra.mxu0 0.0
  %1177 = vmatprep.subr.mxu0 0.0
  %1178 = vmatpush1.xpose.msra.mxu0 0.0
  %1179 = vmatprep.subr.mxu0 0.0
  %1180 = vmatpush1.xpose.msra.mxu0 0.0
  %1181 = vmatprep.subr.mxu0 0.0
  %1182 = vmatpush1.xpose.msra.mxu0 0.0
  %1183 = vmatprep.subr.mxu0 0.0
  %1184 = vmatpush1.xpose.msra.mxu0 0.0
  %1185 = vmatprep.subr.mxu0 0.0
  %1186 = vmatpush1.xpose.msra.mxu0 0.0
  %1187 = vmatprep.subr.mxu0 %v1071
  %1188 = vmatpush1.xpose.msra.mxu0 %v1070
  %1189 = vmatprep.subr.mxu0 0.0
  %1190 = vmatpush2.xpose.msra.mxu0 0.0
  %1191 = vmatprep.subr.mxu0 0.0
  %1192 = vmatpush2.xpose.msra.mxu0 0.0
  %1193 = vmatprep.subr.mxu0 0.0
  %1194 = vmatpush2.xpose.msra.mxu0 0.0
  %1195 = vmatprep.subr.mxu0 0.0
  %1196 = vmatpush2.xpose.msra.mxu0 0.0
  %1197 = vmatprep.subr.mxu0 0.0
  %1198 = vmatpush2.xpose.msra.mxu0 0.0
  %1199 = vmatprep.subr.mxu0 0.0
  %1200 = vmatpush2.xpose.msra.mxu0 0.0
  %1201 = vmatprep.subr.mxu0 0.0
  %1202 = vmatpush2.xpose.msra.mxu0 0.0
  %1203 = vmatprep.subr.mxu0 0.0
  %1204 = vmatpush2.xpose.msra.mxu0 0.0
  %1205 = vmatprep.subr.mxu0 0.0
  %1206 = vmatpush2.xpose.msra.mxu0 0.0
  %1207 = vmatprep.subr.mxu0 0.0
  %1208 = vmatpush2.xpose.msra.mxu0 0.0
  %1209 = vmatprep.subr.mxu0 0.0
  %1210 = vmatpush2.xpose.msra.mxu0 0.0
  %1211 = vmatprep.subr.mxu0 0.0
  %1212 = vmatpush2.xpose.msra.mxu0 0.0
  %1213 = vmatprep.subr.mxu0 0.0
  %1214 = vmatpush2.xpose.msra.mxu0 0.0
  %1215 = vmatprep.subr.mxu0 0.0
  %1216 = vmatpush2.xpose.msra.mxu0 0.0
  %1217 = vmatprep.subr.mxu0 0.0
  %1218 = vmatpush2.xpose.msra.mxu0 0.0
  %1219 = vmatprep.subr.mxu0 0.0
  %1220 = vmatpush2.xpose.msra.mxu0 0.0
  %1221 = vmatprep.mubr.f32.mxu0 %v1046
  %1222 = vmatmul.mubr.f32.gmra.mxu0 %v1044
  %v1223 = vpop.f32.mrf.mxu0
  %v1224 = vadd.f32 %v1139, %v1223
  %v1225 = vpop.f32.mrf.mxu0
  %1226 = vmatprep.mubr.f32.mxu0 %v1052
  %1227 = vmatmul.mubr.f32.gmra.mxu0 %v1050
  %v1228 = vpop.f32.mrf.mxu0
  %v1229 = vadd.f32 %v1144, %v1228
  %v1230 = vpop.f32.mrf.mxu0
  %1231 = vmatprep.mubr.f32.mxu0 %v1058
  %1232 = vmatmul.mubr.f32.gmra.mxu0 %v1056
  %v1233 = vpop.f32.mrf.mxu0
  %v1234 = vadd.f32 %v1149, %v1233
  %v1235 = vpop.f32.mrf.mxu0
  %1236 = vmatprep.mubr.f32.mxu0 %v1064
  %1237 = vmatmul.mubr.f32.gmra.mxu0 %v1062
  %v1238 = vpop.f32.mrf.mxu0
  %v1239 = vadd.f32 %v1154, %v1238
  %v1240 = vpop.f32.mrf.mxu0
  %1241 = vdwg.mxu0
  %v1242 = vmul.f32 %v955, %v955
  %v1243 = vmul.f32 %v957, %v957
  %v1244 = vmul.f32 %v1044, %v1044
  %v1245 = vmul.f32 %v1046, %v1046
  %v1246 = vmul.f32 %v961, %v961
  %v1247 = vmul.f32 %v963, %v963
  %v1248 = vmul.f32 %v1050, %v1050
  %v1249 = vmul.f32 %v1052, %v1052
  %v1250 = vmul.f32 %v967, %v967
  %v1251 = vmul.f32 %v969, %v969
  %v1252 = vmul.f32 %v1056, %v1056
  %v1253 = vmul.f32 %v1058, %v1058
  %v1254 = vmul.f32 %v973, %v973
  %v1255 = vmul.f32 %v975, %v975
  %v1256 = vmul.f32 %v1062, %v1062
  %v1257 = vmul.f32 %v1064, %v1064
  %1258 = vmatprep.subr.mxu0 0.0
  %1259 = vmatpush1.xpose.msra.mxu0 0.0
  %1260 = vmatprep.subr.mxu0 0.0
  %1261 = vmatpush1.xpose.msra.mxu0 0.0
  %1262 = vmatprep.subr.mxu0 0.0
  %1263 = vmatpush1.xpose.msra.mxu0 0.0
  %1264 = vmatprep.subr.mxu0 0.0
  %1265 = vmatpush1.xpose.msra.mxu0 0.0
  %1266 = vmatprep.subr.mxu0 0.0
  %1267 = vmatpush1.xpose.msra.mxu0 0.0
  %1268 = vmatprep.subr.mxu0 0.0
  %1269 = vmatpush1.xpose.msra.mxu0 0.0
  %1270 = vmatprep.subr.mxu0 0.0
  %1271 = vmatpush1.xpose.msra.mxu0 0.0
  %1272 = vmatprep.subr.mxu0 0.0
  %1273 = vmatpush1.xpose.msra.mxu0 0.0
  %1274 = vmatprep.subr.mxu0 0.0
  %1275 = vmatpush1.xpose.msra.mxu0 0.0
  %1276 = vmatprep.subr.mxu0 0.0
  %1277 = vmatpush1.xpose.msra.mxu0 0.0
  %1278 = vmatprep.subr.mxu0 0.0
  %1279 = vmatpush1.xpose.msra.mxu0 0.0
  %1280 = vmatprep.subr.mxu0 0.0
  %1281 = vmatpush1.xpose.msra.mxu0 0.0
  %1282 = vmatprep.subr.mxu0 0.0
  %1283 = vmatpush1.xpose.msra.mxu0 0.0
  %1284 = vmatprep.subr.mxu0 0.0
  %1285 = vmatpush1.xpose.msra.mxu0 0.0
  %1286 = vmatprep.subr.mxu0 0.0
  %1287 = vmatpush1.xpose.msra.mxu0 0.0
  %1288 = vmatprep.subr.mxu0 %v1069
  %1289 = vmatpush1.xpose.msra.mxu0 %v1068
  %1290 = vmatprep.subr.mxu0 0.0
  %1291 = vmatpush2.xpose.msra.mxu0 0.0
  %1292 = vmatprep.subr.mxu0 0.0
  %1293 = vmatpush2.xpose.msra.mxu0 0.0
  %1294 = vmatprep.subr.mxu0 0.0
  %1295 = vmatpush2.xpose.msra.mxu0 0.0
  %1296 = vmatprep.subr.mxu0 0.0
  %1297 = vmatpush2.xpose.msra.mxu0 0.0
  %1298 = vmatprep.subr.mxu0 0.0
  %1299 = vmatpush2.xpose.msra.mxu0 0.0
  %1300 = vmatprep.subr.mxu0 0.0
  %1301 = vmatpush2.xpose.msra.mxu0 0.0
  %1302 = vmatprep.subr.mxu0 0.0
  %1303 = vmatpush2.xpose.msra.mxu0 0.0
  %1304 = vmatprep.subr.mxu0 0.0
  %1305 = vmatpush2.xpose.msra.mxu0 0.0
  %1306 = vmatprep.subr.mxu0 0.0
  %1307 = vmatpush2.xpose.msra.mxu0 0.0
  %1308 = vmatprep.subr.mxu0 0.0
  %1309 = vmatpush2.xpose.msra.mxu0 0.0
  %1310 = vmatprep.subr.mxu0 0.0
  %1311 = vmatpush2.xpose.msra.mxu0 0.0
  %1312 = vmatprep.subr.mxu0 0.0
  %1313 = vmatpush2.xpose.msra.mxu0 0.0
  %1314 = vmatprep.subr.mxu0 0.0
  %1315 = vmatpush2.xpose.msra.mxu0 0.0
  %1316 = vmatprep.subr.mxu0 0.0
  %1317 = vmatpush2.xpose.msra.mxu0 0.0
  %1318 = vmatprep.subr.mxu0 0.0
  %1319 = vmatpush2.xpose.msra.mxu0 0.0
  %1320 = vmatprep.subr.mxu0 0.0
  %1321 = vmatpush2.xpose.msra.mxu0 0.0
  %1322 = vmatprep.mubr.f32.mxu0 %v1243
  %1323 = vmatmul.mubr.f32.gmra.mxu0 %v1242
  %v1324 = vpop.f32.mrf.mxu0
  %v1325 = vadd.f32 0.0, %v1324
  %v1326 = vpop.f32.mrf.mxu0
  %1327 = vmatprep.mubr.f32.mxu0 %v1247
  %1328 = vmatmul.mubr.f32.gmra.mxu0 %v1246
  %v1329 = vpop.f32.mrf.mxu0
  %v1330 = vadd.f32 0.0, %v1329
  %v1331 = vpop.f32.mrf.mxu0
  %1332 = vmatprep.mubr.f32.mxu0 %v1251
  %1333 = vmatmul.mubr.f32.gmra.mxu0 %v1250
  %v1334 = vpop.f32.mrf.mxu0
  %v1335 = vadd.f32 0.0, %v1334
  %v1336 = vpop.f32.mrf.mxu0
  %1337 = vmatprep.mubr.f32.mxu0 %v1255
  %1338 = vmatmul.mubr.f32.gmra.mxu0 %v1254
  %v1339 = vpop.f32.mrf.mxu0
  %v1340 = vadd.f32 0.0, %v1339
  %v1341 = vpop.f32.mrf.mxu0
  %1342 = vdwg.mxu0
  %1343 = vmatprep.subr.mxu0 0.0
  %1344 = vmatpush1.xpose.msra.mxu0 0.0
  %1345 = vmatprep.subr.mxu0 0.0
  %1346 = vmatpush1.xpose.msra.mxu0 0.0
  %1347 = vmatprep.subr.mxu0 0.0
  %1348 = vmatpush1.xpose.msra.mxu0 0.0
  %1349 = vmatprep.subr.mxu0 0.0
  %1350 = vmatpush1.xpose.msra.mxu0 0.0
  %1351 = vmatprep.subr.mxu0 0.0
  %1352 = vmatpush1.xpose.msra.mxu0 0.0
  %1353 = vmatprep.subr.mxu0 0.0
  %1354 = vmatpush1.xpose.msra.mxu0 0.0
  %1355 = vmatprep.subr.mxu0 0.0
  %1356 = vmatpush1.xpose.msra.mxu0 0.0
  %1357 = vmatprep.subr.mxu0 0.0
  %1358 = vmatpush1.xpose.msra.mxu0 0.0
  %1359 = vmatprep.subr.mxu0 0.0
  %1360 = vmatpush1.xpose.msra.mxu0 0.0
  %1361 = vmatprep.subr.mxu0 0.0
  %1362 = vmatpush1.xpose.msra.mxu0 0.0
  %1363 = vmatprep.subr.mxu0 0.0
  %1364 = vmatpush1.xpose.msra.mxu0 0.0
  %1365 = vmatprep.subr.mxu0 0.0
  %1366 = vmatpush1.xpose.msra.mxu0 0.0
  %1367 = vmatprep.subr.mxu0 0.0
  %1368 = vmatpush1.xpose.msra.mxu0 0.0
  %1369 = vmatprep.subr.mxu0 0.0
  %1370 = vmatpush1.xpose.msra.mxu0 0.0
  %1371 = vmatprep.subr.mxu0 0.0
  %1372 = vmatpush1.xpose.msra.mxu0 0.0
  %1373 = vmatprep.subr.mxu0 %v1071
  %1374 = vmatpush1.xpose.msra.mxu0 %v1070
  %1375 = vmatprep.subr.mxu0 0.0
  %1376 = vmatpush2.xpose.msra.mxu0 0.0
  %1377 = vmatprep.subr.mxu0 0.0
  %1378 = vmatpush2.xpose.msra.mxu0 0.0
  %1379 = vmatprep.subr.mxu0 0.0
  %1380 = vmatpush2.xpose.msra.mxu0 0.0
  %1381 = vmatprep.subr.mxu0 0.0
  %1382 = vmatpush2.xpose.msra.mxu0 0.0
  %1383 = vmatprep.subr.mxu0 0.0
  %1384 = vmatpush2.xpose.msra.mxu0 0.0
  %1385 = vmatprep.subr.mxu0 0.0
  %1386 = vmatpush2.xpose.msra.mxu0 0.0
  %1387 = vmatprep.subr.mxu0 0.0
  %1388 = vmatpush2.xpose.msra.mxu0 0.0
  %1389 = vmatprep.subr.mxu0 0.0
  %1390 = vmatpush2.xpose.msra.mxu0 0.0
  %1391 = vmatprep.subr.mxu0 0.0
  %1392 = vmatpush2.xpose.msra.mxu0 0.0
  %1393 = vmatprep.subr.mxu0 0.0
  %1394 = vmatpush2.xpose.msra.mxu0 0.0
  %1395 = vmatprep.subr.mxu0 0.0
  %1396 = vmatpush2.xpose.msra.mxu0 0.0
  %1397 = vmatprep.subr.mxu0 0.0
  %1398 = vmatpush2.xpose.msra.mxu0 0.0
  %1399 = vmatprep.subr.mxu0 0.0
  %1400 = vmatpush2.xpose.msra.mxu0 0.0
  %1401 = vmatprep.subr.mxu0 0.0
  %1402 = vmatpush2.xpose.msra.mxu0 0.0
  %1403 = vmatprep.subr.mxu0 0.0
  %1404 = vmatpush2.xpose.msra.mxu0 0.0
  %1405 = vmatprep.subr.mxu0 0.0
  %1406 = vmatpush2.xpose.msra.mxu0 0.0
  %1407 = vmatprep.mubr.f32.mxu0 %v1245
  %1408 = vmatmul.mubr.f32.gmra.mxu0 %v1244
  %v1409 = vpop.f32.mrf.mxu0
  %v1410 = vadd.f32 %v1325, %v1409
  %v1411 = vpop.f32.mrf.mxu0
  %1412 = vmatprep.mubr.f32.mxu0 %v1249
  %1413 = vmatmul.mubr.f32.gmra.mxu0 %v1248
  %v1414 = vpop.f32.mrf.mxu0
  %v1415 = vadd.f32 %v1330, %v1414
  %v1416 = vpop.f32.mrf.mxu0
  %1417 = vmatprep.mubr.f32.mxu0 %v1253
  %1418 = vmatmul.mubr.f32.gmra.mxu0 %v1252
  %v1419 = vpop.f32.mrf.mxu0
  %v1420 = vadd.f32 %v1335, %v1419
  %v1421 = vpop.f32.mrf.mxu0
  %1422 = vmatprep.mubr.f32.mxu0 %v1257
  %1423 = vmatmul.mubr.f32.gmra.mxu0 %v1256
  %v1424 = vpop.f32.mrf.mxu0
  %v1425 = vadd.f32 %v1340, %v1424
  %v1426 = vpop.f32.mrf.mxu0
  %1427 = vdwg.mxu0
  %v1428 = vsel %vm471, %v1224, 0.0
  %v1429 = vsel %vm471, %v1229, 0.0
  %v1430 = vadd.f32 %v1428, %v1429
  %v1431 = vsel %vm471, %v1234, 0.0
  %v1432 = vadd.f32 %v1430, %v1431
  %v1433 = vsel %vm471, %v1239, 0.0
  %v1434 = vadd.f32 %v1432, %v1433
  %v1435 = vrot.slane %v1434, 4
  %v1436 = vadd.f32 %v1434, %v1435
  %v1437 = vrot.slane %v1436, 2
  %v1438 = vadd.f32 %v1436, %v1437
  %v1439 = vrot.slane %v1438, 1
  %v1440 = vadd.f32 %v1438, %v1439
  %v1441 = vmul.f32 %v1440, 0.00048828125
  %v1442 = vsel %vm471, %v1410, 0.0
  %v1443 = vsel %vm471, %v1415, 0.0
  %v1444 = vadd.f32 %v1442, %v1443
  %v1445 = vsel %vm471, %v1420, 0.0
  %v1446 = vadd.f32 %v1444, %v1445
  %v1447 = vsel %vm471, %v1425, 0.0
  %v1448 = vadd.f32 %v1446, %v1447
  %v1449 = vrot.slane %v1448, 4
  %v1450 = vadd.f32 %v1448, %v1449
  %v1451 = vrot.slane %v1450, 2
  %v1452 = vadd.f32 %v1450, %v1451
  %v1453 = vrot.slane %v1452, 1
  %v1454 = vadd.f32 %v1452, %v1453
  %v1455 = vmul.f32 %v1454, 0.00048828125
  %v1456 = vmul.f32 %v1441, %v1441
  %v1457 = vsub.f32 %v1455, %v1456
  %v1458 = vmax.f32 %v1457, 0.0
  %v1459 = vadd.f32 %v1458, 1e-05
  %v1460 = vrsqrt.pop %v1459
  %v1461 = vmul.f32 %v1066, %v1460
  %v1462 = vmul.f32 %v1441, %v1461
  %v1463 = vsub.f32 %v1067, %v1462
  %v1465 = vsel %vm471, %v1461, 0
  %1467 = vmatprep.subr.mxu0 0.0
  %1468 = vmatpush1.msra.mxu0 0.0
  %1469 = vmatprep.subr.mxu0 0.0
  %1470 = vmatpush1.msra.mxu0 0.0
  %1471 = vmatprep.subr.mxu0 0.0
  %1472 = vmatpush1.msra.mxu0 0.0
  %1473 = vmatprep.subr.mxu0 0.0
  %1474 = vmatpush1.msra.mxu0 0.0
  %1475 = vmatprep.subr.mxu0 0.0
  %1476 = vmatpush1.msra.mxu0 0.0
  %1477 = vmatprep.subr.mxu0 0.0
  %1478 = vmatpush1.msra.mxu0 0.0
  %1479 = vmatprep.subr.mxu0 0.0
  %1480 = vmatpush1.msra.mxu0 0.0
  %1481 = vmatprep.subr.mxu0 0.0
  %1482 = vmatpush1.msra.mxu0 0.0
  %1483 = vmatprep.subr.mxu0 0.0
  %1484 = vmatpush1.msra.mxu0 0.0
  %1485 = vmatprep.subr.mxu0 0.0
  %1486 = vmatpush1.msra.mxu0 0.0
  %1487 = vmatprep.subr.mxu0 0.0
  %1488 = vmatpush1.msra.mxu0 0.0
  %1489 = vmatprep.subr.mxu0 0.0
  %1490 = vmatpush1.msra.mxu0 0.0
  %1491 = vmatprep.subr.mxu0 0.0
  %1492 = vmatpush1.msra.mxu0 0.0
  %1493 = vmatprep.subr.mxu0 0.0
  %1494 = vmatpush1.msra.mxu0 0.0
  %1495 = vmatprep.subr.mxu0 0.0
  %1496 = vmatpush1.msra.mxu0 0.0
  %1497 = vmatprep.subr.mxu0 %v1069
  %1498 = vmatpush1.msra.mxu0 %v1068
  %1499 = vmatprep.subr.mxu0 0.0
  %1500 = vmatpush2.msra.mxu0 0.0
  %1501 = vmatprep.subr.mxu0 0.0
  %1502 = vmatpush2.msra.mxu0 0.0
  %1503 = vmatprep.subr.mxu0 0.0
  %1504 = vmatpush2.msra.mxu0 0.0
  %1505 = vmatprep.subr.mxu0 0.0
  %1506 = vmatpush2.msra.mxu0 0.0
  %1507 = vmatprep.subr.mxu0 0.0
  %1508 = vmatpush2.msra.mxu0 0.0
  %1509 = vmatprep.subr.mxu0 0.0
  %1510 = vmatpush2.msra.mxu0 0.0
  %1511 = vmatprep.subr.mxu0 0.0
  %1512 = vmatpush2.msra.mxu0 0.0
  %1513 = vmatprep.subr.mxu0 0.0
  %1514 = vmatpush2.msra.mxu0 0.0
  %1515 = vmatprep.subr.mxu0 0.0
  %1516 = vmatpush2.msra.mxu0 0.0
  %1517 = vmatprep.subr.mxu0 0.0
  %1518 = vmatpush2.msra.mxu0 0.0
  %1519 = vmatprep.subr.mxu0 0.0
  %1520 = vmatpush2.msra.mxu0 0.0
  %1521 = vmatprep.subr.mxu0 0.0
  %1522 = vmatpush2.msra.mxu0 0.0
  %1523 = vmatprep.subr.mxu0 0.0
  %1524 = vmatpush2.msra.mxu0 0.0
  %1525 = vmatprep.subr.mxu0 0.0
  %1526 = vmatpush2.msra.mxu0 0.0
  %1527 = vmatprep.subr.mxu0 0.0
  %1528 = vmatpush2.msra.mxu0 0.0
  %1529 = vmatprep.subr.mxu0 0.0
  %1530 = vmatpush2.msra.mxu0 0.0
  %1531 = vmatprep.mubr.f32.mxu0 0.0
  %1532 = vmatmul.mubr.f32.gmra.mxu0 %v1465
  %v1533 = vpop.f32.mrf.mxu0
  %v1534 = vadd.f32 0.0, %v1533
  %v1535 = vpop.f32.mrf.mxu0
  %v1536 = vadd.f32 0.0, %v1535
  %1537 = vdwg.mxu0
  %1538 = vmatprep.subr.mxu0 0.0
  %1539 = vmatpush1.msra.mxu0 0.0
  %1540 = vmatprep.subr.mxu0 0.0
  %1541 = vmatpush1.msra.mxu0 0.0
  %1542 = vmatprep.subr.mxu0 0.0
  %1543 = vmatpush1.msra.mxu0 0.0
  %1544 = vmatprep.subr.mxu0 0.0
  %1545 = vmatpush1.msra.mxu0 0.0
  %1546 = vmatprep.subr.mxu0 0.0
  %1547 = vmatpush1.msra.mxu0 0.0
  %1548 = vmatprep.subr.mxu0 0.0
  %1549 = vmatpush1.msra.mxu0 0.0
  %1550 = vmatprep.subr.mxu0 0.0
  %1551 = vmatpush1.msra.mxu0 0.0
  %1552 = vmatprep.subr.mxu0 0.0
  %1553 = vmatpush1.msra.mxu0 0.0
  %1554 = vmatprep.subr.mxu0 0.0
  %1555 = vmatpush1.msra.mxu0 0.0
  %1556 = vmatprep.subr.mxu0 0.0
  %1557 = vmatpush1.msra.mxu0 0.0
  %1558 = vmatprep.subr.mxu0 0.0
  %1559 = vmatpush1.msra.mxu0 0.0
  %1560 = vmatprep.subr.mxu0 0.0
  %1561 = vmatpush1.msra.mxu0 0.0
  %1562 = vmatprep.subr.mxu0 0.0
  %1563 = vmatpush1.msra.mxu0 0.0
  %1564 = vmatprep.subr.mxu0 0.0
  %1565 = vmatpush1.msra.mxu0 0.0
  %1566 = vmatprep.subr.mxu0 0.0
  %1567 = vmatpush1.msra.mxu0 0.0
  %1568 = vmatprep.subr.mxu0 %v1071
  %1569 = vmatpush1.msra.mxu0 %v1070
  %1570 = vmatprep.subr.mxu0 0.0
  %1571 = vmatpush2.msra.mxu0 0.0
  %1572 = vmatprep.subr.mxu0 0.0
  %1573 = vmatpush2.msra.mxu0 0.0
  %1574 = vmatprep.subr.mxu0 0.0
  %1575 = vmatpush2.msra.mxu0 0.0
  %1576 = vmatprep.subr.mxu0 0.0
  %1577 = vmatpush2.msra.mxu0 0.0
  %1578 = vmatprep.subr.mxu0 0.0
  %1579 = vmatpush2.msra.mxu0 0.0
  %1580 = vmatprep.subr.mxu0 0.0
  %1581 = vmatpush2.msra.mxu0 0.0
  %1582 = vmatprep.subr.mxu0 0.0
  %1583 = vmatpush2.msra.mxu0 0.0
  %1584 = vmatprep.subr.mxu0 0.0
  %1585 = vmatpush2.msra.mxu0 0.0
  %1586 = vmatprep.subr.mxu0 0.0
  %1587 = vmatpush2.msra.mxu0 0.0
  %1588 = vmatprep.subr.mxu0 0.0
  %1589 = vmatpush2.msra.mxu0 0.0
  %1590 = vmatprep.subr.mxu0 0.0
  %1591 = vmatpush2.msra.mxu0 0.0
  %1592 = vmatprep.subr.mxu0 0.0
  %1593 = vmatpush2.msra.mxu0 0.0
  %1594 = vmatprep.subr.mxu0 0.0
  %1595 = vmatpush2.msra.mxu0 0.0
  %1596 = vmatprep.subr.mxu0 0.0
  %1597 = vmatpush2.msra.mxu0 0.0
  %1598 = vmatprep.subr.mxu0 0.0
  %1599 = vmatpush2.msra.mxu0 0.0
  %1600 = vmatprep.subr.mxu0 0.0
  %1601 = vmatpush2.msra.mxu0 0.0
  %1602 = vmatprep.mubr.f32.mxu0 0.0
  %1603 = vmatmul.mubr.f32.gmra.mxu0 %v1465
  %v1604 = vpop.f32.mrf.mxu0
  %v1605 = vadd.f32 0.0, %v1604
  %v1606 = vpop.f32.mrf.mxu0
  %v1607 = vadd.f32 0.0, %v1606
  %1608 = vdwg.mxu0
  %v1610 = vsel %vm471, %v1463, 0
  %1612 = vmatprep.subr.mxu0 0.0
  %1613 = vmatpush1.msra.mxu0 0.0
  %1614 = vmatprep.subr.mxu0 0.0
  %1615 = vmatpush1.msra.mxu0 0.0
  %1616 = vmatprep.subr.mxu0 0.0
  %1617 = vmatpush1.msra.mxu0 0.0
  %1618 = vmatprep.subr.mxu0 0.0
  %1619 = vmatpush1.msra.mxu0 0.0
  %1620 = vmatprep.subr.mxu0 0.0
  %1621 = vmatpush1.msra.mxu0 0.0
  %1622 = vmatprep.subr.mxu0 0.0
  %1623 = vmatpush1.msra.mxu0 0.0
  %1624 = vmatprep.subr.mxu0 0.0
  %1625 = vmatpush1.msra.mxu0 0.0
  %1626 = vmatprep.subr.mxu0 0.0
  %1627 = vmatpush1.msra.mxu0 0.0
  %1628 = vmatprep.subr.mxu0 0.0
  %1629 = vmatpush1.msra.mxu0 0.0
  %1630 = vmatprep.subr.mxu0 0.0
  %1631 = vmatpush1.msra.mxu0 0.0
  %1632 = vmatprep.subr.mxu0 0.0
  %1633 = vmatpush1.msra.mxu0 0.0
  %1634 = vmatprep.subr.mxu0 0.0
  %1635 = vmatpush1.msra.mxu0 0.0
  %1636 = vmatprep.subr.mxu0 0.0
  %1637 = vmatpush1.msra.mxu0 0.0
  %1638 = vmatprep.subr.mxu0 0.0
  %1639 = vmatpush1.msra.mxu0 0.0
  %1640 = vmatprep.subr.mxu0 0.0
  %1641 = vmatpush1.msra.mxu0 0.0
  %1642 = vmatprep.subr.mxu0 %v1069
  %1643 = vmatpush1.msra.mxu0 %v1068
  %1644 = vmatprep.subr.mxu0 0.0
  %1645 = vmatpush2.msra.mxu0 0.0
  %1646 = vmatprep.subr.mxu0 0.0
  %1647 = vmatpush2.msra.mxu0 0.0
  %1648 = vmatprep.subr.mxu0 0.0
  %1649 = vmatpush2.msra.mxu0 0.0
  %1650 = vmatprep.subr.mxu0 0.0
  %1651 = vmatpush2.msra.mxu0 0.0
  %1652 = vmatprep.subr.mxu0 0.0
  %1653 = vmatpush2.msra.mxu0 0.0
  %1654 = vmatprep.subr.mxu0 0.0
  %1655 = vmatpush2.msra.mxu0 0.0
  %1656 = vmatprep.subr.mxu0 0.0
  %1657 = vmatpush2.msra.mxu0 0.0
  %1658 = vmatprep.subr.mxu0 0.0
  %1659 = vmatpush2.msra.mxu0 0.0
  %1660 = vmatprep.subr.mxu0 0.0
  %1661 = vmatpush2.msra.mxu0 0.0
  %1662 = vmatprep.subr.mxu0 0.0
  %1663 = vmatpush2.msra.mxu0 0.0
  %1664 = vmatprep.subr.mxu0 0.0
  %1665 = vmatpush2.msra.mxu0 0.0
  %1666 = vmatprep.subr.mxu0 0.0
  %1667 = vmatpush2.msra.mxu0 0.0
  %1668 = vmatprep.subr.mxu0 0.0
  %1669 = vmatpush2.msra.mxu0 0.0
  %1670 = vmatprep.subr.mxu0 0.0
  %1671 = vmatpush2.msra.mxu0 0.0
  %1672 = vmatprep.subr.mxu0 0.0
  %1673 = vmatpush2.msra.mxu0 0.0
  %1674 = vmatprep.subr.mxu0 0.0
  %1675 = vmatpush2.msra.mxu0 0.0
  %1676 = vmatprep.mubr.f32.mxu0 0.0
  %1677 = vmatmul.mubr.f32.gmra.mxu0 %v1610
  %v1678 = vpop.f32.mrf.mxu0
  %v1679 = vadd.f32 0.0, %v1678
  %v1680 = vpop.f32.mrf.mxu0
  %v1681 = vadd.f32 0.0, %v1680
  %1682 = vdwg.mxu0
  %1683 = vmatprep.subr.mxu0 0.0
  %1684 = vmatpush1.msra.mxu0 0.0
  %1685 = vmatprep.subr.mxu0 0.0
  %1686 = vmatpush1.msra.mxu0 0.0
  %1687 = vmatprep.subr.mxu0 0.0
  %1688 = vmatpush1.msra.mxu0 0.0
  %1689 = vmatprep.subr.mxu0 0.0
  %1690 = vmatpush1.msra.mxu0 0.0
  %1691 = vmatprep.subr.mxu0 0.0
  %1692 = vmatpush1.msra.mxu0 0.0
  %1693 = vmatprep.subr.mxu0 0.0
  %1694 = vmatpush1.msra.mxu0 0.0
  %1695 = vmatprep.subr.mxu0 0.0
  %1696 = vmatpush1.msra.mxu0 0.0
  %1697 = vmatprep.subr.mxu0 0.0
  %1698 = vmatpush1.msra.mxu0 0.0
  %1699 = vmatprep.subr.mxu0 0.0
  %1700 = vmatpush1.msra.mxu0 0.0
  %1701 = vmatprep.subr.mxu0 0.0
  %1702 = vmatpush1.msra.mxu0 0.0
  %1703 = vmatprep.subr.mxu0 0.0
  %1704 = vmatpush1.msra.mxu0 0.0
  %1705 = vmatprep.subr.mxu0 0.0
  %1706 = vmatpush1.msra.mxu0 0.0
  %1707 = vmatprep.subr.mxu0 0.0
  %1708 = vmatpush1.msra.mxu0 0.0
  %1709 = vmatprep.subr.mxu0 0.0
  %1710 = vmatpush1.msra.mxu0 0.0
  %1711 = vmatprep.subr.mxu0 0.0
  %1712 = vmatpush1.msra.mxu0 0.0
  %1713 = vmatprep.subr.mxu0 %v1071
  %1714 = vmatpush1.msra.mxu0 %v1070
  %1715 = vmatprep.subr.mxu0 0.0
  %1716 = vmatpush2.msra.mxu0 0.0
  %1717 = vmatprep.subr.mxu0 0.0
  %1718 = vmatpush2.msra.mxu0 0.0
  %1719 = vmatprep.subr.mxu0 0.0
  %1720 = vmatpush2.msra.mxu0 0.0
  %1721 = vmatprep.subr.mxu0 0.0
  %1722 = vmatpush2.msra.mxu0 0.0
  %1723 = vmatprep.subr.mxu0 0.0
  %1724 = vmatpush2.msra.mxu0 0.0
  %1725 = vmatprep.subr.mxu0 0.0
  %1726 = vmatpush2.msra.mxu0 0.0
  %1727 = vmatprep.subr.mxu0 0.0
  %1728 = vmatpush2.msra.mxu0 0.0
  %1729 = vmatprep.subr.mxu0 0.0
  %1730 = vmatpush2.msra.mxu0 0.0
  %1731 = vmatprep.subr.mxu0 0.0
  %1732 = vmatpush2.msra.mxu0 0.0
  %1733 = vmatprep.subr.mxu0 0.0
  %1734 = vmatpush2.msra.mxu0 0.0
  %1735 = vmatprep.subr.mxu0 0.0
  %1736 = vmatpush2.msra.mxu0 0.0
  %1737 = vmatprep.subr.mxu0 0.0
  %1738 = vmatpush2.msra.mxu0 0.0
  %1739 = vmatprep.subr.mxu0 0.0
  %1740 = vmatpush2.msra.mxu0 0.0
  %1741 = vmatprep.subr.mxu0 0.0
  %1742 = vmatpush2.msra.mxu0 0.0
  %1743 = vmatprep.subr.mxu0 0.0
  %1744 = vmatpush2.msra.mxu0 0.0
  %1745 = vmatprep.subr.mxu0 0.0
  %1746 = vmatpush2.msra.mxu0 0.0
  %1747 = vmatprep.mubr.f32.mxu0 0.0
  %1748 = vmatmul.mubr.f32.gmra.mxu0 %v1610
  %v1749 = vpop.f32.mrf.mxu0
  %v1750 = vadd.f32 0.0, %v1749
  %v1751 = vpop.f32.mrf.mxu0
  %v1752 = vadd.f32 0.0, %v1751
  %1753 = vdwg.mxu0
  %v1754 = vlaneseq
  %v1755 = vshrl.u32 %v1754, 7
  %v1756 = vsub.s32 0, %v1755
  %v1757 = vrot.slane %v1534, %v1756
  %v1758 = vlaneseq
  %v1759 = vshrl.u32 %v1758, 7
  %v1760 = vsub.s32 0, %v1759
  %v1761 = vrot.slane %v1536, %v1760
  %v1762 = vlaneseq
  %v1763 = vshrl.u32 %v1762, 7
  %v1764 = vsub.s32 0, %v1763
  %v1765 = vrot.slane %v1605, %v1764
  %v1766 = vlaneseq
  %v1767 = vshrl.u32 %v1766, 7
  %v1768 = vsub.s32 0, %v1767
  %v1769 = vrot.slane %v1607, %v1768
  %v1770 = vmul.f32 %v955, %v1757
  %v1771 = vmul.f32 %v957, %v1761
  %v1772 = vmul.f32 %v1044, %v1765
  %v1773 = vmul.f32 %v1046, %v1769
  %v1774 = vmul.f32 %v961, %v1757
  %v1775 = vmul.f32 %v963, %v1761
  %v1776 = vmul.f32 %v1050, %v1765
  %v1777 = vmul.f32 %v1052, %v1769
  %v1778 = vmul.f32 %v967, %v1757
  %v1779 = vmul.f32 %v969, %v1761
  %v1780 = vmul.f32 %v1056, %v1765
  %v1781 = vmul.f32 %v1058, %v1769
  %v1782 = vmul.f32 %v973, %v1757
  %v1783 = vmul.f32 %v975, %v1761
  %v1784 = vmul.f32 %v1062, %v1765
  %v1785 = vmul.f32 %v1064, %v1769
  %v1786 = vlaneseq
  %v1787 = vshrl.u32 %v1786, 7
  %v1788 = vsub.s32 0, %v1787
  %v1789 = vrot.slane %v1679, %v1788
  %v1790 = vlaneseq
  %v1791 = vshrl.u32 %v1790, 7
  %v1792 = vsub.s32 0, %v1791
  %v1793 = vrot.slane %v1681, %v1792
  %v1794 = vlaneseq
  %v1795 = vshrl.u32 %v1794, 7
  %v1796 = vsub.s32 0, %v1795
  %v1797 = vrot.slane %v1750, %v1796
  %v1798 = vlaneseq
  %v1799 = vshrl.u32 %v1798, 7
  %v1800 = vsub.s32 0, %v1799
  %v1801 = vrot.slane %v1752, %v1800
  %v1802 = vadd.f32 %v1770, %v1789
  %v1803 = vadd.f32 %v1771, %v1793
  %v1804 = vadd.f32 %v1772, %v1797
  %v1805 = vadd.f32 %v1773, %v1801
  %v1806 = vadd.f32 %v1774, %v1789
  %v1807 = vadd.f32 %v1775, %v1793
  %v1808 = vadd.f32 %v1776, %v1797
  %v1809 = vadd.f32 %v1777, %v1801
  %v1810 = vadd.f32 %v1778, %v1789
  %v1811 = vadd.f32 %v1779, %v1793
  %v1812 = vadd.f32 %v1780, %v1797
  %v1813 = vadd.f32 %v1781, %v1801
  %v1814 = vadd.f32 %v1782, %v1789
  %v1815 = vadd.f32 %v1783, %v1793
  %v1816 = vadd.f32 %v1784, %v1797
  %v1817 = vadd.f32 %v1785, %v1801
  %v1818 = vmax.f32 %v1802, 0.0
  %v1819 = vmax.f32 %v1803, 0.0
  %v1820 = vmax.f32 %v1804, 0.0
  %v1821 = vmax.f32 %v1805, 0.0
  %v1822 = vmax.f32 %v1806, 0.0
  %v1823 = vmax.f32 %v1807, 0.0
  %v1824 = vmax.f32 %v1808, 0.0
  %v1825 = vmax.f32 %v1809, 0.0
  %v1826 = vmax.f32 %v1810, 0.0
  %v1827 = vmax.f32 %v1811, 0.0
  %v1828 = vmax.f32 %v1812, 0.0
  %v1829 = vmax.f32 %v1813, 0.0
  %v1830 = vmax.f32 %v1814, 0.0
  %v1831 = vmax.f32 %v1815, 0.0
  %v1832 = vmax.f32 %v1816, 0.0
  %v1833 = vmax.f32 %v1817, 0.0
  %v1834 = vld [vmem:[%s9] sm:$0xff]
  %v1835 = vld [vmem:[%s9 + $0x8] sm:$0xff]
  %v1836 = vld [vmem:[%s9 + $0x10] sm:$0xff]
  %v1837 = vld [vmem:[%s9 + $0x18] sm:$0xff]
  %v1838 = vld [vmem:[%s9 + $0x20] sm:$0xff]
  %v1839 = vld [vmem:[%s9 + $0x28] sm:$0xff]
  %v1840 = vld [vmem:[%s9 + $0x30] sm:$0xff]
  %v1841 = vld [vmem:[%s9 + $0x38] sm:$0xff]
  %v1842 = vld [vmem:[%s9 + $0x40] sm:$0xff]
  %v1843 = vld [vmem:[%s9 + $0x48] sm:$0xff]
  %v1844 = vld [vmem:[%s9 + $0x50] sm:$0xff]
  %v1845 = vld [vmem:[%s9 + $0x58] sm:$0xff]
  %v1846 = vld [vmem:[%s9 + $0x60] sm:$0xff]
  %v1847 = vld [vmem:[%s9 + $0x68] sm:$0xff]
  %v1848 = vld [vmem:[%s9 + $0x70] sm:$0xff]
  %v1849 = vld [vmem:[%s9 + $0x78] sm:$0xff]
  %v1850 = vld [vmem:[%s9 + $0x80] sm:$0xff]
  %v1851 = vld [vmem:[%s9 + $0x88] sm:$0xff]
  %v1852 = vld [vmem:[%s9 + $0x90] sm:$0xff]
  %v1853 = vld [vmem:[%s9 + $0x98] sm:$0xff]
  %v1854 = vld [vmem:[%s9 + $0xa0] sm:$0xff]
  %v1855 = vld [vmem:[%s9 + $0xa8] sm:$0xff]
  %v1856 = vld [vmem:[%s9 + $0xb0] sm:$0xff]
  %v1857 = vld [vmem:[%s9 + $0xb8] sm:$0xff]
  %v1858 = vld [vmem:[%s9 + $0xc0] sm:$0xff]
  %v1859 = vld [vmem:[%s9 + $0xc8] sm:$0xff]
  %v1860 = vld [vmem:[%s9 + $0xd0] sm:$0xff]
  %v1861 = vld [vmem:[%s9 + $0xd8] sm:$0xff]
  %v1862 = vld [vmem:[%s9 + $0xe0] sm:$0xff]
  %v1863 = vld [vmem:[%s9 + $0xe8] sm:$0xff]
  %v1864 = vld [vmem:[%s9 + $0xf0] sm:$0xff]
  %v1865 = vld [vmem:[%s9 + $0xf8] sm:$0xff]
  %v1866 = vld [vmem:[%s9 + $0x100] sm:$0xff]
  %v1867 = vld [vmem:[%s9 + $0x108] sm:$0xff]
  %v1868 = vld [vmem:[%s9 + $0x110] sm:$0xff]
  %v1869 = vld [vmem:[%s9 + $0x118] sm:$0xff]
  %v1870 = vld [vmem:[%s9 + $0x120] sm:$0xff]
  %v1871 = vld [vmem:[%s9 + $0x128] sm:$0xff]
  %v1872 = vld [vmem:[%s9 + $0x130] sm:$0xff]
  %v1873 = vld [vmem:[%s9 + $0x138] sm:$0xff]
  %v1874 = vld [vmem:[%s9 + $0x140] sm:$0xff]
  %v1875 = vld [vmem:[%s9 + $0x148] sm:$0xff]
  %v1876 = vld [vmem:[%s9 + $0x150] sm:$0xff]
  %v1877 = vld [vmem:[%s9 + $0x158] sm:$0xff]
  %v1878 = vld [vmem:[%s9 + $0x160] sm:$0xff]
  %v1879 = vld [vmem:[%s9 + $0x168] sm:$0xff]
  %v1880 = vld [vmem:[%s9 + $0x170] sm:$0xff]
  %v1881 = vld [vmem:[%s9 + $0x178] sm:$0xff]
  %v1882 = vld [vmem:[%s9 + $0x180] sm:$0xff]
  %v1883 = vld [vmem:[%s9 + $0x188] sm:$0xff]
  %v1884 = vld [vmem:[%s9 + $0x190] sm:$0xff]
  %v1885 = vld [vmem:[%s9 + $0x198] sm:$0xff]
  %v1886 = vld [vmem:[%s9 + $0x1a0] sm:$0xff]
  %v1887 = vld [vmem:[%s9 + $0x1a8] sm:$0xff]
  %v1888 = vld [vmem:[%s9 + $0x1b0] sm:$0xff]
  %v1889 = vld [vmem:[%s9 + $0x1b8] sm:$0xff]
  %v1890 = vld [vmem:[%s9 + $0x1c0] sm:$0xff]
  %v1891 = vld [vmem:[%s9 + $0x1c8] sm:$0xff]
  %v1892 = vld [vmem:[%s9 + $0x1d0] sm:$0xff]
  %v1893 = vld [vmem:[%s9 + $0x1d8] sm:$0xff]
  %v1894 = vld [vmem:[%s9 + $0x1e0] sm:$0xff]
  %v1895 = vld [vmem:[%s9 + $0x1e8] sm:$0xff]
  %v1896 = vld [vmem:[%s9 + $0x1f0] sm:$0xff]
  %v1897 = vld [vmem:[%s9 + $0x1f8] sm:$0xff]
  %v1898 = vld [vmem:[%s9 + $0x200] sm:$0xff]
  %v1899 = vld [vmem:[%s9 + $0x208] sm:$0xff]
  %v1900 = vld [vmem:[%s9 + $0x210] sm:$0xff]
  %v1901 = vld [vmem:[%s9 + $0x218] sm:$0xff]
  %v1902 = vld [vmem:[%s9 + $0x220] sm:$0xff]
  %v1903 = vld [vmem:[%s9 + $0x228] sm:$0xff]
  %v1904 = vld [vmem:[%s9 + $0x230] sm:$0xff]
  %v1905 = vld [vmem:[%s9 + $0x238] sm:$0xff]
  %v1906 = vld [vmem:[%s9 + $0x240] sm:$0xff]
  %v1907 = vld [vmem:[%s9 + $0x248] sm:$0xff]
  %v1908 = vld [vmem:[%s9 + $0x250] sm:$0xff]
  %v1909 = vld [vmem:[%s9 + $0x258] sm:$0xff]
  %v1910 = vld [vmem:[%s9 + $0x260] sm:$0xff]
  %v1911 = vld [vmem:[%s9 + $0x268] sm:$0xff]
  %v1912 = vld [vmem:[%s9 + $0x270] sm:$0xff]
  %v1913 = vld [vmem:[%s9 + $0x278] sm:$0xff]
  %v1914 = vld [vmem:[%s9 + $0x280] sm:$0xff]
  %v1915 = vld [vmem:[%s9 + $0x288] sm:$0xff]
  %v1916 = vld [vmem:[%s9 + $0x290] sm:$0xff]
  %v1917 = vld [vmem:[%s9 + $0x298] sm:$0xff]
  %v1918 = vld [vmem:[%s9 + $0x2a0] sm:$0xff]
  %v1919 = vld [vmem:[%s9 + $0x2a8] sm:$0xff]
  %v1920 = vld [vmem:[%s9 + $0x2b0] sm:$0xff]
  %v1921 = vld [vmem:[%s9 + $0x2b8] sm:$0xff]
  %v1922 = vld [vmem:[%s9 + $0x2c0] sm:$0xff]
  %v1923 = vld [vmem:[%s9 + $0x2c8] sm:$0xff]
  %v1924 = vld [vmem:[%s9 + $0x2d0] sm:$0xff]
  %v1925 = vld [vmem:[%s9 + $0x2d8] sm:$0xff]
  %v1926 = vld [vmem:[%s9 + $0x2e0] sm:$0xff]
  %v1927 = vld [vmem:[%s9 + $0x2e8] sm:$0xff]
  %v1928 = vld [vmem:[%s9 + $0x2f0] sm:$0xff]
  %v1929 = vld [vmem:[%s9 + $0x2f8] sm:$0xff]
  %v1930 = vld [vmem:[%s9 + $0x300] sm:$0xff]
  %v1931 = vld [vmem:[%s9 + $0x308] sm:$0xff]
  %v1932 = vld [vmem:[%s9 + $0x310] sm:$0xff]
  %v1933 = vld [vmem:[%s9 + $0x318] sm:$0xff]
  %v1934 = vld [vmem:[%s9 + $0x320] sm:$0xff]
  %v1935 = vld [vmem:[%s9 + $0x328] sm:$0xff]
  %v1936 = vld [vmem:[%s9 + $0x330] sm:$0xff]
  %v1937 = vld [vmem:[%s9 + $0x338] sm:$0xff]
  %v1938 = vld [vmem:[%s9 + $0x340] sm:$0xff]
  %v1939 = vld [vmem:[%s9 + $0x348] sm:$0xff]
  %v1940 = vld [vmem:[%s9 + $0x350] sm:$0xff]
  %v1941 = vld [vmem:[%s9 + $0x358] sm:$0xff]
  %v1942 = vld [vmem:[%s9 + $0x360] sm:$0xff]
  %v1943 = vld [vmem:[%s9 + $0x368] sm:$0xff]
  %v1944 = vld [vmem:[%s9 + $0x370] sm:$0xff]
  %v1945 = vld [vmem:[%s9 + $0x378] sm:$0xff]
  %v1946 = vld [vmem:[%s9 + $0x380] sm:$0xff]
  %v1947 = vld [vmem:[%s9 + $0x388] sm:$0xff]
  %v1948 = vld [vmem:[%s9 + $0x390] sm:$0xff]
  %v1949 = vld [vmem:[%s9 + $0x398] sm:$0xff]
  %v1950 = vld [vmem:[%s9 + $0x3a0] sm:$0xff]
  %v1951 = vld [vmem:[%s9 + $0x3a8] sm:$0xff]
  %v1952 = vld [vmem:[%s9 + $0x3b0] sm:$0xff]
  %v1953 = vld [vmem:[%s9 + $0x3b8] sm:$0xff]
  %v1954 = vld [vmem:[%s9 + $0x3c0] sm:$0xff]
  %v1955 = vld [vmem:[%s9 + $0x3c8] sm:$0xff]
  %v1956 = vld [vmem:[%s9 + $0x3d0] sm:$0xff]
  %v1957 = vld [vmem:[%s9 + $0x3d8] sm:$0xff]
  %v1958 = vld [vmem:[%s9 + $0x3e0] sm:$0xff]
  %v1959 = vld [vmem:[%s9 + $0x3e8] sm:$0xff]
  %v1960 = vld [vmem:[%s9 + $0x3f0] sm:$0xff]
  %v1961 = vld [vmem:[%s9 + $0x3f8] sm:$0xff]
  %v1962 = vld [vmem:[%s9 + $0x400] sm:$0xff]
  %v1963 = vld [vmem:[%s9 + $0x408] sm:$0xff]
  %v1964 = vld [vmem:[%s9 + $0x410] sm:$0xff]
  %v1965 = vld [vmem:[%s9 + $0x418] sm:$0xff]
  %v1966 = vld [vmem:[%s9 + $0x420] sm:$0xff]
  %v1967 = vld [vmem:[%s9 + $0x428] sm:$0xff]
  %v1968 = vld [vmem:[%s9 + $0x430] sm:$0xff]
  %v1969 = vld [vmem:[%s9 + $0x438] sm:$0xff]
  %v1970 = vld [vmem:[%s9 + $0x440] sm:$0xff]
  %v1971 = vld [vmem:[%s9 + $0x448] sm:$0xff]
  %v1972 = vld [vmem:[%s9 + $0x450] sm:$0xff]
  %v1973 = vld [vmem:[%s9 + $0x458] sm:$0xff]
  %v1974 = vld [vmem:[%s9 + $0x460] sm:$0xff]
  %v1975 = vld [vmem:[%s9 + $0x468] sm:$0xff]
  %v1976 = vld [vmem:[%s9 + $0x470] sm:$0xff]
  %v1977 = vld [vmem:[%s9 + $0x478] sm:$0xff]
  %v1978 = vld [vmem:[%s9 + $0x480] sm:$0xff]
  %v1979 = vld [vmem:[%s9 + $0x488] sm:$0xff]
  %v1980 = vld [vmem:[%s9 + $0x490] sm:$0xff]
  %v1981 = vld [vmem:[%s9 + $0x498] sm:$0xff]
  %v1982 = vld [vmem:[%s9 + $0x4a0] sm:$0xff]
  %v1983 = vld [vmem:[%s9 + $0x4a8] sm:$0xff]
  %v1984 = vld [vmem:[%s9 + $0x4b0] sm:$0xff]
  %v1985 = vld [vmem:[%s9 + $0x4b8] sm:$0xff]
  %v1986 = vld [vmem:[%s9 + $0x4c0] sm:$0xff]
  %v1987 = vld [vmem:[%s9 + $0x4c8] sm:$0xff]
  %v1988 = vld [vmem:[%s9 + $0x4d0] sm:$0xff]
  %v1989 = vld [vmem:[%s9 + $0x4d8] sm:$0xff]
  %v1990 = vld [vmem:[%s9 + $0x4e0] sm:$0xff]
  %v1991 = vld [vmem:[%s9 + $0x4e8] sm:$0xff]
  %v1992 = vld [vmem:[%s9 + $0x4f0] sm:$0xff]
  %v1993 = vld [vmem:[%s9 + $0x4f8] sm:$0xff]
  %v1994 = vld [vmem:[%s9 + $0x500] sm:$0xff]
  %v1995 = vld [vmem:[%s9 + $0x508] sm:$0xff]
  %v1996 = vld [vmem:[%s9 + $0x510] sm:$0xff]
  %v1997 = vld [vmem:[%s9 + $0x518] sm:$0xff]
  %v1998 = vld [vmem:[%s9 + $0x520] sm:$0xff]
  %v1999 = vld [vmem:[%s9 + $0x528] sm:$0xff]
  %v2000 = vld [vmem:[%s9 + $0x530] sm:$0xff]
  %v2001 = vld [vmem:[%s9 + $0x538] sm:$0xff]
  %v2002 = vld [vmem:[%s9 + $0x540] sm:$0xff]
  %v2003 = vld [vmem:[%s9 + $0x548] sm:$0xff]
  %v2004 = vld [vmem:[%s9 + $0x550] sm:$0xff]
  %v2005 = vld [vmem:[%s9 + $0x558] sm:$0xff]
  %v2006 = vld [vmem:[%s9 + $0x560] sm:$0xff]
  %v2007 = vld [vmem:[%s9 + $0x568] sm:$0xff]
  %v2008 = vld [vmem:[%s9 + $0x570] sm:$0xff]
  %v2009 = vld [vmem:[%s9 + $0x578] sm:$0xff]
  %v2010 = vld [vmem:[%s9 + $0x580] sm:$0xff]
  %v2011 = vld [vmem:[%s9 + $0x588] sm:$0xff]
  %v2012 = vld [vmem:[%s9 + $0x590] sm:$0xff]
  %v2013 = vld [vmem:[%s9 + $0x598] sm:$0xff]
  %v2014 = vld [vmem:[%s9 + $0x5a0] sm:$0xff]
  %v2015 = vld [vmem:[%s9 + $0x5a8] sm:$0xff]
  %v2016 = vld [vmem:[%s9 + $0x5b0] sm:$0xff]
  %v2017 = vld [vmem:[%s9 + $0x5b8] sm:$0xff]
  %v2018 = vld [vmem:[%s9 + $0x5c0] sm:$0xff]
  %v2019 = vld [vmem:[%s9 + $0x5c8] sm:$0xff]
  %v2020 = vld [vmem:[%s9 + $0x5d0] sm:$0xff]
  %v2021 = vld [vmem:[%s9 + $0x5d8] sm:$0xff]
  %v2022 = vld [vmem:[%s9 + $0x5e0] sm:$0xff]
  %v2023 = vld [vmem:[%s9 + $0x5e8] sm:$0xff]
  %v2024 = vld [vmem:[%s9 + $0x5f0] sm:$0xff]
  %v2025 = vld [vmem:[%s9 + $0x5f8] sm:$0xff]
  %v2026 = vld [vmem:[%s9 + $0x600] sm:$0xff]
  %v2027 = vld [vmem:[%s9 + $0x608] sm:$0xff]
  %v2028 = vld [vmem:[%s9 + $0x610] sm:$0xff]
  %v2029 = vld [vmem:[%s9 + $0x618] sm:$0xff]
  %v2030 = vld [vmem:[%s9 + $0x620] sm:$0xff]
  %v2031 = vld [vmem:[%s9 + $0x628] sm:$0xff]
  %v2032 = vld [vmem:[%s9 + $0x630] sm:$0xff]
  %v2033 = vld [vmem:[%s9 + $0x638] sm:$0xff]
  %v2034 = vld [vmem:[%s9 + $0x640] sm:$0xff]
  %v2035 = vld [vmem:[%s9 + $0x648] sm:$0xff]
  %v2036 = vld [vmem:[%s9 + $0x650] sm:$0xff]
  %v2037 = vld [vmem:[%s9 + $0x658] sm:$0xff]
  %v2038 = vld [vmem:[%s9 + $0x660] sm:$0xff]
  %v2039 = vld [vmem:[%s9 + $0x668] sm:$0xff]
  %v2040 = vld [vmem:[%s9 + $0x670] sm:$0xff]
  %v2041 = vld [vmem:[%s9 + $0x678] sm:$0xff]
  %v2042 = vld [vmem:[%s9 + $0x680] sm:$0xff]
  %v2043 = vld [vmem:[%s9 + $0x688] sm:$0xff]
  %v2044 = vld [vmem:[%s9 + $0x690] sm:$0xff]
  %v2045 = vld [vmem:[%s9 + $0x698] sm:$0xff]
  %v2046 = vld [vmem:[%s9 + $0x6a0] sm:$0xff]
  %v2047 = vld [vmem:[%s9 + $0x6a8] sm:$0xff]
  %v2048 = vld [vmem:[%s9 + $0x6b0] sm:$0xff]
  %v2049 = vld [vmem:[%s9 + $0x6b8] sm:$0xff]
  %v2050 = vld [vmem:[%s9 + $0x6c0] sm:$0xff]
  %v2051 = vld [vmem:[%s9 + $0x6c8] sm:$0xff]
  %v2052 = vld [vmem:[%s9 + $0x6d0] sm:$0xff]
  %v2053 = vld [vmem:[%s9 + $0x6d8] sm:$0xff]
  %v2054 = vld [vmem:[%s9 + $0x6e0] sm:$0xff]
  %v2055 = vld [vmem:[%s9 + $0x6e8] sm:$0xff]
  %v2056 = vld [vmem:[%s9 + $0x6f0] sm:$0xff]
  %v2057 = vld [vmem:[%s9 + $0x6f8] sm:$0xff]
  %v2058 = vld [vmem:[%s9 + $0x700] sm:$0xff]
  %v2059 = vld [vmem:[%s9 + $0x708] sm:$0xff]
  %v2060 = vld [vmem:[%s9 + $0x710] sm:$0xff]
  %v2061 = vld [vmem:[%s9 + $0x718] sm:$0xff]
  %v2062 = vld [vmem:[%s9 + $0x720] sm:$0xff]
  %v2063 = vld [vmem:[%s9 + $0x728] sm:$0xff]
  %v2064 = vld [vmem:[%s9 + $0x730] sm:$0xff]
  %v2065 = vld [vmem:[%s9 + $0x738] sm:$0xff]
  %v2066 = vld [vmem:[%s9 + $0x740] sm:$0xff]
  %v2067 = vld [vmem:[%s9 + $0x748] sm:$0xff]
  %v2068 = vld [vmem:[%s9 + $0x750] sm:$0xff]
  %v2069 = vld [vmem:[%s9 + $0x758] sm:$0xff]
  %v2070 = vld [vmem:[%s9 + $0x760] sm:$0xff]
  %v2071 = vld [vmem:[%s9 + $0x768] sm:$0xff]
  %v2072 = vld [vmem:[%s9 + $0x770] sm:$0xff]
  %v2073 = vld [vmem:[%s9 + $0x778] sm:$0xff]
  %v2074 = vld [vmem:[%s9 + $0x780] sm:$0xff]
  %v2075 = vld [vmem:[%s9 + $0x788] sm:$0xff]
  %v2076 = vld [vmem:[%s9 + $0x790] sm:$0xff]
  %v2077 = vld [vmem:[%s9 + $0x798] sm:$0xff]
  %v2078 = vld [vmem:[%s9 + $0x7a0] sm:$0xff]
  %v2079 = vld [vmem:[%s9 + $0x7a8] sm:$0xff]
  %v2080 = vld [vmem:[%s9 + $0x7b0] sm:$0xff]
  %v2081 = vld [vmem:[%s9 + $0x7b8] sm:$0xff]
  %v2082 = vld [vmem:[%s9 + $0x7c0] sm:$0xff]
  %v2083 = vld [vmem:[%s9 + $0x7c8] sm:$0xff]
  %v2084 = vld [vmem:[%s9 + $0x7d0] sm:$0xff]
  %v2085 = vld [vmem:[%s9 + $0x7d8] sm:$0xff]
  %v2086 = vld [vmem:[%s9 + $0x7e0] sm:$0xff]
  %v2087 = vld [vmem:[%s9 + $0x7e8] sm:$0xff]
  %v2088 = vld [vmem:[%s9 + $0x7f0] sm:$0xff]
  %v2089 = vld [vmem:[%s9 + $0x7f8] sm:$0xff]
  %v2090 = vld [vmem:[%s9 + $0x800] sm:$0xff]
  %v2091 = vld [vmem:[%s9 + $0x808] sm:$0xff]
  %v2092 = vld [vmem:[%s9 + $0x810] sm:$0xff]
  %v2093 = vld [vmem:[%s9 + $0x818] sm:$0xff]
  %v2094 = vld [vmem:[%s9 + $0x820] sm:$0xff]
  %v2095 = vld [vmem:[%s9 + $0x828] sm:$0xff]
  %v2096 = vld [vmem:[%s9 + $0x830] sm:$0xff]
  %v2097 = vld [vmem:[%s9 + $0x838] sm:$0xff]
  %v2098 = vld [vmem:[%s9 + $0x840] sm:$0xff]
  %v2099 = vld [vmem:[%s9 + $0x848] sm:$0xff]
  %v2100 = vld [vmem:[%s9 + $0x850] sm:$0xff]
  %v2101 = vld [vmem:[%s9 + $0x858] sm:$0xff]
  %v2102 = vld [vmem:[%s9 + $0x860] sm:$0xff]
  %v2103 = vld [vmem:[%s9 + $0x868] sm:$0xff]
  %v2104 = vld [vmem:[%s9 + $0x870] sm:$0xff]
  %v2105 = vld [vmem:[%s9 + $0x878] sm:$0xff]
  %v2106 = vld [vmem:[%s9 + $0x880] sm:$0xff]
  %v2107 = vld [vmem:[%s9 + $0x888] sm:$0xff]
  %v2108 = vld [vmem:[%s9 + $0x890] sm:$0xff]
  %v2109 = vld [vmem:[%s9 + $0x898] sm:$0xff]
  %v2110 = vld [vmem:[%s9 + $0x8a0] sm:$0xff]
  %v2111 = vld [vmem:[%s9 + $0x8a8] sm:$0xff]
  %v2112 = vld [vmem:[%s9 + $0x8b0] sm:$0xff]
  %v2113 = vld [vmem:[%s9 + $0x8b8] sm:$0xff]
  %v2114 = vld [vmem:[%s9 + $0x8c0] sm:$0xff]
  %v2115 = vld [vmem:[%s9 + $0x8c8] sm:$0xff]
  %v2116 = vld [vmem:[%s9 + $0x8d0] sm:$0xff]
  %v2117 = vld [vmem:[%s9 + $0x8d8] sm:$0xff]
  %v2118 = vld [vmem:[%s9 + $0x8e0] sm:$0xff]
  %v2119 = vld [vmem:[%s9 + $0x8e8] sm:$0xff]
  %v2120 = vld [vmem:[%s9 + $0x8f0] sm:$0xff]
  %v2121 = vld [vmem:[%s9 + $0x8f8] sm:$0xff]
  %v2122 = vld [vmem:[%s9 + $0x900] sm:$0xff]
  %v2123 = vld [vmem:[%s9 + $0x908] sm:$0xff]
  %v2124 = vld [vmem:[%s9 + $0x910] sm:$0xff]
  %v2125 = vld [vmem:[%s9 + $0x918] sm:$0xff]
  %v2126 = vld [vmem:[%s9 + $0x920] sm:$0xff]
  %v2127 = vld [vmem:[%s9 + $0x928] sm:$0xff]
  %v2128 = vld [vmem:[%s9 + $0x930] sm:$0xff]
  %v2129 = vld [vmem:[%s9 + $0x938] sm:$0xff]
  %v2130 = vld [vmem:[%s9 + $0x940] sm:$0xff]
  %v2131 = vld [vmem:[%s9 + $0x948] sm:$0xff]
  %v2132 = vld [vmem:[%s9 + $0x950] sm:$0xff]
  %v2133 = vld [vmem:[%s9 + $0x958] sm:$0xff]
  %v2134 = vld [vmem:[%s9 + $0x960] sm:$0xff]
  %v2135 = vld [vmem:[%s9 + $0x968] sm:$0xff]
  %v2136 = vld [vmem:[%s9 + $0x970] sm:$0xff]
  %v2137 = vld [vmem:[%s9 + $0x978] sm:$0xff]
  %v2138 = vld [vmem:[%s9 + $0x980] sm:$0xff]
  %v2139 = vld [vmem:[%s9 + $0x988] sm:$0xff]
  %v2140 = vld [vmem:[%s9 + $0x990] sm:$0xff]
  %v2141 = vld [vmem:[%s9 + $0x998] sm:$0xff]
  %v2142 = vld [vmem:[%s9 + $0x9a0] sm:$0xff]
  %v2143 = vld [vmem:[%s9 + $0x9a8] sm:$0xff]
  %v2144 = vld [vmem:[%s9 + $0x9b0] sm:$0xff]
  %v2145 = vld [vmem:[%s9 + $0x9b8] sm:$0xff]
  %v2146 = vld [vmem:[%s9 + $0x9c0] sm:$0xff]
  %v2147 = vld [vmem:[%s9 + $0x9c8] sm:$0xff]
  %v2148 = vld [vmem:[%s9 + $0x9d0] sm:$0xff]
  %v2149 = vld [vmem:[%s9 + $0x9d8] sm:$0xff]
  %v2150 = vld [vmem:[%s9 + $0x9e0] sm:$0xff]
  %v2151 = vld [vmem:[%s9 + $0x9e8] sm:$0xff]
  %v2152 = vld [vmem:[%s9 + $0x9f0] sm:$0xff]
  %v2153 = vld [vmem:[%s9 + $0x9f8] sm:$0xff]
  %v2154 = vld [vmem:[%s9 + $0xa00] sm:$0xff]
  %v2155 = vld [vmem:[%s9 + $0xa08] sm:$0xff]
  %v2156 = vld [vmem:[%s9 + $0xa10] sm:$0xff]
  %v2157 = vld [vmem:[%s9 + $0xa18] sm:$0xff]
  %v2158 = vld [vmem:[%s9 + $0xa20] sm:$0xff]
  %v2159 = vld [vmem:[%s9 + $0xa28] sm:$0xff]
  %v2160 = vld [vmem:[%s9 + $0xa30] sm:$0xff]
  %v2161 = vld [vmem:[%s9 + $0xa38] sm:$0xff]
  %v2162 = vld [vmem:[%s9 + $0xa40] sm:$0xff]
  %v2163 = vld [vmem:[%s9 + $0xa48] sm:$0xff]
  %v2164 = vld [vmem:[%s9 + $0xa50] sm:$0xff]
  %v2165 = vld [vmem:[%s9 + $0xa58] sm:$0xff]
  %v2166 = vld [vmem:[%s9 + $0xa60] sm:$0xff]
  %v2167 = vld [vmem:[%s9 + $0xa68] sm:$0xff]
  %v2168 = vld [vmem:[%s9 + $0xa70] sm:$0xff]
  %v2169 = vld [vmem:[%s9 + $0xa78] sm:$0xff]
  %v2170 = vld [vmem:[%s9 + $0xa80] sm:$0xff]
  %v2171 = vld [vmem:[%s9 + $0xa88] sm:$0xff]
  %v2172 = vld [vmem:[%s9 + $0xa90] sm:$0xff]
  %v2173 = vld [vmem:[%s9 + $0xa98] sm:$0xff]
  %v2174 = vld [vmem:[%s9 + $0xaa0] sm:$0xff]
  %v2175 = vld [vmem:[%s9 + $0xaa8] sm:$0xff]
  %v2176 = vld [vmem:[%s9 + $0xab0] sm:$0xff]
  %v2177 = vld [vmem:[%s9 + $0xab8] sm:$0xff]
  %v2178 = vld [vmem:[%s9 + $0xac0] sm:$0xff]
  %v2179 = vld [vmem:[%s9 + $0xac8] sm:$0xff]
  %v2180 = vld [vmem:[%s9 + $0xad0] sm:$0xff]
  %v2181 = vld [vmem:[%s9 + $0xad8] sm:$0xff]
  %v2182 = vld [vmem:[%s9 + $0xae0] sm:$0xff]
  %v2183 = vld [vmem:[%s9 + $0xae8] sm:$0xff]
  %v2184 = vld [vmem:[%s9 + $0xaf0] sm:$0xff]
  %v2185 = vld [vmem:[%s9 + $0xaf8] sm:$0xff]
  %v2186 = vld [vmem:[%s9 + $0xb00] sm:$0xff]
  %v2187 = vld [vmem:[%s9 + $0xb08] sm:$0xff]
  %v2188 = vld [vmem:[%s9 + $0xb10] sm:$0xff]
  %v2189 = vld [vmem:[%s9 + $0xb18] sm:$0xff]
  %v2190 = vld [vmem:[%s9 + $0xb20] sm:$0xff]
  %v2191 = vld [vmem:[%s9 + $0xb28] sm:$0xff]
  %v2192 = vld [vmem:[%s9 + $0xb30] sm:$0xff]
  %v2193 = vld [vmem:[%s9 + $0xb38] sm:$0xff]
  %v2194 = vld [vmem:[%s9 + $0xb40] sm:$0xff]
  %v2195 = vld [vmem:[%s9 + $0xb48] sm:$0xff]
  %v2196 = vld [vmem:[%s9 + $0xb50] sm:$0xff]
  %v2197 = vld [vmem:[%s9 + $0xb58] sm:$0xff]
  %v2198 = vld [vmem:[%s9 + $0xb60] sm:$0xff]
  %v2199 = vld [vmem:[%s9 + $0xb68] sm:$0xff]
  %v2200 = vld [vmem:[%s9 + $0xb70] sm:$0xff]
  %v2201 = vld [vmem:[%s9 + $0xb78] sm:$0xff]
  %v2202 = vld [vmem:[%s9 + $0xb80] sm:$0xff]
  %v2203 = vld [vmem:[%s9 + $0xb88] sm:$0xff]
  %v2204 = vld [vmem:[%s9 + $0xb90] sm:$0xff]
  %v2205 = vld [vmem:[%s9 + $0xb98] sm:$0xff]
  %v2206 = vld [vmem:[%s9 + $0xba0] sm:$0xff]
  %v2207 = vld [vmem:[%s9 + $0xba8] sm:$0xff]
  %v2208 = vld [vmem:[%s9 + $0xbb0] sm:$0xff]
  %v2209 = vld [vmem:[%s9 + $0xbb8] sm:$0xff]
  %v2210 = vld [vmem:[%s9 + $0xbc0] sm:$0xff]
  %v2211 = vld [vmem:[%s9 + $0xbc8] sm:$0xff]
  %v2212 = vld [vmem:[%s9 + $0xbd0] sm:$0xff]
  %v2213 = vld [vmem:[%s9 + $0xbd8] sm:$0xff]
  %v2214 = vld [vmem:[%s9 + $0xbe0] sm:$0xff]
  %v2215 = vld [vmem:[%s9 + $0xbe8] sm:$0xff]
  %v2216 = vld [vmem:[%s9 + $0xbf0] sm:$0xff]
  %v2217 = vld [vmem:[%s9 + $0xbf8] sm:$0xff]
  %v2218 = vld [vmem:[%s9 + $0xc00] sm:$0xff]
  %v2219 = vld [vmem:[%s9 + $0xc08] sm:$0xff]
  %v2220 = vld [vmem:[%s9 + $0xc10] sm:$0xff]
  %v2221 = vld [vmem:[%s9 + $0xc18] sm:$0xff]
  %v2222 = vld [vmem:[%s9 + $0xc20] sm:$0xff]
  %v2223 = vld [vmem:[%s9 + $0xc28] sm:$0xff]
  %v2224 = vld [vmem:[%s9 + $0xc30] sm:$0xff]
  %v2225 = vld [vmem:[%s9 + $0xc38] sm:$0xff]
  %v2226 = vld [vmem:[%s9 + $0xc40] sm:$0xff]
  %v2227 = vld [vmem:[%s9 + $0xc48] sm:$0xff]
  %v2228 = vld [vmem:[%s9 + $0xc50] sm:$0xff]
  %v2229 = vld [vmem:[%s9 + $0xc58] sm:$0xff]
  %v2230 = vld [vmem:[%s9 + $0xc60] sm:$0xff]
  %v2231 = vld [vmem:[%s9 + $0xc68] sm:$0xff]
  %v2232 = vld [vmem:[%s9 + $0xc70] sm:$0xff]
  %v2233 = vld [vmem:[%s9 + $0xc78] sm:$0xff]
  %v2234 = vld [vmem:[%s9 + $0xc80] sm:$0xff]
  %v2235 = vld [vmem:[%s9 + $0xc88] sm:$0xff]
  %v2236 = vld [vmem:[%s9 + $0xc90] sm:$0xff]
  %v2237 = vld [vmem:[%s9 + $0xc98] sm:$0xff]
  %v2238 = vld [vmem:[%s9 + $0xca0] sm:$0xff]
  %v2239 = vld [vmem:[%s9 + $0xca8] sm:$0xff]
  %v2240 = vld [vmem:[%s9 + $0xcb0] sm:$0xff]
  %v2241 = vld [vmem:[%s9 + $0xcb8] sm:$0xff]
  %v2242 = vld [vmem:[%s9 + $0xcc0] sm:$0xff]
  %v2243 = vld [vmem:[%s9 + $0xcc8] sm:$0xff]
  %v2244 = vld [vmem:[%s9 + $0xcd0] sm:$0xff]
  %v2245 = vld [vmem:[%s9 + $0xcd8] sm:$0xff]
  %v2246 = vld [vmem:[%s9 + $0xce0] sm:$0xff]
  %v2247 = vld [vmem:[%s9 + $0xce8] sm:$0xff]
  %v2248 = vld [vmem:[%s9 + $0xcf0] sm:$0xff]
  %v2249 = vld [vmem:[%s9 + $0xcf8] sm:$0xff]
  %v2250 = vld [vmem:[%s9 + $0xd00] sm:$0xff]
  %v2251 = vld [vmem:[%s9 + $0xd08] sm:$0xff]
  %v2252 = vld [vmem:[%s9 + $0xd10] sm:$0xff]
  %v2253 = vld [vmem:[%s9 + $0xd18] sm:$0xff]
  %v2254 = vld [vmem:[%s9 + $0xd20] sm:$0xff]
  %v2255 = vld [vmem:[%s9 + $0xd28] sm:$0xff]
  %v2256 = vld [vmem:[%s9 + $0xd30] sm:$0xff]
  %v2257 = vld [vmem:[%s9 + $0xd38] sm:$0xff]
  %v2258 = vld [vmem:[%s9 + $0xd40] sm:$0xff]
  %v2259 = vld [vmem:[%s9 + $0xd48] sm:$0xff]
  %v2260 = vld [vmem:[%s9 + $0xd50] sm:$0xff]
  %v2261 = vld [vmem:[%s9 + $0xd58] sm:$0xff]
  %v2262 = vld [vmem:[%s9 + $0xd60] sm:$0xff]
  %v2263 = vld [vmem:[%s9 + $0xd68] sm:$0xff]
  %v2264 = vld [vmem:[%s9 + $0xd70] sm:$0xff]
  %v2265 = vld [vmem:[%s9 + $0xd78] sm:$0xff]
  %v2266 = vld [vmem:[%s9 + $0xd80] sm:$0xff]
  %v2267 = vld [vmem:[%s9 + $0xd88] sm:$0xff]
  %v2268 = vld [vmem:[%s9 + $0xd90] sm:$0xff]
  %v2269 = vld [vmem:[%s9 + $0xd98] sm:$0xff]
  %v2270 = vld [vmem:[%s9 + $0xda0] sm:$0xff]
  %v2271 = vld [vmem:[%s9 + $0xda8] sm:$0xff]
  %v2272 = vld [vmem:[%s9 + $0xdb0] sm:$0xff]
  %v2273 = vld [vmem:[%s9 + $0xdb8] sm:$0xff]
  %v2274 = vld [vmem:[%s9 + $0xdc0] sm:$0xff]
  %v2275 = vld [vmem:[%s9 + $0xdc8] sm:$0xff]
  %v2276 = vld [vmem:[%s9 + $0xdd0] sm:$0xff]
  %v2277 = vld [vmem:[%s9 + $0xdd8] sm:$0xff]
  %v2278 = vld [vmem:[%s9 + $0xde0] sm:$0xff]
  %v2279 = vld [vmem:[%s9 + $0xde8] sm:$0xff]
  %v2280 = vld [vmem:[%s9 + $0xdf0] sm:$0xff]
  %v2281 = vld [vmem:[%s9 + $0xdf8] sm:$0xff]
  %v2282 = vld [vmem:[%s9 + $0xe00] sm:$0xff]
  %v2283 = vld [vmem:[%s9 + $0xe08] sm:$0xff]
  %v2284 = vld [vmem:[%s9 + $0xe10] sm:$0xff]
  %v2285 = vld [vmem:[%s9 + $0xe18] sm:$0xff]
  %v2286 = vld [vmem:[%s9 + $0xe20] sm:$0xff]
  %v2287 = vld [vmem:[%s9 + $0xe28] sm:$0xff]
  %v2288 = vld [vmem:[%s9 + $0xe30] sm:$0xff]
  %v2289 = vld [vmem:[%s9 + $0xe38] sm:$0xff]
  %v2290 = vld [vmem:[%s9 + $0xe40] sm:$0xff]
  %v2291 = vld [vmem:[%s9 + $0xe48] sm:$0xff]
  %v2292 = vld [vmem:[%s9 + $0xe50] sm:$0xff]
  %v2293 = vld [vmem:[%s9 + $0xe58] sm:$0xff]
  %v2294 = vld [vmem:[%s9 + $0xe60] sm:$0xff]
  %v2295 = vld [vmem:[%s9 + $0xe68] sm:$0xff]
  %v2296 = vld [vmem:[%s9 + $0xe70] sm:$0xff]
  %v2297 = vld [vmem:[%s9 + $0xe78] sm:$0xff]
  %v2298 = vld [vmem:[%s9 + $0xe80] sm:$0xff]
  %v2299 = vld [vmem:[%s9 + $0xe88] sm:$0xff]
  %v2300 = vld [vmem:[%s9 + $0xe90] sm:$0xff]
  %v2301 = vld [vmem:[%s9 + $0xe98] sm:$0xff]
  %v2302 = vld [vmem:[%s9 + $0xea0] sm:$0xff]
  %v2303 = vld [vmem:[%s9 + $0xea8] sm:$0xff]
  %v2304 = vld [vmem:[%s9 + $0xeb0] sm:$0xff]
  %v2305 = vld [vmem:[%s9 + $0xeb8] sm:$0xff]
  %v2306 = vld [vmem:[%s9 + $0xec0] sm:$0xff]
  %v2307 = vld [vmem:[%s9 + $0xec8] sm:$0xff]
  %v2308 = vld [vmem:[%s9 + $0xed0] sm:$0xff]
  %v2309 = vld [vmem:[%s9 + $0xed8] sm:$0xff]
  %v2310 = vld [vmem:[%s9 + $0xee0] sm:$0xff]
  %v2311 = vld [vmem:[%s9 + $0xee8] sm:$0xff]
  %v2312 = vld [vmem:[%s9 + $0xef0] sm:$0xff]
  %v2313 = vld [vmem:[%s9 + $0xef8] sm:$0xff]
  %v2314 = vld [vmem:[%s9 + $0xf00] sm:$0xff]
  %v2315 = vld [vmem:[%s9 + $0xf08] sm:$0xff]
  %v2316 = vld [vmem:[%s9 + $0xf10] sm:$0xff]
  %v2317 = vld [vmem:[%s9 + $0xf18] sm:$0xff]
  %v2318 = vld [vmem:[%s9 + $0xf20] sm:$0xff]
  %v2319 = vld [vmem:[%s9 + $0xf28] sm:$0xff]
  %v2320 = vld [vmem:[%s9 + $0xf30] sm:$0xff]
  %v2321 = vld [vmem:[%s9 + $0xf38] sm:$0xff]
  %v2322 = vld [vmem:[%s9 + $0xf40] sm:$0xff]
  %v2323 = vld [vmem:[%s9 + $0xf48] sm:$0xff]
  %v2324 = vld [vmem:[%s9 + $0xf50] sm:$0xff]
  %v2325 = vld [vmem:[%s9 + $0xf58] sm:$0xff]
  %v2326 = vld [vmem:[%s9 + $0xf60] sm:$0xff]
  %v2327 = vld [vmem:[%s9 + $0xf68] sm:$0xff]
  %v2328 = vld [vmem:[%s9 + $0xf70] sm:$0xff]
  %v2329 = vld [vmem:[%s9 + $0xf78] sm:$0xff]
  %v2330 = vld [vmem:[%s9 + $0xf80] sm:$0xff]
  %v2331 = vld [vmem:[%s9 + $0xf88] sm:$0xff]
  %v2332 = vld [vmem:[%s9 + $0xf90] sm:$0xff]
  %v2333 = vld [vmem:[%s9 + $0xf98] sm:$0xff]
  %v2334 = vld [vmem:[%s9 + $0xfa0] sm:$0xff]
  %v2335 = vld [vmem:[%s9 + $0xfa8] sm:$0xff]
  %v2336 = vld [vmem:[%s9 + $0xfb0] sm:$0xff]
  %v2337 = vld [vmem:[%s9 + $0xfb8] sm:$0xff]
  %v2338 = vld [vmem:[%s9 + $0xfc0] sm:$0xff]
  %v2339 = vld [vmem:[%s9 + $0xfc8] sm:$0xff]
  %v2340 = vld [vmem:[%s9 + $0xfd0] sm:$0xff]
  %v2341 = vld [vmem:[%s9 + $0xfd8] sm:$0xff]
  %v2342 = vld [vmem:[%s9 + $0xfe0] sm:$0xff]
  %v2343 = vld [vmem:[%s9 + $0xfe8] sm:$0xff]
  %v2344 = vld [vmem:[%s9 + $0xff0] sm:$0xff]
  %v2345 = vld [vmem:[%s9 + $0xff8] sm:$0xff]
  %2346 = vmatprep.subr.mxu0 %v1955
  %2347 = vmatpush1.msra.mxu0 %v1954
  %2348 = vmatprep.subr.mxu0 %v1947
  %2349 = vmatpush1.msra.mxu0 %v1946
  %2350 = vmatprep.subr.mxu0 %v1939
  %2351 = vmatpush1.msra.mxu0 %v1938
  %2352 = vmatprep.subr.mxu0 %v1931
  %2353 = vmatpush1.msra.mxu0 %v1930
  %2354 = vmatprep.subr.mxu0 %v1923
  %2355 = vmatpush1.msra.mxu0 %v1922
  %2356 = vmatprep.subr.mxu0 %v1915
  %2357 = vmatpush1.msra.mxu0 %v1914
  %2358 = vmatprep.subr.mxu0 %v1907
  %2359 = vmatpush1.msra.mxu0 %v1906
  %2360 = vmatprep.subr.mxu0 %v1899
  %2361 = vmatpush1.msra.mxu0 %v1898
  %2362 = vmatprep.subr.mxu0 %v1891
  %2363 = vmatpush1.msra.mxu0 %v1890
  %2364 = vmatprep.subr.mxu0 %v1883
  %2365 = vmatpush1.msra.mxu0 %v1882
  %2366 = vmatprep.subr.mxu0 %v1875
  %2367 = vmatpush1.msra.mxu0 %v1874
  %2368 = vmatprep.subr.mxu0 %v1867
  %2369 = vmatpush1.msra.mxu0 %v1866
  %2370 = vmatprep.subr.mxu0 %v1859
  %2371 = vmatpush1.msra.mxu0 %v1858
  %2372 = vmatprep.subr.mxu0 %v1851
  %2373 = vmatpush1.msra.mxu0 %v1850
  %2374 = vmatprep.subr.mxu0 %v1843
  %2375 = vmatpush1.msra.mxu0 %v1842
  %2376 = vmatprep.subr.mxu0 %v1835
  %2377 = vmatpush1.msra.mxu0 %v1834
  %2378 = vmatprep.subr.mxu0 %v2083
  %2379 = vmatpush2.msra.mxu0 %v2082
  %2380 = vmatprep.subr.mxu0 %v2075
  %2381 = vmatpush2.msra.mxu0 %v2074
  %2382 = vmatprep.subr.mxu0 %v2067
  %2383 = vmatpush2.msra.mxu0 %v2066
  %2384 = vmatprep.subr.mxu0 %v2059
  %2385 = vmatpush2.msra.mxu0 %v2058
  %2386 = vmatprep.subr.mxu0 %v2051
  %2387 = vmatpush2.msra.mxu0 %v2050
  %2388 = vmatprep.subr.mxu0 %v2043
  %2389 = vmatpush2.msra.mxu0 %v2042
  %2390 = vmatprep.subr.mxu0 %v2035
  %2391 = vmatpush2.msra.mxu0 %v2034
  %2392 = vmatprep.subr.mxu0 %v2027
  %2393 = vmatpush2.msra.mxu0 %v2026
  %2394 = vmatprep.subr.mxu0 %v2019
  %2395 = vmatpush2.msra.mxu0 %v2018
  %2396 = vmatprep.subr.mxu0 %v2011
  %2397 = vmatpush2.msra.mxu0 %v2010
  %2398 = vmatprep.subr.mxu0 %v2003
  %2399 = vmatpush2.msra.mxu0 %v2002
  %2400 = vmatprep.subr.mxu0 %v1995
  %2401 = vmatpush2.msra.mxu0 %v1994
  %2402 = vmatprep.subr.mxu0 %v1987
  %2403 = vmatpush2.msra.mxu0 %v1986
  %2404 = vmatprep.subr.mxu0 %v1979
  %2405 = vmatpush2.msra.mxu0 %v1978
  %2406 = vmatprep.subr.mxu0 %v1971
  %2407 = vmatpush2.msra.mxu0 %v1970
  %2408 = vmatprep.subr.mxu0 %v1963
  %2409 = vmatpush2.msra.mxu0 %v1962
  %2410 = vmatprep.mubr.f32.mxu0 %v1819
  %2411 = vmatmul.mubr.f32.gmra.mxu0 %v1818
  %v2412 = vpop.f32.mrf.mxu0
  %v2413 = vadd.f32 0.0, %v2412
  %v2414 = vpop.f32.mrf.mxu0
  %v2415 = vadd.f32 0.0, %v2414
  %2416 = vmatprep.mubr.f32.mxu0 %v1823
  %2417 = vmatmul.mubr.f32.gmra.mxu0 %v1822
  %v2418 = vpop.f32.mrf.mxu0
  %v2419 = vadd.f32 0.0, %v2418
  %v2420 = vpop.f32.mrf.mxu0
  %v2421 = vadd.f32 0.0, %v2420
  %2422 = vmatprep.mubr.f32.mxu0 %v1827
  %2423 = vmatmul.mubr.f32.gmra.mxu0 %v1826
  %v2424 = vpop.f32.mrf.mxu0
  %v2425 = vadd.f32 0.0, %v2424
  %v2426 = vpop.f32.mrf.mxu0
  %v2427 = vadd.f32 0.0, %v2426
  %2428 = vmatprep.mubr.f32.mxu0 %v1831
  %2429 = vmatmul.mubr.f32.gmra.mxu0 %v1830
  %v2430 = vpop.f32.mrf.mxu0
  %v2431 = vadd.f32 0.0, %v2430
  %v2432 = vpop.f32.mrf.mxu0
  %v2433 = vadd.f32 0.0, %v2432
  %2434 = vdwg.mxu0
  %2435 = vmatprep.subr.mxu0 %v2211
  %2436 = vmatpush1.msra.mxu0 %v2210
  %2437 = vmatprep.subr.mxu0 %v2203
  %2438 = vmatpush1.msra.mxu0 %v2202
  %2439 = vmatprep.subr.mxu0 %v2195
  %2440 = vmatpush1.msra.mxu0 %v2194
  %2441 = vmatprep.subr.mxu0 %v2187
  %2442 = vmatpush1.msra.mxu0 %v2186
  %2443 = vmatprep.subr.mxu0 %v2179
  %2444 = vmatpush1.msra.mxu0 %v2178
  %2445 = vmatprep.subr.mxu0 %v2171
  %2446 = vmatpush1.msra.mxu0 %v2170
  %2447 = vmatprep.subr.mxu0 %v2163
  %2448 = vmatpush1.msra.mxu0 %v2162
  %2449 = vmatprep.subr.mxu0 %v2155
  %2450 = vmatpush1.msra.mxu0 %v2154
  %2451 = vmatprep.subr.mxu0 %v2147
  %2452 = vmatpush1.msra.mxu0 %v2146
  %2453 = vmatprep.subr.mxu0 %v2139
  %2454 = vmatpush1.msra.mxu0 %v2138
  %2455 = vmatprep.subr.mxu0 %v2131
  %2456 = vmatpush1.msra.mxu0 %v2130
  %2457 = vmatprep.subr.mxu0 %v2123
  %2458 = vmatpush1.msra.mxu0 %v2122
  %2459 = vmatprep.subr.mxu0 %v2115
  %2460 = vmatpush1.msra.mxu0 %v2114
  %2461 = vmatprep.subr.mxu0 %v2107
  %2462 = vmatpush1.msra.mxu0 %v2106
  %2463 = vmatprep.subr.mxu0 %v2099
  %2464 = vmatpush1.msra.mxu0 %v2098
  %2465 = vmatprep.subr.mxu0 %v2091
  %2466 = vmatpush1.msra.mxu0 %v2090
  %2467 = vmatprep.subr.mxu0 %v2339
  %2468 = vmatpush2.msra.mxu0 %v2338
  %2469 = vmatprep.subr.mxu0 %v2331
  %2470 = vmatpush2.msra.mxu0 %v2330
  %2471 = vmatprep.subr.mxu0 %v2323
  %2472 = vmatpush2.msra.mxu0 %v2322
  %2473 = vmatprep.subr.mxu0 %v2315
  %2474 = vmatpush2.msra.mxu0 %v2314
  %2475 = vmatprep.subr.mxu0 %v2307
  %2476 = vmatpush2.msra.mxu0 %v2306
  %2477 = vmatprep.subr.mxu0 %v2299
  %2478 = vmatpush2.msra.mxu0 %v2298
  %2479 = vmatprep.subr.mxu0 %v2291
  %2480 = vmatpush2.msra.mxu0 %v2290
  %2481 = vmatprep.subr.mxu0 %v2283
  %2482 = vmatpush2.msra.mxu0 %v2282
  %2483 = vmatprep.subr.mxu0 %v2275
  %2484 = vmatpush2.msra.mxu0 %v2274
  %2485 = vmatprep.subr.mxu0 %v2267
  %2486 = vmatpush2.msra.mxu0 %v2266
  %2487 = vmatprep.subr.mxu0 %v2259
  %2488 = vmatpush2.msra.mxu0 %v2258
  %2489 = vmatprep.subr.mxu0 %v2251
  %2490 = vmatpush2.msra.mxu0 %v2250
  %2491 = vmatprep.subr.mxu0 %v2243
  %2492 = vmatpush2.msra.mxu0 %v2242
  %2493 = vmatprep.subr.mxu0 %v2235
  %2494 = vmatpush2.msra.mxu0 %v2234
  %2495 = vmatprep.subr.mxu0 %v2227
  %2496 = vmatpush2.msra.mxu0 %v2226
  %2497 = vmatprep.subr.mxu0 %v2219
  %2498 = vmatpush2.msra.mxu0 %v2218
  %2499 = vmatprep.mubr.f32.mxu0 %v1821
  %2500 = vmatmul.mubr.f32.gmra.mxu0 %v1820
  %v2501 = vpop.f32.mrf.mxu0
  %v2502 = vadd.f32 %v2413, %v2501
  %v2503 = vpop.f32.mrf.mxu0
  %v2504 = vadd.f32 %v2415, %v2503
  %2505 = vmatprep.mubr.f32.mxu0 %v1825
  %2506 = vmatmul.mubr.f32.gmra.mxu0 %v1824
  %v2507 = vpop.f32.mrf.mxu0
  %v2508 = vadd.f32 %v2419, %v2507
  %v2509 = vpop.f32.mrf.mxu0
  %v2510 = vadd.f32 %v2421, %v2509
  %2511 = vmatprep.mubr.f32.mxu0 %v1829
  %2512 = vmatmul.mubr.f32.gmra.mxu0 %v1828
  %v2513 = vpop.f32.mrf.mxu0
  %v2514 = vadd.f32 %v2425, %v2513
  %v2515 = vpop.f32.mrf.mxu0
  %v2516 = vadd.f32 %v2427, %v2515
  %2517 = vmatprep.mubr.f32.mxu0 %v1833
  %2518 = vmatmul.mubr.f32.gmra.mxu0 %v1832
  %v2519 = vpop.f32.mrf.mxu0
  %v2520 = vadd.f32 %v2431, %v2519
  %v2521 = vpop.f32.mrf.mxu0
  %v2522 = vadd.f32 %v2433, %v2521
  %2523 = vdwg.mxu0
  %2524 = vmatprep.subr.mxu0 %v1957
  %2525 = vmatpush1.msra.mxu0 %v1956
  %2526 = vmatprep.subr.mxu0 %v1949
  %2527 = vmatpush1.msra.mxu0 %v1948
  %2528 = vmatprep.subr.mxu0 %v1941
  %2529 = vmatpush1.msra.mxu0 %v1940
  %2530 = vmatprep.subr.mxu0 %v1933
  %2531 = vmatpush1.msra.mxu0 %v1932
  %2532 = vmatprep.subr.mxu0 %v1925
  %2533 = vmatpush1.msra.mxu0 %v1924
  %2534 = vmatprep.subr.mxu0 %v1917
  %2535 = vmatpush1.msra.mxu0 %v1916
  %2536 = vmatprep.subr.mxu0 %v1909
  %2537 = vmatpush1.msra.mxu0 %v1908
  %2538 = vmatprep.subr.mxu0 %v1901
  %2539 = vmatpush1.msra.mxu0 %v1900
  %2540 = vmatprep.subr.mxu0 %v1893
  %2541 = vmatpush1.msra.mxu0 %v1892
  %2542 = vmatprep.subr.mxu0 %v1885
  %2543 = vmatpush1.msra.mxu0 %v1884
  %2544 = vmatprep.subr.mxu0 %v1877
  %2545 = vmatpush1.msra.mxu0 %v1876
  %2546 = vmatprep.subr.mxu0 %v1869
  %2547 = vmatpush1.msra.mxu0 %v1868
  %2548 = vmatprep.subr.mxu0 %v1861
  %2549 = vmatpush1.msra.mxu0 %v1860
  %2550 = vmatprep.subr.mxu0 %v1853
  %2551 = vmatpush1.msra.mxu0 %v1852
  %2552 = vmatprep.subr.mxu0 %v1845
  %2553 = vmatpush1.msra.mxu0 %v1844
  %2554 = vmatprep.subr.mxu0 %v1837
  %2555 = vmatpush1.msra.mxu0 %v1836
  %2556 = vmatprep.subr.mxu0 %v2085
  %2557 = vmatpush2.msra.mxu0 %v2084
  %2558 = vmatprep.subr.mxu0 %v2077
  %2559 = vmatpush2.msra.mxu0 %v2076
  %2560 = vmatprep.subr.mxu0 %v2069
  %2561 = vmatpush2.msra.mxu0 %v2068
  %2562 = vmatprep.subr.mxu0 %v2061
  %2563 = vmatpush2.msra.mxu0 %v2060
  %2564 = vmatprep.subr.mxu0 %v2053
  %2565 = vmatpush2.msra.mxu0 %v2052
  %2566 = vmatprep.subr.mxu0 %v2045
  %2567 = vmatpush2.msra.mxu0 %v2044
  %2568 = vmatprep.subr.mxu0 %v2037
  %2569 = vmatpush2.msra.mxu0 %v2036
  %2570 = vmatprep.subr.mxu0 %v2029
  %2571 = vmatpush2.msra.mxu0 %v2028
  %2572 = vmatprep.subr.mxu0 %v2021
  %2573 = vmatpush2.msra.mxu0 %v2020
  %2574 = vmatprep.subr.mxu0 %v2013
  %2575 = vmatpush2.msra.mxu0 %v2012
  %2576 = vmatprep.subr.mxu0 %v2005
  %2577 = vmatpush2.msra.mxu0 %v2004
  %2578 = vmatprep.subr.mxu0 %v1997
  %2579 = vmatpush2.msra.mxu0 %v1996
  %2580 = vmatprep.subr.mxu0 %v1989
  %2581 = vmatpush2.msra.mxu0 %v1988
  %2582 = vmatprep.subr.mxu0 %v1981
  %2583 = vmatpush2.msra.mxu0 %v1980
  %2584 = vmatprep.subr.mxu0 %v1973
  %2585 = vmatpush2.msra.mxu0 %v1972
  %2586 = vmatprep.subr.mxu0 %v1965
  %2587 = vmatpush2.msra.mxu0 %v1964
  %2588 = vmatprep.mubr.f32.mxu0 %v1819
  %2589 = vmatmul.mubr.f32.gmra.mxu0 %v1818
  %v2590 = vpop.f32.mrf.mxu0
  %v2591 = vadd.f32 0.0, %v2590
  %v2592 = vpop.f32.mrf.mxu0
  %v2593 = vadd.f32 0.0, %v2592
  %2594 = vmatprep.mubr.f32.mxu0 %v1823
  %2595 = vmatmul.mubr.f32.gmra.mxu0 %v1822
  %v2596 = vpop.f32.mrf.mxu0
  %v2597 = vadd.f32 0.0, %v2596
  %v2598 = vpop.f32.mrf.mxu0
  %v2599 = vadd.f32 0.0, %v2598
  %2600 = vmatprep.mubr.f32.mxu0 %v1827
  %2601 = vmatmul.mubr.f32.gmra.mxu0 %v1826
  %v2602 = vpop.f32.mrf.mxu0
  %v2603 = vadd.f32 0.0, %v2602
  %v2604 = vpop.f32.mrf.mxu0
  %v2605 = vadd.f32 0.0, %v2604
  %2606 = vmatprep.mubr.f32.mxu0 %v1831
  %2607 = vmatmul.mubr.f32.gmra.mxu0 %v1830
  %v2608 = vpop.f32.mrf.mxu0
  %v2609 = vadd.f32 0.0, %v2608
  %v2610 = vpop.f32.mrf.mxu0
  %v2611 = vadd.f32 0.0, %v2610
  %2612 = vdwg.mxu0
  %2613 = vmatprep.subr.mxu0 %v2213
  %2614 = vmatpush1.msra.mxu0 %v2212
  %2615 = vmatprep.subr.mxu0 %v2205
  %2616 = vmatpush1.msra.mxu0 %v2204
  %2617 = vmatprep.subr.mxu0 %v2197
  %2618 = vmatpush1.msra.mxu0 %v2196
  %2619 = vmatprep.subr.mxu0 %v2189
  %2620 = vmatpush1.msra.mxu0 %v2188
  %2621 = vmatprep.subr.mxu0 %v2181
  %2622 = vmatpush1.msra.mxu0 %v2180
  %2623 = vmatprep.subr.mxu0 %v2173
  %2624 = vmatpush1.msra.mxu0 %v2172
  %2625 = vmatprep.subr.mxu0 %v2165
  %2626 = vmatpush1.msra.mxu0 %v2164
  %2627 = vmatprep.subr.mxu0 %v2157
  %2628 = vmatpush1.msra.mxu0 %v2156
  %2629 = vmatprep.subr.mxu0 %v2149
  %2630 = vmatpush1.msra.mxu0 %v2148
  %2631 = vmatprep.subr.mxu0 %v2141
  %2632 = vmatpush1.msra.mxu0 %v2140
  %2633 = vmatprep.subr.mxu0 %v2133
  %2634 = vmatpush1.msra.mxu0 %v2132
  %2635 = vmatprep.subr.mxu0 %v2125
  %2636 = vmatpush1.msra.mxu0 %v2124
  %2637 = vmatprep.subr.mxu0 %v2117
  %2638 = vmatpush1.msra.mxu0 %v2116
  %2639 = vmatprep.subr.mxu0 %v2109
  %2640 = vmatpush1.msra.mxu0 %v2108
  %2641 = vmatprep.subr.mxu0 %v2101
  %2642 = vmatpush1.msra.mxu0 %v2100
  %2643 = vmatprep.subr.mxu0 %v2093
  %2644 = vmatpush1.msra.mxu0 %v2092
  %2645 = vmatprep.subr.mxu0 %v2341
  %2646 = vmatpush2.msra.mxu0 %v2340
  %2647 = vmatprep.subr.mxu0 %v2333
  %2648 = vmatpush2.msra.mxu0 %v2332
  %2649 = vmatprep.subr.mxu0 %v2325
  %2650 = vmatpush2.msra.mxu0 %v2324
  %2651 = vmatprep.subr.mxu0 %v2317
  %2652 = vmatpush2.msra.mxu0 %v2316
  %2653 = vmatprep.subr.mxu0 %v2309
  %2654 = vmatpush2.msra.mxu0 %v2308
  %2655 = vmatprep.subr.mxu0 %v2301
  %2656 = vmatpush2.msra.mxu0 %v2300
  %2657 = vmatprep.subr.mxu0 %v2293
  %2658 = vmatpush2.msra.mxu0 %v2292
  %2659 = vmatprep.subr.mxu0 %v2285
  %2660 = vmatpush2.msra.mxu0 %v2284
  %2661 = vmatprep.subr.mxu0 %v2277
  %2662 = vmatpush2.msra.mxu0 %v2276
  %2663 = vmatprep.subr.mxu0 %v2269
  %2664 = vmatpush2.msra.mxu0 %v2268
  %2665 = vmatprep.subr.mxu0 %v2261
  %2666 = vmatpush2.msra.mxu0 %v2260
  %2667 = vmatprep.subr.mxu0 %v2253
  %2668 = vmatpush2.msra.mxu0 %v2252
  %2669 = vmatprep.subr.mxu0 %v2245
  %2670 = vmatpush2.msra.mxu0 %v2244
  %2671 = vmatprep.subr.mxu0 %v2237
  %2672 = vmatpush2.msra.mxu0 %v2236
  %2673 = vmatprep.subr.mxu0 %v2229
  %2674 = vmatpush2.msra.mxu0 %v2228
  %2675 = vmatprep.subr.mxu0 %v2221
  %2676 = vmatpush2.msra.mxu0 %v2220
  %2677 = vmatprep.mubr.f32.mxu0 %v1821
  %2678 = vmatmul.mubr.f32.gmra.mxu0 %v1820
  %v2679 = vpop.f32.mrf.mxu0
  %v2680 = vadd.f32 %v2591, %v2679
  %v2681 = vpop.f32.mrf.mxu0
  %v2682 = vadd.f32 %v2593, %v2681
  %2683 = vmatprep.mubr.f32.mxu0 %v1825
  %2684 = vmatmul.mubr.f32.gmra.mxu0 %v1824
  %v2685 = vpop.f32.mrf.mxu0
  %v2686 = vadd.f32 %v2597, %v2685
  %v2687 = vpop.f32.mrf.mxu0
  %v2688 = vadd.f32 %v2599, %v2687
  %2689 = vmatprep.mubr.f32.mxu0 %v1829
  %2690 = vmatmul.mubr.f32.gmra.mxu0 %v1828
  %v2691 = vpop.f32.mrf.mxu0
  %v2692 = vadd.f32 %v2603, %v2691
  %v2693 = vpop.f32.mrf.mxu0
  %v2694 = vadd.f32 %v2605, %v2693
  %2695 = vmatprep.mubr.f32.mxu0 %v1833
  %2696 = vmatmul.mubr.f32.gmra.mxu0 %v1832
  %v2697 = vpop.f32.mrf.mxu0
  %v2698 = vadd.f32 %v2609, %v2697
  %v2699 = vpop.f32.mrf.mxu0
  %v2700 = vadd.f32 %v2611, %v2699
  %2701 = vdwg.mxu0
  %2702 = vmatprep.subr.mxu0 %v1959
  %2703 = vmatpush1.msra.mxu0 %v1958
  %2704 = vmatprep.subr.mxu0 %v1951
  %2705 = vmatpush1.msra.mxu0 %v1950
  %2706 = vmatprep.subr.mxu0 %v1943
  %2707 = vmatpush1.msra.mxu0 %v1942
  %2708 = vmatprep.subr.mxu0 %v1935
  %2709 = vmatpush1.msra.mxu0 %v1934
  %2710 = vmatprep.subr.mxu0 %v1927
  %2711 = vmatpush1.msra.mxu0 %v1926
  %2712 = vmatprep.subr.mxu0 %v1919
  %2713 = vmatpush1.msra.mxu0 %v1918
  %2714 = vmatprep.subr.mxu0 %v1911
  %2715 = vmatpush1.msra.mxu0 %v1910
  %2716 = vmatprep.subr.mxu0 %v1903
  %2717 = vmatpush1.msra.mxu0 %v1902
  %2718 = vmatprep.subr.mxu0 %v1895
  %2719 = vmatpush1.msra.mxu0 %v1894
  %2720 = vmatprep.subr.mxu0 %v1887
  %2721 = vmatpush1.msra.mxu0 %v1886
  %2722 = vmatprep.subr.mxu0 %v1879
  %2723 = vmatpush1.msra.mxu0 %v1878
  %2724 = vmatprep.subr.mxu0 %v1871
  %2725 = vmatpush1.msra.mxu0 %v1870
  %2726 = vmatprep.subr.mxu0 %v1863
  %2727 = vmatpush1.msra.mxu0 %v1862
  %2728 = vmatprep.subr.mxu0 %v1855
  %2729 = vmatpush1.msra.mxu0 %v1854
  %2730 = vmatprep.subr.mxu0 %v1847
  %2731 = vmatpush1.msra.mxu0 %v1846
  %2732 = vmatprep.subr.mxu0 %v1839
  %2733 = vmatpush1.msra.mxu0 %v1838
  %2734 = vmatprep.subr.mxu0 %v2087
  %2735 = vmatpush2.msra.mxu0 %v2086
  %2736 = vmatprep.subr.mxu0 %v2079
  %2737 = vmatpush2.msra.mxu0 %v2078
  %2738 = vmatprep.subr.mxu0 %v2071
  %2739 = vmatpush2.msra.mxu0 %v2070
  %2740 = vmatprep.subr.mxu0 %v2063
  %2741 = vmatpush2.msra.mxu0 %v2062
  %2742 = vmatprep.subr.mxu0 %v2055
  %2743 = vmatpush2.msra.mxu0 %v2054
  %2744 = vmatprep.subr.mxu0 %v2047
  %2745 = vmatpush2.msra.mxu0 %v2046
  %2746 = vmatprep.subr.mxu0 %v2039
  %2747 = vmatpush2.msra.mxu0 %v2038
  %2748 = vmatprep.subr.mxu0 %v2031
  %2749 = vmatpush2.msra.mxu0 %v2030
  %2750 = vmatprep.subr.mxu0 %v2023
  %2751 = vmatpush2.msra.mxu0 %v2022
  %2752 = vmatprep.subr.mxu0 %v2015
  %2753 = vmatpush2.msra.mxu0 %v2014
  %2754 = vmatprep.subr.mxu0 %v2007
  %2755 = vmatpush2.msra.mxu0 %v2006
  %2756 = vmatprep.subr.mxu0 %v1999
  %2757 = vmatpush2.msra.mxu0 %v1998
  %2758 = vmatprep.subr.mxu0 %v1991
  %2759 = vmatpush2.msra.mxu0 %v1990
  %2760 = vmatprep.subr.mxu0 %v1983
  %2761 = vmatpush2.msra.mxu0 %v1982
  %2762 = vmatprep.subr.mxu0 %v1975
  %2763 = vmatpush2.msra.mxu0 %v1974
  %2764 = vmatprep.subr.mxu0 %v1967
  %2765 = vmatpush2.msra.mxu0 %v1966
  %2766 = vmatprep.mubr.f32.mxu0 %v1819
  %2767 = vmatmul.mubr.f32.gmra.mxu0 %v1818
  %v2768 = vpop.f32.mrf.mxu0
  %v2769 = vadd.f32 0.0, %v2768
  %v2770 = vpop.f32.mrf.mxu0
  %v2771 = vadd.f32 0.0, %v2770
  %2772 = vmatprep.mubr.f32.mxu0 %v1823
  %2773 = vmatmul.mubr.f32.gmra.mxu0 %v1822
  %v2774 = vpop.f32.mrf.mxu0
  %v2775 = vadd.f32 0.0, %v2774
  %v2776 = vpop.f32.mrf.mxu0
  %v2777 = vadd.f32 0.0, %v2776
  %2778 = vmatprep.mubr.f32.mxu0 %v1827
  %2779 = vmatmul.mubr.f32.gmra.mxu0 %v1826
  %v2780 = vpop.f32.mrf.mxu0
  %v2781 = vadd.f32 0.0, %v2780
  %v2782 = vpop.f32.mrf.mxu0
  %v2783 = vadd.f32 0.0, %v2782
  %2784 = vmatprep.mubr.f32.mxu0 %v1831
  %2785 = vmatmul.mubr.f32.gmra.mxu0 %v1830
  %v2786 = vpop.f32.mrf.mxu0
  %v2787 = vadd.f32 0.0, %v2786
  %v2788 = vpop.f32.mrf.mxu0
  %v2789 = vadd.f32 0.0, %v2788
  %2790 = vdwg.mxu0
  %2791 = vmatprep.subr.mxu0 %v2215
  %2792 = vmatpush1.msra.mxu0 %v2214
  %2793 = vmatprep.subr.mxu0 %v2207
  %2794 = vmatpush1.msra.mxu0 %v2206
  %2795 = vmatprep.subr.mxu0 %v2199
  %2796 = vmatpush1.msra.mxu0 %v2198
  %2797 = vmatprep.subr.mxu0 %v2191
  %2798 = vmatpush1.msra.mxu0 %v2190
  %2799 = vmatprep.subr.mxu0 %v2183
  %2800 = vmatpush1.msra.mxu0 %v2182
  %2801 = vmatprep.subr.mxu0 %v2175
  %2802 = vmatpush1.msra.mxu0 %v2174
  %2803 = vmatprep.subr.mxu0 %v2167
  %2804 = vmatpush1.msra.mxu0 %v2166
  %2805 = vmatprep.subr.mxu0 %v2159
  %2806 = vmatpush1.msra.mxu0 %v2158
  %2807 = vmatprep.subr.mxu0 %v2151
  %2808 = vmatpush1.msra.mxu0 %v2150
  %2809 = vmatprep.subr.mxu0 %v2143
  %2810 = vmatpush1.msra.mxu0 %v2142
  %2811 = vmatprep.subr.mxu0 %v2135
  %2812 = vmatpush1.msra.mxu0 %v2134
  %2813 = vmatprep.subr.mxu0 %v2127
  %2814 = vmatpush1.msra.mxu0 %v2126
  %2815 = vmatprep.subr.mxu0 %v2119
  %2816 = vmatpush1.msra.mxu0 %v2118
  %2817 = vmatprep.subr.mxu0 %v2111
  %2818 = vmatpush1.msra.mxu0 %v2110
  %2819 = vmatprep.subr.mxu0 %v2103
  %2820 = vmatpush1.msra.mxu0 %v2102
  %2821 = vmatprep.subr.mxu0 %v2095
  %2822 = vmatpush1.msra.mxu0 %v2094
  %2823 = vmatprep.subr.mxu0 %v2343
  %2824 = vmatpush2.msra.mxu0 %v2342
  %2825 = vmatprep.subr.mxu0 %v2335
  %2826 = vmatpush2.msra.mxu0 %v2334
  %2827 = vmatprep.subr.mxu0 %v2327
  %2828 = vmatpush2.msra.mxu0 %v2326
  %2829 = vmatprep.subr.mxu0 %v2319
  %2830 = vmatpush2.msra.mxu0 %v2318
  %2831 = vmatprep.subr.mxu0 %v2311
  %2832 = vmatpush2.msra.mxu0 %v2310
  %2833 = vmatprep.subr.mxu0 %v2303
  %2834 = vmatpush2.msra.mxu0 %v2302
  %2835 = vmatprep.subr.mxu0 %v2295
  %2836 = vmatpush2.msra.mxu0 %v2294
  %2837 = vmatprep.subr.mxu0 %v2287
  %2838 = vmatpush2.msra.mxu0 %v2286
  %2839 = vmatprep.subr.mxu0 %v2279
  %2840 = vmatpush2.msra.mxu0 %v2278
  %2841 = vmatprep.subr.mxu0 %v2271
  %2842 = vmatpush2.msra.mxu0 %v2270
  %2843 = vmatprep.subr.mxu0 %v2263
  %2844 = vmatpush2.msra.mxu0 %v2262
  %2845 = vmatprep.subr.mxu0 %v2255
  %2846 = vmatpush2.msra.mxu0 %v2254
  %2847 = vmatprep.subr.mxu0 %v2247
  %2848 = vmatpush2.msra.mxu0 %v2246
  %2849 = vmatprep.subr.mxu0 %v2239
  %2850 = vmatpush2.msra.mxu0 %v2238
  %2851 = vmatprep.subr.mxu0 %v2231
  %2852 = vmatpush2.msra.mxu0 %v2230
  %2853 = vmatprep.subr.mxu0 %v2223
  %2854 = vmatpush2.msra.mxu0 %v2222
  %2855 = vmatprep.mubr.f32.mxu0 %v1821
  %2856 = vmatmul.mubr.f32.gmra.mxu0 %v1820
  %v2857 = vpop.f32.mrf.mxu0
  %v2858 = vadd.f32 %v2769, %v2857
  %v2859 = vpop.f32.mrf.mxu0
  %v2860 = vadd.f32 %v2771, %v2859
  %2861 = vmatprep.mubr.f32.mxu0 %v1825
  %2862 = vmatmul.mubr.f32.gmra.mxu0 %v1824
  %v2863 = vpop.f32.mrf.mxu0
  %v2864 = vadd.f32 %v2775, %v2863
  %v2865 = vpop.f32.mrf.mxu0
  %v2866 = vadd.f32 %v2777, %v2865
  %2867 = vmatprep.mubr.f32.mxu0 %v1829
  %2868 = vmatmul.mubr.f32.gmra.mxu0 %v1828
  %v2869 = vpop.f32.mrf.mxu0
  %v2870 = vadd.f32 %v2781, %v2869
  %v2871 = vpop.f32.mrf.mxu0
  %v2872 = vadd.f32 %v2783, %v2871
  %2873 = vmatprep.mubr.f32.mxu0 %v1833
  %2874 = vmatmul.mubr.f32.gmra.mxu0 %v1832
  %v2875 = vpop.f32.mrf.mxu0
  %v2876 = vadd.f32 %v2787, %v2875
  %v2877 = vpop.f32.mrf.mxu0
  %v2878 = vadd.f32 %v2789, %v2877
  %2879 = vdwg.mxu0
  %2880 = vmatprep.subr.mxu0 %v1961
  %2881 = vmatpush1.msra.mxu0 %v1960
  %2882 = vmatprep.subr.mxu0 %v1953
  %2883 = vmatpush1.msra.mxu0 %v1952
  %2884 = vmatprep.subr.mxu0 %v1945
  %2885 = vmatpush1.msra.mxu0 %v1944
  %2886 = vmatprep.subr.mxu0 %v1937
  %2887 = vmatpush1.msra.mxu0 %v1936
  %2888 = vmatprep.subr.mxu0 %v1929
  %2889 = vmatpush1.msra.mxu0 %v1928
  %2890 = vmatprep.subr.mxu0 %v1921
  %2891 = vmatpush1.msra.mxu0 %v1920
  %2892 = vmatprep.subr.mxu0 %v1913
  %2893 = vmatpush1.msra.mxu0 %v1912
  %2894 = vmatprep.subr.mxu0 %v1905
  %2895 = vmatpush1.msra.mxu0 %v1904
  %2896 = vmatprep.subr.mxu0 %v1897
  %2897 = vmatpush1.msra.mxu0 %v1896
  %2898 = vmatprep.subr.mxu0 %v1889
  %2899 = vmatpush1.msra.mxu0 %v1888
  %2900 = vmatprep.subr.mxu0 %v1881
  %2901 = vmatpush1.msra.mxu0 %v1880
  %2902 = vmatprep.subr.mxu0 %v1873
  %2903 = vmatpush1.msra.mxu0 %v1872
  %2904 = vmatprep.subr.mxu0 %v1865
  %2905 = vmatpush1.msra.mxu0 %v1864
  %2906 = vmatprep.subr.mxu0 %v1857
  %2907 = vmatpush1.msra.mxu0 %v1856
  %2908 = vmatprep.subr.mxu0 %v1849
  %2909 = vmatpush1.msra.mxu0 %v1848
  %2910 = vmatprep.subr.mxu0 %v1841
  %2911 = vmatpush1.msra.mxu0 %v1840
  %2912 = vmatprep.subr.mxu0 %v2089
  %2913 = vmatpush2.msra.mxu0 %v2088
  %2914 = vmatprep.subr.mxu0 %v2081
  %2915 = vmatpush2.msra.mxu0 %v2080
  %2916 = vmatprep.subr.mxu0 %v2073
  %2917 = vmatpush2.msra.mxu0 %v2072
  %2918 = vmatprep.subr.mxu0 %v2065
  %2919 = vmatpush2.msra.mxu0 %v2064
  %2920 = vmatprep.subr.mxu0 %v2057
  %2921 = vmatpush2.msra.mxu0 %v2056
  %2922 = vmatprep.subr.mxu0 %v2049
  %2923 = vmatpush2.msra.mxu0 %v2048
  %2924 = vmatprep.subr.mxu0 %v2041
  %2925 = vmatpush2.msra.mxu0 %v2040
  %2926 = vmatprep.subr.mxu0 %v2033
  %2927 = vmatpush2.msra.mxu0 %v2032
  %2928 = vmatprep.subr.mxu0 %v2025
  %2929 = vmatpush2.msra.mxu0 %v2024
  %2930 = vmatprep.subr.mxu0 %v2017
  %2931 = vmatpush2.msra.mxu0 %v2016
  %2932 = vmatprep.subr.mxu0 %v2009
  %2933 = vmatpush2.msra.mxu0 %v2008
  %2934 = vmatprep.subr.mxu0 %v2001
  %2935 = vmatpush2.msra.mxu0 %v2000
  %2936 = vmatprep.subr.mxu0 %v1993
  %2937 = vmatpush2.msra.mxu0 %v1992
  %2938 = vmatprep.subr.mxu0 %v1985
  %2939 = vmatpush2.msra.mxu0 %v1984
  %2940 = vmatprep.subr.mxu0 %v1977
  %2941 = vmatpush2.msra.mxu0 %v1976
  %2942 = vmatprep.subr.mxu0 %v1969
  %2943 = vmatpush2.msra.mxu0 %v1968
  %2944 = vmatprep.mubr.f32.mxu0 %v1819
  %2945 = vmatmul.mubr.f32.gmra.mxu0 %v1818
  %v2946 = vpop.f32.mrf.mxu0
  %v2947 = vadd.f32 0.0, %v2946
  %v2948 = vpop.f32.mrf.mxu0
  %v2949 = vadd.f32 0.0, %v2948
  %2950 = vmatprep.mubr.f32.mxu0 %v1823
  %2951 = vmatmul.mubr.f32.gmra.mxu0 %v1822
  %v2952 = vpop.f32.mrf.mxu0
  %v2953 = vadd.f32 0.0, %v2952
  %v2954 = vpop.f32.mrf.mxu0
  %v2955 = vadd.f32 0.0, %v2954
  %2956 = vmatprep.mubr.f32.mxu0 %v1827
  %2957 = vmatmul.mubr.f32.gmra.mxu0 %v1826
  %v2958 = vpop.f32.mrf.mxu0
  %v2959 = vadd.f32 0.0, %v2958
  %v2960 = vpop.f32.mrf.mxu0
  %v2961 = vadd.f32 0.0, %v2960
  %2962 = vmatprep.mubr.f32.mxu0 %v1831
  %2963 = vmatmul.mubr.f32.gmra.mxu0 %v1830
  %v2964 = vpop.f32.mrf.mxu0
  %v2965 = vadd.f32 0.0, %v2964
  %v2966 = vpop.f32.mrf.mxu0
  %v2967 = vadd.f32 0.0, %v2966
  %2968 = vdwg.mxu0
  %2969 = vmatprep.subr.mxu0 %v2217
  %2970 = vmatpush1.msra.mxu0 %v2216
  %2971 = vmatprep.subr.mxu0 %v2209
  %2972 = vmatpush1.msra.mxu0 %v2208
  %2973 = vmatprep.subr.mxu0 %v2201
  %2974 = vmatpush1.msra.mxu0 %v2200
  %2975 = vmatprep.subr.mxu0 %v2193
  %2976 = vmatpush1.msra.mxu0 %v2192
  %2977 = vmatprep.subr.mxu0 %v2185
  %2978 = vmatpush1.msra.mxu0 %v2184
  %2979 = vmatprep.subr.mxu0 %v2177
  %2980 = vmatpush1.msra.mxu0 %v2176
  %2981 = vmatprep.subr.mxu0 %v2169
  %2982 = vmatpush1.msra.mxu0 %v2168
  %2983 = vmatprep.subr.mxu0 %v2161
  %2984 = vmatpush1.msra.mxu0 %v2160
  %2985 = vmatprep.subr.mxu0 %v2153
  %2986 = vmatpush1.msra.mxu0 %v2152
  %2987 = vmatprep.subr.mxu0 %v2145
  %2988 = vmatpush1.msra.mxu0 %v2144
  %2989 = vmatprep.subr.mxu0 %v2137
  %2990 = vmatpush1.msra.mxu0 %v2136
  %2991 = vmatprep.subr.mxu0 %v2129
  %2992 = vmatpush1.msra.mxu0 %v2128
  %2993 = vmatprep.subr.mxu0 %v2121
  %2994 = vmatpush1.msra.mxu0 %v2120
  %2995 = vmatprep.subr.mxu0 %v2113
  %2996 = vmatpush1.msra.mxu0 %v2112
  %2997 = vmatprep.subr.mxu0 %v2105
  %2998 = vmatpush1.msra.mxu0 %v2104
  %2999 = vmatprep.subr.mxu0 %v2097
  %3000 = vmatpush1.msra.mxu0 %v2096
  %3001 = vmatprep.subr.mxu0 %v2345
  %3002 = vmatpush2.msra.mxu0 %v2344
  %3003 = vmatprep.subr.mxu0 %v2337
  %3004 = vmatpush2.msra.mxu0 %v2336
  %3005 = vmatprep.subr.mxu0 %v2329
  %3006 = vmatpush2.msra.mxu0 %v2328
  %3007 = vmatprep.subr.mxu0 %v2321
  %3008 = vmatpush2.msra.mxu0 %v2320
  %3009 = vmatprep.subr.mxu0 %v2313
  %3010 = vmatpush2.msra.mxu0 %v2312
  %3011 = vmatprep.subr.mxu0 %v2305
  %3012 = vmatpush2.msra.mxu0 %v2304
  %3013 = vmatprep.subr.mxu0 %v2297
  %3014 = vmatpush2.msra.mxu0 %v2296
  %3015 = vmatprep.subr.mxu0 %v2289
  %3016 = vmatpush2.msra.mxu0 %v2288
  %3017 = vmatprep.subr.mxu0 %v2281
  %3018 = vmatpush2.msra.mxu0 %v2280
  %3019 = vmatprep.subr.mxu0 %v2273
  %3020 = vmatpush2.msra.mxu0 %v2272
  %3021 = vmatprep.subr.mxu0 %v2265
  %3022 = vmatpush2.msra.mxu0 %v2264
  %3023 = vmatprep.subr.mxu0 %v2257
  %3024 = vmatpush2.msra.mxu0 %v2256
  %3025 = vmatprep.subr.mxu0 %v2249
  %3026 = vmatpush2.msra.mxu0 %v2248
  %3027 = vmatprep.subr.mxu0 %v2241
  %3028 = vmatpush2.msra.mxu0 %v2240
  %3029 = vmatprep.subr.mxu0 %v2233
  %3030 = vmatpush2.msra.mxu0 %v2232
  %3031 = vmatprep.subr.mxu0 %v2225
  %3032 = vmatpush2.msra.mxu0 %v2224
  %3033 = vmatprep.mubr.f32.mxu0 %v1821
  %3034 = vmatmul.mubr.f32.gmra.mxu0 %v1820
  %v3035 = vpop.f32.mrf.mxu0
  %v3036 = vadd.f32 %v2947, %v3035
  %v3037 = vpop.f32.mrf.mxu0
  %v3038 = vadd.f32 %v2949, %v3037
  %3039 = vmatprep.mubr.f32.mxu0 %v1825
  %3040 = vmatmul.mubr.f32.gmra.mxu0 %v1824
  %v3041 = vpop.f32.mrf.mxu0
  %v3042 = vadd.f32 %v2953, %v3041
  %v3043 = vpop.f32.mrf.mxu0
  %v3044 = vadd.f32 %v2955, %v3043
  %3045 = vmatprep.mubr.f32.mxu0 %v1829
  %3046 = vmatmul.mubr.f32.gmra.mxu0 %v1828
  %v3047 = vpop.f32.mrf.mxu0
  %v3048 = vadd.f32 %v2959, %v3047
  %v3049 = vpop.f32.mrf.mxu0
  %v3050 = vadd.f32 %v2961, %v3049
  %3051 = vmatprep.mubr.f32.mxu0 %v1833
  %3052 = vmatmul.mubr.f32.gmra.mxu0 %v1832
  %v3053 = vpop.f32.mrf.mxu0
  %v3054 = vadd.f32 %v2965, %v3053
  %v3055 = vpop.f32.mrf.mxu0
  %v3056 = vadd.f32 %v2967, %v3055
  %3057 = vdwg.mxu0
  %v3058 = vld [vmem:[%s10] sm:$0x1]
  %v3059 = vld [vmem:[%s11] sm:$0x1]
  %v3060 = vld [vmem:[%s12] sm:$0xff]
  %v3061 = vld [vmem:[%s12 + $0x8] sm:$0xff]
  %v3062 = vld [vmem:[%s12 + $0x10] sm:$0xff]
  %v3063 = vld [vmem:[%s12 + $0x18] sm:$0xff]
  %v3064 = vld [vmem:[%s12 + $0x20] sm:$0xff]
  %v3065 = vld [vmem:[%s12 + $0x28] sm:$0xff]
  %v3066 = vld [vmem:[%s12 + $0x30] sm:$0xff]
  %v3067 = vld [vmem:[%s12 + $0x38] sm:$0xff]
  %v3068 = vld [vmem:[%s12 + $0x40] sm:$0xff]
  %v3069 = vld [vmem:[%s12 + $0x48] sm:$0xff]
  %v3070 = vld [vmem:[%s12 + $0x50] sm:$0xff]
  %v3071 = vld [vmem:[%s12 + $0x58] sm:$0xff]
  %v3072 = vld [vmem:[%s12 + $0x60] sm:$0xff]
  %v3073 = vld [vmem:[%s12 + $0x68] sm:$0xff]
  %v3074 = vld [vmem:[%s12 + $0x70] sm:$0xff]
  %v3075 = vld [vmem:[%s12 + $0x78] sm:$0xff]
  %3076 = vmatprep.subr.mxu0 0.0
  %3077 = vmatpush1.xpose.msra.mxu0 0.0
  %3078 = vmatprep.subr.mxu0 0.0
  %3079 = vmatpush1.xpose.msra.mxu0 0.0
  %3080 = vmatprep.subr.mxu0 0.0
  %3081 = vmatpush1.xpose.msra.mxu0 0.0
  %3082 = vmatprep.subr.mxu0 0.0
  %3083 = vmatpush1.xpose.msra.mxu0 0.0
  %3084 = vmatprep.subr.mxu0 0.0
  %3085 = vmatpush1.xpose.msra.mxu0 0.0
  %3086 = vmatprep.subr.mxu0 0.0
  %3087 = vmatpush1.xpose.msra.mxu0 0.0
  %3088 = vmatprep.subr.mxu0 0.0
  %3089 = vmatpush1.xpose.msra.mxu0 0.0
  %3090 = vmatprep.subr.mxu0 0.0
  %3091 = vmatpush1.xpose.msra.mxu0 0.0
  %3092 = vmatprep.subr.mxu0 0.0
  %3093 = vmatpush1.xpose.msra.mxu0 0.0
  %3094 = vmatprep.subr.mxu0 0.0
  %3095 = vmatpush1.xpose.msra.mxu0 0.0
  %3096 = vmatprep.subr.mxu0 0.0
  %3097 = vmatpush1.xpose.msra.mxu0 0.0
  %3098 = vmatprep.subr.mxu0 0.0
  %3099 = vmatpush1.xpose.msra.mxu0 0.0
  %3100 = vmatprep.subr.mxu0 0.0
  %3101 = vmatpush1.xpose.msra.mxu0 0.0
  %3102 = vmatprep.subr.mxu0 0.0
  %3103 = vmatpush1.xpose.msra.mxu0 0.0
  %3104 = vmatprep.subr.mxu0 %v3069
  %3105 = vmatpush1.xpose.msra.mxu0 %v3068
  %3106 = vmatprep.subr.mxu0 %v3061
  %3107 = vmatpush1.xpose.msra.mxu0 %v3060
  %3108 = vmatprep.subr.mxu0 0.0
  %3109 = vmatpush2.xpose.msra.mxu0 0.0
  %3110 = vmatprep.subr.mxu0 0.0
  %3111 = vmatpush2.xpose.msra.mxu0 0.0
  %3112 = vmatprep.subr.mxu0 0.0
  %3113 = vmatpush2.xpose.msra.mxu0 0.0
  %3114 = vmatprep.subr.mxu0 0.0
  %3115 = vmatpush2.xpose.msra.mxu0 0.0
  %3116 = vmatprep.subr.mxu0 0.0
  %3117 = vmatpush2.xpose.msra.mxu0 0.0
  %3118 = vmatprep.subr.mxu0 0.0
  %3119 = vmatpush2.xpose.msra.mxu0 0.0
  %3120 = vmatprep.subr.mxu0 0.0
  %3121 = vmatpush2.xpose.msra.mxu0 0.0
  %3122 = vmatprep.subr.mxu0 0.0
  %3123 = vmatpush2.xpose.msra.mxu0 0.0
  %3124 = vmatprep.subr.mxu0 0.0
  %3125 = vmatpush2.xpose.msra.mxu0 0.0
  %3126 = vmatprep.subr.mxu0 0.0
  %3127 = vmatpush2.xpose.msra.mxu0 0.0
  %3128 = vmatprep.subr.mxu0 0.0
  %3129 = vmatpush2.xpose.msra.mxu0 0.0
  %3130 = vmatprep.subr.mxu0 0.0
  %3131 = vmatpush2.xpose.msra.mxu0 0.0
  %3132 = vmatprep.subr.mxu0 0.0
  %3133 = vmatpush2.xpose.msra.mxu0 0.0
  %3134 = vmatprep.subr.mxu0 0.0
  %3135 = vmatpush2.xpose.msra.mxu0 0.0
  %3136 = vmatprep.subr.mxu0 0.0
  %3137 = vmatpush2.xpose.msra.mxu0 0.0
  %3138 = vmatprep.subr.mxu0 0.0
  %3139 = vmatpush2.xpose.msra.mxu0 0.0
  %3140 = vmatprep.mubr.f32.mxu0 %v2504
  %3141 = vmatmul.mubr.f32.gmra.mxu0 %v2502
  %v3142 = vpop.f32.mrf.mxu0
  %v3143 = vadd.f32 0.0, %v3142
  %v3144 = vpop.f32.mrf.mxu0
  %3145 = vmatprep.mubr.f32.mxu0 %v2510
  %3146 = vmatmul.mubr.f32.gmra.mxu0 %v2508
  %v3147 = vpop.f32.mrf.mxu0
  %v3148 = vadd.f32 0.0, %v3147
  %v3149 = vpop.f32.mrf.mxu0
  %3150 = vmatprep.mubr.f32.mxu0 %v2516
  %3151 = vmatmul.mubr.f32.gmra.mxu0 %v2514
  %v3152 = vpop.f32.mrf.mxu0
  %v3153 = vadd.f32 0.0, %v3152
  %v3154 = vpop.f32.mrf.mxu0
  %3155 = vmatprep.mubr.f32.mxu0 %v2522
  %3156 = vmatmul.mubr.f32.gmra.mxu0 %v2520
  %v3157 = vpop.f32.mrf.mxu0
  %v3158 = vadd.f32 0.0, %v3157
  %v3159 = vpop.f32.mrf.mxu0
  %3160 = vdwg.mxu0
  %3161 = vmatprep.subr.mxu0 0.0
  %3162 = vmatpush1.xpose.msra.mxu0 0.0
  %3163 = vmatprep.subr.mxu0 0.0
  %3164 = vmatpush1.xpose.msra.mxu0 0.0
  %3165 = vmatprep.subr.mxu0 0.0
  %3166 = vmatpush1.xpose.msra.mxu0 0.0
  %3167 = vmatprep.subr.mxu0 0.0
  %3168 = vmatpush1.xpose.msra.mxu0 0.0
  %3169 = vmatprep.subr.mxu0 0.0
  %3170 = vmatpush1.xpose.msra.mxu0 0.0
  %3171 = vmatprep.subr.mxu0 0.0
  %3172 = vmatpush1.xpose.msra.mxu0 0.0
  %3173 = vmatprep.subr.mxu0 0.0
  %3174 = vmatpush1.xpose.msra.mxu0 0.0
  %3175 = vmatprep.subr.mxu0 0.0
  %3176 = vmatpush1.xpose.msra.mxu0 0.0
  %3177 = vmatprep.subr.mxu0 0.0
  %3178 = vmatpush1.xpose.msra.mxu0 0.0
  %3179 = vmatprep.subr.mxu0 0.0
  %3180 = vmatpush1.xpose.msra.mxu0 0.0
  %3181 = vmatprep.subr.mxu0 0.0
  %3182 = vmatpush1.xpose.msra.mxu0 0.0
  %3183 = vmatprep.subr.mxu0 0.0
  %3184 = vmatpush1.xpose.msra.mxu0 0.0
  %3185 = vmatprep.subr.mxu0 0.0
  %3186 = vmatpush1.xpose.msra.mxu0 0.0
  %3187 = vmatprep.subr.mxu0 0.0
  %3188 = vmatpush1.xpose.msra.mxu0 0.0
  %3189 = vmatprep.subr.mxu0 %v3071
  %3190 = vmatpush1.xpose.msra.mxu0 %v3070
  %3191 = vmatprep.subr.mxu0 %v3063
  %3192 = vmatpush1.xpose.msra.mxu0 %v3062
  %3193 = vmatprep.subr.mxu0 0.0
  %3194 = vmatpush2.xpose.msra.mxu0 0.0
  %3195 = vmatprep.subr.mxu0 0.0
  %3196 = vmatpush2.xpose.msra.mxu0 0.0
  %3197 = vmatprep.subr.mxu0 0.0
  %3198 = vmatpush2.xpose.msra.mxu0 0.0
  %3199 = vmatprep.subr.mxu0 0.0
  %3200 = vmatpush2.xpose.msra.mxu0 0.0
  %3201 = vmatprep.subr.mxu0 0.0
  %3202 = vmatpush2.xpose.msra.mxu0 0.0
  %3203 = vmatprep.subr.mxu0 0.0
  %3204 = vmatpush2.xpose.msra.mxu0 0.0
  %3205 = vmatprep.subr.mxu0 0.0
  %3206 = vmatpush2.xpose.msra.mxu0 0.0
  %3207 = vmatprep.subr.mxu0 0.0
  %3208 = vmatpush2.xpose.msra.mxu0 0.0
  %3209 = vmatprep.subr.mxu0 0.0
  %3210 = vmatpush2.xpose.msra.mxu0 0.0
  %3211 = vmatprep.subr.mxu0 0.0
  %3212 = vmatpush2.xpose.msra.mxu0 0.0
  %3213 = vmatprep.subr.mxu0 0.0
  %3214 = vmatpush2.xpose.msra.mxu0 0.0
  %3215 = vmatprep.subr.mxu0 0.0
  %3216 = vmatpush2.xpose.msra.mxu0 0.0
  %3217 = vmatprep.subr.mxu0 0.0
  %3218 = vmatpush2.xpose.msra.mxu0 0.0
  %3219 = vmatprep.subr.mxu0 0.0
  %3220 = vmatpush2.xpose.msra.mxu0 0.0
  %3221 = vmatprep.subr.mxu0 0.0
  %3222 = vmatpush2.xpose.msra.mxu0 0.0
  %3223 = vmatprep.subr.mxu0 0.0
  %3224 = vmatpush2.xpose.msra.mxu0 0.0
  %3225 = vmatprep.mubr.f32.mxu0 %v2682
  %3226 = vmatmul.mubr.f32.gmra.mxu0 %v2680
  %v3227 = vpop.f32.mrf.mxu0
  %v3228 = vadd.f32 %v3143, %v3227
  %v3229 = vpop.f32.mrf.mxu0
  %3230 = vmatprep.mubr.f32.mxu0 %v2688
  %3231 = vmatmul.mubr.f32.gmra.mxu0 %v2686
  %v3232 = vpop.f32.mrf.mxu0
  %v3233 = vadd.f32 %v3148, %v3232
  %v3234 = vpop.f32.mrf.mxu0
  %3235 = vmatprep.mubr.f32.mxu0 %v2694
  %3236 = vmatmul.mubr.f32.gmra.mxu0 %v2692
  %v3237 = vpop.f32.mrf.mxu0
  %v3238 = vadd.f32 %v3153, %v3237
  %v3239 = vpop.f32.mrf.mxu0
  %3240 = vmatprep.mubr.f32.mxu0 %v2700
  %3241 = vmatmul.mubr.f32.gmra.mxu0 %v2698
  %v3242 = vpop.f32.mrf.mxu0
  %v3243 = vadd.f32 %v3158, %v3242
  %v3244 = vpop.f32.mrf.mxu0
  %3245 = vdwg.mxu0
  %3246 = vmatprep.subr.mxu0 0.0
  %3247 = vmatpush1.xpose.msra.mxu0 0.0
  %3248 = vmatprep.subr.mxu0 0.0
  %3249 = vmatpush1.xpose.msra.mxu0 0.0
  %3250 = vmatprep.subr.mxu0 0.0
  %3251 = vmatpush1.xpose.msra.mxu0 0.0
  %3252 = vmatprep.subr.mxu0 0.0
  %3253 = vmatpush1.xpose.msra.mxu0 0.0
  %3254 = vmatprep.subr.mxu0 0.0
  %3255 = vmatpush1.xpose.msra.mxu0 0.0
  %3256 = vmatprep.subr.mxu0 0.0
  %3257 = vmatpush1.xpose.msra.mxu0 0.0
  %3258 = vmatprep.subr.mxu0 0.0
  %3259 = vmatpush1.xpose.msra.mxu0 0.0
  %3260 = vmatprep.subr.mxu0 0.0
  %3261 = vmatpush1.xpose.msra.mxu0 0.0
  %3262 = vmatprep.subr.mxu0 0.0
  %3263 = vmatpush1.xpose.msra.mxu0 0.0
  %3264 = vmatprep.subr.mxu0 0.0
  %3265 = vmatpush1.xpose.msra.mxu0 0.0
  %3266 = vmatprep.subr.mxu0 0.0
  %3267 = vmatpush1.xpose.msra.mxu0 0.0
  %3268 = vmatprep.subr.mxu0 0.0
  %3269 = vmatpush1.xpose.msra.mxu0 0.0
  %3270 = vmatprep.subr.mxu0 0.0
  %3271 = vmatpush1.xpose.msra.mxu0 0.0
  %3272 = vmatprep.subr.mxu0 0.0
  %3273 = vmatpush1.xpose.msra.mxu0 0.0
  %3274 = vmatprep.subr.mxu0 %v3073
  %3275 = vmatpush1.xpose.msra.mxu0 %v3072
  %3276 = vmatprep.subr.mxu0 %v3065
  %3277 = vmatpush1.xpose.msra.mxu0 %v3064
  %3278 = vmatprep.subr.mxu0 0.0
  %3279 = vmatpush2.xpose.msra.mxu0 0.0
  %3280 = vmatprep.subr.mxu0 0.0
  %3281 = vmatpush2.xpose.msra.mxu0 0.0
  %3282 = vmatprep.subr.mxu0 0.0
  %3283 = vmatpush2.xpose.msra.mxu0 0.0
  %3284 = vmatprep.subr.mxu0 0.0
  %3285 = vmatpush2.xpose.msra.mxu0 0.0
  %3286 = vmatprep.subr.mxu0 0.0
  %3287 = vmatpush2.xpose.msra.mxu0 0.0
  %3288 = vmatprep.subr.mxu0 0.0
  %3289 = vmatpush2.xpose.msra.mxu0 0.0
  %3290 = vmatprep.subr.mxu0 0.0
  %3291 = vmatpush2.xpose.msra.mxu0 0.0
  %3292 = vmatprep.subr.mxu0 0.0
  %3293 = vmatpush2.xpose.msra.mxu0 0.0
  %3294 = vmatprep.subr.mxu0 0.0
  %3295 = vmatpush2.xpose.msra.mxu0 0.0
  %3296 = vmatprep.subr.mxu0 0.0
  %3297 = vmatpush2.xpose.msra.mxu0 0.0
  %3298 = vmatprep.subr.mxu0 0.0
  %3299 = vmatpush2.xpose.msra.mxu0 0.0
  %3300 = vmatprep.subr.mxu0 0.0
  %3301 = vmatpush2.xpose.msra.mxu0 0.0
  %3302 = vmatprep.subr.mxu0 0.0
  %3303 = vmatpush2.xpose.msra.mxu0 0.0
  %3304 = vmatprep.subr.mxu0 0.0
  %3305 = vmatpush2.xpose.msra.mxu0 0.0
  %3306 = vmatprep.subr.mxu0 0.0
  %3307 = vmatpush2.xpose.msra.mxu0 0.0
  %3308 = vmatprep.subr.mxu0 0.0
  %3309 = vmatpush2.xpose.msra.mxu0 0.0
  %3310 = vmatprep.mubr.f32.mxu0 %v2860
  %3311 = vmatmul.mubr.f32.gmra.mxu0 %v2858
  %v3312 = vpop.f32.mrf.mxu0
  %v3313 = vadd.f32 %v3228, %v3312
  %v3314 = vpop.f32.mrf.mxu0
  %3315 = vmatprep.mubr.f32.mxu0 %v2866
  %3316 = vmatmul.mubr.f32.gmra.mxu0 %v2864
  %v3317 = vpop.f32.mrf.mxu0
  %v3318 = vadd.f32 %v3233, %v3317
  %v3319 = vpop.f32.mrf.mxu0
  %3320 = vmatprep.mubr.f32.mxu0 %v2872
  %3321 = vmatmul.mubr.f32.gmra.mxu0 %v2870
  %v3322 = vpop.f32.mrf.mxu0
  %v3323 = vadd.f32 %v3238, %v3322
  %v3324 = vpop.f32.mrf.mxu0
  %3325 = vmatprep.mubr.f32.mxu0 %v2878
  %3326 = vmatmul.mubr.f32.gmra.mxu0 %v2876
  %v3327 = vpop.f32.mrf.mxu0
  %v3328 = vadd.f32 %v3243, %v3327
  %v3329 = vpop.f32.mrf.mxu0
  %3330 = vdwg.mxu0
  %3331 = vmatprep.subr.mxu0 0.0
  %3332 = vmatpush1.xpose.msra.mxu0 0.0
  %3333 = vmatprep.subr.mxu0 0.0
  %3334 = vmatpush1.xpose.msra.mxu0 0.0
  %3335 = vmatprep.subr.mxu0 0.0
  %3336 = vmatpush1.xpose.msra.mxu0 0.0
  %3337 = vmatprep.subr.mxu0 0.0
  %3338 = vmatpush1.xpose.msra.mxu0 0.0
  %3339 = vmatprep.subr.mxu0 0.0
  %3340 = vmatpush1.xpose.msra.mxu0 0.0
  %3341 = vmatprep.subr.mxu0 0.0
  %3342 = vmatpush1.xpose.msra.mxu0 0.0
  %3343 = vmatprep.subr.mxu0 0.0
  %3344 = vmatpush1.xpose.msra.mxu0 0.0
  %3345 = vmatprep.subr.mxu0 0.0
  %3346 = vmatpush1.xpose.msra.mxu0 0.0
  %3347 = vmatprep.subr.mxu0 0.0
  %3348 = vmatpush1.xpose.msra.mxu0 0.0
  %3349 = vmatprep.subr.mxu0 0.0
  %3350 = vmatpush1.xpose.msra.mxu0 0.0
  %3351 = vmatprep.subr.mxu0 0.0
  %3352 = vmatpush1.xpose.msra.mxu0 0.0
  %3353 = vmatprep.subr.mxu0 0.0
  %3354 = vmatpush1.xpose.msra.mxu0 0.0
  %3355 = vmatprep.subr.mxu0 0.0
  %3356 = vmatpush1.xpose.msra.mxu0 0.0
  %3357 = vmatprep.subr.mxu0 0.0
  %3358 = vmatpush1.xpose.msra.mxu0 0.0
  %3359 = vmatprep.subr.mxu0 %v3075
  %3360 = vmatpush1.xpose.msra.mxu0 %v3074
  %3361 = vmatprep.subr.mxu0 %v3067
  %3362 = vmatpush1.xpose.msra.mxu0 %v3066
  %3363 = vmatprep.subr.mxu0 0.0
  %3364 = vmatpush2.xpose.msra.mxu0 0.0
  %3365 = vmatprep.subr.mxu0 0.0
  %3366 = vmatpush2.xpose.msra.mxu0 0.0
  %3367 = vmatprep.subr.mxu0 0.0
  %3368 = vmatpush2.xpose.msra.mxu0 0.0
  %3369 = vmatprep.subr.mxu0 0.0
  %3370 = vmatpush2.xpose.msra.mxu0 0.0
  %3371 = vmatprep.subr.mxu0 0.0
  %3372 = vmatpush2.xpose.msra.mxu0 0.0
  %3373 = vmatprep.subr.mxu0 0.0
  %3374 = vmatpush2.xpose.msra.mxu0 0.0
  %3375 = vmatprep.subr.mxu0 0.0
  %3376 = vmatpush2.xpose.msra.mxu0 0.0
  %3377 = vmatprep.subr.mxu0 0.0
  %3378 = vmatpush2.xpose.msra.mxu0 0.0
  %3379 = vmatprep.subr.mxu0 0.0
  %3380 = vmatpush2.xpose.msra.mxu0 0.0
  %3381 = vmatprep.subr.mxu0 0.0
  %3382 = vmatpush2.xpose.msra.mxu0 0.0
  %3383 = vmatprep.subr.mxu0 0.0
  %3384 = vmatpush2.xpose.msra.mxu0 0.0
  %3385 = vmatprep.subr.mxu0 0.0
  %3386 = vmatpush2.xpose.msra.mxu0 0.0
  %3387 = vmatprep.subr.mxu0 0.0
  %3388 = vmatpush2.xpose.msra.mxu0 0.0
  %3389 = vmatprep.subr.mxu0 0.0
  %3390 = vmatpush2.xpose.msra.mxu0 0.0
  %3391 = vmatprep.subr.mxu0 0.0
  %3392 = vmatpush2.xpose.msra.mxu0 0.0
  %3393 = vmatprep.subr.mxu0 0.0
  %3394 = vmatpush2.xpose.msra.mxu0 0.0
  %3395 = vmatprep.mubr.f32.mxu0 %v3038
  %3396 = vmatmul.mubr.f32.gmra.mxu0 %v3036
  %v3397 = vpop.f32.mrf.mxu0
  %v3398 = vadd.f32 %v3313, %v3397
  %v3399 = vpop.f32.mrf.mxu0
  %3400 = vmatprep.mubr.f32.mxu0 %v3044
  %3401 = vmatmul.mubr.f32.gmra.mxu0 %v3042
  %v3402 = vpop.f32.mrf.mxu0
  %v3403 = vadd.f32 %v3318, %v3402
  %v3404 = vpop.f32.mrf.mxu0
  %3405 = vmatprep.mubr.f32.mxu0 %v3050
  %3406 = vmatmul.mubr.f32.gmra.mxu0 %v3048
  %v3407 = vpop.f32.mrf.mxu0
  %v3408 = vadd.f32 %v3323, %v3407
  %v3409 = vpop.f32.mrf.mxu0
  %3410 = vmatprep.mubr.f32.mxu0 %v3056
  %3411 = vmatmul.mubr.f32.gmra.mxu0 %v3054
  %v3412 = vpop.f32.mrf.mxu0
  %v3413 = vadd.f32 %v3328, %v3412
  %v3414 = vpop.f32.mrf.mxu0
  %3415 = vdwg.mxu0
  %v3416 = vmul.f32 %v2502, %v2502
  %v3417 = vmul.f32 %v2504, %v2504
  %v3418 = vmul.f32 %v2680, %v2680
  %v3419 = vmul.f32 %v2682, %v2682
  %v3420 = vmul.f32 %v2858, %v2858
  %v3421 = vmul.f32 %v2860, %v2860
  %v3422 = vmul.f32 %v3036, %v3036
  %v3423 = vmul.f32 %v3038, %v3038
  %v3424 = vmul.f32 %v2508, %v2508
  %v3425 = vmul.f32 %v2510, %v2510
  %v3426 = vmul.f32 %v2686, %v2686
  %v3427 = vmul.f32 %v2688, %v2688
  %v3428 = vmul.f32 %v2864, %v2864
  %v3429 = vmul.f32 %v2866, %v2866
  %v3430 = vmul.f32 %v3042, %v3042
  %v3431 = vmul.f32 %v3044, %v3044
  %v3432 = vmul.f32 %v2514, %v2514
  %v3433 = vmul.f32 %v2516, %v2516
  %v3434 = vmul.f32 %v2692, %v2692
  %v3435 = vmul.f32 %v2694, %v2694
  %v3436 = vmul.f32 %v2870, %v2870
  %v3437 = vmul.f32 %v2872, %v2872
  %v3438 = vmul.f32 %v3048, %v3048
  %v3439 = vmul.f32 %v3050, %v3050
  %v3440 = vmul.f32 %v2520, %v2520
  %v3441 = vmul.f32 %v2522, %v2522
  %v3442 = vmul.f32 %v2698, %v2698
  %v3443 = vmul.f32 %v2700, %v2700
  %v3444 = vmul.f32 %v2876, %v2876
  %v3445 = vmul.f32 %v2878, %v2878
  %v3446 = vmul.f32 %v3054, %v3054
  %v3447 = vmul.f32 %v3056, %v3056
  %3448 = vmatprep.subr.mxu0 0.0
  %3449 = vmatpush1.xpose.msra.mxu0 0.0
  %3450 = vmatprep.subr.mxu0 0.0
  %3451 = vmatpush1.xpose.msra.mxu0 0.0
  %3452 = vmatprep.subr.mxu0 0.0
  %3453 = vmatpush1.xpose.msra.mxu0 0.0
  %3454 = vmatprep.subr.mxu0 0.0
  %3455 = vmatpush1.xpose.msra.mxu0 0.0
  %3456 = vmatprep.subr.mxu0 0.0
  %3457 = vmatpush1.xpose.msra.mxu0 0.0
  %3458 = vmatprep.subr.mxu0 0.0
  %3459 = vmatpush1.xpose.msra.mxu0 0.0
  %3460 = vmatprep.subr.mxu0 0.0
  %3461 = vmatpush1.xpose.msra.mxu0 0.0
  %3462 = vmatprep.subr.mxu0 0.0
  %3463 = vmatpush1.xpose.msra.mxu0 0.0
  %3464 = vmatprep.subr.mxu0 0.0
  %3465 = vmatpush1.xpose.msra.mxu0 0.0
  %3466 = vmatprep.subr.mxu0 0.0
  %3467 = vmatpush1.xpose.msra.mxu0 0.0
  %3468 = vmatprep.subr.mxu0 0.0
  %3469 = vmatpush1.xpose.msra.mxu0 0.0
  %3470 = vmatprep.subr.mxu0 0.0
  %3471 = vmatpush1.xpose.msra.mxu0 0.0
  %3472 = vmatprep.subr.mxu0 0.0
  %3473 = vmatpush1.xpose.msra.mxu0 0.0
  %3474 = vmatprep.subr.mxu0 0.0
  %3475 = vmatpush1.xpose.msra.mxu0 0.0
  %3476 = vmatprep.subr.mxu0 %v3069
  %3477 = vmatpush1.xpose.msra.mxu0 %v3068
  %3478 = vmatprep.subr.mxu0 %v3061
  %3479 = vmatpush1.xpose.msra.mxu0 %v3060
  %3480 = vmatprep.subr.mxu0 0.0
  %3481 = vmatpush2.xpose.msra.mxu0 0.0
  %3482 = vmatprep.subr.mxu0 0.0
  %3483 = vmatpush2.xpose.msra.mxu0 0.0
  %3484 = vmatprep.subr.mxu0 0.0
  %3485 = vmatpush2.xpose.msra.mxu0 0.0
  %3486 = vmatprep.subr.mxu0 0.0
  %3487 = vmatpush2.xpose.msra.mxu0 0.0
  %3488 = vmatprep.subr.mxu0 0.0
  %3489 = vmatpush2.xpose.msra.mxu0 0.0
  %3490 = vmatprep.subr.mxu0 0.0
  %3491 = vmatpush2.xpose.msra.mxu0 0.0
  %3492 = vmatprep.subr.mxu0 0.0
  %3493 = vmatpush2.xpose.msra.mxu0 0.0
  %3494 = vmatprep.subr.mxu0 0.0
  %3495 = vmatpush2.xpose.msra.mxu0 0.0
  %3496 = vmatprep.subr.mxu0 0.0
  %3497 = vmatpush2.xpose.msra.mxu0 0.0
  %3498 = vmatprep.subr.mxu0 0.0
  %3499 = vmatpush2.xpose.msra.mxu0 0.0
  %3500 = vmatprep.subr.mxu0 0.0
  %3501 = vmatpush2.xpose.msra.mxu0 0.0
  %3502 = vmatprep.subr.mxu0 0.0
  %3503 = vmatpush2.xpose.msra.mxu0 0.0
  %3504 = vmatprep.subr.mxu0 0.0
  %3505 = vmatpush2.xpose.msra.mxu0 0.0
  %3506 = vmatprep.subr.mxu0 0.0
  %3507 = vmatpush2.xpose.msra.mxu0 0.0
  %3508 = vmatprep.subr.mxu0 0.0
  %3509 = vmatpush2.xpose.msra.mxu0 0.0
  %3510 = vmatprep.subr.mxu0 0.0
  %3511 = vmatpush2.xpose.msra.mxu0 0.0
  %3512 = vmatprep.mubr.f32.mxu0 %v3417
  %3513 = vmatmul.mubr.f32.gmra.mxu0 %v3416
  %v3514 = vpop.f32.mrf.mxu0
  %v3515 = vadd.f32 0.0, %v3514
  %v3516 = vpop.f32.mrf.mxu0
  %3517 = vmatprep.mubr.f32.mxu0 %v3425
  %3518 = vmatmul.mubr.f32.gmra.mxu0 %v3424
  %v3519 = vpop.f32.mrf.mxu0
  %v3520 = vadd.f32 0.0, %v3519
  %v3521 = vpop.f32.mrf.mxu0
  %3522 = vmatprep.mubr.f32.mxu0 %v3433
  %3523 = vmatmul.mubr.f32.gmra.mxu0 %v3432
  %v3524 = vpop.f32.mrf.mxu0
  %v3525 = vadd.f32 0.0, %v3524
  %v3526 = vpop.f32.mrf.mxu0
  %3527 = vmatprep.mubr.f32.mxu0 %v3441
  %3528 = vmatmul.mubr.f32.gmra.mxu0 %v3440
  %v3529 = vpop.f32.mrf.mxu0
  %v3530 = vadd.f32 0.0, %v3529
  %v3531 = vpop.f32.mrf.mxu0
  %3532 = vdwg.mxu0
  %3533 = vmatprep.subr.mxu0 0.0
  %3534 = vmatpush1.xpose.msra.mxu0 0.0
  %3535 = vmatprep.subr.mxu0 0.0
  %3536 = vmatpush1.xpose.msra.mxu0 0.0
  %3537 = vmatprep.subr.mxu0 0.0
  %3538 = vmatpush1.xpose.msra.mxu0 0.0
  %3539 = vmatprep.subr.mxu0 0.0
  %3540 = vmatpush1.xpose.msra.mxu0 0.0
  %3541 = vmatprep.subr.mxu0 0.0
  %3542 = vmatpush1.xpose.msra.mxu0 0.0
  %3543 = vmatprep.subr.mxu0 0.0
  %3544 = vmatpush1.xpose.msra.mxu0 0.0
  %3545 = vmatprep.subr.mxu0 0.0
  %3546 = vmatpush1.xpose.msra.mxu0 0.0
  %3547 = vmatprep.subr.mxu0 0.0
  %3548 = vmatpush1.xpose.msra.mxu0 0.0
  %3549 = vmatprep.subr.mxu0 0.0
  %3550 = vmatpush1.xpose.msra.mxu0 0.0
  %3551 = vmatprep.subr.mxu0 0.0
  %3552 = vmatpush1.xpose.msra.mxu0 0.0
  %3553 = vmatprep.subr.mxu0 0.0
  %3554 = vmatpush1.xpose.msra.mxu0 0.0
  %3555 = vmatprep.subr.mxu0 0.0
  %3556 = vmatpush1.xpose.msra.mxu0 0.0
  %3557 = vmatprep.subr.mxu0 0.0
  %3558 = vmatpush1.xpose.msra.mxu0 0.0
  %3559 = vmatprep.subr.mxu0 0.0
  %3560 = vmatpush1.xpose.msra.mxu0 0.0
  %3561 = vmatprep.subr.mxu0 %v3071
  %3562 = vmatpush1.xpose.msra.mxu0 %v3070
  %3563 = vmatprep.subr.mxu0 %v3063
  %3564 = vmatpush1.xpose.msra.mxu0 %v3062
  %3565 = vmatprep.subr.mxu0 0.0
  %3566 = vmatpush2.xpose.msra.mxu0 0.0
  %3567 = vmatprep.subr.mxu0 0.0
  %3568 = vmatpush2.xpose.msra.mxu0 0.0
  %3569 = vmatprep.subr.mxu0 0.0
  %3570 = vmatpush2.xpose.msra.mxu0 0.0
  %3571 = vmatprep.subr.mxu0 0.0
  %3572 = vmatpush2.xpose.msra.mxu0 0.0
  %3573 = vmatprep.subr.mxu0 0.0
  %3574 = vmatpush2.xpose.msra.mxu0 0.0
  %3575 = vmatprep.subr.mxu0 0.0
  %3576 = vmatpush2.xpose.msra.mxu0 0.0
  %3577 = vmatprep.subr.mxu0 0.0
  %3578 = vmatpush2.xpose.msra.mxu0 0.0
  %3579 = vmatprep.subr.mxu0 0.0
  %3580 = vmatpush2.xpose.msra.mxu0 0.0
  %3581 = vmatprep.subr.mxu0 0.0
  %3582 = vmatpush2.xpose.msra.mxu0 0.0
  %3583 = vmatprep.subr.mxu0 0.0
  %3584 = vmatpush2.xpose.msra.mxu0 0.0
  %3585 = vmatprep.subr.mxu0 0.0
  %3586 = vmatpush2.xpose.msra.mxu0 0.0
  %3587 = vmatprep.subr.mxu0 0.0
  %3588 = vmatpush2.xpose.msra.mxu0 0.0
  %3589 = vmatprep.subr.mxu0 0.0
  %3590 = vmatpush2.xpose.msra.mxu0 0.0
  %3591 = vmatprep.subr.mxu0 0.0
  %3592 = vmatpush2.xpose.msra.mxu0 0.0
  %3593 = vmatprep.subr.mxu0 0.0
  %3594 = vmatpush2.xpose.msra.mxu0 0.0
  %3595 = vmatprep.subr.mxu0 0.0
  %3596 = vmatpush2.xpose.msra.mxu0 0.0
  %3597 = vmatprep.mubr.f32.mxu0 %v3419
  %3598 = vmatmul.mubr.f32.gmra.mxu0 %v3418
  %v3599 = vpop.f32.mrf.mxu0
  %v3600 = vadd.f32 %v3515, %v3599
  %v3601 = vpop.f32.mrf.mxu0
  %3602 = vmatprep.mubr.f32.mxu0 %v3427
  %3603 = vmatmul.mubr.f32.gmra.mxu0 %v3426
  %v3604 = vpop.f32.mrf.mxu0
  %v3605 = vadd.f32 %v3520, %v3604
  %v3606 = vpop.f32.mrf.mxu0
  %3607 = vmatprep.mubr.f32.mxu0 %v3435
  %3608 = vmatmul.mubr.f32.gmra.mxu0 %v3434
  %v3609 = vpop.f32.mrf.mxu0
  %v3610 = vadd.f32 %v3525, %v3609
  %v3611 = vpop.f32.mrf.mxu0
  %3612 = vmatprep.mubr.f32.mxu0 %v3443
  %3613 = vmatmul.mubr.f32.gmra.mxu0 %v3442
  %v3614 = vpop.f32.mrf.mxu0
  %v3615 = vadd.f32 %v3530, %v3614
  %v3616 = vpop.f32.mrf.mxu0
  %3617 = vdwg.mxu0
  %3618 = vmatprep.subr.mxu0 0.0
  %3619 = vmatpush1.xpose.msra.mxu0 0.0
  %3620 = vmatprep.subr.mxu0 0.0
  %3621 = vmatpush1.xpose.msra.mxu0 0.0
  %3622 = vmatprep.subr.mxu0 0.0
  %3623 = vmatpush1.xpose.msra.mxu0 0.0
  %3624 = vmatprep.subr.mxu0 0.0
  %3625 = vmatpush1.xpose.msra.mxu0 0.0
  %3626 = vmatprep.subr.mxu0 0.0
  %3627 = vmatpush1.xpose.msra.mxu0 0.0
  %3628 = vmatprep.subr.mxu0 0.0
  %3629 = vmatpush1.xpose.msra.mxu0 0.0
  %3630 = vmatprep.subr.mxu0 0.0
  %3631 = vmatpush1.xpose.msra.mxu0 0.0
  %3632 = vmatprep.subr.mxu0 0.0
  %3633 = vmatpush1.xpose.msra.mxu0 0.0
  %3634 = vmatprep.subr.mxu0 0.0
  %3635 = vmatpush1.xpose.msra.mxu0 0.0
  %3636 = vmatprep.subr.mxu0 0.0
  %3637 = vmatpush1.xpose.msra.mxu0 0.0
  %3638 = vmatprep.subr.mxu0 0.0
  %3639 = vmatpush1.xpose.msra.mxu0 0.0
  %3640 = vmatprep.subr.mxu0 0.0
  %3641 = vmatpush1.xpose.msra.mxu0 0.0
  %3642 = vmatprep.subr.mxu0 0.0
  %3643 = vmatpush1.xpose.msra.mxu0 0.0
  %3644 = vmatprep.subr.mxu0 0.0
  %3645 = vmatpush1.xpose.msra.mxu0 0.0
  %3646 = vmatprep.subr.mxu0 %v3073
  %3647 = vmatpush1.xpose.msra.mxu0 %v3072
  %3648 = vmatprep.subr.mxu0 %v3065
  %3649 = vmatpush1.xpose.msra.mxu0 %v3064
  %3650 = vmatprep.subr.mxu0 0.0
  %3651 = vmatpush2.xpose.msra.mxu0 0.0
  %3652 = vmatprep.subr.mxu0 0.0
  %3653 = vmatpush2.xpose.msra.mxu0 0.0
  %3654 = vmatprep.subr.mxu0 0.0
  %3655 = vmatpush2.xpose.msra.mxu0 0.0
  %3656 = vmatprep.subr.mxu0 0.0
  %3657 = vmatpush2.xpose.msra.mxu0 0.0
  %3658 = vmatprep.subr.mxu0 0.0
  %3659 = vmatpush2.xpose.msra.mxu0 0.0
  %3660 = vmatprep.subr.mxu0 0.0
  %3661 = vmatpush2.xpose.msra.mxu0 0.0
  %3662 = vmatprep.subr.mxu0 0.0
  %3663 = vmatpush2.xpose.msra.mxu0 0.0
  %3664 = vmatprep.subr.mxu0 0.0
  %3665 = vmatpush2.xpose.msra.mxu0 0.0
  %3666 = vmatprep.subr.mxu0 0.0
  %3667 = vmatpush2.xpose.msra.mxu0 0.0
  %3668 = vmatprep.subr.mxu0 0.0
  %3669 = vmatpush2.xpose.msra.mxu0 0.0
  %3670 = vmatprep.subr.mxu0 0.0
  %3671 = vmatpush2.xpose.msra.mxu0 0.0
  %3672 = vmatprep.subr.mxu0 0.0
  %3673 = vmatpush2.xpose.msra.mxu0 0.0
  %3674 = vmatprep.subr.mxu0 0.0
  %3675 = vmatpush2.xpose.msra.mxu0 0.0
  %3676 = vmatprep.subr.mxu0 0.0
  %3677 = vmatpush2.xpose.msra.mxu0 0.0
  %3678 = vmatprep.subr.mxu0 0.0
  %3679 = vmatpush2.xpose.msra.mxu0 0.0
  %3680 = vmatprep.subr.mxu0 0.0
  %3681 = vmatpush2.xpose.msra.mxu0 0.0
  %3682 = vmatprep.mubr.f32.mxu0 %v3421
  %3683 = vmatmul.mubr.f32.gmra.mxu0 %v3420
  %v3684 = vpop.f32.mrf.mxu0
  %v3685 = vadd.f32 %v3600, %v3684
  %v3686 = vpop.f32.mrf.mxu0
  %3687 = vmatprep.mubr.f32.mxu0 %v3429
  %3688 = vmatmul.mubr.f32.gmra.mxu0 %v3428
  %v3689 = vpop.f32.mrf.mxu0
  %v3690 = vadd.f32 %v3605, %v3689
  %v3691 = vpop.f32.mrf.mxu0
  %3692 = vmatprep.mubr.f32.mxu0 %v3437
  %3693 = vmatmul.mubr.f32.gmra.mxu0 %v3436
  %v3694 = vpop.f32.mrf.mxu0
  %v3695 = vadd.f32 %v3610, %v3694
  %v3696 = vpop.f32.mrf.mxu0
  %3697 = vmatprep.mubr.f32.mxu0 %v3445
  %3698 = vmatmul.mubr.f32.gmra.mxu0 %v3444
  %v3699 = vpop.f32.mrf.mxu0
  %v3700 = vadd.f32 %v3615, %v3699
  %v3701 = vpop.f32.mrf.mxu0
  %3702 = vdwg.mxu0
  %3703 = vmatprep.subr.mxu0 0.0
  %3704 = vmatpush1.xpose.msra.mxu0 0.0
  %3705 = vmatprep.subr.mxu0 0.0
  %3706 = vmatpush1.xpose.msra.mxu0 0.0
  %3707 = vmatprep.subr.mxu0 0.0
  %3708 = vmatpush1.xpose.msra.mxu0 0.0
  %3709 = vmatprep.subr.mxu0 0.0
  %3710 = vmatpush1.xpose.msra.mxu0 0.0
  %3711 = vmatprep.subr.mxu0 0.0
  %3712 = vmatpush1.xpose.msra.mxu0 0.0
  %3713 = vmatprep.subr.mxu0 0.0
  %3714 = vmatpush1.xpose.msra.mxu0 0.0
  %3715 = vmatprep.subr.mxu0 0.0
  %3716 = vmatpush1.xpose.msra.mxu0 0.0
  %3717 = vmatprep.subr.mxu0 0.0
  %3718 = vmatpush1.xpose.msra.mxu0 0.0
  %3719 = vmatprep.subr.mxu0 0.0
  %3720 = vmatpush1.xpose.msra.mxu0 0.0
  %3721 = vmatprep.subr.mxu0 0.0
  %3722 = vmatpush1.xpose.msra.mxu0 0.0
  %3723 = vmatprep.subr.mxu0 0.0
  %3724 = vmatpush1.xpose.msra.mxu0 0.0
  %3725 = vmatprep.subr.mxu0 0.0
  %3726 = vmatpush1.xpose.msra.mxu0 0.0
  %3727 = vmatprep.subr.mxu0 0.0
  %3728 = vmatpush1.xpose.msra.mxu0 0.0
  %3729 = vmatprep.subr.mxu0 0.0
  %3730 = vmatpush1.xpose.msra.mxu0 0.0
  %3731 = vmatprep.subr.mxu0 %v3075
  %3732 = vmatpush1.xpose.msra.mxu0 %v3074
  %3733 = vmatprep.subr.mxu0 %v3067
  %3734 = vmatpush1.xpose.msra.mxu0 %v3066
  %3735 = vmatprep.subr.mxu0 0.0
  %3736 = vmatpush2.xpose.msra.mxu0 0.0
  %3737 = vmatprep.subr.mxu0 0.0
  %3738 = vmatpush2.xpose.msra.mxu0 0.0
  %3739 = vmatprep.subr.mxu0 0.0
  %3740 = vmatpush2.xpose.msra.mxu0 0.0
  %3741 = vmatprep.subr.mxu0 0.0
  %3742 = vmatpush2.xpose.msra.mxu0 0.0
  %3743 = vmatprep.subr.mxu0 0.0
  %3744 = vmatpush2.xpose.msra.mxu0 0.0
  %3745 = vmatprep.subr.mxu0 0.0
  %3746 = vmatpush2.xpose.msra.mxu0 0.0
  %3747 = vmatprep.subr.mxu0 0.0
  %3748 = vmatpush2.xpose.msra.mxu0 0.0
  %3749 = vmatprep.subr.mxu0 0.0
  %3750 = vmatpush2.xpose.msra.mxu0 0.0
  %3751 = vmatprep.subr.mxu0 0.0
  %3752 = vmatpush2.xpose.msra.mxu0 0.0
  %3753 = vmatprep.subr.mxu0 0.0
  %3754 = vmatpush2.xpose.msra.mxu0 0.0
  %3755 = vmatprep.subr.mxu0 0.0
  %3756 = vmatpush2.xpose.msra.mxu0 0.0
  %3757 = vmatprep.subr.mxu0 0.0
  %3758 = vmatpush2.xpose.msra.mxu0 0.0
  %3759 = vmatprep.subr.mxu0 0.0
  %3760 = vmatpush2.xpose.msra.mxu0 0.0
  %3761 = vmatprep.subr.mxu0 0.0
  %3762 = vmatpush2.xpose.msra.mxu0 0.0
  %3763 = vmatprep.subr.mxu0 0.0
  %3764 = vmatpush2.xpose.msra.mxu0 0.0
  %3765 = vmatprep.subr.mxu0 0.0
  %3766 = vmatpush2.xpose.msra.mxu0 0.0
  %3767 = vmatprep.mubr.f32.mxu0 %v3423
  %3768 = vmatmul.mubr.f32.gmra.mxu0 %v3422
  %v3769 = vpop.f32.mrf.mxu0
  %v3770 = vadd.f32 %v3685, %v3769
  %v3771 = vpop.f32.mrf.mxu0
  %3772 = vmatprep.mubr.f32.mxu0 %v3431
  %3773 = vmatmul.mubr.f32.gmra.mxu0 %v3430
  %v3774 = vpop.f32.mrf.mxu0
  %v3775 = vadd.f32 %v3690, %v3774
  %v3776 = vpop.f32.mrf.mxu0
  %3777 = vmatprep.mubr.f32.mxu0 %v3439
  %3778 = vmatmul.mubr.f32.gmra.mxu0 %v3438
  %v3779 = vpop.f32.mrf.mxu0
  %v3780 = vadd.f32 %v3695, %v3779
  %v3781 = vpop.f32.mrf.mxu0
  %3782 = vmatprep.mubr.f32.mxu0 %v3447
  %3783 = vmatmul.mubr.f32.gmra.mxu0 %v3446
  %v3784 = vpop.f32.mrf.mxu0
  %v3785 = vadd.f32 %v3700, %v3784
  %v3786 = vpop.f32.mrf.mxu0
  %3787 = vdwg.mxu0
  %vm3788 = vcmask 130048
  %v3789 = vsel %vm3788, %v3398, 0.0
  %v3790 = vsel %vm3788, %v3403, 0.0
  %v3791 = vadd.f32 %v3789, %v3790
  %v3792 = vsel %vm3788, %v3408, 0.0
  %v3793 = vadd.f32 %v3791, %v3792
  %v3794 = vsel %vm3788, %v3413, 0.0
  %v3795 = vadd.f32 %v3793, %v3794
  %v3796 = vrot.slane %v3795, 4
  %v3797 = vadd.f32 %v3795, %v3796
  %v3798 = vrot.slane %v3797, 2
  %v3799 = vadd.f32 %v3797, %v3798
  %v3800 = vrot.slane %v3799, 1
  %v3801 = vadd.f32 %v3799, %v3800
  %v3802 = vmul.f32 %v3801, 0.00048828125
  %v3803 = vsel %vm3788, %v3770, 0.0
  %v3804 = vsel %vm3788, %v3775, 0.0
  %v3805 = vadd.f32 %v3803, %v3804
  %v3806 = vsel %vm3788, %v3780, 0.0
  %v3807 = vadd.f32 %v3805, %v3806
  %v3808 = vsel %vm3788, %v3785, 0.0
  %v3809 = vadd.f32 %v3807, %v3808
  %v3810 = vrot.slane %v3809, 4
  %v3811 = vadd.f32 %v3809, %v3810
  %v3812 = vrot.slane %v3811, 2
  %v3813 = vadd.f32 %v3811, %v3812
  %v3814 = vrot.slane %v3813, 1
  %v3815 = vadd.f32 %v3813, %v3814
  %v3816 = vmul.f32 %v3815, 0.00048828125
  %v3817 = vmul.f32 %v3802, %v3802
  %v3818 = vsub.f32 %v3816, %v3817
  %v3819 = vmax.f32 %v3818, 0.0
  %v3820 = vadd.f32 %v3819, 1e-05
  %v3821 = vrsqrt.pop %v3820
  %v3822 = vmul.f32 %v3058, %v3821
  %v3823 = vmul.f32 %v3802, %v3822
  %v3824 = vsub.f32 %v3059, %v3823
  %v3826 = vsel %vm3788, %v3822, 0
  %3828 = vmatprep.subr.mxu0 0.0
  %3829 = vmatpush1.msra.mxu0 0.0
  %3830 = vmatprep.subr.mxu0 0.0
  %3831 = vmatpush1.msra.mxu0 0.0
  %3832 = vmatprep.subr.mxu0 0.0
  %3833 = vmatpush1.msra.mxu0 0.0
  %3834 = vmatprep.subr.mxu0 0.0
  %3835 = vmatpush1.msra.mxu0 0.0
  %3836 = vmatprep.subr.mxu0 0.0
  %3837 = vmatpush1.msra.mxu0 0.0
  %3838 = vmatprep.subr.mxu0 0.0
  %3839 = vmatpush1.msra.mxu0 0.0
  %3840 = vmatprep.subr.mxu0 0.0
  %3841 = vmatpush1.msra.mxu0 0.0
  %3842 = vmatprep.subr.mxu0 0.0
  %3843 = vmatpush1.msra.mxu0 0.0
  %3844 = vmatprep.subr.mxu0 0.0
  %3845 = vmatpush1.msra.mxu0 0.0
  %3846 = vmatprep.subr.mxu0 0.0
  %3847 = vmatpush1.msra.mxu0 0.0
  %3848 = vmatprep.subr.mxu0 0.0
  %3849 = vmatpush1.msra.mxu0 0.0
  %3850 = vmatprep.subr.mxu0 0.0
  %3851 = vmatpush1.msra.mxu0 0.0
  %3852 = vmatprep.subr.mxu0 0.0
  %3853 = vmatpush1.msra.mxu0 0.0
  %3854 = vmatprep.subr.mxu0 0.0
  %3855 = vmatpush1.msra.mxu0 0.0
  %3856 = vmatprep.subr.mxu0 %v3069
  %3857 = vmatpush1.msra.mxu0 %v3068
  %3858 = vmatprep.subr.mxu0 %v3061
  %3859 = vmatpush1.msra.mxu0 %v3060
  %3860 = vmatprep.subr.mxu0 0.0
  %3861 = vmatpush2.msra.mxu0 0.0
  %3862 = vmatprep.subr.mxu0 0.0
  %3863 = vmatpush2.msra.mxu0 0.0
  %3864 = vmatprep.subr.mxu0 0.0
  %3865 = vmatpush2.msra.mxu0 0.0
  %3866 = vmatprep.subr.mxu0 0.0
  %3867 = vmatpush2.msra.mxu0 0.0
  %3868 = vmatprep.subr.mxu0 0.0
  %3869 = vmatpush2.msra.mxu0 0.0
  %3870 = vmatprep.subr.mxu0 0.0
  %3871 = vmatpush2.msra.mxu0 0.0
  %3872 = vmatprep.subr.mxu0 0.0
  %3873 = vmatpush2.msra.mxu0 0.0
  %3874 = vmatprep.subr.mxu0 0.0
  %3875 = vmatpush2.msra.mxu0 0.0
  %3876 = vmatprep.subr.mxu0 0.0
  %3877 = vmatpush2.msra.mxu0 0.0
  %3878 = vmatprep.subr.mxu0 0.0
  %3879 = vmatpush2.msra.mxu0 0.0
  %3880 = vmatprep.subr.mxu0 0.0
  %3881 = vmatpush2.msra.mxu0 0.0
  %3882 = vmatprep.subr.mxu0 0.0
  %3883 = vmatpush2.msra.mxu0 0.0
  %3884 = vmatprep.subr.mxu0 0.0
  %3885 = vmatpush2.msra.mxu0 0.0
  %3886 = vmatprep.subr.mxu0 0.0
  %3887 = vmatpush2.msra.mxu0 0.0
  %3888 = vmatprep.subr.mxu0 0.0
  %3889 = vmatpush2.msra.mxu0 0.0
  %3890 = vmatprep.subr.mxu0 0.0
  %3891 = vmatpush2.msra.mxu0 0.0
  %3892 = vmatprep.mubr.f32.mxu0 0.0
  %3893 = vmatmul.mubr.f32.gmra.mxu0 %v3826
  %v3894 = vpop.f32.mrf.mxu0
  %v3895 = vadd.f32 0.0, %v3894
  %v3896 = vpop.f32.mrf.mxu0
  %v3897 = vadd.f32 0.0, %v3896
  %3898 = vdwg.mxu0
  %3899 = vmatprep.subr.mxu0 0.0
  %3900 = vmatpush1.msra.mxu0 0.0
  %3901 = vmatprep.subr.mxu0 0.0
  %3902 = vmatpush1.msra.mxu0 0.0
  %3903 = vmatprep.subr.mxu0 0.0
  %3904 = vmatpush1.msra.mxu0 0.0
  %3905 = vmatprep.subr.mxu0 0.0
  %3906 = vmatpush1.msra.mxu0 0.0
  %3907 = vmatprep.subr.mxu0 0.0
  %3908 = vmatpush1.msra.mxu0 0.0
  %3909 = vmatprep.subr.mxu0 0.0
  %3910 = vmatpush1.msra.mxu0 0.0
  %3911 = vmatprep.subr.mxu0 0.0
  %3912 = vmatpush1.msra.mxu0 0.0
  %3913 = vmatprep.subr.mxu0 0.0
  %3914 = vmatpush1.msra.mxu0 0.0
  %3915 = vmatprep.subr.mxu0 0.0
  %3916 = vmatpush1.msra.mxu0 0.0
  %3917 = vmatprep.subr.mxu0 0.0
  %3918 = vmatpush1.msra.mxu0 0.0
  %3919 = vmatprep.subr.mxu0 0.0
  %3920 = vmatpush1.msra.mxu0 0.0
  %3921 = vmatprep.subr.mxu0 0.0
  %3922 = vmatpush1.msra.mxu0 0.0
  %3923 = vmatprep.subr.mxu0 0.0
  %3924 = vmatpush1.msra.mxu0 0.0
  %3925 = vmatprep.subr.mxu0 0.0
  %3926 = vmatpush1.msra.mxu0 0.0
  %3927 = vmatprep.subr.mxu0 %v3071
  %3928 = vmatpush1.msra.mxu0 %v3070
  %3929 = vmatprep.subr.mxu0 %v3063
  %3930 = vmatpush1.msra.mxu0 %v3062
  %3931 = vmatprep.subr.mxu0 0.0
  %3932 = vmatpush2.msra.mxu0 0.0
  %3933 = vmatprep.subr.mxu0 0.0
  %3934 = vmatpush2.msra.mxu0 0.0
  %3935 = vmatprep.subr.mxu0 0.0
  %3936 = vmatpush2.msra.mxu0 0.0
  %3937 = vmatprep.subr.mxu0 0.0
  %3938 = vmatpush2.msra.mxu0 0.0
  %3939 = vmatprep.subr.mxu0 0.0
  %3940 = vmatpush2.msra.mxu0 0.0
  %3941 = vmatprep.subr.mxu0 0.0
  %3942 = vmatpush2.msra.mxu0 0.0
  %3943 = vmatprep.subr.mxu0 0.0
  %3944 = vmatpush2.msra.mxu0 0.0
  %3945 = vmatprep.subr.mxu0 0.0
  %3946 = vmatpush2.msra.mxu0 0.0
  %3947 = vmatprep.subr.mxu0 0.0
  %3948 = vmatpush2.msra.mxu0 0.0
  %3949 = vmatprep.subr.mxu0 0.0
  %3950 = vmatpush2.msra.mxu0 0.0
  %3951 = vmatprep.subr.mxu0 0.0
  %3952 = vmatpush2.msra.mxu0 0.0
  %3953 = vmatprep.subr.mxu0 0.0
  %3954 = vmatpush2.msra.mxu0 0.0
  %3955 = vmatprep.subr.mxu0 0.0
  %3956 = vmatpush2.msra.mxu0 0.0
  %3957 = vmatprep.subr.mxu0 0.0
  %3958 = vmatpush2.msra.mxu0 0.0
  %3959 = vmatprep.subr.mxu0 0.0
  %3960 = vmatpush2.msra.mxu0 0.0
  %3961 = vmatprep.subr.mxu0 0.0
  %3962 = vmatpush2.msra.mxu0 0.0
  %3963 = vmatprep.mubr.f32.mxu0 0.0
  %3964 = vmatmul.mubr.f32.gmra.mxu0 %v3826
  %v3965 = vpop.f32.mrf.mxu0
  %v3966 = vadd.f32 0.0, %v3965
  %v3967 = vpop.f32.mrf.mxu0
  %v3968 = vadd.f32 0.0, %v3967
  %3969 = vdwg.mxu0
  %3970 = vmatprep.subr.mxu0 0.0
  %3971 = vmatpush1.msra.mxu0 0.0
  %3972 = vmatprep.subr.mxu0 0.0
  %3973 = vmatpush1.msra.mxu0 0.0
  %3974 = vmatprep.subr.mxu0 0.0
  %3975 = vmatpush1.msra.mxu0 0.0
  %3976 = vmatprep.subr.mxu0 0.0
  %3977 = vmatpush1.msra.mxu0 0.0
  %3978 = vmatprep.subr.mxu0 0.0
  %3979 = vmatpush1.msra.mxu0 0.0
  %3980 = vmatprep.subr.mxu0 0.0
  %3981 = vmatpush1.msra.mxu0 0.0
  %3982 = vmatprep.subr.mxu0 0.0
  %3983 = vmatpush1.msra.mxu0 0.0
  %3984 = vmatprep.subr.mxu0 0.0
  %3985 = vmatpush1.msra.mxu0 0.0
  %3986 = vmatprep.subr.mxu0 0.0
  %3987 = vmatpush1.msra.mxu0 0.0
  %3988 = vmatprep.subr.mxu0 0.0
  %3989 = vmatpush1.msra.mxu0 0.0
  %3990 = vmatprep.subr.mxu0 0.0
  %3991 = vmatpush1.msra.mxu0 0.0
  %3992 = vmatprep.subr.mxu0 0.0
  %3993 = vmatpush1.msra.mxu0 0.0
  %3994 = vmatprep.subr.mxu0 0.0
  %3995 = vmatpush1.msra.mxu0 0.0
  %3996 = vmatprep.subr.mxu0 0.0
  %3997 = vmatpush1.msra.mxu0 0.0
  %3998 = vmatprep.subr.mxu0 %v3073
  %3999 = vmatpush1.msra.mxu0 %v3072
  %4000 = vmatprep.subr.mxu0 %v3065
  %4001 = vmatpush1.msra.mxu0 %v3064
  %4002 = vmatprep.subr.mxu0 0.0
  %4003 = vmatpush2.msra.mxu0 0.0
  %4004 = vmatprep.subr.mxu0 0.0
  %4005 = vmatpush2.msra.mxu0 0.0
  %4006 = vmatprep.subr.mxu0 0.0
  %4007 = vmatpush2.msra.mxu0 0.0
  %4008 = vmatprep.subr.mxu0 0.0
  %4009 = vmatpush2.msra.mxu0 0.0
  %4010 = vmatprep.subr.mxu0 0.0
  %4011 = vmatpush2.msra.mxu0 0.0
  %4012 = vmatprep.subr.mxu0 0.0
  %4013 = vmatpush2.msra.mxu0 0.0
  %4014 = vmatprep.subr.mxu0 0.0
  %4015 = vmatpush2.msra.mxu0 0.0
  %4016 = vmatprep.subr.mxu0 0.0
  %4017 = vmatpush2.msra.mxu0 0.0
  %4018 = vmatprep.subr.mxu0 0.0
  %4019 = vmatpush2.msra.mxu0 0.0
  %4020 = vmatprep.subr.mxu0 0.0
  %4021 = vmatpush2.msra.mxu0 0.0
  %4022 = vmatprep.subr.mxu0 0.0
  %4023 = vmatpush2.msra.mxu0 0.0
  %4024 = vmatprep.subr.mxu0 0.0
  %4025 = vmatpush2.msra.mxu0 0.0
  %4026 = vmatprep.subr.mxu0 0.0
  %4027 = vmatpush2.msra.mxu0 0.0
  %4028 = vmatprep.subr.mxu0 0.0
  %4029 = vmatpush2.msra.mxu0 0.0
  %4030 = vmatprep.subr.mxu0 0.0
  %4031 = vmatpush2.msra.mxu0 0.0
  %4032 = vmatprep.subr.mxu0 0.0
  %4033 = vmatpush2.msra.mxu0 0.0
  %4034 = vmatprep.mubr.f32.mxu0 0.0
  %4035 = vmatmul.mubr.f32.gmra.mxu0 %v3826
  %v4036 = vpop.f32.mrf.mxu0
  %v4037 = vadd.f32 0.0, %v4036
  %v4038 = vpop.f32.mrf.mxu0
  %v4039 = vadd.f32 0.0, %v4038
  %4040 = vdwg.mxu0
  %4041 = vmatprep.subr.mxu0 0.0
  %4042 = vmatpush1.msra.mxu0 0.0
  %4043 = vmatprep.subr.mxu0 0.0
  %4044 = vmatpush1.msra.mxu0 0.0
  %4045 = vmatprep.subr.mxu0 0.0
  %4046 = vmatpush1.msra.mxu0 0.0
  %4047 = vmatprep.subr.mxu0 0.0
  %4048 = vmatpush1.msra.mxu0 0.0
  %4049 = vmatprep.subr.mxu0 0.0
  %4050 = vmatpush1.msra.mxu0 0.0
  %4051 = vmatprep.subr.mxu0 0.0
  %4052 = vmatpush1.msra.mxu0 0.0
  %4053 = vmatprep.subr.mxu0 0.0
  %4054 = vmatpush1.msra.mxu0 0.0
  %4055 = vmatprep.subr.mxu0 0.0
  %4056 = vmatpush1.msra.mxu0 0.0
  %4057 = vmatprep.subr.mxu0 0.0
  %4058 = vmatpush1.msra.mxu0 0.0
  %4059 = vmatprep.subr.mxu0 0.0
  %4060 = vmatpush1.msra.mxu0 0.0
  %4061 = vmatprep.subr.mxu0 0.0
  %4062 = vmatpush1.msra.mxu0 0.0
  %4063 = vmatprep.subr.mxu0 0.0
  %4064 = vmatpush1.msra.mxu0 0.0
  %4065 = vmatprep.subr.mxu0 0.0
  %4066 = vmatpush1.msra.mxu0 0.0
  %4067 = vmatprep.subr.mxu0 0.0
  %4068 = vmatpush1.msra.mxu0 0.0
  %4069 = vmatprep.subr.mxu0 %v3075
  %4070 = vmatpush1.msra.mxu0 %v3074
  %4071 = vmatprep.subr.mxu0 %v3067
  %4072 = vmatpush1.msra.mxu0 %v3066
  %4073 = vmatprep.subr.mxu0 0.0
  %4074 = vmatpush2.msra.mxu0 0.0
  %4075 = vmatprep.subr.mxu0 0.0
  %4076 = vmatpush2.msra.mxu0 0.0
  %4077 = vmatprep.subr.mxu0 0.0
  %4078 = vmatpush2.msra.mxu0 0.0
  %4079 = vmatprep.subr.mxu0 0.0
  %4080 = vmatpush2.msra.mxu0 0.0
  %4081 = vmatprep.subr.mxu0 0.0
  %4082 = vmatpush2.msra.mxu0 0.0
  %4083 = vmatprep.subr.mxu0 0.0
  %4084 = vmatpush2.msra.mxu0 0.0
  %4085 = vmatprep.subr.mxu0 0.0
  %4086 = vmatpush2.msra.mxu0 0.0
  %4087 = vmatprep.subr.mxu0 0.0
  %4088 = vmatpush2.msra.mxu0 0.0
  %4089 = vmatprep.subr.mxu0 0.0
  %4090 = vmatpush2.msra.mxu0 0.0
  %4091 = vmatprep.subr.mxu0 0.0
  %4092 = vmatpush2.msra.mxu0 0.0
  %4093 = vmatprep.subr.mxu0 0.0
  %4094 = vmatpush2.msra.mxu0 0.0
  %4095 = vmatprep.subr.mxu0 0.0
  %4096 = vmatpush2.msra.mxu0 0.0
  %4097 = vmatprep.subr.mxu0 0.0
  %4098 = vmatpush2.msra.mxu0 0.0
  %4099 = vmatprep.subr.mxu0 0.0
  %4100 = vmatpush2.msra.mxu0 0.0
  %4101 = vmatprep.subr.mxu0 0.0
  %4102 = vmatpush2.msra.mxu0 0.0
  %4103 = vmatprep.subr.mxu0 0.0
  %4104 = vmatpush2.msra.mxu0 0.0
  %4105 = vmatprep.mubr.f32.mxu0 0.0
  %4106 = vmatmul.mubr.f32.gmra.mxu0 %v3826
  %v4107 = vpop.f32.mrf.mxu0
  %v4108 = vadd.f32 0.0, %v4107
  %v4109 = vpop.f32.mrf.mxu0
  %v4110 = vadd.f32 0.0, %v4109
  %4111 = vdwg.mxu0
  %v4113 = vsel %vm3788, %v3824, 0
  %4115 = vmatprep.subr.mxu0 0.0
  %4116 = vmatpush1.msra.mxu0 0.0
  %4117 = vmatprep.subr.mxu0 0.0
  %4118 = vmatpush1.msra.mxu0 0.0
  %4119 = vmatprep.subr.mxu0 0.0
  %4120 = vmatpush1.msra.mxu0 0.0
  %4121 = vmatprep.subr.mxu0 0.0
  %4122 = vmatpush1.msra.mxu0 0.0
  %4123 = vmatprep.subr.mxu0 0.0
  %4124 = vmatpush1.msra.mxu0 0.0
  %4125 = vmatprep.subr.mxu0 0.0
  %4126 = vmatpush1.msra.mxu0 0.0
  %4127 = vmatprep.subr.mxu0 0.0
  %4128 = vmatpush1.msra.mxu0 0.0
  %4129 = vmatprep.subr.mxu0 0.0
  %4130 = vmatpush1.msra.mxu0 0.0
  %4131 = vmatprep.subr.mxu0 0.0
  %4132 = vmatpush1.msra.mxu0 0.0
  %4133 = vmatprep.subr.mxu0 0.0
  %4134 = vmatpush1.msra.mxu0 0.0
  %4135 = vmatprep.subr.mxu0 0.0
  %4136 = vmatpush1.msra.mxu0 0.0
  %4137 = vmatprep.subr.mxu0 0.0
  %4138 = vmatpush1.msra.mxu0 0.0
  %4139 = vmatprep.subr.mxu0 0.0
  %4140 = vmatpush1.msra.mxu0 0.0
  %4141 = vmatprep.subr.mxu0 0.0
  %4142 = vmatpush1.msra.mxu0 0.0
  %4143 = vmatprep.subr.mxu0 %v3069
  %4144 = vmatpush1.msra.mxu0 %v3068
  %4145 = vmatprep.subr.mxu0 %v3061
  %4146 = vmatpush1.msra.mxu0 %v3060
  %4147 = vmatprep.subr.mxu0 0.0
  %4148 = vmatpush2.msra.mxu0 0.0
  %4149 = vmatprep.subr.mxu0 0.0
  %4150 = vmatpush2.msra.mxu0 0.0
  %4151 = vmatprep.subr.mxu0 0.0
  %4152 = vmatpush2.msra.mxu0 0.0
  %4153 = vmatprep.subr.mxu0 0.0
  %4154 = vmatpush2.msra.mxu0 0.0
  %4155 = vmatprep.subr.mxu0 0.0
  %4156 = vmatpush2.msra.mxu0 0.0
  %4157 = vmatprep.subr.mxu0 0.0
  %4158 = vmatpush2.msra.mxu0 0.0
  %4159 = vmatprep.subr.mxu0 0.0
  %4160 = vmatpush2.msra.mxu0 0.0
  %4161 = vmatprep.subr.mxu0 0.0
  %4162 = vmatpush2.msra.mxu0 0.0
  %4163 = vmatprep.subr.mxu0 0.0
  %4164 = vmatpush2.msra.mxu0 0.0
  %4165 = vmatprep.subr.mxu0 0.0
  %4166 = vmatpush2.msra.mxu0 0.0
  %4167 = vmatprep.subr.mxu0 0.0
  %4168 = vmatpush2.msra.mxu0 0.0
  %4169 = vmatprep.subr.mxu0 0.0
  %4170 = vmatpush2.msra.mxu0 0.0
  %4171 = vmatprep.subr.mxu0 0.0
  %4172 = vmatpush2.msra.mxu0 0.0
  %4173 = vmatprep.subr.mxu0 0.0
  %4174 = vmatpush2.msra.mxu0 0.0
  %4175 = vmatprep.subr.mxu0 0.0
  %4176 = vmatpush2.msra.mxu0 0.0
  %4177 = vmatprep.subr.mxu0 0.0
  %4178 = vmatpush2.msra.mxu0 0.0
  %4179 = vmatprep.mubr.f32.mxu0 0.0
  %4180 = vmatmul.mubr.f32.gmra.mxu0 %v4113
  %v4181 = vpop.f32.mrf.mxu0
  %v4182 = vadd.f32 0.0, %v4181
  %v4183 = vpop.f32.mrf.mxu0
  %v4184 = vadd.f32 0.0, %v4183
  %4185 = vdwg.mxu0
  %4186 = vmatprep.subr.mxu0 0.0
  %4187 = vmatpush1.msra.mxu0 0.0
  %4188 = vmatprep.subr.mxu0 0.0
  %4189 = vmatpush1.msra.mxu0 0.0
  %4190 = vmatprep.subr.mxu0 0.0
  %4191 = vmatpush1.msra.mxu0 0.0
  %4192 = vmatprep.subr.mxu0 0.0
  %4193 = vmatpush1.msra.mxu0 0.0
  %4194 = vmatprep.subr.mxu0 0.0
  %4195 = vmatpush1.msra.mxu0 0.0
  %4196 = vmatprep.subr.mxu0 0.0
  %4197 = vmatpush1.msra.mxu0 0.0
  %4198 = vmatprep.subr.mxu0 0.0
  %4199 = vmatpush1.msra.mxu0 0.0
  %4200 = vmatprep.subr.mxu0 0.0
  %4201 = vmatpush1.msra.mxu0 0.0
  %4202 = vmatprep.subr.mxu0 0.0
  %4203 = vmatpush1.msra.mxu0 0.0
  %4204 = vmatprep.subr.mxu0 0.0
  %4205 = vmatpush1.msra.mxu0 0.0
  %4206 = vmatprep.subr.mxu0 0.0
  %4207 = vmatpush1.msra.mxu0 0.0
  %4208 = vmatprep.subr.mxu0 0.0
  %4209 = vmatpush1.msra.mxu0 0.0
  %4210 = vmatprep.subr.mxu0 0.0
  %4211 = vmatpush1.msra.mxu0 0.0
  %4212 = vmatprep.subr.mxu0 0.0
  %4213 = vmatpush1.msra.mxu0 0.0
  %4214 = vmatprep.subr.mxu0 %v3071
  %4215 = vmatpush1.msra.mxu0 %v3070
  %4216 = vmatprep.subr.mxu0 %v3063
  %4217 = vmatpush1.msra.mxu0 %v3062
  %4218 = vmatprep.subr.mxu0 0.0
  %4219 = vmatpush2.msra.mxu0 0.0
  %4220 = vmatprep.subr.mxu0 0.0
  %4221 = vmatpush2.msra.mxu0 0.0
  %4222 = vmatprep.subr.mxu0 0.0
  %4223 = vmatpush2.msra.mxu0 0.0
  %4224 = vmatprep.subr.mxu0 0.0
  %4225 = vmatpush2.msra.mxu0 0.0
  %4226 = vmatprep.subr.mxu0 0.0
  %4227 = vmatpush2.msra.mxu0 0.0
  %4228 = vmatprep.subr.mxu0 0.0
  %4229 = vmatpush2.msra.mxu0 0.0
  %4230 = vmatprep.subr.mxu0 0.0
  %4231 = vmatpush2.msra.mxu0 0.0
  %4232 = vmatprep.subr.mxu0 0.0
  %4233 = vmatpush2.msra.mxu0 0.0
  %4234 = vmatprep.subr.mxu0 0.0
  %4235 = vmatpush2.msra.mxu0 0.0
  %4236 = vmatprep.subr.mxu0 0.0
  %4237 = vmatpush2.msra.mxu0 0.0
  %4238 = vmatprep.subr.mxu0 0.0
  %4239 = vmatpush2.msra.mxu0 0.0
  %4240 = vmatprep.subr.mxu0 0.0
  %4241 = vmatpush2.msra.mxu0 0.0
  %4242 = vmatprep.subr.mxu0 0.0
  %4243 = vmatpush2.msra.mxu0 0.0
  %4244 = vmatprep.subr.mxu0 0.0
  %4245 = vmatpush2.msra.mxu0 0.0
  %4246 = vmatprep.subr.mxu0 0.0
  %4247 = vmatpush2.msra.mxu0 0.0
  %4248 = vmatprep.subr.mxu0 0.0
  %4249 = vmatpush2.msra.mxu0 0.0
  %4250 = vmatprep.mubr.f32.mxu0 0.0
  %4251 = vmatmul.mubr.f32.gmra.mxu0 %v4113
  %v4252 = vpop.f32.mrf.mxu0
  %v4253 = vadd.f32 0.0, %v4252
  %v4254 = vpop.f32.mrf.mxu0
  %v4255 = vadd.f32 0.0, %v4254
  %4256 = vdwg.mxu0
  %4257 = vmatprep.subr.mxu0 0.0
  %4258 = vmatpush1.msra.mxu0 0.0
  %4259 = vmatprep.subr.mxu0 0.0
  %4260 = vmatpush1.msra.mxu0 0.0
  %4261 = vmatprep.subr.mxu0 0.0
  %4262 = vmatpush1.msra.mxu0 0.0
  %4263 = vmatprep.subr.mxu0 0.0
  %4264 = vmatpush1.msra.mxu0 0.0
  %4265 = vmatprep.subr.mxu0 0.0
  %4266 = vmatpush1.msra.mxu0 0.0
  %4267 = vmatprep.subr.mxu0 0.0
  %4268 = vmatpush1.msra.mxu0 0.0
  %4269 = vmatprep.subr.mxu0 0.0
  %4270 = vmatpush1.msra.mxu0 0.0
  %4271 = vmatprep.subr.mxu0 0.0
  %4272 = vmatpush1.msra.mxu0 0.0
  %4273 = vmatprep.subr.mxu0 0.0
  %4274 = vmatpush1.msra.mxu0 0.0
  %4275 = vmatprep.subr.mxu0 0.0
  %4276 = vmatpush1.msra.mxu0 0.0
  %4277 = vmatprep.subr.mxu0 0.0
  %4278 = vmatpush1.msra.mxu0 0.0
  %4279 = vmatprep.subr.mxu0 0.0
  %4280 = vmatpush1.msra.mxu0 0.0
  %4281 = vmatprep.subr.mxu0 0.0
  %4282 = vmatpush1.msra.mxu0 0.0
  %4283 = vmatprep.subr.mxu0 0.0
  %4284 = vmatpush1.msra.mxu0 0.0
  %4285 = vmatprep.subr.mxu0 %v3073
  %4286 = vmatpush1.msra.mxu0 %v3072
  %4287 = vmatprep.subr.mxu0 %v3065
  %4288 = vmatpush1.msra.mxu0 %v3064
  %4289 = vmatprep.subr.mxu0 0.0
  %4290 = vmatpush2.msra.mxu0 0.0
  %4291 = vmatprep.subr.mxu0 0.0
  %4292 = vmatpush2.msra.mxu0 0.0
  %4293 = vmatprep.subr.mxu0 0.0
  %4294 = vmatpush2.msra.mxu0 0.0
  %4295 = vmatprep.subr.mxu0 0.0
  %4296 = vmatpush2.msra.mxu0 0.0
  %4297 = vmatprep.subr.mxu0 0.0
  %4298 = vmatpush2.msra.mxu0 0.0
  %4299 = vmatprep.subr.mxu0 0.0
  %4300 = vmatpush2.msra.mxu0 0.0
  %4301 = vmatprep.subr.mxu0 0.0
  %4302 = vmatpush2.msra.mxu0 0.0
  %4303 = vmatprep.subr.mxu0 0.0
  %4304 = vmatpush2.msra.mxu0 0.0
  %4305 = vmatprep.subr.mxu0 0.0
  %4306 = vmatpush2.msra.mxu0 0.0
  %4307 = vmatprep.subr.mxu0 0.0
  %4308 = vmatpush2.msra.mxu0 0.0
  %4309 = vmatprep.subr.mxu0 0.0
  %4310 = vmatpush2.msra.mxu0 0.0
  %4311 = vmatprep.subr.mxu0 0.0
  %4312 = vmatpush2.msra.mxu0 0.0
  %4313 = vmatprep.subr.mxu0 0.0
  %4314 = vmatpush2.msra.mxu0 0.0
  %4315 = vmatprep.subr.mxu0 0.0
  %4316 = vmatpush2.msra.mxu0 0.0
  %4317 = vmatprep.subr.mxu0 0.0
  %4318 = vmatpush2.msra.mxu0 0.0
  %4319 = vmatprep.subr.mxu0 0.0
  %4320 = vmatpush2.msra.mxu0 0.0
  %4321 = vmatprep.mubr.f32.mxu0 0.0
  %4322 = vmatmul.mubr.f32.gmra.mxu0 %v4113
  %v4323 = vpop.f32.mrf.mxu0
  %v4324 = vadd.f32 0.0, %v4323
  %v4325 = vpop.f32.mrf.mxu0
  %v4326 = vadd.f32 0.0, %v4325
  %4327 = vdwg.mxu0
  %4328 = vmatprep.subr.mxu0 0.0
  %4329 = vmatpush1.msra.mxu0 0.0
  %4330 = vmatprep.subr.mxu0 0.0
  %4331 = vmatpush1.msra.mxu0 0.0
  %4332 = vmatprep.subr.mxu0 0.0
  %4333 = vmatpush1.msra.mxu0 0.0
  %4334 = vmatprep.subr.mxu0 0.0
  %4335 = vmatpush1.msra.mxu0 0.0
  %4336 = vmatprep.subr.mxu0 0.0
  %4337 = vmatpush1.msra.mxu0 0.0
  %4338 = vmatprep.subr.mxu0 0.0
  %4339 = vmatpush1.msra.mxu0 0.0
  %4340 = vmatprep.subr.mxu0 0.0
  %4341 = vmatpush1.msra.mxu0 0.0
  %4342 = vmatprep.subr.mxu0 0.0
  %4343 = vmatpush1.msra.mxu0 0.0
  %4344 = vmatprep.subr.mxu0 0.0
  %4345 = vmatpush1.msra.mxu0 0.0
  %4346 = vmatprep.subr.mxu0 0.0
  %4347 = vmatpush1.msra.mxu0 0.0
  %4348 = vmatprep.subr.mxu0 0.0
  %4349 = vmatpush1.msra.mxu0 0.0
  %4350 = vmatprep.subr.mxu0 0.0
  %4351 = vmatpush1.msra.mxu0 0.0
  %4352 = vmatprep.subr.mxu0 0.0
  %4353 = vmatpush1.msra.mxu0 0.0
  %4354 = vmatprep.subr.mxu0 0.0
  %4355 = vmatpush1.msra.mxu0 0.0
  %4356 = vmatprep.subr.mxu0 %v3075
  %4357 = vmatpush1.msra.mxu0 %v3074
  %4358 = vmatprep.subr.mxu0 %v3067
  %4359 = vmatpush1.msra.mxu0 %v3066
  %4360 = vmatprep.subr.mxu0 0.0
  %4361 = vmatpush2.msra.mxu0 0.0
  %4362 = vmatprep.subr.mxu0 0.0
  %4363 = vmatpush2.msra.mxu0 0.0
  %4364 = vmatprep.subr.mxu0 0.0
  %4365 = vmatpush2.msra.mxu0 0.0
  %4366 = vmatprep.subr.mxu0 0.0
  %4367 = vmatpush2.msra.mxu0 0.0
  %4368 = vmatprep.subr.mxu0 0.0
  %4369 = vmatpush2.msra.mxu0 0.0
  %4370 = vmatprep.subr.mxu0 0.0
  %4371 = vmatpush2.msra.mxu0 0.0
  %4372 = vmatprep.subr.mxu0 0.0
  %4373 = vmatpush2.msra.mxu0 0.0
  %4374 = vmatprep.subr.mxu0 0.0
  %4375 = vmatpush2.msra.mxu0 0.0
  %4376 = vmatprep.subr.mxu0 0.0
  %4377 = vmatpush2.msra.mxu0 0.0
  %4378 = vmatprep.subr.mxu0 0.0
  %4379 = vmatpush2.msra.mxu0 0.0
  %4380 = vmatprep.subr.mxu0 0.0
  %4381 = vmatpush2.msra.mxu0 0.0
  %4382 = vmatprep.subr.mxu0 0.0
  %4383 = vmatpush2.msra.mxu0 0.0
  %4384 = vmatprep.subr.mxu0 0.0
  %4385 = vmatpush2.msra.mxu0 0.0
  %4386 = vmatprep.subr.mxu0 0.0
  %4387 = vmatpush2.msra.mxu0 0.0
  %4388 = vmatprep.subr.mxu0 0.0
  %4389 = vmatpush2.msra.mxu0 0.0
  %4390 = vmatprep.subr.mxu0 0.0
  %4391 = vmatpush2.msra.mxu0 0.0
  %4392 = vmatprep.mubr.f32.mxu0 0.0
  %4393 = vmatmul.mubr.f32.gmra.mxu0 %v4113
  %v4394 = vpop.f32.mrf.mxu0
  %v4395 = vadd.f32 0.0, %v4394
  %v4396 = vpop.f32.mrf.mxu0
  %v4397 = vadd.f32 0.0, %v4396
  %4398 = vdwg.mxu0
  %v4399 = vlaneseq
  %v4400 = vshrl.u32 %v4399, 7
  %v4401 = vsub.s32 0, %v4400
  %v4402 = vrot.slane %v3895, %v4401
  %v4403 = vlaneseq
  %v4404 = vshrl.u32 %v4403, 7
  %v4405 = vsub.s32 0, %v4404
  %v4406 = vrot.slane %v3897, %v4405
  %v4407 = vlaneseq
  %v4408 = vshrl.u32 %v4407, 7
  %v4409 = vsub.s32 0, %v4408
  %v4410 = vrot.slane %v3966, %v4409
  %v4411 = vlaneseq
  %v4412 = vshrl.u32 %v4411, 7
  %v4413 = vsub.s32 0, %v4412
  %v4414 = vrot.slane %v3968, %v4413
  %v4415 = vlaneseq
  %v4416 = vshrl.u32 %v4415, 7
  %v4417 = vsub.s32 0, %v4416
  %v4418 = vrot.slane %v4037, %v4417
  %v4419 = vlaneseq
  %v4420 = vshrl.u32 %v4419, 7
  %v4421 = vsub.s32 0, %v4420
  %v4422 = vrot.slane %v4039, %v4421
  %v4423 = vlaneseq
  %v4424 = vshrl.u32 %v4423, 7
  %v4425 = vsub.s32 0, %v4424
  %v4426 = vrot.slane %v4108, %v4425
  %v4427 = vlaneseq
  %v4428 = vshrl.u32 %v4427, 7
  %v4429 = vsub.s32 0, %v4428
  %v4430 = vrot.slane %v4110, %v4429
  %v4431 = vmul.f32 %v2502, %v4402
  %v4432 = vmul.f32 %v2504, %v4406
  %v4433 = vmul.f32 %v2680, %v4410
  %v4434 = vmul.f32 %v2682, %v4414
  %v4435 = vmul.f32 %v2858, %v4418
  %v4436 = vmul.f32 %v2860, %v4422
  %v4437 = vmul.f32 %v3036, %v4426
  %v4438 = vmul.f32 %v3038, %v4430
  %v4439 = vmul.f32 %v2508, %v4402
  %v4440 = vmul.f32 %v2510, %v4406
  %v4441 = vmul.f32 %v2686, %v4410
  %v4442 = vmul.f32 %v2688, %v4414
  %v4443 = vmul.f32 %v2864, %v4418
  %v4444 = vmul.f32 %v2866, %v4422
  %v4445 = vmul.f32 %v3042, %v4426
  %v4446 = vmul.f32 %v3044, %v4430
  %v4447 = vmul.f32 %v2514, %v4402
  %v4448 = vmul.f32 %v2516, %v4406
  %v4449 = vmul.f32 %v2692, %v4410
  %v4450 = vmul.f32 %v2694, %v4414
  %v4451 = vmul.f32 %v2870, %v4418
  %v4452 = vmul.f32 %v2872, %v4422
  %v4453 = vmul.f32 %v3048, %v4426
  %v4454 = vmul.f32 %v3050, %v4430
  %v4455 = vmul.f32 %v2520, %v4402
  %v4456 = vmul.f32 %v2522, %v4406
  %v4457 = vmul.f32 %v2698, %v4410
  %v4458 = vmul.f32 %v2700, %v4414
  %v4459 = vmul.f32 %v2876, %v4418
  %v4460 = vmul.f32 %v2878, %v4422
  %v4461 = vmul.f32 %v3054, %v4426
  %v4462 = vmul.f32 %v3056, %v4430
  %v4463 = vlaneseq
  %v4464 = vshrl.u32 %v4463, 7
  %v4465 = vsub.s32 0, %v4464
  %v4466 = vrot.slane %v4182, %v4465
  %v4467 = vlaneseq
  %v4468 = vshrl.u32 %v4467, 7
  %v4469 = vsub.s32 0, %v4468
  %v4470 = vrot.slane %v4184, %v4469
  %v4471 = vlaneseq
  %v4472 = vshrl.u32 %v4471, 7
  %v4473 = vsub.s32 0, %v4472
  %v4474 = vrot.slane %v4253, %v4473
  %v4475 = vlaneseq
  %v4476 = vshrl.u32 %v4475, 7
  %v4477 = vsub.s32 0, %v4476
  %v4478 = vrot.slane %v4255, %v4477
  %v4479 = vlaneseq
  %v4480 = vshrl.u32 %v4479, 7
  %v4481 = vsub.s32 0, %v4480
  %v4482 = vrot.slane %v4324, %v4481
  %v4483 = vlaneseq
  %v4484 = vshrl.u32 %v4483, 7
  %v4485 = vsub.s32 0, %v4484
  %v4486 = vrot.slane %v4326, %v4485
  %v4487 = vlaneseq
  %v4488 = vshrl.u32 %v4487, 7
  %v4489 = vsub.s32 0, %v4488
  %v4490 = vrot.slane %v4395, %v4489
  %v4491 = vlaneseq
  %v4492 = vshrl.u32 %v4491, 7
  %v4493 = vsub.s32 0, %v4492
  %v4494 = vrot.slane %v4397, %v4493
  %v4495 = vadd.f32 %v4431, %v4466
  %v4496 = vadd.f32 %v4432, %v4470
  %v4497 = vadd.f32 %v4433, %v4474
  %v4498 = vadd.f32 %v4434, %v4478
  %v4499 = vadd.f32 %v4435, %v4482
  %v4500 = vadd.f32 %v4436, %v4486
  %v4501 = vadd.f32 %v4437, %v4490
  %v4502 = vadd.f32 %v4438, %v4494
  %v4503 = vadd.f32 %v4439, %v4466
  %v4504 = vadd.f32 %v4440, %v4470
  %v4505 = vadd.f32 %v4441, %v4474
  %v4506 = vadd.f32 %v4442, %v4478
  %v4507 = vadd.f32 %v4443, %v4482
  %v4508 = vadd.f32 %v4444, %v4486
  %v4509 = vadd.f32 %v4445, %v4490
  %v4510 = vadd.f32 %v4446, %v4494
  %v4511 = vadd.f32 %v4447, %v4466
  %v4512 = vadd.f32 %v4448, %v4470
  %v4513 = vadd.f32 %v4449, %v4474
  %v4514 = vadd.f32 %v4450, %v4478
  %v4515 = vadd.f32 %v4451, %v4482
  %v4516 = vadd.f32 %v4452, %v4486
  %v4517 = vadd.f32 %v4453, %v4490
  %v4518 = vadd.f32 %v4454, %v4494
  %v4519 = vadd.f32 %v4455, %v4466
  %v4520 = vadd.f32 %v4456, %v4470
  %v4521 = vadd.f32 %v4457, %v4474
  %v4522 = vadd.f32 %v4458, %v4478
  %v4523 = vadd.f32 %v4459, %v4482
  %v4524 = vadd.f32 %v4460, %v4486
  %v4525 = vadd.f32 %v4461, %v4490
  %v4526 = vadd.f32 %v4462, %v4494
  %v4527 = vmax.f32 %v4495, 0.0
  %v4528 = vmax.f32 %v4496, 0.0
  %v4529 = vmax.f32 %v4497, 0.0
  %v4530 = vmax.f32 %v4498, 0.0
  %v4531 = vmax.f32 %v4499, 0.0
  %v4532 = vmax.f32 %v4500, 0.0
  %v4533 = vmax.f32 %v4501, 0.0
  %v4534 = vmax.f32 %v4502, 0.0
  %v4535 = vmax.f32 %v4503, 0.0
  %v4536 = vmax.f32 %v4504, 0.0
  %v4537 = vmax.f32 %v4505, 0.0
  %v4538 = vmax.f32 %v4506, 0.0
  %v4539 = vmax.f32 %v4507, 0.0
  %v4540 = vmax.f32 %v4508, 0.0
  %v4541 = vmax.f32 %v4509, 0.0
  %v4542 = vmax.f32 %v4510, 0.0
  %v4543 = vmax.f32 %v4511, 0.0
  %v4544 = vmax.f32 %v4512, 0.0
  %v4545 = vmax.f32 %v4513, 0.0
  %v4546 = vmax.f32 %v4514, 0.0
  %v4547 = vmax.f32 %v4515, 0.0
  %v4548 = vmax.f32 %v4516, 0.0
  %v4549 = vmax.f32 %v4517, 0.0
  %v4550 = vmax.f32 %v4518, 0.0
  %v4551 = vmax.f32 %v4519, 0.0
  %v4552 = vmax.f32 %v4520, 0.0
  %v4553 = vmax.f32 %v4521, 0.0
  %v4554 = vmax.f32 %v4522, 0.0
  %v4555 = vmax.f32 %v4523, 0.0
  %v4556 = vmax.f32 %v4524, 0.0
  %v4557 = vmax.f32 %v4525, 0.0
  %v4558 = vmax.f32 %v4526, 0.0
  %4559 = vst [vmem:[%s13] sm:$0xff] %v4527
  %4560 = vst [vmem:[%s13 + $0x8] sm:$0xff] %v4528
  %4561 = vst [vmem:[%s13 + $0x10] sm:$0xff] %v4529
  %4562 = vst [vmem:[%s13 + $0x18] sm:$0xff] %v4530
  %4563 = vst [vmem:[%s13 + $0x20] sm:$0xff] %v4531
  %4564 = vst [vmem:[%s13 + $0x28] sm:$0xff] %v4532
  %4565 = vst [vmem:[%s13 + $0x30] sm:$0xff] %v4533
  %4566 = vst [vmem:[%s13 + $0x38] sm:$0xff] %v4534
  %4567 = vst [vmem:[%s13 + $0x40] sm:$0xff] %v4535
  %4568 = vst [vmem:[%s13 + $0x48] sm:$0xff] %v4536
  %4569 = vst [vmem:[%s13 + $0x50] sm:$0xff] %v4537
  %4570 = vst [vmem:[%s13 + $0x58] sm:$0xff] %v4538
  %4571 = vst [vmem:[%s13 + $0x60] sm:$0xff] %v4539
  %4572 = vst [vmem:[%s13 + $0x68] sm:$0xff] %v4540
  %4573 = vst [vmem:[%s13 + $0x70] sm:$0xff] %v4541
  %4574 = vst [vmem:[%s13 + $0x78] sm:$0xff] %v4542
  %4575 = vst [vmem:[%s13 + $0x80] sm:$0xff] %v4543
  %4576 = vst [vmem:[%s13 + $0x88] sm:$0xff] %v4544
  %4577 = vst [vmem:[%s13 + $0x90] sm:$0xff] %v4545
  %4578 = vst [vmem:[%s13 + $0x98] sm:$0xff] %v4546
  %4579 = vst [vmem:[%s13 + $0xa0] sm:$0xff] %v4547
  %4580 = vst [vmem:[%s13 + $0xa8] sm:$0xff] %v4548
  %4581 = vst [vmem:[%s13 + $0xb0] sm:$0xff] %v4549
  %4582 = vst [vmem:[%s13 + $0xb8] sm:$0xff] %v4550
  %4583 = vst [vmem:[%s13 + $0xc0] sm:$0xff] %v4551
  %4584 = vst [vmem:[%s13 + $0xc8] sm:$0xff] %v4552
  %4585 = vst [vmem:[%s13 + $0xd0] sm:$0xff] %v4553
  %4586 = vst [vmem:[%s13 + $0xd8] sm:$0xff] %v4554
  %4587 = vst [vmem:[%s13 + $0xe0] sm:$0xff] %v4555
  %4588 = vst [vmem:[%s13 + $0xe8] sm:$0xff] %v4556
  %4589 = vst [vmem:[%s13 + $0xf0] sm:$0xff] %v4557
  %4590 = vst [vmem:[%s13 + $0xf8] sm:$0xff] %v4558
  // Predicated region
  $region54: #{decoder_block_pallas.1} parent=0 // pred_check
    _
  $region55: #{decoder_block_pallas.1} parent=0 // pred_check_branch
    %4592 = sbr.rel (0) target = $region57
  $region56: #{decoder_block_pallas.1} parent=0 // pred_region
    _
  $region57: #{decoder_block_pallas.1} parent=0 // pred_fallthru
    _
  // Predicated region
  $region58: #{decoder_block_pallas.1} parent=0 // pred_check
    _
  $region59: #{decoder_block_pallas.1} parent=0 // pred_check_branch
    %4594 = sbr.rel (0) target = $region61
  $region60: #{decoder_block_pallas.1} parent=0 // pred_region
    _
  $region61: #{decoder_block_pallas.1} parent=0 // pred_fallthru
    _

</llo_original>
